<compile_context>
chip_gen: v7x
topology: tpu7x:2x2x1
jax: 0.10.0
libtpu: 0.0.40
codegen_flags: <defaults>
</compile_context>

<pallas_src>
import jax
import jax.numpy as jnp
from jax.experimental import pallas as pl
from jax.experimental.pallas import tpu as pltpu

_CONV_TILE_ROWS = 1024      # pooled-output rows per grid step (mult. of 16)
_MLP_TILE_ROWS = 256        # batch rows per grid step (mult. of 16)
_PAD = 128                  # lane-dense padding for the MLP head
_NUM_CLASSES = 10
_VMEM_LIMIT = 32 * 1024 * 1024


def _compiler_params():
    return pltpu.CompilerParams(
        dimension_semantics=("parallel",),
        vmem_limit_bytes=_VMEM_LIMIT,
    )


# ---------------------------------------------------------------------------
# Pallas kernels
# ---------------------------------------------------------------------------
def conv_pool_relu_kernel(patches_ref, wt_ref, b_ref, out_ref):
    """conv (single fused matmul) + maxpool(2x2) + bias + relu.

    patches_ref : [4, TILE_M, K]  bf16  (4 = positions inside 2x2 pool window)
    wt_ref      : [K, Cout]       bf16
    b_ref       : [1, Cout]       f32
    out_ref     : [TILE_M, Cout]  bf16
    """
    four, tile_m, k = patches_ref.shape
    cout = wt_ref.shape[1]
    # One long MXU push chain instead of 4 short ones.
    p = patches_ref[...].reshape(four * tile_m, k)
    acc = jnp.dot(p, wt_ref[...], preferred_element_type=jnp.float32)
    acc = acc.reshape(four, tile_m, cout)
    pooled = jnp.max(acc, axis=0)                       # maxpool over window
    out_ref[...] = jnp.maximum(pooled + b_ref[...], 0.0).astype(out_ref.dtype)


def mlp_head_kernel(x_ref, w1t_ref, b1_ref, w2t_ref, b2_ref, out_ref):
    """fc1 + relu + fc2 + log_softmax over 128 padded lanes (10 valid)."""
    h = jnp.dot(x_ref[...], w1t_ref[...], preferred_element_type=jnp.float32)
    h = jnp.maximum(h + b1_ref[...], 0.0)
    # TODO(synk): Dropout2d / F.dropout use eval-mode identity semantics.
    logits = jnp.dot(h.astype(w2t_ref.dtype), w2t_ref[...],
                     preferred_element_type=jnp.float32) + b2_ref[...]
    lane = jax.lax.broadcasted_iota(jnp.int32, logits.shape, 1)
    logits = jnp.where(lane < _NUM_CLASSES, logits, jnp.float32(-1e30))
    mx = jnp.max(logits, axis=1, keepdims=True)
    shifted = logits - mx
    lse = jnp.log(jnp.sum(jnp.exp(shifted), axis=1, keepdims=True))
    out_ref[...] = shifted - lse


# ---------------------------------------------------------------------------
# pallas_call wrappers (gridded, pipelined)
# ---------------------------------------------------------------------------
def conv_pool_relu(patches, wt, b):
    four, m2, k = patches.shape
    cout = wt.shape[1]
    tm = min(m2, _CONV_TILE_ROWS)
    return pl.pallas_call(
        conv_pool_relu_kernel,
        out_shape=jax.ShapeDtypeStruct((m2, cout), jnp.bfloat16),
        grid=(pl.cdiv(m2, tm),),
        in_specs=[
            pl.BlockSpec((four, tm, k), lambda i: (0, i, 0)),
            pl.BlockSpec((k, cout), lambda i: (0, 0)),      # resident weights
            pl.BlockSpec((1, cout), lambda i: (0, 0)),      # resident bias
        ],
        out_specs=pl.BlockSpec((tm, cout), lambda i: (i, 0)),
        compiler_params=_compiler_params(),
    )(patches, wt, b)


def mlp_head(x, w1t, b1, w2t, b2):
    n, d = x.shape
    cpad = w2t.shape[1]
    tn = min(n, _MLP_TILE_ROWS)
    return pl.pallas_call(
        mlp_head_kernel,
        out_shape=jax.ShapeDtypeStruct((n, cpad), jnp.float32),
        grid=(pl.cdiv(n, tn),),
        in_specs=[
            pl.BlockSpec((tn, d), lambda i: (i, 0)),
            pl.BlockSpec(w1t.shape, lambda i: (0, 0)),
            pl.BlockSpec(b1.shape, lambda i: (0, 0)),
            pl.BlockSpec(w2t.shape, lambda i: (0, 0)),
            pl.BlockSpec(b2.shape, lambda i: (0, 0)),
        ],
        out_specs=pl.BlockSpec((tn, cpad), lambda i: (i, 0)),
        compiler_params=_compiler_params(),
    )(x, w1t, b1, w2t, b2)


# ---------------------------------------------------------------------------
# Plain-JAX glue: NHWC im2col + pooling-window arrangement (reshapes/slices)
# ---------------------------------------------------------------------------
def im2col_pool_patches(x, k=5):
    """x: [N, H, W, C] -> ([4, N*(Ho/2)*(Wo/2), C*k*k], (Ho/2, Wo/2)).

    Feature order on the last axis is (cin, kh, kw) to match
    weight.reshape(Cout, Cin*k*k). Valid conv, 2x2 max-pool.
    """
    n, h, w, c = x.shape
    ho, wo = h - k + 1, w - k + 1
    cols = jnp.stack(
        [x[:, i:i + ho, j:j + wo, :] for i in range(k) for j in range(k)],
        axis=-1,
    )                                                 # [N, Ho, Wo, C, k*k]
    cols = cols.reshape(n, ho, wo, c * k * k)
    cols = cols.reshape(n, ho // 2, 2, wo // 2, 2, c * k * k)
    cols = cols.transpose(2, 4, 0, 1, 3, 5)           # [2, 2, N, Ho/2, Wo/2, CKK]
    patches = cols.reshape(4, n * (ho // 2) * (wo // 2), c * k * k)
    return patches, (ho // 2, wo // 2)


def _prep_weights(params):
    """Cast/reshape/pad weights into kernel-friendly (bf16, lane-dense) form."""
    c1w = params["conv1_w"].reshape(10, -1).T.astype(jnp.bfloat16)       # [25, 10]
    c1b = params["conv1_b"].reshape(1, -1).astype(jnp.float32)
    c2w = params["conv2_w"].reshape(20, -1).T.astype(jnp.bfloat16)       # [250, 20]
    c2b = params["conv2_b"].reshape(1, -1).astype(jnp.float32)
    # torch flattens activations as (C=20, H=4, W=4); our NHWC flatten gives
    # (H, W, C), so permute fc1's input dimension to keep exact semantics.
    w1 = params["fc1_w"].reshape(50, 20, 4, 4).transpose(0, 2, 3, 1).reshape(50, 320)
    w1t = jnp.zeros((320, _PAD), jnp.bfloat16).at[:, :50].set(
        w1.T.astype(jnp.bfloat16))
    b1 = jnp.zeros((1, _PAD), jnp.float32).at[:, :50].set(params["fc1_b"])
    w2t = jnp.zeros((_PAD, _PAD), jnp.bfloat16).at[:50, :_NUM_CLASSES].set(
        params["fc2_w"].T.astype(jnp.bfloat16))
    b2 = jnp.zeros((1, _PAD), jnp.float32).at[:, :_NUM_CLASSES].set(params["fc2_b"])
    return c1w, c1b, c2w, c2b, w1t, b1, w2t, b2


def net_forward(x, params):
    """x: [N, 1, 28, 28] float32 -> log-probabilities [N, 10]."""
    n = x.shape[0]
    c1w, c1b, c2w, c2b, w1t, b1, w2t, b2 = _prep_weights(params)

    # NCHW -> NHWC (C=1: pure reshape), bf16 operands for the MXU.
    xh = jnp.transpose(x, (0, 2, 3, 1)).astype(jnp.bfloat16)             # [N,28,28,1]

    # conv1 (1->10, k5) + maxpool2 + relu  (no NCHW round-trip)
    p1, (h1, w1_) = im2col_pool_patches(xh, 5)                           # [4, N*144, 25]
    y1 = conv_pool_relu(p1, c1w, c1b).reshape(n, h1, w1_, 10)            # NHWC

    # conv2 (10->20, k5) + dropout2d(identity) + maxpool2 + relu
    p2, (h2, w2_) = im2col_pool_patches(y1, 5)                           # [4, N*16, 250]
    y2 = conv_pool_relu(p2, c2w, c2b)                                    # [N*16, 20]
    flat = y2.reshape(n, h2 * w2_ * 20)                                  # [N, 320] (h,w,c)

    # fc1 + relu + (dropout identity) + fc2 + log_softmax, 128 padded lanes
    logp = mlp_head(flat, w1t, b1, w2t, b2)                              # [N, 128]
    return logp[:, :_NUM_CLASSES]


# ---------------------------------------------------------------------------
# Reference (pure JAX / XLA, NCHW, f32) and test harness
# ---------------------------------------------------------------------------
def init_params(key):
    ks = jax.random.split(key, 8)
    s = 0.1
    return {
        "conv1_w": s * jax.random.normal(ks[0], (10, 1, 5, 5), jnp.float32),
        "conv1_b": s * jax.random.normal(ks[1], (10,), jnp.float32),
        "conv2_w": s * jax.random.normal(ks[2], (20, 10, 5, 5), jnp.float32),
        "conv2_b": s * jax.random.normal(ks[3], (20,), jnp.float32),
        "fc1_w": s * jax.random.normal(ks[4], (50, 320), jnp.float32),
        "fc1_b": s * jax.random.normal(ks[5], (50,), jnp.float32),
        "fc2_w": s * jax.random.normal(ks[6], (10, 50), jnp.float32),
        "fc2_b": s * jax.random.normal(ks[7], (10,), jnp.float32),
    }


def reference_forward(x, params):
    dn = ("NCHW", "OIHW", "NCHW")
    y = jax.lax.conv_general_dilated(x, params["conv1_w"], (1, 1), "VALID",
                                     dimension_numbers=dn)
    y = y + params["conv1_b"][None, :, None, None]
    y = jax.lax.reduce_window(y, -jnp.inf, jax.lax.max, (1, 1, 2, 2),
                              (1, 1, 2, 2), "VALID")
    y = jnp.maximum(y, 0.0)
    y = jax.lax.conv_general_dilated(y, params["conv2_w"], (1, 1), "VALID",
                                     dimension_numbers=dn)
    y = y + params["conv2_b"][None, :, None, None]
    y = jax.lax.reduce_window(y, -jnp.inf, jax.lax.max, (1, 1, 2, 2),
                              (1, 1, 2, 2), "VALID")
    y = jnp.maximum(y, 0.0)
    flat = y.reshape(y.shape[0], -1)                     # (C, H, W) order
    h = jnp.maximum(flat @ params["fc1_w"].T + params["fc1_b"], 0.0)
    logits = h @ params["fc2_w"].T + params["fc2_b"]
    return jax.nn.log_softmax(logits, axis=1)


if __name__ == "__main__":
    key = jax.random.PRNGKey(0)
    k_x, k_p = jax.random.split(key)
    # MNIST-shaped input implied by fc1 (320 = 20 * 4 * 4 after two conv+pool).
    batch = 8   # N*144 = 1152 rows -> conv1 runs a 2-step pipelined grid
    x = jax.random.normal(k_x, (batch, 1, 28, 28), jnp.float32)
    params = init_params(k_p)

    out = jax.jit(net_forward)(x, params)
    out = jax.block_until_ready(out)

    assert out.shape == (batch, 10), out.shape
    assert bool(jnp.all(jnp.isfinite(out))), "non-finite log-probs"
    row_sums = jnp.sum(jnp.exp(out), axis=1)
    assert bool(jnp.all(jnp.abs(row_sums - 1.0) < 1e-3)), row_sums

    # Compare against a pure-JAX f32 reference (tolerance covers bf16 operands).
    ref = reference_forward(x, params)
    max_err = float(jnp.max(jnp.abs(out - ref)))
    assert max_err < 0.15, f"mismatch vs reference: {max_err}"

    print("KERNEL_OK")
</pallas_src>

<mosaic_0001>
module attributes {stable_mosaic.version = 11 : i64} {
  func.func @conv_pool_relu_kernel(%arg0: i32, %arg1: memref<4x1024x25xbf16, #tpu.memory_space<vmem>>, %arg2: memref<25x10xbf16, #tpu.memory_space<vmem>>, %arg3: memref<1x10xf32, #tpu.memory_space<vmem>>, %arg4: memref<1024x10xbf16, #tpu.memory_space<vmem>>) attributes {dimension_semantics = [#tpu.dimension_semantics<parallel>], iteration_bounds = array<i64: 2>, scalar_prefetch = 0 : i64, scratch_operands = 0 : i64, tpu.core_type = #tpu.core_type<tc>, window_params = [{transform_indices = @transform_0, window_bounds = array<i64: 4, 1024, 25>}, {pipeline_mode = #tpu.pipeline_mode<synchronous>, transform_indices = @transform_1, window_bounds = array<i64: 25, 10>}, {pipeline_mode = #tpu.pipeline_mode<synchronous>, transform_indices = @transform_2, window_bounds = array<i64: 1, 10>}, {transform_indices = @transform_3, window_bounds = array<i64: 1024, 10>}]} {
    %c0 = arith.constant 0 : index
    %c0_0 = arith.constant 0 : index
    %c0_1 = arith.constant 0 : index
    %0 = vector.load %arg1[%c0, %c0_0, %c0_1] : memref<4x1024x25xbf16, #tpu.memory_space<vmem>>, vector<4x1024x25xbf16>
    %1 = vector.shape_cast %0 : vector<4x1024x25xbf16> to vector<4096x25xbf16>
    %c0_2 = arith.constant 0 : index
    %c0_3 = arith.constant 0 : index
    %2 = vector.load %arg2[%c0_2, %c0_3] : memref<25x10xbf16, #tpu.memory_space<vmem>>, vector<25x10xbf16>
    %cst = arith.constant dense<0.000000e+00> : vector<4096x10xf32>
    %3 = tpu.matmul %1, %2, %cst {dimension_numbers = #tpu.dot_dimension_numbers<[1], [0], [0], [1], [0, 0, 1, 1], [], []>} : vector<4096x25xbf16>, vector<25x10xbf16>, vector<4096x10xf32> -> vector<4096x10xf32>
    %4 = vector.shape_cast %3 : vector<4096x10xf32> to vector<4x1024x10xf32>
    %cst_4 = arith.constant dense<0xFF800000> : vector<1024x10xf32>
    %5 = vector.multi_reduction <maximumf>, %4, %cst_4 [0] : vector<4x1024x10xf32> to vector<1024x10xf32>
    %c0_5 = arith.constant 0 : index
    %c0_6 = arith.constant 0 : index
    %6 = vector.load %arg3[%c0_5, %c0_6] : memref<1x10xf32, #tpu.memory_space<vmem>>, vector<1x10xf32>
    %7 = vector.broadcast %6 : vector<1x10xf32> to vector<1024x10xf32>
    %8 = arith.addf %5, %7 : vector<1024x10xf32>
    %cst_7 = arith.constant 0.000000e+00 : f32
    %9 = vector.broadcast %cst_7 : f32 to vector<1024x10xf32>
    %10 = arith.maximumf %8, %9 : vector<1024x10xf32>
    %11 = arith.truncf %10 : vector<1024x10xf32> to vector<1024x10xbf16>
    %c0_8 = arith.constant 0 : index
    %c0_9 = arith.constant 0 : index
    %12 = vector.load %arg4[%c0_8, %c0_9] : memref<1024x10xbf16, #tpu.memory_space<vmem>>, vector<1024x10xbf16>
    tpu.vector_store %arg4[%c0_8, %c0_9], %11 {strides = array<i32>} : memref<1024x10xbf16, #tpu.memory_space<vmem>>, vector<1024x10xbf16>,
    return
  }
  func.func @transform_0(%arg0: i32) -> (i32, i32, i32) {
    %c0_i32 = arith.constant 0 : i32
    %c0_i32_0 = arith.constant 0 : i32
    %c0_i32_1 = arith.constant 0 : i32
    return %c0_i32, %arg0, %c0_i32_0 : i32, i32, i32
  }
  func.func @transform_1(%arg0: i32) -> (i32, i32) {
    %c0_i32 = arith.constant 0 : i32
    %c0_i32_0 = arith.constant 0 : i32
    %c0_i32_1 = arith.constant 0 : i32
    return %c0_i32, %c0_i32_0 : i32, i32
  }
  func.func @transform_2(%arg0: i32) -> (i32, i32) {
    %c0_i32 = arith.constant 0 : i32
    %c0_i32_0 = arith.constant 0 : i32
    %c0_i32_1 = arith.constant 0 : i32
    return %c0_i32, %c0_i32_0 : i32, i32
  }
  func.func @transform_3(%arg0: i32) -> (i32, i32) {
    %c0_i32 = arith.constant 0 : i32
    %c0_i32_0 = arith.constant 0 : i32
    return %arg0, %c0_i32 : i32, i32
  }
}

module attributes {stable_mosaic.version = 11 : i64} {
  func.func @conv_pool_relu_kernel(%arg0: i32, %arg1: memref<4x128x250xbf16, #tpu.memory_space<vmem>>, %arg2: memref<250x20xbf16, #tpu.memory_space<vmem>>, %arg3: memref<1x20xf32, #tpu.memory_space<vmem>>, %arg4: memref<128x20xbf16, #tpu.memory_space<vmem>>) attributes {dimension_semantics = [#tpu.dimension_semantics<parallel>], iteration_bounds = array<i64: 1>, scalar_prefetch = 0 : i64, scratch_operands = 0 : i64, tpu.core_type = #tpu.core_type<tc>, window_params = [{transform_indices = @transform_0, window_bounds = array<i64: 4, 128, 250>}, {pipeline_mode = #tpu.pipeline_mode<synchronous>, transform_indices = @transform_1, window_bounds = array<i64: 250, 20>}, {pipeline_mode = #tpu.pipeline_mode<synchronous>, transform_indices = @transform_2, window_bounds = array<i64: 1, 20>}, {transform_indices = @transform_3, window_bounds = array<i64: 128, 20>}]} {
    %c0 = arith.constant 0 : index
    %c0_0 = arith.constant 0 : index
    %c0_1 = arith.constant 0 : index
    %0 = vector.load %arg1[%c0, %c0_0, %c0_1] : memref<4x128x250xbf16, #tpu.memory_space<vmem>>, vector<4x128x250xbf16>
    %1 = vector.shape_cast %0 : vector<4x128x250xbf16> to vector<512x250xbf16>
    %c0_2 = arith.constant 0 : index
    %c0_3 = arith.constant 0 : index
    %2 = vector.load %arg2[%c0_2, %c0_3] : memref<250x20xbf16, #tpu.memory_space<vmem>>, vector<250x20xbf16>
    %cst = arith.constant dense<0.000000e+00> : vector<512x20xf32>
    %3 = tpu.matmul %1, %2, %cst {dimension_numbers = #tpu.dot_dimension_numbers<[1], [0], [0], [1], [0, 0, 1, 1], [], []>} : vector<512x250xbf16>, vector<250x20xbf16>, vector<512x20xf32> -> vector<512x20xf32>
    %4 = vector.shape_cast %3 : vector<512x20xf32> to vector<4x128x20xf32>
    %cst_4 = arith.constant dense<0xFF800000> : vector<128x20xf32>
    %5 = vector.multi_reduction <maximumf>, %4, %cst_4 [0] : vector<4x128x20xf32> to vector<128x20xf32>
    %c0_5 = arith.constant 0 : index
    %c0_6 = arith.constant 0 : index
    %6 = vector.load %arg3[%c0_5, %c0_6] : memref<1x20xf32, #tpu.memory_space<vmem>>, vector<1x20xf32>
    %7 = vector.broadcast %6 : vector<1x20xf32> to vector<128x20xf32>
    %8 = arith.addf %5, %7 : vector<128x20xf32>
    %cst_7 = arith.constant 0.000000e+00 : f32
    %9 = vector.broadcast %cst_7 : f32 to vector<128x20xf32>
    %10 = arith.maximumf %8, %9 : vector<128x20xf32>
    %11 = arith.truncf %10 : vector<128x20xf32> to vector<128x20xbf16>
    %c0_8 = arith.constant 0 : index
    %c0_9 = arith.constant 0 : index
    %12 = vector.load %arg4[%c0_8, %c0_9] : memref<128x20xbf16, #tpu.memory_space<vmem>>, vector<128x20xbf16>
    tpu.vector_store %arg4[%c0_8, %c0_9], %11 {strides = array<i32>} : memref<128x20xbf16, #tpu.memory_space<vmem>>, vector<128x20xbf16>,
    return
  }
  func.func @transform_0(%arg0: i32) -> (i32, i32, i32) {
    %c0_i32 = arith.constant 0 : i32
    %c0_i32_0 = arith.constant 0 : i32
    %c0_i32_1 = arith.constant 0 : i32
    return %c0_i32, %arg0, %c0_i32_0 : i32, i32, i32
  }
  func.func @transform_1(%arg0: i32) -> (i32, i32) {
    %c0_i32 = arith.constant 0 : i32
    %c0_i32_0 = arith.constant 0 : i32
    %c0_i32_1 = arith.constant 0 : i32
    return %c0_i32, %c0_i32_0 : i32, i32
  }
  func.func @transform_2(%arg0: i32) -> (i32, i32) {
    %c0_i32 = arith.constant 0 : i32
    %c0_i32_0 = arith.constant 0 : i32
    %c0_i32_1 = arith.constant 0 : i32
    return %c0_i32, %c0_i32_0 : i32, i32
  }
  func.func @transform_3(%arg0: i32) -> (i32, i32) {
    %c0_i32 = arith.constant 0 : i32
    %c0_i32_0 = arith.constant 0 : i32
    return %arg0, %c0_i32 : i32, i32
  }
}

module attributes {stable_mosaic.version = 11 : i64} {
  func.func @mlp_head_kernel(%arg0: i32, %arg1: memref<8x320xbf16, #tpu.memory_space<vmem>>, %arg2: memref<320x128xbf16, #tpu.memory_space<vmem>>, %arg3: memref<1x128xf32, #tpu.memory_space<vmem>>, %arg4: memref<128x128xbf16, #tpu.memory_space<vmem>>, %arg5: memref<1x128xf32, #tpu.memory_space<vmem>>, %arg6: memref<8x128xf32, #tpu.memory_space<vmem>>) attributes {dimension_semantics = [#tpu.dimension_semantics<parallel>], iteration_bounds = array<i64: 1>, scalar_prefetch = 0 : i64, scratch_operands = 0 : i64, tpu.core_type = #tpu.core_type<tc>, window_params = [{transform_indices = @transform_0, window_bounds = array<i64: 8, 320>}, {pipeline_mode = #tpu.pipeline_mode<synchronous>, transform_indices = @transform_1, window_bounds = array<i64: 320, 128>}, {pipeline_mode = #tpu.pipeline_mode<synchronous>, transform_indices = @transform_2, window_bounds = array<i64: 1, 128>}, {pipeline_mode = #tpu.pipeline_mode<synchronous>, transform_indices = @transform_3, window_bounds = array<i64: 128, 128>}, {pipeline_mode = #tpu.pipeline_mode<synchronous>, transform_indices = @transform_4, window_bounds = array<i64: 1, 128>}, {transform_indices = @transform_5, window_bounds = array<i64: 8, 128>}]} {
    %c0 = arith.constant 0 : index
    %c0_0 = arith.constant 0 : index
    %0 = vector.load %arg1[%c0, %c0_0] : memref<8x320xbf16, #tpu.memory_space<vmem>>, vector<8x320xbf16>
    %c0_1 = arith.constant 0 : index
    %c0_2 = arith.constant 0 : index
    %1 = vector.load %arg2[%c0_1, %c0_2] : memref<320x128xbf16, #tpu.memory_space<vmem>>, vector<320x128xbf16>
    %cst = arith.constant dense<0.000000e+00> : vector<8x128xf32>
    %2 = tpu.matmul %0, %1, %cst {dimension_numbers = #tpu.dot_dimension_numbers<[1], [0], [0], [1], [0, 0, 1, 1], [], []>} : vector<8x320xbf16>, vector<320x128xbf16>, vector<8x128xf32> -> vector<8x128xf32>
    %c0_3 = arith.constant 0 : index
    %c0_4 = arith.constant 0 : index
    %3 = vector.load %arg3[%c0_3, %c0_4] : memref<1x128xf32, #tpu.memory_space<vmem>>, vector<1x128xf32>
    %4 = vector.broadcast %3 : vector<1x128xf32> to vector<8x128xf32>
    %5 = arith.addf %2, %4 : vector<8x128xf32>
    %cst_5 = arith.constant 0.000000e+00 : f32
    %6 = vector.broadcast %cst_5 : f32 to vector<8x128xf32>
    %7 = arith.maximumf %5, %6 : vector<8x128xf32>
    %8 = arith.truncf %7 : vector<8x128xf32> to vector<8x128xbf16>
    %c0_6 = arith.constant 0 : index
    %c0_7 = arith.constant 0 : index
    %9 = vector.load %arg4[%c0_6, %c0_7] : memref<128x128xbf16, #tpu.memory_space<vmem>>, vector<128x128xbf16>
    %cst_8 = arith.constant dense<0.000000e+00> : vector<8x128xf32>
    %10 = tpu.matmul %8, %9, %cst_8 {dimension_numbers = #tpu.dot_dimension_numbers<[1], [0], [0], [1], [0, 0, 1, 1], [], []>} : vector<8x128xbf16>, vector<128x128xbf16>, vector<8x128xf32> -> vector<8x128xf32>
    %c0_9 = arith.constant 0 : index
    %c0_10 = arith.constant 0 : index
    %11 = vector.load %arg5[%c0_9, %c0_10] : memref<1x128xf32, #tpu.memory_space<vmem>>, vector<1x128xf32>
    %12 = vector.broadcast %11 : vector<1x128xf32> to vector<8x128xf32>
    %13 = arith.addf %10, %12 : vector<8x128xf32>
    %14 = tpu.iota {dimensions = array<i32: 1>} : vector<8x128xi32>
    %c10_i32 = arith.constant 10 : i32
    %15 = vector.broadcast %c10_i32 : i32 to vector<8x128xi32>
    %16 = arith.cmpi slt, %14, %15 : vector<8x128xi32>
    %cst_11 = arith.constant -1.000000e+30 : f32
    %17 = vector.broadcast %cst_11 : f32 to vector<8x128xf32>
    %18 = arith.select %16, %13, %17 : vector<8x128xi1>, vector<8x128xf32>
    %cst_12 = arith.constant dense<0xFF800000> : vector<8xf32>
    %19 = vector.multi_reduction <maximumf>, %18, %cst_12 [1] : vector<8x128xf32> to vector<8xf32>
    %20 = vector.shape_cast %19 : vector<8xf32> to vector<8x1xf32>
    %21 = vector.broadcast %20 : vector<8x1xf32> to vector<8x128xf32>
    %22 = arith.subf %18, %21 : vector<8x128xf32>
    %23 = math.exp %22 : vector<8x128xf32>
    %cst_13 = arith.constant dense<0.000000e+00> : vector<8xf32>
    %24 = vector.multi_reduction <add>, %23, %cst_13 [1] : vector<8x128xf32> to vector<8xf32>
    %25 = vector.shape_cast %24 : vector<8xf32> to vector<8x1xf32>
    %26 = math.log %25 : vector<8x1xf32>
    %27 = vector.broadcast %26 : vector<8x1xf32> to vector<8x128xf32>
    %28 = arith.subf %22, %27 : vector<8x128xf32>
    %c0_14 = arith.constant 0 : index
    %c0_15 = arith.constant 0 : index
    %29 = vector.load %arg6[%c0_14, %c0_15] : memref<8x128xf32, #tpu.memory_space<vmem>>, vector<8x128xf32>
    tpu.vector_store %arg6[%c0_14, %c0_15], %28 {strides = array<i32>} : memref<8x128xf32, #tpu.memory_space<vmem>>, vector<8x128xf32>,
    return
  }
  func.func @transform_0(%arg0: i32) -> (i32, i32) {
    %c0_i32 = arith.constant 0 : i32
    %c0_i32_0 = arith.constant 0 : i32
    return %arg0, %c0_i32 : i32, i32
  }
  func.func @transform_1(%arg0: i32) -> (i32, i32) {
    %c0_i32 = arith.constant 0 : i32
    %c0_i32_0 = arith.constant 0 : i32
    %c0_i32_1 = arith.constant 0 : i32
    return %c0_i32, %c0_i32_0 : i32, i32
  }
  func.func @transform_2(%arg0: i32) -> (i32, i32) {
    %c0_i32 = arith.constant 0 : i32
    %c0_i32_0 = arith.constant 0 : i32
    %c0_i32_1 = arith.constant 0 : i32
    return %c0_i32, %c0_i32_0 : i32, i32
  }
  func.func @transform_3(%arg0: i32) -> (i32, i32) {
    %c0_i32 = arith.constant 0 : i32
    %c0_i32_0 = arith.constant 0 : i32
    %c0_i32_1 = arith.constant 0 : i32
    return %c0_i32, %c0_i32_0 : i32, i32
  }
  func.func @transform_4(%arg0: i32) -> (i32, i32) {
    %c0_i32 = arith.constant 0 : i32
    %c0_i32_0 = arith.constant 0 : i32
    %c0_i32_1 = arith.constant 0 : i32
    return %c0_i32, %c0_i32_0 : i32, i32
  }
  func.func @transform_5(%arg0: i32) -> (i32, i32) {
    %c0_i32 = arith.constant 0 : i32
    %c0_i32_0 = arith.constant 0 : i32
    return %arg0, %c0_i32 : i32, i32
  }
}

</mosaic_0001>

<llo_original>
// kernel: net_forward.3
$region0: #{net_forward.3}
  #allocation0 [shape = 'u32[]', space=smem, size = 0x4, offset = 0x4, fixed_abs, tag = 'smem constant byte address 0x4 - core index']
  #allocation1 [shape = 'u32[144,128]{1,0:T(1,128)}', space=vmem, size = 0x12000, scoped, tag = 'internal scratch']
  %s0 = inlined_call_operand.vmem [shape: bf16[4,1152,25], index: 0, kind: input, shape index: {}]
  %s1 = inlined_call_operand.vmem [shape: bf16[25,10], index: 1, kind: input, shape index: {}]
  %s2 = inlined_call_operand.vmem [shape: f32[1,10], index: 2, kind: input, shape index: {}]
  %s3 = inlined_call_operand.vmem [shape: bf16[1152,10], index: 3, kind: output, shape index: {}]
  %s4 = sld [smem:[#allocation0]]
  $region151: #{net_forward.3} parent=0
    _
  %s6 = ssub.s32 1, %s4
  %s7 = scalar_select 0, %s6, %s4
  $region1: #{net_forward.3} parent=0
    #allocation2 [shape = 'u8[2097152]{0}', space=vmem, size = 0x200000, scoped, tag = 'input window, operand 0']
    #allocation3 [shape = 'u8[524288]{0}', space=vmem, size = 0x80000, scoped, tag = 'output window, operand 0']
    loop: start=0, step=1, limit=4
    $region2: #{net_forward.3} parent=1 // loop_pre_header
      _
    $region3: #{net_forward.3} parent=1 // loop_header
      %s9 = sphi 0, %s13
      %p10 = scmp.ge.s32.totalorder %s9, 4
      %s19 = sphi 0, %s21
      %s22 = sphi 0, %s19
      %s23 = sphi 0, %s22
      %s39 = sphi 0, %s23
      %s43 = sphi 0, %s43
      %s45 = sphi 0, %s43
      %s46 = sphi 0, %s45
      %s60 = sphi 0, %s46
      %s64 = sphi 0, %s64
      %s66 = sphi 0, %s64
      %s67 = sphi 0, %s66
      %s81 = sphi 0, %s67
      %s87 = sphi 0, %s89
      %s90 = sphi 0, %s87
      %s91 = sphi 0, %s90
      %s107 = sphi 0, %s91
    $region4: #{net_forward.3} parent=1 // loop_header_branch
      %12 = sbr.rel (%p10) target = $region8
    $region5: #{net_forward.3} parent=1 // loop_body
      %s14 = ssub.s32 %s9, 1
      %s15 = ssub.s32 %s9, 2
      %s16 = sadd.s32 %s9, 1
      %s17 = ssub.s32 %s9, %s16
      %p18 = scmp.eq.s32.totalorder %s17, 0
      %s20 = sadd.s32 %s19, 1
      %s21 = scalar_select %p18, %s19, %s20
      %p24 = pneg %p18
      %p25 = scmp.eq.s32.totalorder %s9, 1
      %p26 = por %p24, %p25
      %p27 = scmp.ne.s32.totalorder %s19, %s22
      %p28 = scmp.eq.s32.totalorder %s9, 0
      %p29 = por %p27, %p28
      %p30 = scmp.ne.s32.totalorder %s19, %s22
      %p31 = scmp.eq.s32.totalorder %s14, 1
      %p32 = por %p30, %p31
      %p33 = scmp.ne.s32.totalorder %s22, %s23
      %p34 = scmp.eq.s32.totalorder %s14, 0
      %p35 = por %p33, %p34
      %p36 = scmp.ne.s32.totalorder %s22, %s23
      %p37 = scmp.eq.s32.totalorder %s15, 1
      %p38 = por %p36, %p37
      %p40 = scmp.ne.s32.totalorder %s23, %s39
      %p41 = scmp.eq.s32.totalorder %s15, 0
      %p42 = por %p40, %p41
      %s44 = sadd.s32 %s43, 1
      %p47 = scmp.eq.s32.totalorder %s9, 1
      %p48 = scmp.ne.s32.totalorder %s43, %s45
      %p49 = scmp.eq.s32.totalorder %s9, 0
      %p50 = por %p48, %p49
      %p51 = scmp.ne.s32.totalorder %s43, %s45
      %p52 = scmp.eq.s32.totalorder %s14, 1
      %p53 = por %p51, %p52
      %p54 = scmp.ne.s32.totalorder %s45, %s46
      %p55 = scmp.eq.s32.totalorder %s14, 0
      %p56 = por %p54, %p55
      %p57 = scmp.ne.s32.totalorder %s45, %s46
      %p58 = scmp.eq.s32.totalorder %s15, 1
      %p59 = por %p57, %p58
      %p61 = scmp.ne.s32.totalorder %s46, %s60
      %p62 = scmp.eq.s32.totalorder %s15, 0
      %p63 = por %p61, %p62
      %s65 = sadd.s32 %s64, 1
      %p68 = scmp.eq.s32.totalorder %s9, 1
      %p69 = scmp.ne.s32.totalorder %s64, %s66
      %p70 = scmp.eq.s32.totalorder %s9, 0
      %p71 = por %p69, %p70
      %p72 = scmp.ne.s32.totalorder %s64, %s66
      %p73 = scmp.eq.s32.totalorder %s14, 1
      %p74 = por %p72, %p73
      %p75 = scmp.ne.s32.totalorder %s66, %s67
      %p76 = scmp.eq.s32.totalorder %s14, 0
      %p77 = por %p75, %p76
      %p78 = scmp.ne.s32.totalorder %s66, %s67
      %p79 = scmp.eq.s32.totalorder %s15, 1
      %p80 = por %p78, %p79
      %p82 = scmp.ne.s32.totalorder %s67, %s81
      %p83 = scmp.eq.s32.totalorder %s15, 0
      %p84 = por %p82, %p83
      %s85 = ssub.s32 %s9, %s16
      %p86 = scmp.eq.s32.totalorder %s85, 0
      %s88 = sadd.s32 %s87, 1
      %s89 = scalar_select %p86, %s87, %s88
      %p92 = pneg %p86
      %p93 = scmp.eq.s32.totalorder %s9, 1
      %p94 = por %p92, %p93
      %p95 = scmp.ne.s32.totalorder %s87, %s90
      %p96 = scmp.eq.s32.totalorder %s9, 0
      %p97 = por %p95, %p96
      %p98 = scmp.ne.s32.totalorder %s87, %s90
      %p99 = scmp.eq.s32.totalorder %s14, 1
      %p100 = por %p98, %p99
      %p101 = scmp.ne.s32.totalorder %s90, %s91
      %p102 = scmp.eq.s32.totalorder %s14, 0
      %p103 = por %p101, %p102
      %p104 = scmp.ne.s32.totalorder %s90, %s91
      %p105 = scmp.eq.s32.totalorder %s15, 1
      %p106 = por %p104, %p105
      %p108 = scmp.ne.s32.totalorder %s91, %s107
      %p109 = scmp.eq.s32.totalorder %s15, 0
      %p110 = por %p108, %p109
      %p111 = scmp.le.s32.totalorder 1, %s9
      %p112 = scmp.lt.s32.totalorder %s9, 3
      %p113 = pnand %p111, %p112
      %p114 = pneg %p113
      // Predicated region
      $region9: #{net_forward.3} parent=5 // pred_check
        _
      $region10: #{net_forward.3} parent=5 // pred_check_branch
        %116 = sbr.rel (%p113) target = $region12
      $region11: #{net_forward.3} parent=5 // pred_region
        %s117 = ssub.s32 %s9, 1
        // Predicated region
        $region13: #{net_forward.3} parent=11 // pred_check
          %p118 = pneg %p56
        $region14: #{net_forward.3} parent=11 // pred_check_branch
          %120 = sbr.rel (%p118) target = $region16
        $region15: #{net_forward.3} parent=11 // pred_region
          _
        $region16: #{net_forward.3} parent=11 // pred_fallthru
          _
        // Predicated region
        $region17: #{net_forward.3} parent=11 // pred_check
          %p121 = pneg %p77
        $region18: #{net_forward.3} parent=11 // pred_check_branch
          %123 = sbr.rel (%p121) target = $region20
        $region19: #{net_forward.3} parent=11 // pred_region
          _
        $region20: #{net_forward.3} parent=11 // pred_fallthru
          _
      $region12: #{net_forward.3} parent=5 // pred_fallthru
        _
      %p124 = scmp.lt.s32.totalorder %s9, 2
      // Predicated region
      $region21: #{net_forward.3} parent=5 // pred_check
        %p125 = pneg %p124
      $region22: #{net_forward.3} parent=5 // pred_check_branch
        %127 = sbr.rel (%p125) target = $region24
      $region23: #{net_forward.3} parent=5 // pred_region
        // Predicated region
        $region25: #{net_forward.3} parent=23 // pred_check
          %p128 = pneg %p29
        $region26: #{net_forward.3} parent=23 // pred_check_branch
          %130 = sbr.rel (%p128) target = $region28
        $region27: #{net_forward.3} parent=23 // pred_region
          %s131 = sand.u32 %s19, 1
          %s132 = sand.u32 %s19, 1
          %s133 = smul.addr %s132, 2048
          %s134 = scalar_lea.vmem [#allocation2], %s133
          %s135 = smul.u32 128, %s9
          %s136 = ssub.s32 144, %s135
          %p137 = scmp.lt.s32.totalorder %s136, 128
          %s138 = scalar_select %p137, %s136, 128
          %s139 = smul.u32 256, %s138
          %p140 = scmp.ne.s32.totalorder 0, %s139
          %s141 = smul.addr %s135, 4
          %s142 = scalar_lea.vmem %s0, %s141
          // Predicated region
          $region29: #{net_forward.3} parent=27 // pred_check
            %p143 = pneg %p140
          $region30: #{net_forward.3} parent=27 // pred_check_branch
            %145 = sbr.rel (%p143) target = $region32
          $region31: #{net_forward.3} parent=27 // pred_region
            // Predicated region
            $region33: #{net_forward.3} parent=31 // pred_check
              _
            $region34: #{net_forward.3} parent=31 // pred_check_branch
              %147 = sbr.rel target = $region36
            $region35: #{net_forward.3} parent=31 // pred_region
              // Predicated region
              $region55: #{net_forward.3} parent=35 // pred_check
                _
              $region56: #{net_forward.3} parent=35 // pred_check_branch
                %328 = sbr.rel (0) target = $region58
              $region57: #{net_forward.3} parent=35 // pred_region
                %s329 = sshrl.u32 %s138, 5
                // While loop
                $region59: #{net_forward.3} parent=57 // loop_pre_header
                  _
                $region60: #{net_forward.3} parent=57 // loop_header
                  %s331 = sphi 0, %s333
                  %p332 = scmp.ge.s32.totalorder %s331, %s329
                  %s336 = sphi 0, %s341
                  %s337 = sphi %s142, %s344
                  %s338 = sphi %s134, %s345
                $region61: #{net_forward.3} parent=57 // loop_header_branch
                  %335 = sbr.rel (%p332) target = $region65
                $region62: #{net_forward.3} parent=57 // loop_body
                  %s339 = sadd.s32 1, %s336
                  %p340 = scmp.ge.s32.totalorder %s339, %s329
                  %s341 = scalar_select %p340, 0, %s339
                  %s342 = smul.u32 %s341, 128
                  %s343 = smul.u32 %s341, 128
                  %s344 = scalar_lea.vmem %s142, %s342
                  %s345 = scalar_lea.vmem %s134, %s343 [#allocation2]
                $region63: #{net_forward.3} parent=57 // loop_footer
                  %s333 = sadd.s32 %s331, 1
                $region64: #{net_forward.3} parent=57 // loop_footer_branch
                  %330 = sbr.rel target = $region60
                $region65: #{net_forward.3} parent=57 // loop_exit
                  _
                %s346 = sshrl.u32 %s138, 5
                %s347 = sand.u32 %s138, 31
                %s348 = smul.u32 %s346, 32
                %s349 = smul.u32 4, %s348
                %s350 = scalar_lea.vmem %s142, %s349
                %s351 = smul.u32 4, %s348
                %s352 = scalar_lea.vmem %s134, %s351 [#allocation2]
                // While loop
                $region66: #{net_forward.3} parent=57 // loop_pre_header
                  _
                $region67: #{net_forward.3} parent=57 // loop_header
                  %s354 = sphi 0, %s356
                  %p355 = scmp.ge.s32.totalorder %s354, %s347
                  %s359 = sphi 0, %s364
                  %s360 = sphi %s350, %s367
                  %s361 = sphi %s352, %s368
                $region68: #{net_forward.3} parent=57 // loop_header_branch
                  %358 = sbr.rel (%p355) target = $region72
                $region69: #{net_forward.3} parent=57 // loop_body
                  %s362 = sadd.s32 1, %s359
                  %p363 = scmp.ge.s32.totalorder %s362, %s347
                  %s364 = scalar_select %p363, 0, %s362
                  %s365 = smul.u32 %s364, 4
                  %s366 = smul.u32 %s364, 4
                  %s367 = scalar_lea.vmem %s350, %s365
                  %s368 = scalar_lea.vmem %s352, %s366 [#allocation2]
                $region70: #{net_forward.3} parent=57 // loop_footer
                  %s356 = sadd.s32 %s354, 1
                $region71: #{net_forward.3} parent=57 // loop_footer_branch
                  %353 = sbr.rel target = $region67
                $region72: #{net_forward.3} parent=57 // loop_exit
                  _
                %s370 = sshrl.u32 %s138, 4
                // While loop
                $region73: #{net_forward.3} parent=57 // loop_pre_header
                  _
                $region74: #{net_forward.3} parent=57 // loop_header
                  %s372 = sphi 0, %s374
                  %p373 = scmp.ge.s32.totalorder %s372, %s370
                  %s377 = sphi 0, %s510
                  %s378 = sphi %s142, %s513
                  %s379 = sphi %s134, %s514
                $region75: #{net_forward.3} parent=57 // loop_header_branch
                  %376 = sbr.rel (%p373) target = $region79
                $region76: #{net_forward.3} parent=57 // loop_body
                  %v380 = vld [vmem:[%s378] sm:$0xf]
                  %381 = vst [vmem:[%s379] sm:$0xf] %v380
                  %v382 = vld [vmem:[%s378 + $0x4] sm:$0xf]
                  %383 = vst [vmem:[%s379 + $0x4] sm:$0xf] %v382
                  %v384 = vld [vmem:[%s378 + $0x8] sm:$0xf]
                  %385 = vst [vmem:[%s379 + $0x8] sm:$0xf] %v384
                  %v386 = vld [vmem:[%s378 + $0xc] sm:$0xf]
                  %387 = vst [vmem:[%s379 + $0xc] sm:$0xf] %v386
                  %v388 = vld [vmem:[%s378 + $0x10] sm:$0xf]
                  %389 = vst [vmem:[%s379 + $0x10] sm:$0xf] %v388
                  %v390 = vld [vmem:[%s378 + $0x14] sm:$0xf]
                  %391 = vst [vmem:[%s379 + $0x14] sm:$0xf] %v390
                  %v392 = vld [vmem:[%s378 + $0x18] sm:$0xf]
                  %393 = vst [vmem:[%s379 + $0x18] sm:$0xf] %v392
                  %v394 = vld [vmem:[%s378 + $0x1c] sm:$0xf]
                  %395 = vst [vmem:[%s379 + $0x1c] sm:$0xf] %v394
                  %v396 = vld [vmem:[%s378 + $0x20] sm:$0xf]
                  %397 = vst [vmem:[%s379 + $0x20] sm:$0xf] %v396
                  %v398 = vld [vmem:[%s378 + $0x24] sm:$0xf]
                  %399 = vst [vmem:[%s379 + $0x24] sm:$0xf] %v398
                  %v400 = vld [vmem:[%s378 + $0x28] sm:$0xf]
                  %401 = vst [vmem:[%s379 + $0x28] sm:$0xf] %v400
                  %v402 = vld [vmem:[%s378 + $0x2c] sm:$0xf]
                  %403 = vst [vmem:[%s379 + $0x2c] sm:$0xf] %v402
                  %v404 = vld [vmem:[%s378 + $0x30] sm:$0xf]
                  %405 = vst [vmem:[%s379 + $0x30] sm:$0xf] %v404
                  %v406 = vld [vmem:[%s378 + $0x34] sm:$0xf]
                  %407 = vst [vmem:[%s379 + $0x34] sm:$0xf] %v406
                  %v408 = vld [vmem:[%s378 + $0x38] sm:$0xf]
                  %409 = vst [vmem:[%s379 + $0x38] sm:$0xf] %v408
                  %v410 = vld [vmem:[%s378 + $0x3c] sm:$0xf]
                  %411 = vst [vmem:[%s379 + $0x3c] sm:$0xf] %v410
                  %v412 = vld [vmem:[%s378 + $0x240] sm:$0xf]
                  %413 = vst [vmem:[%s379 + $0x200] sm:$0xf] %v412
                  %v414 = vld [vmem:[%s378 + $0x244] sm:$0xf]
                  %415 = vst [vmem:[%s379 + $0x204] sm:$0xf] %v414
                  %v416 = vld [vmem:[%s378 + $0x248] sm:$0xf]
                  %417 = vst [vmem:[%s379 + $0x208] sm:$0xf] %v416
                  %v418 = vld [vmem:[%s378 + $0x24c] sm:$0xf]
                  %419 = vst [vmem:[%s379 + $0x20c] sm:$0xf] %v418
                  %v420 = vld [vmem:[%s378 + $0x250] sm:$0xf]
                  %421 = vst [vmem:[%s379 + $0x210] sm:$0xf] %v420
                  %v422 = vld [vmem:[%s378 + $0x254] sm:$0xf]
                  %423 = vst [vmem:[%s379 + $0x214] sm:$0xf] %v422
                  %v424 = vld [vmem:[%s378 + $0x258] sm:$0xf]
                  %425 = vst [vmem:[%s379 + $0x218] sm:$0xf] %v424
                  %v426 = vld [vmem:[%s378 + $0x25c] sm:$0xf]
                  %427 = vst [vmem:[%s379 + $0x21c] sm:$0xf] %v426
                  %v428 = vld [vmem:[%s378 + $0x260] sm:$0xf]
                  %429 = vst [vmem:[%s379 + $0x220] sm:$0xf] %v428
                  %v430 = vld [vmem:[%s378 + $0x264] sm:$0xf]
                  %431 = vst [vmem:[%s379 + $0x224] sm:$0xf] %v430
                  %v432 = vld [vmem:[%s378 + $0x268] sm:$0xf]
                  %433 = vst [vmem:[%s379 + $0x228] sm:$0xf] %v432
                  %v434 = vld [vmem:[%s378 + $0x26c] sm:$0xf]
                  %435 = vst [vmem:[%s379 + $0x22c] sm:$0xf] %v434
                  %v436 = vld [vmem:[%s378 + $0x270] sm:$0xf]
                  %437 = vst [vmem:[%s379 + $0x230] sm:$0xf] %v436
                  %v438 = vld [vmem:[%s378 + $0x274] sm:$0xf]
                  %439 = vst [vmem:[%s379 + $0x234] sm:$0xf] %v438
                  %v440 = vld [vmem:[%s378 + $0x278] sm:$0xf]
                  %441 = vst [vmem:[%s379 + $0x238] sm:$0xf] %v440
                  %v442 = vld [vmem:[%s378 + $0x27c] sm:$0xf]
                  %443 = vst [vmem:[%s379 + $0x23c] sm:$0xf] %v442
                  %v444 = vld [vmem:[%s378 + $0x480] sm:$0xf]
                  %445 = vst [vmem:[%s379 + $0x400] sm:$0xf] %v444
                  %v446 = vld [vmem:[%s378 + $0x484] sm:$0xf]
                  %447 = vst [vmem:[%s379 + $0x404] sm:$0xf] %v446
                  %v448 = vld [vmem:[%s378 + $0x488] sm:$0xf]
                  %449 = vst [vmem:[%s379 + $0x408] sm:$0xf] %v448
                  %v450 = vld [vmem:[%s378 + $0x48c] sm:$0xf]
                  %451 = vst [vmem:[%s379 + $0x40c] sm:$0xf] %v450
                  %v452 = vld [vmem:[%s378 + $0x490] sm:$0xf]
                  %453 = vst [vmem:[%s379 + $0x410] sm:$0xf] %v452
                  %v454 = vld [vmem:[%s378 + $0x494] sm:$0xf]
                  %455 = vst [vmem:[%s379 + $0x414] sm:$0xf] %v454
                  %v456 = vld [vmem:[%s378 + $0x498] sm:$0xf]
                  %457 = vst [vmem:[%s379 + $0x418] sm:$0xf] %v456
                  %v458 = vld [vmem:[%s378 + $0x49c] sm:$0xf]
                  %459 = vst [vmem:[%s379 + $0x41c] sm:$0xf] %v458
                  %v460 = vld [vmem:[%s378 + $0x4a0] sm:$0xf]
                  %461 = vst [vmem:[%s379 + $0x420] sm:$0xf] %v460
                  %v462 = vld [vmem:[%s378 + $0x4a4] sm:$0xf]
                  %463 = vst [vmem:[%s379 + $0x424] sm:$0xf] %v462
                  %v464 = vld [vmem:[%s378 + $0x4a8] sm:$0xf]
                  %465 = vst [vmem:[%s379 + $0x428] sm:$0xf] %v464
                  %v466 = vld [vmem:[%s378 + $0x4ac] sm:$0xf]
                  %467 = vst [vmem:[%s379 + $0x42c] sm:$0xf] %v466
                  %v468 = vld [vmem:[%s378 + $0x4b0] sm:$0xf]
                  %469 = vst [vmem:[%s379 + $0x430] sm:$0xf] %v468
                  %v470 = vld [vmem:[%s378 + $0x4b4] sm:$0xf]
                  %471 = vst [vmem:[%s379 + $0x434] sm:$0xf] %v470
                  %v472 = vld [vmem:[%s378 + $0x4b8] sm:$0xf]
                  %473 = vst [vmem:[%s379 + $0x438] sm:$0xf] %v472
                  %v474 = vld [vmem:[%s378 + $0x4bc] sm:$0xf]
                  %475 = vst [vmem:[%s379 + $0x43c] sm:$0xf] %v474
                  %v476 = vld [vmem:[%s378 + $0x6c0] sm:$0xf]
                  %477 = vst [vmem:[%s379 + $0x600] sm:$0xf] %v476
                  %v478 = vld [vmem:[%s378 + $0x6c4] sm:$0xf]
                  %479 = vst [vmem:[%s379 + $0x604] sm:$0xf] %v478
                  %v480 = vld [vmem:[%s378 + $0x6c8] sm:$0xf]
                  %481 = vst [vmem:[%s379 + $0x608] sm:$0xf] %v480
                  %v482 = vld [vmem:[%s378 + $0x6cc] sm:$0xf]
                  %483 = vst [vmem:[%s379 + $0x60c] sm:$0xf] %v482
                  %v484 = vld [vmem:[%s378 + $0x6d0] sm:$0xf]
                  %485 = vst [vmem:[%s379 + $0x610] sm:$0xf] %v484
                  %v486 = vld [vmem:[%s378 + $0x6d4] sm:$0xf]
                  %487 = vst [vmem:[%s379 + $0x614] sm:$0xf] %v486
                  %v488 = vld [vmem:[%s378 + $0x6d8] sm:$0xf]
                  %489 = vst [vmem:[%s379 + $0x618] sm:$0xf] %v488
                  %v490 = vld [vmem:[%s378 + $0x6dc] sm:$0xf]
                  %491 = vst [vmem:[%s379 + $0x61c] sm:$0xf] %v490
                  %v492 = vld [vmem:[%s378 + $0x6e0] sm:$0xf]
                  %493 = vst [vmem:[%s379 + $0x620] sm:$0xf] %v492
                  %v494 = vld [vmem:[%s378 + $0x6e4] sm:$0xf]
                  %495 = vst [vmem:[%s379 + $0x624] sm:$0xf] %v494
                  %v496 = vld [vmem:[%s378 + $0x6e8] sm:$0xf]
                  %497 = vst [vmem:[%s379 + $0x628] sm:$0xf] %v496
                  %v498 = vld [vmem:[%s378 + $0x6ec] sm:$0xf]
                  %499 = vst [vmem:[%s379 + $0x62c] sm:$0xf] %v498
                  %v500 = vld [vmem:[%s378 + $0x6f0] sm:$0xf]
                  %501 = vst [vmem:[%s379 + $0x630] sm:$0xf] %v500
                  %v502 = vld [vmem:[%s378 + $0x6f4] sm:$0xf]
                  %503 = vst [vmem:[%s379 + $0x634] sm:$0xf] %v502
                  %v504 = vld [vmem:[%s378 + $0x6f8] sm:$0xf]
                  %505 = vst [vmem:[%s379 + $0x638] sm:$0xf] %v504
                  %v506 = vld [vmem:[%s378 + $0x6fc] sm:$0xf]
                  %507 = vst [vmem:[%s379 + $0x63c] sm:$0xf] %v506
                  %s508 = sadd.s32 1, %s377
                  %p509 = scmp.ge.s32.totalorder %s508, %s370
                  %s510 = scalar_select %p509, 0, %s508
                  %s511 = smul.u32 %s510, 64
                  %s512 = smul.u32 %s510, 64
                  %s513 = scalar_lea.vmem %s142, %s511
                  %s514 = scalar_lea.vmem %s134, %s512 [#allocation2]
                $region77: #{net_forward.3} parent=57 // loop_footer
                  %s374 = sadd.s32 %s372, 1
                $region78: #{net_forward.3} parent=57 // loop_footer_branch
                  %371 = sbr.rel target = $region74
                $region79: #{net_forward.3} parent=57 // loop_exit
                  _
                %s515 = sshrl.u32 %s138, 4
                %s516 = sand.u32 %s138, 15
                %s517 = smul.u32 %s515, 16
                %s518 = smul.u32 4, %s517
                %s519 = scalar_lea.vmem %s142, %s518
                %s520 = smul.u32 4, %s517
                %s521 = scalar_lea.vmem %s134, %s520 [#allocation2]
                // While loop
                $region80: #{net_forward.3} parent=57 // loop_pre_header
                  _
                $region81: #{net_forward.3} parent=57 // loop_header
                  %s523 = sphi 0, %s525
                  %p524 = scmp.ge.s32.totalorder %s523, %s516
                  %s528 = sphi 0, %s541
                  %s529 = sphi %s519, %s544
                  %s530 = sphi %s521, %s545
                $region82: #{net_forward.3} parent=57 // loop_header_branch
                  %527 = sbr.rel (%p524) target = $region86
                $region83: #{net_forward.3} parent=57 // loop_body
                  %v531 = vld [vmem:[%s529] sm:$0xf]
                  %532 = vst [vmem:[%s530] sm:$0xf] %v531
                  %v533 = vld [vmem:[%s529 + $0x240] sm:$0xf]
                  %534 = vst [vmem:[%s530 + $0x200] sm:$0xf] %v533
                  %v535 = vld [vmem:[%s529 + $0x480] sm:$0xf]
                  %536 = vst [vmem:[%s530 + $0x400] sm:$0xf] %v535
                  %v537 = vld [vmem:[%s529 + $0x6c0] sm:$0xf]
                  %538 = vst [vmem:[%s530 + $0x600] sm:$0xf] %v537
                  %s539 = sadd.s32 1, %s528
                  %p540 = scmp.ge.s32.totalorder %s539, %s516
                  %s541 = scalar_select %p540, 0, %s539
                  %s542 = smul.u32 %s541, 4
                  %s543 = smul.u32 %s541, 4
                  %s544 = scalar_lea.vmem %s519, %s542
                  %s545 = scalar_lea.vmem %s521, %s543 [#allocation2]
                $region84: #{net_forward.3} parent=57 // loop_footer
                  %s525 = sadd.s32 %s523, 1
                $region85: #{net_forward.3} parent=57 // loop_footer_branch
                  %522 = sbr.rel target = $region81
                $region86: #{net_forward.3} parent=57 // loop_exit
                  _
              $region58: #{net_forward.3} parent=35 // pred_fallthru
                _
            $region36: #{net_forward.3} parent=31 // pred_fallthru
              _
            // Predicated region
            $region37: #{net_forward.3} parent=31 // pred_check
              _
            $region38: #{net_forward.3} parent=31 // pred_check_branch
              %149 = sbr.rel (0) target = $region40
            $region39: #{net_forward.3} parent=31 // pred_region
              %s151 = sshrl.u32 %s138, 4
              // While loop
              $region41: #{net_forward.3} parent=39 // loop_pre_header
                _
              $region42: #{net_forward.3} parent=39 // loop_header
                %s153 = sphi 0, %s155
                %p154 = scmp.ge.s32.totalorder %s153, %s151
                %s158 = sphi 0, %s291
                %s159 = sphi %s142, %s294
                %s160 = sphi %s134, %s295
              $region43: #{net_forward.3} parent=39 // loop_header_branch
                %157 = sbr.rel (%p154) target = $region47
              $region44: #{net_forward.3} parent=39 // loop_body
                %v161 = vld [vmem:[%s159] sm:$0xf]
                %162 = vst [vmem:[%s160] sm:$0xf] %v161
                %v163 = vld [vmem:[%s159 + $0x4] sm:$0xf]
                %164 = vst [vmem:[%s160 + $0x4] sm:$0xf] %v163
                %v165 = vld [vmem:[%s159 + $0x8] sm:$0xf]
                %166 = vst [vmem:[%s160 + $0x8] sm:$0xf] %v165
                %v167 = vld [vmem:[%s159 + $0xc] sm:$0xf]
                %168 = vst [vmem:[%s160 + $0xc] sm:$0xf] %v167
                %v169 = vld [vmem:[%s159 + $0x10] sm:$0xf]
                %170 = vst [vmem:[%s160 + $0x10] sm:$0xf] %v169
                %v171 = vld [vmem:[%s159 + $0x14] sm:$0xf]
                %172 = vst [vmem:[%s160 + $0x14] sm:$0xf] %v171
                %v173 = vld [vmem:[%s159 + $0x18] sm:$0xf]
                %174 = vst [vmem:[%s160 + $0x18] sm:$0xf] %v173
                %v175 = vld [vmem:[%s159 + $0x1c] sm:$0xf]
                %176 = vst [vmem:[%s160 + $0x1c] sm:$0xf] %v175
                %v177 = vld [vmem:[%s159 + $0x20] sm:$0xf]
                %178 = vst [vmem:[%s160 + $0x20] sm:$0xf] %v177
                %v179 = vld [vmem:[%s159 + $0x24] sm:$0xf]
                %180 = vst [vmem:[%s160 + $0x24] sm:$0xf] %v179
                %v181 = vld [vmem:[%s159 + $0x28] sm:$0xf]
                %182 = vst [vmem:[%s160 + $0x28] sm:$0xf] %v181
                %v183 = vld [vmem:[%s159 + $0x2c] sm:$0xf]
                %184 = vst [vmem:[%s160 + $0x2c] sm:$0xf] %v183
                %v185 = vld [vmem:[%s159 + $0x30] sm:$0xf]
                %186 = vst [vmem:[%s160 + $0x30] sm:$0xf] %v185
                %v187 = vld [vmem:[%s159 + $0x34] sm:$0xf]
                %188 = vst [vmem:[%s160 + $0x34] sm:$0xf] %v187
                %v189 = vld [vmem:[%s159 + $0x38] sm:$0xf]
                %190 = vst [vmem:[%s160 + $0x38] sm:$0xf] %v189
                %v191 = vld [vmem:[%s159 + $0x3c] sm:$0xf]
                %192 = vst [vmem:[%s160 + $0x3c] sm:$0xf] %v191
                %v193 = vld [vmem:[%s159 + $0x240] sm:$0xf]
                %194 = vst [vmem:[%s160 + $0x200] sm:$0xf] %v193
                %v195 = vld [vmem:[%s159 + $0x244] sm:$0xf]
                %196 = vst [vmem:[%s160 + $0x204] sm:$0xf] %v195
                %v197 = vld [vmem:[%s159 + $0x248] sm:$0xf]
                %198 = vst [vmem:[%s160 + $0x208] sm:$0xf] %v197
                %v199 = vld [vmem:[%s159 + $0x24c] sm:$0xf]
                %200 = vst [vmem:[%s160 + $0x20c] sm:$0xf] %v199
                %v201 = vld [vmem:[%s159 + $0x250] sm:$0xf]
                %202 = vst [vmem:[%s160 + $0x210] sm:$0xf] %v201
                %v203 = vld [vmem:[%s159 + $0x254] sm:$0xf]
                %204 = vst [vmem:[%s160 + $0x214] sm:$0xf] %v203
                %v205 = vld [vmem:[%s159 + $0x258] sm:$0xf]
                %206 = vst [vmem:[%s160 + $0x218] sm:$0xf] %v205
                %v207 = vld [vmem:[%s159 + $0x25c] sm:$0xf]
                %208 = vst [vmem:[%s160 + $0x21c] sm:$0xf] %v207
                %v209 = vld [vmem:[%s159 + $0x260] sm:$0xf]
                %210 = vst [vmem:[%s160 + $0x220] sm:$0xf] %v209
                %v211 = vld [vmem:[%s159 + $0x264] sm:$0xf]
                %212 = vst [vmem:[%s160 + $0x224] sm:$0xf] %v211
                %v213 = vld [vmem:[%s159 + $0x268] sm:$0xf]
                %214 = vst [vmem:[%s160 + $0x228] sm:$0xf] %v213
                %v215 = vld [vmem:[%s159 + $0x26c] sm:$0xf]
                %216 = vst [vmem:[%s160 + $0x22c] sm:$0xf] %v215
                %v217 = vld [vmem:[%s159 + $0x270] sm:$0xf]
                %218 = vst [vmem:[%s160 + $0x230] sm:$0xf] %v217
                %v219 = vld [vmem:[%s159 + $0x274] sm:$0xf]
                %220 = vst [vmem:[%s160 + $0x234] sm:$0xf] %v219
                %v221 = vld [vmem:[%s159 + $0x278] sm:$0xf]
                %222 = vst [vmem:[%s160 + $0x238] sm:$0xf] %v221
                %v223 = vld [vmem:[%s159 + $0x27c] sm:$0xf]
                %224 = vst [vmem:[%s160 + $0x23c] sm:$0xf] %v223
                %v225 = vld [vmem:[%s159 + $0x480] sm:$0xf]
                %226 = vst [vmem:[%s160 + $0x400] sm:$0xf] %v225
                %v227 = vld [vmem:[%s159 + $0x484] sm:$0xf]
                %228 = vst [vmem:[%s160 + $0x404] sm:$0xf] %v227
                %v229 = vld [vmem:[%s159 + $0x488] sm:$0xf]
                %230 = vst [vmem:[%s160 + $0x408] sm:$0xf] %v229
                %v231 = vld [vmem:[%s159 + $0x48c] sm:$0xf]
                %232 = vst [vmem:[%s160 + $0x40c] sm:$0xf] %v231
                %v233 = vld [vmem:[%s159 + $0x490] sm:$0xf]
                %234 = vst [vmem:[%s160 + $0x410] sm:$0xf] %v233
                %v235 = vld [vmem:[%s159 + $0x494] sm:$0xf]
                %236 = vst [vmem:[%s160 + $0x414] sm:$0xf] %v235
                %v237 = vld [vmem:[%s159 + $0x498] sm:$0xf]
                %238 = vst [vmem:[%s160 + $0x418] sm:$0xf] %v237
                %v239 = vld [vmem:[%s159 + $0x49c] sm:$0xf]
                %240 = vst [vmem:[%s160 + $0x41c] sm:$0xf] %v239
                %v241 = vld [vmem:[%s159 + $0x4a0] sm:$0xf]
                %242 = vst [vmem:[%s160 + $0x420] sm:$0xf] %v241
                %v243 = vld [vmem:[%s159 + $0x4a4] sm:$0xf]
                %244 = vst [vmem:[%s160 + $0x424] sm:$0xf] %v243
                %v245 = vld [vmem:[%s159 + $0x4a8] sm:$0xf]
                %246 = vst [vmem:[%s160 + $0x428] sm:$0xf] %v245
                %v247 = vld [vmem:[%s159 + $0x4ac] sm:$0xf]
                %248 = vst [vmem:[%s160 + $0x42c] sm:$0xf] %v247
                %v249 = vld [vmem:[%s159 + $0x4b0] sm:$0xf]
                %250 = vst [vmem:[%s160 + $0x430] sm:$0xf] %v249
                %v251 = vld [vmem:[%s159 + $0x4b4] sm:$0xf]
                %252 = vst [vmem:[%s160 + $0x434] sm:$0xf] %v251
                %v253 = vld [vmem:[%s159 + $0x4b8] sm:$0xf]
                %254 = vst [vmem:[%s160 + $0x438] sm:$0xf] %v253
                %v255 = vld [vmem:[%s159 + $0x4bc] sm:$0xf]
                %256 = vst [vmem:[%s160 + $0x43c] sm:$0xf] %v255
                %v257 = vld [vmem:[%s159 + $0x6c0] sm:$0xf]
                %258 = vst [vmem:[%s160 + $0x600] sm:$0xf] %v257
                %v259 = vld [vmem:[%s159 + $0x6c4] sm:$0xf]
                %260 = vst [vmem:[%s160 + $0x604] sm:$0xf] %v259
                %v261 = vld [vmem:[%s159 + $0x6c8] sm:$0xf]
                %262 = vst [vmem:[%s160 + $0x608] sm:$0xf] %v261
                %v263 = vld [vmem:[%s159 + $0x6cc] sm:$0xf]
                %264 = vst [vmem:[%s160 + $0x60c] sm:$0xf] %v263
                %v265 = vld [vmem:[%s159 + $0x6d0] sm:$0xf]
                %266 = vst [vmem:[%s160 + $0x610] sm:$0xf] %v265
                %v267 = vld [vmem:[%s159 + $0x6d4] sm:$0xf]
                %268 = vst [vmem:[%s160 + $0x614] sm:$0xf] %v267
                %v269 = vld [vmem:[%s159 + $0x6d8] sm:$0xf]
                %270 = vst [vmem:[%s160 + $0x618] sm:$0xf] %v269
                %v271 = vld [vmem:[%s159 + $0x6dc] sm:$0xf]
                %272 = vst [vmem:[%s160 + $0x61c] sm:$0xf] %v271
                %v273 = vld [vmem:[%s159 + $0x6e0] sm:$0xf]
                %274 = vst [vmem:[%s160 + $0x620] sm:$0xf] %v273
                %v275 = vld [vmem:[%s159 + $0x6e4] sm:$0xf]
                %276 = vst [vmem:[%s160 + $0x624] sm:$0xf] %v275
                %v277 = vld [vmem:[%s159 + $0x6e8] sm:$0xf]
                %278 = vst [vmem:[%s160 + $0x628] sm:$0xf] %v277
                %v279 = vld [vmem:[%s159 + $0x6ec] sm:$0xf]
                %280 = vst [vmem:[%s160 + $0x62c] sm:$0xf] %v279
                %v281 = vld [vmem:[%s159 + $0x6f0] sm:$0xf]
                %282 = vst [vmem:[%s160 + $0x630] sm:$0xf] %v281
                %v283 = vld [vmem:[%s159 + $0x6f4] sm:$0xf]
                %284 = vst [vmem:[%s160 + $0x634] sm:$0xf] %v283
                %v285 = vld [vmem:[%s159 + $0x6f8] sm:$0xf]
                %286 = vst [vmem:[%s160 + $0x638] sm:$0xf] %v285
                %v287 = vld [vmem:[%s159 + $0x6fc] sm:$0xf]
                %288 = vst [vmem:[%s160 + $0x63c] sm:$0xf] %v287
                %s289 = sadd.s32 1, %s158
                %p290 = scmp.ge.s32.totalorder %s289, %s151
                %s291 = scalar_select %p290, 0, %s289
                %s292 = smul.u32 %s291, 64
                %s293 = smul.u32 %s291, 64
                %s294 = scalar_lea.vmem %s142, %s292
                %s295 = scalar_lea.vmem %s134, %s293 [#allocation2]
              $region45: #{net_forward.3} parent=39 // loop_footer
                %s155 = sadd.s32 %s153, 1
              $region46: #{net_forward.3} parent=39 // loop_footer_branch
                %152 = sbr.rel target = $region42
              $region47: #{net_forward.3} parent=39 // loop_exit
                _
              %s296 = sshrl.u32 %s138, 4
              %s297 = sand.u32 %s138, 15
              %s298 = smul.u32 %s296, 16
              %s299 = smul.u32 4, %s298
              %s300 = scalar_lea.vmem %s142, %s299
              %s301 = smul.u32 4, %s298
              %s302 = scalar_lea.vmem %s134, %s301 [#allocation2]
              // While loop
              $region48: #{net_forward.3} parent=39 // loop_pre_header
                _
              $region49: #{net_forward.3} parent=39 // loop_header
                %s304 = sphi 0, %s306
                %p305 = scmp.ge.s32.totalorder %s304, %s297
                %s309 = sphi 0, %s322
                %s310 = sphi %s300, %s325
                %s311 = sphi %s302, %s326
              $region50: #{net_forward.3} parent=39 // loop_header_branch
                %308 = sbr.rel (%p305) target = $region54
              $region51: #{net_forward.3} parent=39 // loop_body
                %v312 = vld [vmem:[%s310] sm:$0xf]
                %313 = vst [vmem:[%s311] sm:$0xf] %v312
                %v314 = vld [vmem:[%s310 + $0x240] sm:$0xf]
                %315 = vst [vmem:[%s311 + $0x200] sm:$0xf] %v314
                %v316 = vld [vmem:[%s310 + $0x480] sm:$0xf]
                %317 = vst [vmem:[%s311 + $0x400] sm:$0xf] %v316
                %v318 = vld [vmem:[%s310 + $0x6c0] sm:$0xf]
                %319 = vst [vmem:[%s311 + $0x600] sm:$0xf] %v318
                %s320 = sadd.s32 1, %s309
                %p321 = scmp.ge.s32.totalorder %s320, %s297
                %s322 = scalar_select %p321, 0, %s320
                %s323 = smul.u32 %s322, 4
                %s324 = smul.u32 %s322, 4
                %s325 = scalar_lea.vmem %s300, %s323
                %s326 = scalar_lea.vmem %s302, %s324 [#allocation2]
              $region52: #{net_forward.3} parent=39 // loop_footer
                %s306 = sadd.s32 %s304, 1
              $region53: #{net_forward.3} parent=39 // loop_footer_branch
                %303 = sbr.rel target = $region49
              $region54: #{net_forward.3} parent=39 // loop_exit
                _
            $region40: #{net_forward.3} parent=31 // pred_fallthru
              _
          $region32: #{net_forward.3} parent=27 // pred_fallthru
            _
          %546 = vnop
        $region28: #{net_forward.3} parent=23 // pred_fallthru
          _
      $region24: #{net_forward.3} parent=5 // pred_fallthru
        _
      %p547 = scmp.le.s32.totalorder 1, %s9
      %p548 = scmp.lt.s32.totalorder %s9, 3
      %p549 = pnand %p547, %p548
      %p550 = pneg %p549
      // Predicated region
      $region87: #{net_forward.3} parent=5 // pred_check
        _
      $region88: #{net_forward.3} parent=5 // pred_check_branch
        %552 = sbr.rel (%p549) target = $region90
      $region89: #{net_forward.3} parent=5 // pred_region
        %s553 = ssub.s32 %s9, 1
        %s554 = sand.u32 %s22, 1
        %s555 = sand.u32 %s22, 1
        %s556 = smul.addr %s555, 2048
        %s557 = scalar_lea.vmem [#allocation2], %s556
        // Predicated region
        $region91: #{net_forward.3} parent=89 // pred_check
          %p558 = pneg %p35
        $region92: #{net_forward.3} parent=89 // pred_check_branch
          %560 = sbr.rel (%p558) target = $region94
        $region93: #{net_forward.3} parent=89 // pred_region
          _
        $region94: #{net_forward.3} parent=89 // pred_fallthru
          _
        %s561 = sand.u32 %s22, 1
        %s562 = sand.u32 %s22, 1
        %s563 = smul.addr %s562, 2048
        %s564 = scalar_lea.vmem [#allocation2], %s563
        %p565 = pneg %p35
        %p566 = pneg %p32
        %p567 = pneg %p56
        %p568 = pneg %p53
        %p569 = pneg %p77
        %p570 = pneg %p74
        %p571 = pneg %p103
        %p572 = pneg %p100
        %s573 = sand.u32 %s90, 1
        %s574 = sand.u32 %s90, 1
        %s575 = smul.addr %s574, 512
        %s576 = scalar_lea.vmem [#allocation3], %s575
        %s577 = smul.u32 128, %s14
        %s578 = ssub.s32 144, %s577
        %p579 = scmp.lt.s32.totalorder %s578, 128
        %s580 = scalar_select %p579, %s578, 128
        %s581 = smul.u32 256, %s580
        %s582 = smul.u32 128, %s14
        %s583 = ssub.s32 144, %s582
        %p584 = scmp.lt.s32.totalorder %s583, 128
        %s585 = scalar_select %p584, %s583, 128
        %s586 = smul.u32 64, %s585
        %v588 = vld [vmem:[%s557] sm:$0xf]
        %v589 = vld [vmem:[%s557 + $0x4] sm:$0xf]
        %v590 = vld [vmem:[%s557 + $0x8] sm:$0xf]
        %v591 = vld [vmem:[%s557 + $0xc] sm:$0xf]
        %v592 = vld [vmem:[%s557 + $0x10] sm:$0xf]
        %v593 = vld [vmem:[%s557 + $0x14] sm:$0xf]
        %v594 = vld [vmem:[%s557 + $0x18] sm:$0xf]
        %v595 = vld [vmem:[%s557 + $0x1c] sm:$0xf]
        %v596 = vld [vmem:[%s557 + $0x20] sm:$0xf]
        %v597 = vld [vmem:[%s557 + $0x24] sm:$0xf]
        %v598 = vld [vmem:[%s557 + $0x28] sm:$0xf]
        %v599 = vld [vmem:[%s557 + $0x2c] sm:$0xf]
        %v600 = vld [vmem:[%s557 + $0x30] sm:$0xf]
        %v601 = vld [vmem:[%s557 + $0x34] sm:$0xf]
        %v602 = vld [vmem:[%s557 + $0x38] sm:$0xf]
        %v603 = vld [vmem:[%s557 + $0x3c] sm:$0xf]
        %v604 = vld [vmem:[%s557 + $0x40] sm:$0xf]
        %v605 = vld [vmem:[%s557 + $0x44] sm:$0xf]
        %v606 = vld [vmem:[%s557 + $0x48] sm:$0xf]
        %v607 = vld [vmem:[%s557 + $0x4c] sm:$0xf]
        %v608 = vld [vmem:[%s557 + $0x50] sm:$0xf]
        %v609 = vld [vmem:[%s557 + $0x54] sm:$0xf]
        %v610 = vld [vmem:[%s557 + $0x58] sm:$0xf]
        %v611 = vld [vmem:[%s557 + $0x5c] sm:$0xf]
        %v612 = vld [vmem:[%s557 + $0x60] sm:$0xf]
        %v613 = vld [vmem:[%s557 + $0x64] sm:$0xf]
        %v614 = vld [vmem:[%s557 + $0x68] sm:$0xf]
        %v615 = vld [vmem:[%s557 + $0x6c] sm:$0xf]
        %v616 = vld [vmem:[%s557 + $0x70] sm:$0xf]
        %v617 = vld [vmem:[%s557 + $0x74] sm:$0xf]
        %v618 = vld [vmem:[%s557 + $0x78] sm:$0xf]
        %v619 = vld [vmem:[%s557 + $0x7c] sm:$0xf]
        %v620 = vld [vmem:[%s557 + $0x80] sm:$0xf]
        %v621 = vld [vmem:[%s557 + $0x84] sm:$0xf]
        %v622 = vld [vmem:[%s557 + $0x88] sm:$0xf]
        %v623 = vld [vmem:[%s557 + $0x8c] sm:$0xf]
        %v624 = vld [vmem:[%s557 + $0x90] sm:$0xf]
        %v625 = vld [vmem:[%s557 + $0x94] sm:$0xf]
        %v626 = vld [vmem:[%s557 + $0x98] sm:$0xf]
        %v627 = vld [vmem:[%s557 + $0x9c] sm:$0xf]
        %v628 = vld [vmem:[%s557 + $0xa0] sm:$0xf]
        %v629 = vld [vmem:[%s557 + $0xa4] sm:$0xf]
        %v630 = vld [vmem:[%s557 + $0xa8] sm:$0xf]
        %v631 = vld [vmem:[%s557 + $0xac] sm:$0xf]
        %v632 = vld [vmem:[%s557 + $0xb0] sm:$0xf]
        %v633 = vld [vmem:[%s557 + $0xb4] sm:$0xf]
        %v634 = vld [vmem:[%s557 + $0xb8] sm:$0xf]
        %v635 = vld [vmem:[%s557 + $0xbc] sm:$0xf]
        %v636 = vld [vmem:[%s557 + $0xc0] sm:$0xf]
        %v637 = vld [vmem:[%s557 + $0xc4] sm:$0xf]
        %v638 = vld [vmem:[%s557 + $0xc8] sm:$0xf]
        %v639 = vld [vmem:[%s557 + $0xcc] sm:$0xf]
        %v640 = vld [vmem:[%s557 + $0xd0] sm:$0xf]
        %v641 = vld [vmem:[%s557 + $0xd4] sm:$0xf]
        %v642 = vld [vmem:[%s557 + $0xd8] sm:$0xf]
        %v643 = vld [vmem:[%s557 + $0xdc] sm:$0xf]
        %v644 = vld [vmem:[%s557 + $0xe0] sm:$0xf]
        %v645 = vld [vmem:[%s557 + $0xe4] sm:$0xf]
        %v646 = vld [vmem:[%s557 + $0xe8] sm:$0xf]
        %v647 = vld [vmem:[%s557 + $0xec] sm:$0xf]
        %v648 = vld [vmem:[%s557 + $0xf0] sm:$0xf]
        %v649 = vld [vmem:[%s557 + $0xf4] sm:$0xf]
        %v650 = vld [vmem:[%s557 + $0xf8] sm:$0xf]
        %v651 = vld [vmem:[%s557 + $0xfc] sm:$0xf]
        %v652 = vld [vmem:[%s557 + $0x100] sm:$0xf]
        %v653 = vld [vmem:[%s557 + $0x104] sm:$0xf]
        %v654 = vld [vmem:[%s557 + $0x108] sm:$0xf]
        %v655 = vld [vmem:[%s557 + $0x10c] sm:$0xf]
        %v656 = vld [vmem:[%s557 + $0x110] sm:$0xf]
        %v657 = vld [vmem:[%s557 + $0x114] sm:$0xf]
        %v658 = vld [vmem:[%s557 + $0x118] sm:$0xf]
        %v659 = vld [vmem:[%s557 + $0x11c] sm:$0xf]
        %v660 = vld [vmem:[%s557 + $0x120] sm:$0xf]
        %v661 = vld [vmem:[%s557 + $0x124] sm:$0xf]
        %v662 = vld [vmem:[%s557 + $0x128] sm:$0xf]
        %v663 = vld [vmem:[%s557 + $0x12c] sm:$0xf]
        %v664 = vld [vmem:[%s557 + $0x130] sm:$0xf]
        %v665 = vld [vmem:[%s557 + $0x134] sm:$0xf]
        %v666 = vld [vmem:[%s557 + $0x138] sm:$0xf]
        %v667 = vld [vmem:[%s557 + $0x13c] sm:$0xf]
        %v668 = vld [vmem:[%s557 + $0x140] sm:$0xf]
        %v669 = vld [vmem:[%s557 + $0x144] sm:$0xf]
        %v670 = vld [vmem:[%s557 + $0x148] sm:$0xf]
        %v671 = vld [vmem:[%s557 + $0x14c] sm:$0xf]
        %v672 = vld [vmem:[%s557 + $0x150] sm:$0xf]
        %v673 = vld [vmem:[%s557 + $0x154] sm:$0xf]
        %v674 = vld [vmem:[%s557 + $0x158] sm:$0xf]
        %v675 = vld [vmem:[%s557 + $0x15c] sm:$0xf]
        %v676 = vld [vmem:[%s557 + $0x160] sm:$0xf]
        %v677 = vld [vmem:[%s557 + $0x164] sm:$0xf]
        %v678 = vld [vmem:[%s557 + $0x168] sm:$0xf]
        %v679 = vld [vmem:[%s557 + $0x16c] sm:$0xf]
        %v680 = vld [vmem:[%s557 + $0x170] sm:$0xf]
        %v681 = vld [vmem:[%s557 + $0x174] sm:$0xf]
        %v682 = vld [vmem:[%s557 + $0x178] sm:$0xf]
        %v683 = vld [vmem:[%s557 + $0x17c] sm:$0xf]
        %v684 = vld [vmem:[%s557 + $0x180] sm:$0xf]
        %v685 = vld [vmem:[%s557 + $0x184] sm:$0xf]
        %v686 = vld [vmem:[%s557 + $0x188] sm:$0xf]
        %v687 = vld [vmem:[%s557 + $0x18c] sm:$0xf]
        %v688 = vld [vmem:[%s557 + $0x190] sm:$0xf]
        %v689 = vld [vmem:[%s557 + $0x194] sm:$0xf]
        %v690 = vld [vmem:[%s557 + $0x198] sm:$0xf]
        %v691 = vld [vmem:[%s557 + $0x19c] sm:$0xf]
        %v692 = vld [vmem:[%s557 + $0x1a0] sm:$0xf]
        %v693 = vld [vmem:[%s557 + $0x1a4] sm:$0xf]
        %v694 = vld [vmem:[%s557 + $0x1a8] sm:$0xf]
        %v695 = vld [vmem:[%s557 + $0x1ac] sm:$0xf]
        %v696 = vld [vmem:[%s557 + $0x1b0] sm:$0xf]
        %v697 = vld [vmem:[%s557 + $0x1b4] sm:$0xf]
        %v698 = vld [vmem:[%s557 + $0x1b8] sm:$0xf]
        %v699 = vld [vmem:[%s557 + $0x1bc] sm:$0xf]
        %v700 = vld [vmem:[%s557 + $0x1c0] sm:$0xf]
        %v701 = vld [vmem:[%s557 + $0x1c4] sm:$0xf]
        %v702 = vld [vmem:[%s557 + $0x1c8] sm:$0xf]
        %v703 = vld [vmem:[%s557 + $0x1cc] sm:$0xf]
        %v704 = vld [vmem:[%s557 + $0x1d0] sm:$0xf]
        %v705 = vld [vmem:[%s557 + $0x1d4] sm:$0xf]
        %v706 = vld [vmem:[%s557 + $0x1d8] sm:$0xf]
        %v707 = vld [vmem:[%s557 + $0x1dc] sm:$0xf]
        %v708 = vld [vmem:[%s557 + $0x1e0] sm:$0xf]
        %v709 = vld [vmem:[%s557 + $0x1e4] sm:$0xf]
        %v710 = vld [vmem:[%s557 + $0x1e8] sm:$0xf]
        %v711 = vld [vmem:[%s557 + $0x1ec] sm:$0xf]
        %v712 = vld [vmem:[%s557 + $0x1f0] sm:$0xf]
        %v713 = vld [vmem:[%s557 + $0x1f4] sm:$0xf]
        %v714 = vld [vmem:[%s557 + $0x1f8] sm:$0xf]
        %v715 = vld [vmem:[%s557 + $0x1fc] sm:$0xf]
        %v716 = vld [vmem:[%s557 + $0x200] sm:$0xf]
        %v717 = vld [vmem:[%s557 + $0x204] sm:$0xf]
        %v718 = vld [vmem:[%s557 + $0x208] sm:$0xf]
        %v719 = vld [vmem:[%s557 + $0x20c] sm:$0xf]
        %v720 = vld [vmem:[%s557 + $0x210] sm:$0xf]
        %v721 = vld [vmem:[%s557 + $0x214] sm:$0xf]
        %v722 = vld [vmem:[%s557 + $0x218] sm:$0xf]
        %v723 = vld [vmem:[%s557 + $0x21c] sm:$0xf]
        %v724 = vld [vmem:[%s557 + $0x220] sm:$0xf]
        %v725 = vld [vmem:[%s557 + $0x224] sm:$0xf]
        %v726 = vld [vmem:[%s557 + $0x228] sm:$0xf]
        %v727 = vld [vmem:[%s557 + $0x22c] sm:$0xf]
        %v728 = vld [vmem:[%s557 + $0x230] sm:$0xf]
        %v729 = vld [vmem:[%s557 + $0x234] sm:$0xf]
        %v730 = vld [vmem:[%s557 + $0x238] sm:$0xf]
        %v731 = vld [vmem:[%s557 + $0x23c] sm:$0xf]
        %v732 = vld [vmem:[%s557 + $0x240] sm:$0xf]
        %v733 = vld [vmem:[%s557 + $0x244] sm:$0xf]
        %v734 = vld [vmem:[%s557 + $0x248] sm:$0xf]
        %v735 = vld [vmem:[%s557 + $0x24c] sm:$0xf]
        %v736 = vld [vmem:[%s557 + $0x250] sm:$0xf]
        %v737 = vld [vmem:[%s557 + $0x254] sm:$0xf]
        %v738 = vld [vmem:[%s557 + $0x258] sm:$0xf]
        %v739 = vld [vmem:[%s557 + $0x25c] sm:$0xf]
        %v740 = vld [vmem:[%s557 + $0x260] sm:$0xf]
        %v741 = vld [vmem:[%s557 + $0x264] sm:$0xf]
        %v742 = vld [vmem:[%s557 + $0x268] sm:$0xf]
        %v743 = vld [vmem:[%s557 + $0x26c] sm:$0xf]
        %v744 = vld [vmem:[%s557 + $0x270] sm:$0xf]
        %v745 = vld [vmem:[%s557 + $0x274] sm:$0xf]
        %v746 = vld [vmem:[%s557 + $0x278] sm:$0xf]
        %v747 = vld [vmem:[%s557 + $0x27c] sm:$0xf]
        %v748 = vld [vmem:[%s557 + $0x280] sm:$0xf]
        %v749 = vld [vmem:[%s557 + $0x284] sm:$0xf]
        %v750 = vld [vmem:[%s557 + $0x288] sm:$0xf]
        %v751 = vld [vmem:[%s557 + $0x28c] sm:$0xf]
        %v752 = vld [vmem:[%s557 + $0x290] sm:$0xf]
        %v753 = vld [vmem:[%s557 + $0x294] sm:$0xf]
        %v754 = vld [vmem:[%s557 + $0x298] sm:$0xf]
        %v755 = vld [vmem:[%s557 + $0x29c] sm:$0xf]
        %v756 = vld [vmem:[%s557 + $0x2a0] sm:$0xf]
        %v757 = vld [vmem:[%s557 + $0x2a4] sm:$0xf]
        %v758 = vld [vmem:[%s557 + $0x2a8] sm:$0xf]
        %v759 = vld [vmem:[%s557 + $0x2ac] sm:$0xf]
        %v760 = vld [vmem:[%s557 + $0x2b0] sm:$0xf]
        %v761 = vld [vmem:[%s557 + $0x2b4] sm:$0xf]
        %v762 = vld [vmem:[%s557 + $0x2b8] sm:$0xf]
        %v763 = vld [vmem:[%s557 + $0x2bc] sm:$0xf]
        %v764 = vld [vmem:[%s557 + $0x2c0] sm:$0xf]
        %v765 = vld [vmem:[%s557 + $0x2c4] sm:$0xf]
        %v766 = vld [vmem:[%s557 + $0x2c8] sm:$0xf]
        %v767 = vld [vmem:[%s557 + $0x2cc] sm:$0xf]
        %v768 = vld [vmem:[%s557 + $0x2d0] sm:$0xf]
        %v769 = vld [vmem:[%s557 + $0x2d4] sm:$0xf]
        %v770 = vld [vmem:[%s557 + $0x2d8] sm:$0xf]
        %v771 = vld [vmem:[%s557 + $0x2dc] sm:$0xf]
        %v772 = vld [vmem:[%s557 + $0x2e0] sm:$0xf]
        %v773 = vld [vmem:[%s557 + $0x2e4] sm:$0xf]
        %v774 = vld [vmem:[%s557 + $0x2e8] sm:$0xf]
        %v775 = vld [vmem:[%s557 + $0x2ec] sm:$0xf]
        %v776 = vld [vmem:[%s557 + $0x2f0] sm:$0xf]
        %v777 = vld [vmem:[%s557 + $0x2f4] sm:$0xf]
        %v778 = vld [vmem:[%s557 + $0x2f8] sm:$0xf]
        %v779 = vld [vmem:[%s557 + $0x2fc] sm:$0xf]
        %v780 = vld [vmem:[%s557 + $0x300] sm:$0xf]
        %v781 = vld [vmem:[%s557 + $0x304] sm:$0xf]
        %v782 = vld [vmem:[%s557 + $0x308] sm:$0xf]
        %v783 = vld [vmem:[%s557 + $0x30c] sm:$0xf]
        %v784 = vld [vmem:[%s557 + $0x310] sm:$0xf]
        %v785 = vld [vmem:[%s557 + $0x314] sm:$0xf]
        %v786 = vld [vmem:[%s557 + $0x318] sm:$0xf]
        %v787 = vld [vmem:[%s557 + $0x31c] sm:$0xf]
        %v788 = vld [vmem:[%s557 + $0x320] sm:$0xf]
        %v789 = vld [vmem:[%s557 + $0x324] sm:$0xf]
        %v790 = vld [vmem:[%s557 + $0x328] sm:$0xf]
        %v791 = vld [vmem:[%s557 + $0x32c] sm:$0xf]
        %v792 = vld [vmem:[%s557 + $0x330] sm:$0xf]
        %v793 = vld [vmem:[%s557 + $0x334] sm:$0xf]
        %v794 = vld [vmem:[%s557 + $0x338] sm:$0xf]
        %v795 = vld [vmem:[%s557 + $0x33c] sm:$0xf]
        %v796 = vld [vmem:[%s557 + $0x340] sm:$0xf]
        %v797 = vld [vmem:[%s557 + $0x344] sm:$0xf]
        %v798 = vld [vmem:[%s557 + $0x348] sm:$0xf]
        %v799 = vld [vmem:[%s557 + $0x34c] sm:$0xf]
        %v800 = vld [vmem:[%s557 + $0x350] sm:$0xf]
        %v801 = vld [vmem:[%s557 + $0x354] sm:$0xf]
        %v802 = vld [vmem:[%s557 + $0x358] sm:$0xf]
        %v803 = vld [vmem:[%s557 + $0x35c] sm:$0xf]
        %v804 = vld [vmem:[%s557 + $0x360] sm:$0xf]
        %v805 = vld [vmem:[%s557 + $0x364] sm:$0xf]
        %v806 = vld [vmem:[%s557 + $0x368] sm:$0xf]
        %v807 = vld [vmem:[%s557 + $0x36c] sm:$0xf]
        %v808 = vld [vmem:[%s557 + $0x370] sm:$0xf]
        %v809 = vld [vmem:[%s557 + $0x374] sm:$0xf]
        %v810 = vld [vmem:[%s557 + $0x378] sm:$0xf]
        %v811 = vld [vmem:[%s557 + $0x37c] sm:$0xf]
        %v812 = vld [vmem:[%s557 + $0x380] sm:$0xf]
        %v813 = vld [vmem:[%s557 + $0x384] sm:$0xf]
        %v814 = vld [vmem:[%s557 + $0x388] sm:$0xf]
        %v815 = vld [vmem:[%s557 + $0x38c] sm:$0xf]
        %v816 = vld [vmem:[%s557 + $0x390] sm:$0xf]
        %v817 = vld [vmem:[%s557 + $0x394] sm:$0xf]
        %v818 = vld [vmem:[%s557 + $0x398] sm:$0xf]
        %v819 = vld [vmem:[%s557 + $0x39c] sm:$0xf]
        %v820 = vld [vmem:[%s557 + $0x3a0] sm:$0xf]
        %v821 = vld [vmem:[%s557 + $0x3a4] sm:$0xf]
        %v822 = vld [vmem:[%s557 + $0x3a8] sm:$0xf]
        %v823 = vld [vmem:[%s557 + $0x3ac] sm:$0xf]
        %v824 = vld [vmem:[%s557 + $0x3b0] sm:$0xf]
        %v825 = vld [vmem:[%s557 + $0x3b4] sm:$0xf]
        %v826 = vld [vmem:[%s557 + $0x3b8] sm:$0xf]
        %v827 = vld [vmem:[%s557 + $0x3bc] sm:$0xf]
        %v828 = vld [vmem:[%s557 + $0x3c0] sm:$0xf]
        %v829 = vld [vmem:[%s557 + $0x3c4] sm:$0xf]
        %v830 = vld [vmem:[%s557 + $0x3c8] sm:$0xf]
        %v831 = vld [vmem:[%s557 + $0x3cc] sm:$0xf]
        %v832 = vld [vmem:[%s557 + $0x3d0] sm:$0xf]
        %v833 = vld [vmem:[%s557 + $0x3d4] sm:$0xf]
        %v834 = vld [vmem:[%s557 + $0x3d8] sm:$0xf]
        %v835 = vld [vmem:[%s557 + $0x3dc] sm:$0xf]
        %v836 = vld [vmem:[%s557 + $0x3e0] sm:$0xf]
        %v837 = vld [vmem:[%s557 + $0x3e4] sm:$0xf]
        %v838 = vld [vmem:[%s557 + $0x3e8] sm:$0xf]
        %v839 = vld [vmem:[%s557 + $0x3ec] sm:$0xf]
        %v840 = vld [vmem:[%s557 + $0x3f0] sm:$0xf]
        %v841 = vld [vmem:[%s557 + $0x3f4] sm:$0xf]
        %v842 = vld [vmem:[%s557 + $0x3f8] sm:$0xf]
        %v843 = vld [vmem:[%s557 + $0x3fc] sm:$0xf]
        %v844 = vld [vmem:[%s557 + $0x400] sm:$0xf]
        %v845 = vld [vmem:[%s557 + $0x404] sm:$0xf]
        %v846 = vld [vmem:[%s557 + $0x408] sm:$0xf]
        %v847 = vld [vmem:[%s557 + $0x40c] sm:$0xf]
        %v848 = vld [vmem:[%s557 + $0x410] sm:$0xf]
        %v849 = vld [vmem:[%s557 + $0x414] sm:$0xf]
        %v850 = vld [vmem:[%s557 + $0x418] sm:$0xf]
        %v851 = vld [vmem:[%s557 + $0x41c] sm:$0xf]
        %v852 = vld [vmem:[%s557 + $0x420] sm:$0xf]
        %v853 = vld [vmem:[%s557 + $0x424] sm:$0xf]
        %v854 = vld [vmem:[%s557 + $0x428] sm:$0xf]
        %v855 = vld [vmem:[%s557 + $0x42c] sm:$0xf]
        %v856 = vld [vmem:[%s557 + $0x430] sm:$0xf]
        %v857 = vld [vmem:[%s557 + $0x434] sm:$0xf]
        %v858 = vld [vmem:[%s557 + $0x438] sm:$0xf]
        %v859 = vld [vmem:[%s557 + $0x43c] sm:$0xf]
        %v860 = vld [vmem:[%s557 + $0x440] sm:$0xf]
        %v861 = vld [vmem:[%s557 + $0x444] sm:$0xf]
        %v862 = vld [vmem:[%s557 + $0x448] sm:$0xf]
        %v863 = vld [vmem:[%s557 + $0x44c] sm:$0xf]
        %v864 = vld [vmem:[%s557 + $0x450] sm:$0xf]
        %v865 = vld [vmem:[%s557 + $0x454] sm:$0xf]
        %v866 = vld [vmem:[%s557 + $0x458] sm:$0xf]
        %v867 = vld [vmem:[%s557 + $0x45c] sm:$0xf]
        %v868 = vld [vmem:[%s557 + $0x460] sm:$0xf]
        %v869 = vld [vmem:[%s557 + $0x464] sm:$0xf]
        %v870 = vld [vmem:[%s557 + $0x468] sm:$0xf]
        %v871 = vld [vmem:[%s557 + $0x46c] sm:$0xf]
        %v872 = vld [vmem:[%s557 + $0x470] sm:$0xf]
        %v873 = vld [vmem:[%s557 + $0x474] sm:$0xf]
        %v874 = vld [vmem:[%s557 + $0x478] sm:$0xf]
        %v875 = vld [vmem:[%s557 + $0x47c] sm:$0xf]
        %v876 = vld [vmem:[%s557 + $0x480] sm:$0xf]
        %v877 = vld [vmem:[%s557 + $0x484] sm:$0xf]
        %v878 = vld [vmem:[%s557 + $0x488] sm:$0xf]
        %v879 = vld [vmem:[%s557 + $0x48c] sm:$0xf]
        %v880 = vld [vmem:[%s557 + $0x490] sm:$0xf]
        %v881 = vld [vmem:[%s557 + $0x494] sm:$0xf]
        %v882 = vld [vmem:[%s557 + $0x498] sm:$0xf]
        %v883 = vld [vmem:[%s557 + $0x49c] sm:$0xf]
        %v884 = vld [vmem:[%s557 + $0x4a0] sm:$0xf]
        %v885 = vld [vmem:[%s557 + $0x4a4] sm:$0xf]
        %v886 = vld [vmem:[%s557 + $0x4a8] sm:$0xf]
        %v887 = vld [vmem:[%s557 + $0x4ac] sm:$0xf]
        %v888 = vld [vmem:[%s557 + $0x4b0] sm:$0xf]
        %v889 = vld [vmem:[%s557 + $0x4b4] sm:$0xf]
        %v890 = vld [vmem:[%s557 + $0x4b8] sm:$0xf]
        %v891 = vld [vmem:[%s557 + $0x4bc] sm:$0xf]
        %v892 = vld [vmem:[%s557 + $0x4c0] sm:$0xf]
        %v893 = vld [vmem:[%s557 + $0x4c4] sm:$0xf]
        %v894 = vld [vmem:[%s557 + $0x4c8] sm:$0xf]
        %v895 = vld [vmem:[%s557 + $0x4cc] sm:$0xf]
        %v896 = vld [vmem:[%s557 + $0x4d0] sm:$0xf]
        %v897 = vld [vmem:[%s557 + $0x4d4] sm:$0xf]
        %v898 = vld [vmem:[%s557 + $0x4d8] sm:$0xf]
        %v899 = vld [vmem:[%s557 + $0x4dc] sm:$0xf]
        %v900 = vld [vmem:[%s557 + $0x4e0] sm:$0xf]
        %v901 = vld [vmem:[%s557 + $0x4e4] sm:$0xf]
        %v902 = vld [vmem:[%s557 + $0x4e8] sm:$0xf]
        %v903 = vld [vmem:[%s557 + $0x4ec] sm:$0xf]
        %v904 = vld [vmem:[%s557 + $0x4f0] sm:$0xf]
        %v905 = vld [vmem:[%s557 + $0x4f4] sm:$0xf]
        %v906 = vld [vmem:[%s557 + $0x4f8] sm:$0xf]
        %v907 = vld [vmem:[%s557 + $0x4fc] sm:$0xf]
        %v908 = vld [vmem:[%s557 + $0x500] sm:$0xf]
        %v909 = vld [vmem:[%s557 + $0x504] sm:$0xf]
        %v910 = vld [vmem:[%s557 + $0x508] sm:$0xf]
        %v911 = vld [vmem:[%s557 + $0x50c] sm:$0xf]
        %v912 = vld [vmem:[%s557 + $0x510] sm:$0xf]
        %v913 = vld [vmem:[%s557 + $0x514] sm:$0xf]
        %v914 = vld [vmem:[%s557 + $0x518] sm:$0xf]
        %v915 = vld [vmem:[%s557 + $0x51c] sm:$0xf]
        %v916 = vld [vmem:[%s557 + $0x520] sm:$0xf]
        %v917 = vld [vmem:[%s557 + $0x524] sm:$0xf]
        %v918 = vld [vmem:[%s557 + $0x528] sm:$0xf]
        %v919 = vld [vmem:[%s557 + $0x52c] sm:$0xf]
        %v920 = vld [vmem:[%s557 + $0x530] sm:$0xf]
        %v921 = vld [vmem:[%s557 + $0x534] sm:$0xf]
        %v922 = vld [vmem:[%s557 + $0x538] sm:$0xf]
        %v923 = vld [vmem:[%s557 + $0x53c] sm:$0xf]
        %v924 = vld [vmem:[%s557 + $0x540] sm:$0xf]
        %v925 = vld [vmem:[%s557 + $0x544] sm:$0xf]
        %v926 = vld [vmem:[%s557 + $0x548] sm:$0xf]
        %v927 = vld [vmem:[%s557 + $0x54c] sm:$0xf]
        %v928 = vld [vmem:[%s557 + $0x550] sm:$0xf]
        %v929 = vld [vmem:[%s557 + $0x554] sm:$0xf]
        %v930 = vld [vmem:[%s557 + $0x558] sm:$0xf]
        %v931 = vld [vmem:[%s557 + $0x55c] sm:$0xf]
        %v932 = vld [vmem:[%s557 + $0x560] sm:$0xf]
        %v933 = vld [vmem:[%s557 + $0x564] sm:$0xf]
        %v934 = vld [vmem:[%s557 + $0x568] sm:$0xf]
        %v935 = vld [vmem:[%s557 + $0x56c] sm:$0xf]
        %v936 = vld [vmem:[%s557 + $0x570] sm:$0xf]
        %v937 = vld [vmem:[%s557 + $0x574] sm:$0xf]
        %v938 = vld [vmem:[%s557 + $0x578] sm:$0xf]
        %v939 = vld [vmem:[%s557 + $0x57c] sm:$0xf]
        %v940 = vld [vmem:[%s557 + $0x580] sm:$0xf]
        %v941 = vld [vmem:[%s557 + $0x584] sm:$0xf]
        %v942 = vld [vmem:[%s557 + $0x588] sm:$0xf]
        %v943 = vld [vmem:[%s557 + $0x58c] sm:$0xf]
        %v944 = vld [vmem:[%s557 + $0x590] sm:$0xf]
        %v945 = vld [vmem:[%s557 + $0x594] sm:$0xf]
        %v946 = vld [vmem:[%s557 + $0x598] sm:$0xf]
        %v947 = vld [vmem:[%s557 + $0x59c] sm:$0xf]
        %v948 = vld [vmem:[%s557 + $0x5a0] sm:$0xf]
        %v949 = vld [vmem:[%s557 + $0x5a4] sm:$0xf]
        %v950 = vld [vmem:[%s557 + $0x5a8] sm:$0xf]
        %v951 = vld [vmem:[%s557 + $0x5ac] sm:$0xf]
        %v952 = vld [vmem:[%s557 + $0x5b0] sm:$0xf]
        %v953 = vld [vmem:[%s557 + $0x5b4] sm:$0xf]
        %v954 = vld [vmem:[%s557 + $0x5b8] sm:$0xf]
        %v955 = vld [vmem:[%s557 + $0x5bc] sm:$0xf]
        %v956 = vld [vmem:[%s557 + $0x5c0] sm:$0xf]
        %v957 = vld [vmem:[%s557 + $0x5c4] sm:$0xf]
        %v958 = vld [vmem:[%s557 + $0x5c8] sm:$0xf]
        %v959 = vld [vmem:[%s557 + $0x5cc] sm:$0xf]
        %v960 = vld [vmem:[%s557 + $0x5d0] sm:$0xf]
        %v961 = vld [vmem:[%s557 + $0x5d4] sm:$0xf]
        %v962 = vld [vmem:[%s557 + $0x5d8] sm:$0xf]
        %v963 = vld [vmem:[%s557 + $0x5dc] sm:$0xf]
        %v964 = vld [vmem:[%s557 + $0x5e0] sm:$0xf]
        %v965 = vld [vmem:[%s557 + $0x5e4] sm:$0xf]
        %v966 = vld [vmem:[%s557 + $0x5e8] sm:$0xf]
        %v967 = vld [vmem:[%s557 + $0x5ec] sm:$0xf]
        %v968 = vld [vmem:[%s557 + $0x5f0] sm:$0xf]
        %v969 = vld [vmem:[%s557 + $0x5f4] sm:$0xf]
        %v970 = vld [vmem:[%s557 + $0x5f8] sm:$0xf]
        %v971 = vld [vmem:[%s557 + $0x5fc] sm:$0xf]
        %v972 = vld [vmem:[%s557 + $0x600] sm:$0xf]
        %v973 = vld [vmem:[%s557 + $0x604] sm:$0xf]
        %v974 = vld [vmem:[%s557 + $0x608] sm:$0xf]
        %v975 = vld [vmem:[%s557 + $0x60c] sm:$0xf]
        %v976 = vld [vmem:[%s557 + $0x610] sm:$0xf]
        %v977 = vld [vmem:[%s557 + $0x614] sm:$0xf]
        %v978 = vld [vmem:[%s557 + $0x618] sm:$0xf]
        %v979 = vld [vmem:[%s557 + $0x61c] sm:$0xf]
        %v980 = vld [vmem:[%s557 + $0x620] sm:$0xf]
        %v981 = vld [vmem:[%s557 + $0x624] sm:$0xf]
        %v982 = vld [vmem:[%s557 + $0x628] sm:$0xf]
        %v983 = vld [vmem:[%s557 + $0x62c] sm:$0xf]
        %v984 = vld [vmem:[%s557 + $0x630] sm:$0xf]
        %v985 = vld [vmem:[%s557 + $0x634] sm:$0xf]
        %v986 = vld [vmem:[%s557 + $0x638] sm:$0xf]
        %v987 = vld [vmem:[%s557 + $0x63c] sm:$0xf]
        %v988 = vld [vmem:[%s557 + $0x640] sm:$0xf]
        %v989 = vld [vmem:[%s557 + $0x644] sm:$0xf]
        %v990 = vld [vmem:[%s557 + $0x648] sm:$0xf]
        %v991 = vld [vmem:[%s557 + $0x64c] sm:$0xf]
        %v992 = vld [vmem:[%s557 + $0x650] sm:$0xf]
        %v993 = vld [vmem:[%s557 + $0x654] sm:$0xf]
        %v994 = vld [vmem:[%s557 + $0x658] sm:$0xf]
        %v995 = vld [vmem:[%s557 + $0x65c] sm:$0xf]
        %v996 = vld [vmem:[%s557 + $0x660] sm:$0xf]
        %v997 = vld [vmem:[%s557 + $0x664] sm:$0xf]
        %v998 = vld [vmem:[%s557 + $0x668] sm:$0xf]
        %v999 = vld [vmem:[%s557 + $0x66c] sm:$0xf]
        %v1000 = vld [vmem:[%s557 + $0x670] sm:$0xf]
        %v1001 = vld [vmem:[%s557 + $0x674] sm:$0xf]
        %v1002 = vld [vmem:[%s557 + $0x678] sm:$0xf]
        %v1003 = vld [vmem:[%s557 + $0x67c] sm:$0xf]
        %v1004 = vld [vmem:[%s557 + $0x680] sm:$0xf]
        %v1005 = vld [vmem:[%s557 + $0x684] sm:$0xf]
        %v1006 = vld [vmem:[%s557 + $0x688] sm:$0xf]
        %v1007 = vld [vmem:[%s557 + $0x68c] sm:$0xf]
        %v1008 = vld [vmem:[%s557 + $0x690] sm:$0xf]
        %v1009 = vld [vmem:[%s557 + $0x694] sm:$0xf]
        %v1010 = vld [vmem:[%s557 + $0x698] sm:$0xf]
        %v1011 = vld [vmem:[%s557 + $0x69c] sm:$0xf]
        %v1012 = vld [vmem:[%s557 + $0x6a0] sm:$0xf]
        %v1013 = vld [vmem:[%s557 + $0x6a4] sm:$0xf]
        %v1014 = vld [vmem:[%s557 + $0x6a8] sm:$0xf]
        %v1015 = vld [vmem:[%s557 + $0x6ac] sm:$0xf]
        %v1016 = vld [vmem:[%s557 + $0x6b0] sm:$0xf]
        %v1017 = vld [vmem:[%s557 + $0x6b4] sm:$0xf]
        %v1018 = vld [vmem:[%s557 + $0x6b8] sm:$0xf]
        %v1019 = vld [vmem:[%s557 + $0x6bc] sm:$0xf]
        %v1020 = vld [vmem:[%s557 + $0x6c0] sm:$0xf]
        %v1021 = vld [vmem:[%s557 + $0x6c4] sm:$0xf]
        %v1022 = vld [vmem:[%s557 + $0x6c8] sm:$0xf]
        %v1023 = vld [vmem:[%s557 + $0x6cc] sm:$0xf]
        %v1024 = vld [vmem:[%s557 + $0x6d0] sm:$0xf]
        %v1025 = vld [vmem:[%s557 + $0x6d4] sm:$0xf]
        %v1026 = vld [vmem:[%s557 + $0x6d8] sm:$0xf]
        %v1027 = vld [vmem:[%s557 + $0x6dc] sm:$0xf]
        %v1028 = vld [vmem:[%s557 + $0x6e0] sm:$0xf]
        %v1029 = vld [vmem:[%s557 + $0x6e4] sm:$0xf]
        %v1030 = vld [vmem:[%s557 + $0x6e8] sm:$0xf]
        %v1031 = vld [vmem:[%s557 + $0x6ec] sm:$0xf]
        %v1032 = vld [vmem:[%s557 + $0x6f0] sm:$0xf]
        %v1033 = vld [vmem:[%s557 + $0x6f4] sm:$0xf]
        %v1034 = vld [vmem:[%s557 + $0x6f8] sm:$0xf]
        %v1035 = vld [vmem:[%s557 + $0x6fc] sm:$0xf]
        %v1036 = vld [vmem:[%s557 + $0x700] sm:$0xf]
        %v1037 = vld [vmem:[%s557 + $0x704] sm:$0xf]
        %v1038 = vld [vmem:[%s557 + $0x708] sm:$0xf]
        %v1039 = vld [vmem:[%s557 + $0x70c] sm:$0xf]
        %v1040 = vld [vmem:[%s557 + $0x710] sm:$0xf]
        %v1041 = vld [vmem:[%s557 + $0x714] sm:$0xf]
        %v1042 = vld [vmem:[%s557 + $0x718] sm:$0xf]
        %v1043 = vld [vmem:[%s557 + $0x71c] sm:$0xf]
        %v1044 = vld [vmem:[%s557 + $0x720] sm:$0xf]
        %v1045 = vld [vmem:[%s557 + $0x724] sm:$0xf]
        %v1046 = vld [vmem:[%s557 + $0x728] sm:$0xf]
        %v1047 = vld [vmem:[%s557 + $0x72c] sm:$0xf]
        %v1048 = vld [vmem:[%s557 + $0x730] sm:$0xf]
        %v1049 = vld [vmem:[%s557 + $0x734] sm:$0xf]
        %v1050 = vld [vmem:[%s557 + $0x738] sm:$0xf]
        %v1051 = vld [vmem:[%s557 + $0x73c] sm:$0xf]
        %v1052 = vld [vmem:[%s557 + $0x740] sm:$0xf]
        %v1053 = vld [vmem:[%s557 + $0x744] sm:$0xf]
        %v1054 = vld [vmem:[%s557 + $0x748] sm:$0xf]
        %v1055 = vld [vmem:[%s557 + $0x74c] sm:$0xf]
        %v1056 = vld [vmem:[%s557 + $0x750] sm:$0xf]
        %v1057 = vld [vmem:[%s557 + $0x754] sm:$0xf]
        %v1058 = vld [vmem:[%s557 + $0x758] sm:$0xf]
        %v1059 = vld [vmem:[%s557 + $0x75c] sm:$0xf]
        %v1060 = vld [vmem:[%s557 + $0x760] sm:$0xf]
        %v1061 = vld [vmem:[%s557 + $0x764] sm:$0xf]
        %v1062 = vld [vmem:[%s557 + $0x768] sm:$0xf]
        %v1063 = vld [vmem:[%s557 + $0x76c] sm:$0xf]
        %v1064 = vld [vmem:[%s557 + $0x770] sm:$0xf]
        %v1065 = vld [vmem:[%s557 + $0x774] sm:$0xf]
        %v1066 = vld [vmem:[%s557 + $0x778] sm:$0xf]
        %v1067 = vld [vmem:[%s557 + $0x77c] sm:$0xf]
        %v1068 = vld [vmem:[%s557 + $0x780] sm:$0xf]
        %v1069 = vld [vmem:[%s557 + $0x784] sm:$0xf]
        %v1070 = vld [vmem:[%s557 + $0x788] sm:$0xf]
        %v1071 = vld [vmem:[%s557 + $0x78c] sm:$0xf]
        %v1072 = vld [vmem:[%s557 + $0x790] sm:$0xf]
        %v1073 = vld [vmem:[%s557 + $0x794] sm:$0xf]
        %v1074 = vld [vmem:[%s557 + $0x798] sm:$0xf]
        %v1075 = vld [vmem:[%s557 + $0x79c] sm:$0xf]
        %v1076 = vld [vmem:[%s557 + $0x7a0] sm:$0xf]
        %v1077 = vld [vmem:[%s557 + $0x7a4] sm:$0xf]
        %v1078 = vld [vmem:[%s557 + $0x7a8] sm:$0xf]
        %v1079 = vld [vmem:[%s557 + $0x7ac] sm:$0xf]
        %v1080 = vld [vmem:[%s557 + $0x7b0] sm:$0xf]
        %v1081 = vld [vmem:[%s557 + $0x7b4] sm:$0xf]
        %v1082 = vld [vmem:[%s557 + $0x7b8] sm:$0xf]
        %v1083 = vld [vmem:[%s557 + $0x7bc] sm:$0xf]
        %v1084 = vld [vmem:[%s557 + $0x7c0] sm:$0xf]
        %v1085 = vld [vmem:[%s557 + $0x7c4] sm:$0xf]
        %v1086 = vld [vmem:[%s557 + $0x7c8] sm:$0xf]
        %v1087 = vld [vmem:[%s557 + $0x7cc] sm:$0xf]
        %v1088 = vld [vmem:[%s557 + $0x7d0] sm:$0xf]
        %v1089 = vld [vmem:[%s557 + $0x7d4] sm:$0xf]
        %v1090 = vld [vmem:[%s557 + $0x7d8] sm:$0xf]
        %v1091 = vld [vmem:[%s557 + $0x7dc] sm:$0xf]
        %v1092 = vld [vmem:[%s557 + $0x7e0] sm:$0xf]
        %v1093 = vld [vmem:[%s557 + $0x7e4] sm:$0xf]
        %v1094 = vld [vmem:[%s557 + $0x7e8] sm:$0xf]
        %v1095 = vld [vmem:[%s557 + $0x7ec] sm:$0xf]
        %v1096 = vld [vmem:[%s557 + $0x7f0] sm:$0xf]
        %v1097 = vld [vmem:[%s557 + $0x7f4] sm:$0xf]
        %v1098 = vld [vmem:[%s557 + $0x7f8] sm:$0xf]
        %v1099 = vld [vmem:[%s557 + $0x7fc] sm:$0xf]
        %v1100 = vld [vmem:[%s1] sm:$0xf]
        %v1101 = vld [vmem:[%s1 + $0x4] sm:$0xf]
        %v1102 = vld [vmem:[%s1 + $0x8] sm:$0xf]
        %v1103 = vld [vmem:[%s1 + $0xc] sm:$0x1]
        %v1616 = vunpack.c.l.b16 %v588
        %v1617 = vunpack.c.l.b16 %v589
        %v1618 = vunpack.c.l.b16 %v590
        %v1619 = vunpack.c.l.b16 %v591
        %v1620 = vunpack.c.l.b16 %v592
        %v1621 = vunpack.c.l.b16 %v593
        %v1622 = vunpack.c.l.b16 %v594
        %v1623 = vunpack.c.l.b16 %v595
        %v1624 = vunpack.c.l.b16 %v596
        %v1625 = vunpack.c.l.b16 %v597
        %v1626 = vunpack.c.l.b16 %v598
        %v1627 = vunpack.c.l.b16 %v599
        %v1628 = vunpack.c.l.b16 %v600
        %v1629 = vunpack.c.l.b16 %v601
        %v1630 = vunpack.c.l.b16 %v602
        %v1631 = vunpack.c.l.b16 %v603
        %v1632 = vunpack.c.l.b16 %v604
        %v1633 = vunpack.c.l.b16 %v605
        %v1634 = vunpack.c.l.b16 %v606
        %v1635 = vunpack.c.l.b16 %v607
        %v1636 = vunpack.c.l.b16 %v608
        %v1637 = vunpack.c.l.b16 %v609
        %v1638 = vunpack.c.l.b16 %v610
        %v1639 = vunpack.c.l.b16 %v611
        %v1640 = vunpack.c.l.b16 %v612
        %v1641 = vunpack.c.l.b16 %v613
        %v1642 = vunpack.c.l.b16 %v614
        %v1643 = vunpack.c.l.b16 %v615
        %v1644 = vunpack.c.l.b16 %v616
        %v1645 = vunpack.c.l.b16 %v617
        %v1646 = vunpack.c.l.b16 %v618
        %v1647 = vunpack.c.l.b16 %v619
        %v1648 = vunpack.c.l.b16 %v620
        %v1649 = vunpack.c.l.b16 %v621
        %v1650 = vunpack.c.l.b16 %v622
        %v1651 = vunpack.c.l.b16 %v623
        %v1652 = vunpack.c.l.b16 %v624
        %v1653 = vunpack.c.l.b16 %v625
        %v1654 = vunpack.c.l.b16 %v626
        %v1655 = vunpack.c.l.b16 %v627
        %v1656 = vunpack.c.l.b16 %v628
        %v1657 = vunpack.c.l.b16 %v629
        %v1658 = vunpack.c.l.b16 %v630
        %v1659 = vunpack.c.l.b16 %v631
        %v1660 = vunpack.c.l.b16 %v632
        %v1661 = vunpack.c.l.b16 %v633
        %v1662 = vunpack.c.l.b16 %v634
        %v1663 = vunpack.c.l.b16 %v635
        %v1664 = vunpack.c.l.b16 %v636
        %v1665 = vunpack.c.l.b16 %v637
        %v1666 = vunpack.c.l.b16 %v638
        %v1667 = vunpack.c.l.b16 %v639
        %v1668 = vunpack.c.l.b16 %v640
        %v1669 = vunpack.c.l.b16 %v641
        %v1670 = vunpack.c.l.b16 %v642
        %v1671 = vunpack.c.l.b16 %v643
        %v1672 = vunpack.c.l.b16 %v644
        %v1673 = vunpack.c.l.b16 %v645
        %v1674 = vunpack.c.l.b16 %v646
        %v1675 = vunpack.c.l.b16 %v647
        %v1676 = vunpack.c.l.b16 %v648
        %v1677 = vunpack.c.l.b16 %v649
        %v1678 = vunpack.c.l.b16 %v650
        %v1679 = vunpack.c.l.b16 %v651
        %v1680 = vunpack.c.l.b16 %v652
        %v1681 = vunpack.c.l.b16 %v653
        %v1682 = vunpack.c.l.b16 %v654
        %v1683 = vunpack.c.l.b16 %v655
        %v1684 = vunpack.c.l.b16 %v656
        %v1685 = vunpack.c.l.b16 %v657
        %v1686 = vunpack.c.l.b16 %v658
        %v1687 = vunpack.c.l.b16 %v659
        %v1688 = vunpack.c.l.b16 %v660
        %v1689 = vunpack.c.l.b16 %v661
        %v1690 = vunpack.c.l.b16 %v662
        %v1691 = vunpack.c.l.b16 %v663
        %v1692 = vunpack.c.l.b16 %v664
        %v1693 = vunpack.c.l.b16 %v665
        %v1694 = vunpack.c.l.b16 %v666
        %v1695 = vunpack.c.l.b16 %v667
        %v1696 = vunpack.c.l.b16 %v668
        %v1697 = vunpack.c.l.b16 %v669
        %v1698 = vunpack.c.l.b16 %v670
        %v1699 = vunpack.c.l.b16 %v671
        %v1700 = vunpack.c.l.b16 %v672
        %v1701 = vunpack.c.l.b16 %v673
        %v1702 = vunpack.c.l.b16 %v674
        %v1703 = vunpack.c.l.b16 %v675
        %v1704 = vunpack.c.l.b16 %v676
        %v1705 = vunpack.c.l.b16 %v677
        %v1706 = vunpack.c.l.b16 %v678
        %v1707 = vunpack.c.l.b16 %v679
        %v1708 = vunpack.c.l.b16 %v680
        %v1709 = vunpack.c.l.b16 %v681
        %v1710 = vunpack.c.l.b16 %v682
        %v1711 = vunpack.c.l.b16 %v683
        %v1712 = vunpack.c.l.b16 %v684
        %v1713 = vunpack.c.l.b16 %v685
        %v1714 = vunpack.c.l.b16 %v686
        %v1715 = vunpack.c.l.b16 %v687
        %v1716 = vunpack.c.l.b16 %v688
        %v1717 = vunpack.c.l.b16 %v689
        %v1718 = vunpack.c.l.b16 %v690
        %v1719 = vunpack.c.l.b16 %v691
        %v1720 = vunpack.c.l.b16 %v692
        %v1721 = vunpack.c.l.b16 %v693
        %v1722 = vunpack.c.l.b16 %v694
        %v1723 = vunpack.c.l.b16 %v695
        %v1724 = vunpack.c.l.b16 %v696
        %v1725 = vunpack.c.l.b16 %v697
        %v1726 = vunpack.c.l.b16 %v698
        %v1727 = vunpack.c.l.b16 %v699
        %v1728 = vunpack.c.l.b16 %v700
        %v1729 = vunpack.c.l.b16 %v701
        %v1730 = vunpack.c.l.b16 %v702
        %v1731 = vunpack.c.l.b16 %v703
        %v1732 = vunpack.c.l.b16 %v704
        %v1733 = vunpack.c.l.b16 %v705
        %v1734 = vunpack.c.l.b16 %v706
        %v1735 = vunpack.c.l.b16 %v707
        %v1736 = vunpack.c.l.b16 %v708
        %v1737 = vunpack.c.l.b16 %v709
        %v1738 = vunpack.c.l.b16 %v710
        %v1739 = vunpack.c.l.b16 %v711
        %v1740 = vunpack.c.l.b16 %v712
        %v1741 = vunpack.c.l.b16 %v713
        %v1742 = vunpack.c.l.b16 %v714
        %v1743 = vunpack.c.l.b16 %v715
        %v1744 = vunpack.c.l.b16 %v716
        %v1745 = vunpack.c.l.b16 %v717
        %v1746 = vunpack.c.l.b16 %v718
        %v1747 = vunpack.c.l.b16 %v719
        %v1748 = vunpack.c.l.b16 %v720
        %v1749 = vunpack.c.l.b16 %v721
        %v1750 = vunpack.c.l.b16 %v722
        %v1751 = vunpack.c.l.b16 %v723
        %v1752 = vunpack.c.l.b16 %v724
        %v1753 = vunpack.c.l.b16 %v725
        %v1754 = vunpack.c.l.b16 %v726
        %v1755 = vunpack.c.l.b16 %v727
        %v1756 = vunpack.c.l.b16 %v728
        %v1757 = vunpack.c.l.b16 %v729
        %v1758 = vunpack.c.l.b16 %v730
        %v1759 = vunpack.c.l.b16 %v731
        %v1760 = vunpack.c.l.b16 %v732
        %v1761 = vunpack.c.l.b16 %v733
        %v1762 = vunpack.c.l.b16 %v734
        %v1763 = vunpack.c.l.b16 %v735
        %v1764 = vunpack.c.l.b16 %v736
        %v1765 = vunpack.c.l.b16 %v737
        %v1766 = vunpack.c.l.b16 %v738
        %v1767 = vunpack.c.l.b16 %v739
        %v1768 = vunpack.c.l.b16 %v740
        %v1769 = vunpack.c.l.b16 %v741
        %v1770 = vunpack.c.l.b16 %v742
        %v1771 = vunpack.c.l.b16 %v743
        %v1772 = vunpack.c.l.b16 %v744
        %v1773 = vunpack.c.l.b16 %v745
        %v1774 = vunpack.c.l.b16 %v746
        %v1775 = vunpack.c.l.b16 %v747
        %v1776 = vunpack.c.l.b16 %v748
        %v1777 = vunpack.c.l.b16 %v749
        %v1778 = vunpack.c.l.b16 %v750
        %v1779 = vunpack.c.l.b16 %v751
        %v1780 = vunpack.c.l.b16 %v752
        %v1781 = vunpack.c.l.b16 %v753
        %v1782 = vunpack.c.l.b16 %v754
        %v1783 = vunpack.c.l.b16 %v755
        %v1784 = vunpack.c.l.b16 %v756
        %v1785 = vunpack.c.l.b16 %v757
        %v1786 = vunpack.c.l.b16 %v758
        %v1787 = vunpack.c.l.b16 %v759
        %v1788 = vunpack.c.l.b16 %v760
        %v1789 = vunpack.c.l.b16 %v761
        %v1790 = vunpack.c.l.b16 %v762
        %v1791 = vunpack.c.l.b16 %v763
        %v1792 = vunpack.c.l.b16 %v764
        %v1793 = vunpack.c.l.b16 %v765
        %v1794 = vunpack.c.l.b16 %v766
        %v1795 = vunpack.c.l.b16 %v767
        %v1796 = vunpack.c.l.b16 %v768
        %v1797 = vunpack.c.l.b16 %v769
        %v1798 = vunpack.c.l.b16 %v770
        %v1799 = vunpack.c.l.b16 %v771
        %v1800 = vunpack.c.l.b16 %v772
        %v1801 = vunpack.c.l.b16 %v773
        %v1802 = vunpack.c.l.b16 %v774
        %v1803 = vunpack.c.l.b16 %v775
        %v1804 = vunpack.c.l.b16 %v776
        %v1805 = vunpack.c.l.b16 %v777
        %v1806 = vunpack.c.l.b16 %v778
        %v1807 = vunpack.c.l.b16 %v779
        %v1808 = vunpack.c.l.b16 %v780
        %v1809 = vunpack.c.l.b16 %v781
        %v1810 = vunpack.c.l.b16 %v782
        %v1811 = vunpack.c.l.b16 %v783
        %v1812 = vunpack.c.l.b16 %v784
        %v1813 = vunpack.c.l.b16 %v785
        %v1814 = vunpack.c.l.b16 %v786
        %v1815 = vunpack.c.l.b16 %v787
        %v1816 = vunpack.c.l.b16 %v788
        %v1817 = vunpack.c.l.b16 %v789
        %v1818 = vunpack.c.l.b16 %v790
        %v1819 = vunpack.c.l.b16 %v791
        %v1820 = vunpack.c.l.b16 %v792
        %v1821 = vunpack.c.l.b16 %v793
        %v1822 = vunpack.c.l.b16 %v794
        %v1823 = vunpack.c.l.b16 %v795
        %v1824 = vunpack.c.l.b16 %v796
        %v1825 = vunpack.c.l.b16 %v797
        %v1826 = vunpack.c.l.b16 %v798
        %v1827 = vunpack.c.l.b16 %v799
        %v1828 = vunpack.c.l.b16 %v800
        %v1829 = vunpack.c.l.b16 %v801
        %v1830 = vunpack.c.l.b16 %v802
        %v1831 = vunpack.c.l.b16 %v803
        %v1832 = vunpack.c.l.b16 %v804
        %v1833 = vunpack.c.l.b16 %v805
        %v1834 = vunpack.c.l.b16 %v806
        %v1835 = vunpack.c.l.b16 %v807
        %v1836 = vunpack.c.l.b16 %v808
        %v1837 = vunpack.c.l.b16 %v809
        %v1838 = vunpack.c.l.b16 %v810
        %v1839 = vunpack.c.l.b16 %v811
        %v1840 = vunpack.c.l.b16 %v812
        %v1841 = vunpack.c.l.b16 %v813
        %v1842 = vunpack.c.l.b16 %v814
        %v1843 = vunpack.c.l.b16 %v815
        %v1844 = vunpack.c.l.b16 %v816
        %v1845 = vunpack.c.l.b16 %v817
        %v1846 = vunpack.c.l.b16 %v818
        %v1847 = vunpack.c.l.b16 %v819
        %v1848 = vunpack.c.l.b16 %v820
        %v1849 = vunpack.c.l.b16 %v821
        %v1850 = vunpack.c.l.b16 %v822
        %v1851 = vunpack.c.l.b16 %v823
        %v1852 = vunpack.c.l.b16 %v824
        %v1853 = vunpack.c.l.b16 %v825
        %v1854 = vunpack.c.l.b16 %v826
        %v1855 = vunpack.c.l.b16 %v827
        %v1856 = vunpack.c.l.b16 %v828
        %v1857 = vunpack.c.l.b16 %v829
        %v1858 = vunpack.c.l.b16 %v830
        %v1859 = vunpack.c.l.b16 %v831
        %v1860 = vunpack.c.l.b16 %v832
        %v1861 = vunpack.c.l.b16 %v833
        %v1862 = vunpack.c.l.b16 %v834
        %v1863 = vunpack.c.l.b16 %v835
        %v1864 = vunpack.c.l.b16 %v836
        %v1865 = vunpack.c.l.b16 %v837
        %v1866 = vunpack.c.l.b16 %v838
        %v1867 = vunpack.c.l.b16 %v839
        %v1868 = vunpack.c.l.b16 %v840
        %v1869 = vunpack.c.l.b16 %v841
        %v1870 = vunpack.c.l.b16 %v842
        %v1871 = vunpack.c.l.b16 %v843
        %v1872 = vunpack.c.l.b16 %v844
        %v1873 = vunpack.c.l.b16 %v845
        %v1874 = vunpack.c.l.b16 %v846
        %v1875 = vunpack.c.l.b16 %v847
        %v1876 = vunpack.c.l.b16 %v848
        %v1877 = vunpack.c.l.b16 %v849
        %v1878 = vunpack.c.l.b16 %v850
        %v1879 = vunpack.c.l.b16 %v851
        %v1880 = vunpack.c.l.b16 %v852
        %v1881 = vunpack.c.l.b16 %v853
        %v1882 = vunpack.c.l.b16 %v854
        %v1883 = vunpack.c.l.b16 %v855
        %v1884 = vunpack.c.l.b16 %v856
        %v1885 = vunpack.c.l.b16 %v857
        %v1886 = vunpack.c.l.b16 %v858
        %v1887 = vunpack.c.l.b16 %v859
        %v1888 = vunpack.c.l.b16 %v860
        %v1889 = vunpack.c.l.b16 %v861
        %v1890 = vunpack.c.l.b16 %v862
        %v1891 = vunpack.c.l.b16 %v863
        %v1892 = vunpack.c.l.b16 %v864
        %v1893 = vunpack.c.l.b16 %v865
        %v1894 = vunpack.c.l.b16 %v866
        %v1895 = vunpack.c.l.b16 %v867
        %v1896 = vunpack.c.l.b16 %v868
        %v1897 = vunpack.c.l.b16 %v869
        %v1898 = vunpack.c.l.b16 %v870
        %v1899 = vunpack.c.l.b16 %v871
        %v1900 = vunpack.c.l.b16 %v872
        %v1901 = vunpack.c.l.b16 %v873
        %v1902 = vunpack.c.l.b16 %v874
        %v1903 = vunpack.c.l.b16 %v875
        %v1904 = vunpack.c.l.b16 %v876
        %v1905 = vunpack.c.l.b16 %v877
        %v1906 = vunpack.c.l.b16 %v878
        %v1907 = vunpack.c.l.b16 %v879
        %v1908 = vunpack.c.l.b16 %v880
        %v1909 = vunpack.c.l.b16 %v881
        %v1910 = vunpack.c.l.b16 %v882
        %v1911 = vunpack.c.l.b16 %v883
        %v1912 = vunpack.c.l.b16 %v884
        %v1913 = vunpack.c.l.b16 %v885
        %v1914 = vunpack.c.l.b16 %v886
        %v1915 = vunpack.c.l.b16 %v887
        %v1916 = vunpack.c.l.b16 %v888
        %v1917 = vunpack.c.l.b16 %v889
        %v1918 = vunpack.c.l.b16 %v890
        %v1919 = vunpack.c.l.b16 %v891
        %v1920 = vunpack.c.l.b16 %v892
        %v1921 = vunpack.c.l.b16 %v893
        %v1922 = vunpack.c.l.b16 %v894
        %v1923 = vunpack.c.l.b16 %v895
        %v1924 = vunpack.c.l.b16 %v896
        %v1925 = vunpack.c.l.b16 %v897
        %v1926 = vunpack.c.l.b16 %v898
        %v1927 = vunpack.c.l.b16 %v899
        %v1928 = vunpack.c.l.b16 %v900
        %v1929 = vunpack.c.l.b16 %v901
        %v1930 = vunpack.c.l.b16 %v902
        %v1931 = vunpack.c.l.b16 %v903
        %v1932 = vunpack.c.l.b16 %v904
        %v1933 = vunpack.c.l.b16 %v905
        %v1934 = vunpack.c.l.b16 %v906
        %v1935 = vunpack.c.l.b16 %v907
        %v1936 = vunpack.c.l.b16 %v908
        %v1937 = vunpack.c.l.b16 %v909
        %v1938 = vunpack.c.l.b16 %v910
        %v1939 = vunpack.c.l.b16 %v911
        %v1940 = vunpack.c.l.b16 %v912
        %v1941 = vunpack.c.l.b16 %v913
        %v1942 = vunpack.c.l.b16 %v914
        %v1943 = vunpack.c.l.b16 %v915
        %v1944 = vunpack.c.l.b16 %v916
        %v1945 = vunpack.c.l.b16 %v917
        %v1946 = vunpack.c.l.b16 %v918
        %v1947 = vunpack.c.l.b16 %v919
        %v1948 = vunpack.c.l.b16 %v920
        %v1949 = vunpack.c.l.b16 %v921
        %v1950 = vunpack.c.l.b16 %v922
        %v1951 = vunpack.c.l.b16 %v923
        %v1952 = vunpack.c.l.b16 %v924
        %v1953 = vunpack.c.l.b16 %v925
        %v1954 = vunpack.c.l.b16 %v926
        %v1955 = vunpack.c.l.b16 %v927
        %v1956 = vunpack.c.l.b16 %v928
        %v1957 = vunpack.c.l.b16 %v929
        %v1958 = vunpack.c.l.b16 %v930
        %v1959 = vunpack.c.l.b16 %v931
        %v1960 = vunpack.c.l.b16 %v932
        %v1961 = vunpack.c.l.b16 %v933
        %v1962 = vunpack.c.l.b16 %v934
        %v1963 = vunpack.c.l.b16 %v935
        %v1964 = vunpack.c.l.b16 %v936
        %v1965 = vunpack.c.l.b16 %v937
        %v1966 = vunpack.c.l.b16 %v938
        %v1967 = vunpack.c.l.b16 %v939
        %v1968 = vunpack.c.l.b16 %v940
        %v1969 = vunpack.c.l.b16 %v941
        %v1970 = vunpack.c.l.b16 %v942
        %v1971 = vunpack.c.l.b16 %v943
        %v1972 = vunpack.c.l.b16 %v944
        %v1973 = vunpack.c.l.b16 %v945
        %v1974 = vunpack.c.l.b16 %v946
        %v1975 = vunpack.c.l.b16 %v947
        %v1976 = vunpack.c.l.b16 %v948
        %v1977 = vunpack.c.l.b16 %v949
        %v1978 = vunpack.c.l.b16 %v950
        %v1979 = vunpack.c.l.b16 %v951
        %v1980 = vunpack.c.l.b16 %v952
        %v1981 = vunpack.c.l.b16 %v953
        %v1982 = vunpack.c.l.b16 %v954
        %v1983 = vunpack.c.l.b16 %v955
        %v1984 = vunpack.c.l.b16 %v956
        %v1985 = vunpack.c.l.b16 %v957
        %v1986 = vunpack.c.l.b16 %v958
        %v1987 = vunpack.c.l.b16 %v959
        %v1988 = vunpack.c.l.b16 %v960
        %v1989 = vunpack.c.l.b16 %v961
        %v1990 = vunpack.c.l.b16 %v962
        %v1991 = vunpack.c.l.b16 %v963
        %v1992 = vunpack.c.l.b16 %v964
        %v1993 = vunpack.c.l.b16 %v965
        %v1994 = vunpack.c.l.b16 %v966
        %v1995 = vunpack.c.l.b16 %v967
        %v1996 = vunpack.c.l.b16 %v968
        %v1997 = vunpack.c.l.b16 %v969
        %v1998 = vunpack.c.l.b16 %v970
        %v1999 = vunpack.c.l.b16 %v971
        %v2000 = vunpack.c.l.b16 %v972
        %v2001 = vunpack.c.l.b16 %v973
        %v2002 = vunpack.c.l.b16 %v974
        %v2003 = vunpack.c.l.b16 %v975
        %v2004 = vunpack.c.l.b16 %v976
        %v2005 = vunpack.c.l.b16 %v977
        %v2006 = vunpack.c.l.b16 %v978
        %v2007 = vunpack.c.l.b16 %v979
        %v2008 = vunpack.c.l.b16 %v980
        %v2009 = vunpack.c.l.b16 %v981
        %v2010 = vunpack.c.l.b16 %v982
        %v2011 = vunpack.c.l.b16 %v983
        %v2012 = vunpack.c.l.b16 %v984
        %v2013 = vunpack.c.l.b16 %v985
        %v2014 = vunpack.c.l.b16 %v986
        %v2015 = vunpack.c.l.b16 %v987
        %v2016 = vunpack.c.l.b16 %v988
        %v2017 = vunpack.c.l.b16 %v989
        %v2018 = vunpack.c.l.b16 %v990
        %v2019 = vunpack.c.l.b16 %v991
        %v2020 = vunpack.c.l.b16 %v992
        %v2021 = vunpack.c.l.b16 %v993
        %v2022 = vunpack.c.l.b16 %v994
        %v2023 = vunpack.c.l.b16 %v995
        %v2024 = vunpack.c.l.b16 %v996
        %v2025 = vunpack.c.l.b16 %v997
        %v2026 = vunpack.c.l.b16 %v998
        %v2027 = vunpack.c.l.b16 %v999
        %v2028 = vunpack.c.l.b16 %v1000
        %v2029 = vunpack.c.l.b16 %v1001
        %v2030 = vunpack.c.l.b16 %v1002
        %v2031 = vunpack.c.l.b16 %v1003
        %v2032 = vunpack.c.l.b16 %v1004
        %v2033 = vunpack.c.l.b16 %v1005
        %v2034 = vunpack.c.l.b16 %v1006
        %v2035 = vunpack.c.l.b16 %v1007
        %v2036 = vunpack.c.l.b16 %v1008
        %v2037 = vunpack.c.l.b16 %v1009
        %v2038 = vunpack.c.l.b16 %v1010
        %v2039 = vunpack.c.l.b16 %v1011
        %v2040 = vunpack.c.l.b16 %v1012
        %v2041 = vunpack.c.l.b16 %v1013
        %v2042 = vunpack.c.l.b16 %v1014
        %v2043 = vunpack.c.l.b16 %v1015
        %v2044 = vunpack.c.l.b16 %v1016
        %v2045 = vunpack.c.l.b16 %v1017
        %v2046 = vunpack.c.l.b16 %v1018
        %v2047 = vunpack.c.l.b16 %v1019
        %v2048 = vunpack.c.l.b16 %v1020
        %v2049 = vunpack.c.l.b16 %v1021
        %v2050 = vunpack.c.l.b16 %v1022
        %v2051 = vunpack.c.l.b16 %v1023
        %v2052 = vunpack.c.l.b16 %v1024
        %v2053 = vunpack.c.l.b16 %v1025
        %v2054 = vunpack.c.l.b16 %v1026
        %v2055 = vunpack.c.l.b16 %v1027
        %v2056 = vunpack.c.l.b16 %v1028
        %v2057 = vunpack.c.l.b16 %v1029
        %v2058 = vunpack.c.l.b16 %v1030
        %v2059 = vunpack.c.l.b16 %v1031
        %v2060 = vunpack.c.l.b16 %v1032
        %v2061 = vunpack.c.l.b16 %v1033
        %v2062 = vunpack.c.l.b16 %v1034
        %v2063 = vunpack.c.l.b16 %v1035
        %v2064 = vunpack.c.l.b16 %v1036
        %v2065 = vunpack.c.l.b16 %v1037
        %v2066 = vunpack.c.l.b16 %v1038
        %v2067 = vunpack.c.l.b16 %v1039
        %v2068 = vunpack.c.l.b16 %v1040
        %v2069 = vunpack.c.l.b16 %v1041
        %v2070 = vunpack.c.l.b16 %v1042
        %v2071 = vunpack.c.l.b16 %v1043
        %v2072 = vunpack.c.l.b16 %v1044
        %v2073 = vunpack.c.l.b16 %v1045
        %v2074 = vunpack.c.l.b16 %v1046
        %v2075 = vunpack.c.l.b16 %v1047
        %v2076 = vunpack.c.l.b16 %v1048
        %v2077 = vunpack.c.l.b16 %v1049
        %v2078 = vunpack.c.l.b16 %v1050
        %v2079 = vunpack.c.l.b16 %v1051
        %v2080 = vunpack.c.l.b16 %v1052
        %v2081 = vunpack.c.l.b16 %v1053
        %v2082 = vunpack.c.l.b16 %v1054
        %v2083 = vunpack.c.l.b16 %v1055
        %v2084 = vunpack.c.l.b16 %v1056
        %v2085 = vunpack.c.l.b16 %v1057
        %v2086 = vunpack.c.l.b16 %v1058
        %v2087 = vunpack.c.l.b16 %v1059
        %v2088 = vunpack.c.l.b16 %v1060
        %v2089 = vunpack.c.l.b16 %v1061
        %v2090 = vunpack.c.l.b16 %v1062
        %v2091 = vunpack.c.l.b16 %v1063
        %v2092 = vunpack.c.l.b16 %v1064
        %v2093 = vunpack.c.l.b16 %v1065
        %v2094 = vunpack.c.l.b16 %v1066
        %v2095 = vunpack.c.l.b16 %v1067
        %v2096 = vunpack.c.l.b16 %v1068
        %v2097 = vunpack.c.l.b16 %v1069
        %v2098 = vunpack.c.l.b16 %v1070
        %v2099 = vunpack.c.l.b16 %v1071
        %v2100 = vunpack.c.l.b16 %v1072
        %v2101 = vunpack.c.l.b16 %v1073
        %v2102 = vunpack.c.l.b16 %v1074
        %v2103 = vunpack.c.l.b16 %v1075
        %v2104 = vunpack.c.l.b16 %v1076
        %v2105 = vunpack.c.l.b16 %v1077
        %v2106 = vunpack.c.l.b16 %v1078
        %v2107 = vunpack.c.l.b16 %v1079
        %v2108 = vunpack.c.l.b16 %v1080
        %v2109 = vunpack.c.l.b16 %v1081
        %v2110 = vunpack.c.l.b16 %v1082
        %v2111 = vunpack.c.l.b16 %v1083
        %v2112 = vunpack.c.l.b16 %v1084
        %v2113 = vunpack.c.l.b16 %v1085
        %v2114 = vunpack.c.l.b16 %v1086
        %v2115 = vunpack.c.l.b16 %v1087
        %v2116 = vunpack.c.l.b16 %v1088
        %v2117 = vunpack.c.l.b16 %v1089
        %v2118 = vunpack.c.l.b16 %v1090
        %v2119 = vunpack.c.l.b16 %v1091
        %v2120 = vunpack.c.l.b16 %v1092
        %v2121 = vunpack.c.l.b16 %v1093
        %v2122 = vunpack.c.l.b16 %v1094
        %v2123 = vunpack.c.l.b16 %v1095
        %v2124 = vunpack.c.l.b16 %v1096
        %v2125 = vunpack.c.l.b16 %v1097
        %v2126 = vunpack.c.l.b16 %v1098
        %v2127 = vunpack.c.l.b16 %v1099
        %v2128 = vpack.c.b16 %v1617, %v1616
        %v2129 = vpack.c.b16 %v1619, %v1618
        %v2130 = vpack.c.b16 %v1621, %v1620
        %v2131 = vpack.c.b16 %v1623, %v1622
        %v2132 = vpack.c.b16 %v1625, %v1624
        %v2133 = vpack.c.b16 %v1627, %v1626
        %v2134 = vpack.c.b16 %v1629, %v1628
        %v2135 = vpack.c.b16 %v1631, %v1630
        %v2136 = vpack.c.b16 %v1633, %v1632
        %v2137 = vpack.c.b16 %v1635, %v1634
        %v2138 = vpack.c.b16 %v1637, %v1636
        %v2139 = vpack.c.b16 %v1639, %v1638
        %v2140 = vpack.c.b16 %v1641, %v1640
        %v2141 = vpack.c.b16 %v1643, %v1642
        %v2142 = vpack.c.b16 %v1645, %v1644
        %v2143 = vpack.c.b16 %v1647, %v1646
        %v2144 = vpack.c.b16 %v1649, %v1648
        %v2145 = vpack.c.b16 %v1651, %v1650
        %v2146 = vpack.c.b16 %v1653, %v1652
        %v2147 = vpack.c.b16 %v1655, %v1654
        %v2148 = vpack.c.b16 %v1657, %v1656
        %v2149 = vpack.c.b16 %v1659, %v1658
        %v2150 = vpack.c.b16 %v1661, %v1660
        %v2151 = vpack.c.b16 %v1663, %v1662
        %v2152 = vpack.c.b16 %v1665, %v1664
        %v2153 = vpack.c.b16 %v1667, %v1666
        %v2154 = vpack.c.b16 %v1669, %v1668
        %v2155 = vpack.c.b16 %v1671, %v1670
        %v2156 = vpack.c.b16 %v1673, %v1672
        %v2157 = vpack.c.b16 %v1675, %v1674
        %v2158 = vpack.c.b16 %v1677, %v1676
        %v2159 = vpack.c.b16 %v1679, %v1678
        %v2160 = vpack.c.b16 %v1681, %v1680
        %v2161 = vpack.c.b16 %v1683, %v1682
        %v2162 = vpack.c.b16 %v1685, %v1684
        %v2163 = vpack.c.b16 %v1687, %v1686
        %v2164 = vpack.c.b16 %v1689, %v1688
        %v2165 = vpack.c.b16 %v1691, %v1690
        %v2166 = vpack.c.b16 %v1693, %v1692
        %v2167 = vpack.c.b16 %v1695, %v1694
        %v2168 = vpack.c.b16 %v1697, %v1696
        %v2169 = vpack.c.b16 %v1699, %v1698
        %v2170 = vpack.c.b16 %v1701, %v1700
        %v2171 = vpack.c.b16 %v1703, %v1702
        %v2172 = vpack.c.b16 %v1705, %v1704
        %v2173 = vpack.c.b16 %v1707, %v1706
        %v2174 = vpack.c.b16 %v1709, %v1708
        %v2175 = vpack.c.b16 %v1711, %v1710
        %v2176 = vpack.c.b16 %v1713, %v1712
        %v2177 = vpack.c.b16 %v1715, %v1714
        %v2178 = vpack.c.b16 %v1717, %v1716
        %v2179 = vpack.c.b16 %v1719, %v1718
        %v2180 = vpack.c.b16 %v1721, %v1720
        %v2181 = vpack.c.b16 %v1723, %v1722
        %v2182 = vpack.c.b16 %v1725, %v1724
        %v2183 = vpack.c.b16 %v1727, %v1726
        %v2184 = vpack.c.b16 %v1729, %v1728
        %v2185 = vpack.c.b16 %v1731, %v1730
        %v2186 = vpack.c.b16 %v1733, %v1732
        %v2187 = vpack.c.b16 %v1735, %v1734
        %v2188 = vpack.c.b16 %v1737, %v1736
        %v2189 = vpack.c.b16 %v1739, %v1738
        %v2190 = vpack.c.b16 %v1741, %v1740
        %v2191 = vpack.c.b16 %v1743, %v1742
        %v2192 = vpack.c.b16 %v1745, %v1744
        %v2193 = vpack.c.b16 %v1747, %v1746
        %v2194 = vpack.c.b16 %v1749, %v1748
        %v2195 = vpack.c.b16 %v1751, %v1750
        %v2196 = vpack.c.b16 %v1753, %v1752
        %v2197 = vpack.c.b16 %v1755, %v1754
        %v2198 = vpack.c.b16 %v1757, %v1756
        %v2199 = vpack.c.b16 %v1759, %v1758
        %v2200 = vpack.c.b16 %v1761, %v1760
        %v2201 = vpack.c.b16 %v1763, %v1762
        %v2202 = vpack.c.b16 %v1765, %v1764
        %v2203 = vpack.c.b16 %v1767, %v1766
        %v2204 = vpack.c.b16 %v1769, %v1768
        %v2205 = vpack.c.b16 %v1771, %v1770
        %v2206 = vpack.c.b16 %v1773, %v1772
        %v2207 = vpack.c.b16 %v1775, %v1774
        %v2208 = vpack.c.b16 %v1777, %v1776
        %v2209 = vpack.c.b16 %v1779, %v1778
        %v2210 = vpack.c.b16 %v1781, %v1780
        %v2211 = vpack.c.b16 %v1783, %v1782
        %v2212 = vpack.c.b16 %v1785, %v1784
        %v2213 = vpack.c.b16 %v1787, %v1786
        %v2214 = vpack.c.b16 %v1789, %v1788
        %v2215 = vpack.c.b16 %v1791, %v1790
        %v2216 = vpack.c.b16 %v1793, %v1792
        %v2217 = vpack.c.b16 %v1795, %v1794
        %v2218 = vpack.c.b16 %v1797, %v1796
        %v2219 = vpack.c.b16 %v1799, %v1798
        %v2220 = vpack.c.b16 %v1801, %v1800
        %v2221 = vpack.c.b16 %v1803, %v1802
        %v2222 = vpack.c.b16 %v1805, %v1804
        %v2223 = vpack.c.b16 %v1807, %v1806
        %v2224 = vpack.c.b16 %v1809, %v1808
        %v2225 = vpack.c.b16 %v1811, %v1810
        %v2226 = vpack.c.b16 %v1813, %v1812
        %v2227 = vpack.c.b16 %v1815, %v1814
        %v2228 = vpack.c.b16 %v1817, %v1816
        %v2229 = vpack.c.b16 %v1819, %v1818
        %v2230 = vpack.c.b16 %v1821, %v1820
        %v2231 = vpack.c.b16 %v1823, %v1822
        %v2232 = vpack.c.b16 %v1825, %v1824
        %v2233 = vpack.c.b16 %v1827, %v1826
        %v2234 = vpack.c.b16 %v1829, %v1828
        %v2235 = vpack.c.b16 %v1831, %v1830
        %v2236 = vpack.c.b16 %v1833, %v1832
        %v2237 = vpack.c.b16 %v1835, %v1834
        %v2238 = vpack.c.b16 %v1837, %v1836
        %v2239 = vpack.c.b16 %v1839, %v1838
        %v2240 = vpack.c.b16 %v1841, %v1840
        %v2241 = vpack.c.b16 %v1843, %v1842
        %v2242 = vpack.c.b16 %v1845, %v1844
        %v2243 = vpack.c.b16 %v1847, %v1846
        %v2244 = vpack.c.b16 %v1849, %v1848
        %v2245 = vpack.c.b16 %v1851, %v1850
        %v2246 = vpack.c.b16 %v1853, %v1852
        %v2247 = vpack.c.b16 %v1855, %v1854
        %v2248 = vpack.c.b16 %v1857, %v1856
        %v2249 = vpack.c.b16 %v1859, %v1858
        %v2250 = vpack.c.b16 %v1861, %v1860
        %v2251 = vpack.c.b16 %v1863, %v1862
        %v2252 = vpack.c.b16 %v1865, %v1864
        %v2253 = vpack.c.b16 %v1867, %v1866
        %v2254 = vpack.c.b16 %v1869, %v1868
        %v2255 = vpack.c.b16 %v1871, %v1870
        %v2256 = vpack.c.b16 %v1873, %v1872
        %v2257 = vpack.c.b16 %v1875, %v1874
        %v2258 = vpack.c.b16 %v1877, %v1876
        %v2259 = vpack.c.b16 %v1879, %v1878
        %v2260 = vpack.c.b16 %v1881, %v1880
        %v2261 = vpack.c.b16 %v1883, %v1882
        %v2262 = vpack.c.b16 %v1885, %v1884
        %v2263 = vpack.c.b16 %v1887, %v1886
        %v2264 = vpack.c.b16 %v1889, %v1888
        %v2265 = vpack.c.b16 %v1891, %v1890
        %v2266 = vpack.c.b16 %v1893, %v1892
        %v2267 = vpack.c.b16 %v1895, %v1894
        %v2268 = vpack.c.b16 %v1897, %v1896
        %v2269 = vpack.c.b16 %v1899, %v1898
        %v2270 = vpack.c.b16 %v1901, %v1900
        %v2271 = vpack.c.b16 %v1903, %v1902
        %v2272 = vpack.c.b16 %v1905, %v1904
        %v2273 = vpack.c.b16 %v1907, %v1906
        %v2274 = vpack.c.b16 %v1909, %v1908
        %v2275 = vpack.c.b16 %v1911, %v1910
        %v2276 = vpack.c.b16 %v1913, %v1912
        %v2277 = vpack.c.b16 %v1915, %v1914
        %v2278 = vpack.c.b16 %v1917, %v1916
        %v2279 = vpack.c.b16 %v1919, %v1918
        %v2280 = vpack.c.b16 %v1921, %v1920
        %v2281 = vpack.c.b16 %v1923, %v1922
        %v2282 = vpack.c.b16 %v1925, %v1924
        %v2283 = vpack.c.b16 %v1927, %v1926
        %v2284 = vpack.c.b16 %v1929, %v1928
        %v2285 = vpack.c.b16 %v1931, %v1930
        %v2286 = vpack.c.b16 %v1933, %v1932
        %v2287 = vpack.c.b16 %v1935, %v1934
        %v2288 = vpack.c.b16 %v1937, %v1936
        %v2289 = vpack.c.b16 %v1939, %v1938
        %v2290 = vpack.c.b16 %v1941, %v1940
        %v2291 = vpack.c.b16 %v1943, %v1942
        %v2292 = vpack.c.b16 %v1945, %v1944
        %v2293 = vpack.c.b16 %v1947, %v1946
        %v2294 = vpack.c.b16 %v1949, %v1948
        %v2295 = vpack.c.b16 %v1951, %v1950
        %v2296 = vpack.c.b16 %v1953, %v1952
        %v2297 = vpack.c.b16 %v1955, %v1954
        %v2298 = vpack.c.b16 %v1957, %v1956
        %v2299 = vpack.c.b16 %v1959, %v1958
        %v2300 = vpack.c.b16 %v1961, %v1960
        %v2301 = vpack.c.b16 %v1963, %v1962
        %v2302 = vpack.c.b16 %v1965, %v1964
        %v2303 = vpack.c.b16 %v1967, %v1966
        %v2304 = vpack.c.b16 %v1969, %v1968
        %v2305 = vpack.c.b16 %v1971, %v1970
        %v2306 = vpack.c.b16 %v1973, %v1972
        %v2307 = vpack.c.b16 %v1975, %v1974
        %v2308 = vpack.c.b16 %v1977, %v1976
        %v2309 = vpack.c.b16 %v1979, %v1978
        %v2310 = vpack.c.b16 %v1981, %v1980
        %v2311 = vpack.c.b16 %v1983, %v1982
        %v2312 = vpack.c.b16 %v1985, %v1984
        %v2313 = vpack.c.b16 %v1987, %v1986
        %v2314 = vpack.c.b16 %v1989, %v1988
        %v2315 = vpack.c.b16 %v1991, %v1990
        %v2316 = vpack.c.b16 %v1993, %v1992
        %v2317 = vpack.c.b16 %v1995, %v1994
        %v2318 = vpack.c.b16 %v1997, %v1996
        %v2319 = vpack.c.b16 %v1999, %v1998
        %v2320 = vpack.c.b16 %v2001, %v2000
        %v2321 = vpack.c.b16 %v2003, %v2002
        %v2322 = vpack.c.b16 %v2005, %v2004
        %v2323 = vpack.c.b16 %v2007, %v2006
        %v2324 = vpack.c.b16 %v2009, %v2008
        %v2325 = vpack.c.b16 %v2011, %v2010
        %v2326 = vpack.c.b16 %v2013, %v2012
        %v2327 = vpack.c.b16 %v2015, %v2014
        %v2328 = vpack.c.b16 %v2017, %v2016
        %v2329 = vpack.c.b16 %v2019, %v2018
        %v2330 = vpack.c.b16 %v2021, %v2020
        %v2331 = vpack.c.b16 %v2023, %v2022
        %v2332 = vpack.c.b16 %v2025, %v2024
        %v2333 = vpack.c.b16 %v2027, %v2026
        %v2334 = vpack.c.b16 %v2029, %v2028
        %v2335 = vpack.c.b16 %v2031, %v2030
        %v2336 = vpack.c.b16 %v2033, %v2032
        %v2337 = vpack.c.b16 %v2035, %v2034
        %v2338 = vpack.c.b16 %v2037, %v2036
        %v2339 = vpack.c.b16 %v2039, %v2038
        %v2340 = vpack.c.b16 %v2041, %v2040
        %v2341 = vpack.c.b16 %v2043, %v2042
        %v2342 = vpack.c.b16 %v2045, %v2044
        %v2343 = vpack.c.b16 %v2047, %v2046
        %v2344 = vpack.c.b16 %v2049, %v2048
        %v2345 = vpack.c.b16 %v2051, %v2050
        %v2346 = vpack.c.b16 %v2053, %v2052
        %v2347 = vpack.c.b16 %v2055, %v2054
        %v2348 = vpack.c.b16 %v2057, %v2056
        %v2349 = vpack.c.b16 %v2059, %v2058
        %v2350 = vpack.c.b16 %v2061, %v2060
        %v2351 = vpack.c.b16 %v2063, %v2062
        %v2352 = vpack.c.b16 %v2065, %v2064
        %v2353 = vpack.c.b16 %v2067, %v2066
        %v2354 = vpack.c.b16 %v2069, %v2068
        %v2355 = vpack.c.b16 %v2071, %v2070
        %v2356 = vpack.c.b16 %v2073, %v2072
        %v2357 = vpack.c.b16 %v2075, %v2074
        %v2358 = vpack.c.b16 %v2077, %v2076
        %v2359 = vpack.c.b16 %v2079, %v2078
        %v2360 = vpack.c.b16 %v2081, %v2080
        %v2361 = vpack.c.b16 %v2083, %v2082
        %v2362 = vpack.c.b16 %v2085, %v2084
        %v2363 = vpack.c.b16 %v2087, %v2086
        %v2364 = vpack.c.b16 %v2089, %v2088
        %v2365 = vpack.c.b16 %v2091, %v2090
        %v2366 = vpack.c.b16 %v2093, %v2092
        %v2367 = vpack.c.b16 %v2095, %v2094
        %v2368 = vpack.c.b16 %v2097, %v2096
        %v2369 = vpack.c.b16 %v2099, %v2098
        %v2370 = vpack.c.b16 %v2101, %v2100
        %v2371 = vpack.c.b16 %v2103, %v2102
        %v2372 = vpack.c.b16 %v2105, %v2104
        %v2373 = vpack.c.b16 %v2107, %v2106
        %v2374 = vpack.c.b16 %v2109, %v2108
        %v2375 = vpack.c.b16 %v2111, %v2110
        %v2376 = vpack.c.b16 %v2113, %v2112
        %v2377 = vpack.c.b16 %v2115, %v2114
        %v2378 = vpack.c.b16 %v2117, %v2116
        %v2379 = vpack.c.b16 %v2119, %v2118
        %v2380 = vpack.c.b16 %v2121, %v2120
        %v2381 = vpack.c.b16 %v2123, %v2122
        %v2382 = vpack.c.b16 %v2125, %v2124
        %v2383 = vpack.c.b16 %v2127, %v2126
        %v2388 = vunpack.c.l.b16 %v1100
        %v2389 = vunpack.c.l.b16 %v1101
        %v2390 = vunpack.c.l.b16 %v1102
        %v2391 = vunpack.c.l.b16 %v1103
        %v2392 = vpack.c.b16 %v2389, %v2388
        %v2393 = vpack.c.b16 %v2391, %v2390
        %vm2395 = vcmask 203776
        %v2397 = vsel %vm2395, %v2128, 0
        %v2400 = vsel %vm2395, %v2129, 0
        %v2403 = vsel %vm2395, %v2130, 0
        %v2406 = vsel %vm2395, %v2131, 0
        %v2409 = vsel %vm2395, %v2132, 0
        %v2412 = vsel %vm2395, %v2133, 0
        %v2415 = vsel %vm2395, %v2134, 0
        %v2418 = vsel %vm2395, %v2135, 0
        %v2421 = vsel %vm2395, %v2136, 0
        %v2424 = vsel %vm2395, %v2137, 0
        %v2427 = vsel %vm2395, %v2138, 0
        %v2430 = vsel %vm2395, %v2139, 0
        %v2433 = vsel %vm2395, %v2140, 0
        %v2436 = vsel %vm2395, %v2141, 0
        %v2439 = vsel %vm2395, %v2142, 0
        %v2442 = vsel %vm2395, %v2143, 0
        %v2445 = vsel %vm2395, %v2144, 0
        %v2448 = vsel %vm2395, %v2145, 0
        %v2451 = vsel %vm2395, %v2146, 0
        %v2454 = vsel %vm2395, %v2147, 0
        %v2457 = vsel %vm2395, %v2148, 0
        %v2460 = vsel %vm2395, %v2149, 0
        %v2463 = vsel %vm2395, %v2150, 0
        %v2466 = vsel %vm2395, %v2151, 0
        %v2469 = vsel %vm2395, %v2152, 0
        %v2472 = vsel %vm2395, %v2153, 0
        %v2475 = vsel %vm2395, %v2154, 0
        %v2478 = vsel %vm2395, %v2155, 0
        %v2481 = vsel %vm2395, %v2156, 0
        %v2484 = vsel %vm2395, %v2157, 0
        %v2487 = vsel %vm2395, %v2158, 0
        %v2490 = vsel %vm2395, %v2159, 0
        %v2493 = vsel %vm2395, %v2160, 0
        %v2496 = vsel %vm2395, %v2161, 0
        %v2499 = vsel %vm2395, %v2162, 0
        %v2502 = vsel %vm2395, %v2163, 0
        %v2505 = vsel %vm2395, %v2164, 0
        %v2508 = vsel %vm2395, %v2165, 0
        %v2511 = vsel %vm2395, %v2166, 0
        %v2514 = vsel %vm2395, %v2167, 0
        %v2517 = vsel %vm2395, %v2168, 0
        %v2520 = vsel %vm2395, %v2169, 0
        %v2523 = vsel %vm2395, %v2170, 0
        %v2526 = vsel %vm2395, %v2171, 0
        %v2529 = vsel %vm2395, %v2172, 0
        %v2532 = vsel %vm2395, %v2173, 0
        %v2535 = vsel %vm2395, %v2174, 0
        %v2538 = vsel %vm2395, %v2175, 0
        %v2541 = vsel %vm2395, %v2176, 0
        %v2544 = vsel %vm2395, %v2177, 0
        %v2547 = vsel %vm2395, %v2178, 0
        %v2550 = vsel %vm2395, %v2179, 0
        %v2553 = vsel %vm2395, %v2180, 0
        %v2556 = vsel %vm2395, %v2181, 0
        %v2559 = vsel %vm2395, %v2182, 0
        %v2562 = vsel %vm2395, %v2183, 0
        %v2565 = vsel %vm2395, %v2184, 0
        %v2568 = vsel %vm2395, %v2185, 0
        %v2571 = vsel %vm2395, %v2186, 0
        %v2574 = vsel %vm2395, %v2187, 0
        %v2577 = vsel %vm2395, %v2188, 0
        %v2580 = vsel %vm2395, %v2189, 0
        %v2583 = vsel %vm2395, %v2190, 0
        %v2586 = vsel %vm2395, %v2191, 0
        %v2589 = vsel %vm2395, %v2192, 0
        %v2592 = vsel %vm2395, %v2193, 0
        %v2595 = vsel %vm2395, %v2194, 0
        %v2598 = vsel %vm2395, %v2195, 0
        %v2601 = vsel %vm2395, %v2196, 0
        %v2604 = vsel %vm2395, %v2197, 0
        %v2607 = vsel %vm2395, %v2198, 0
        %v2610 = vsel %vm2395, %v2199, 0
        %v2613 = vsel %vm2395, %v2200, 0
        %v2616 = vsel %vm2395, %v2201, 0
        %v2619 = vsel %vm2395, %v2202, 0
        %v2622 = vsel %vm2395, %v2203, 0
        %v2625 = vsel %vm2395, %v2204, 0
        %v2628 = vsel %vm2395, %v2205, 0
        %v2631 = vsel %vm2395, %v2206, 0
        %v2634 = vsel %vm2395, %v2207, 0
        %v2637 = vsel %vm2395, %v2208, 0
        %v2640 = vsel %vm2395, %v2209, 0
        %v2643 = vsel %vm2395, %v2210, 0
        %v2646 = vsel %vm2395, %v2211, 0
        %v2649 = vsel %vm2395, %v2212, 0
        %v2652 = vsel %vm2395, %v2213, 0
        %v2655 = vsel %vm2395, %v2214, 0
        %v2658 = vsel %vm2395, %v2215, 0
        %v2661 = vsel %vm2395, %v2216, 0
        %v2664 = vsel %vm2395, %v2217, 0
        %v2667 = vsel %vm2395, %v2218, 0
        %v2670 = vsel %vm2395, %v2219, 0
        %v2673 = vsel %vm2395, %v2220, 0
        %v2676 = vsel %vm2395, %v2221, 0
        %v2679 = vsel %vm2395, %v2222, 0
        %v2682 = vsel %vm2395, %v2223, 0
        %v2685 = vsel %vm2395, %v2224, 0
        %v2688 = vsel %vm2395, %v2225, 0
        %v2691 = vsel %vm2395, %v2226, 0
        %v2694 = vsel %vm2395, %v2227, 0
        %v2697 = vsel %vm2395, %v2228, 0
        %v2700 = vsel %vm2395, %v2229, 0
        %v2703 = vsel %vm2395, %v2230, 0
        %v2706 = vsel %vm2395, %v2231, 0
        %v2709 = vsel %vm2395, %v2232, 0
        %v2712 = vsel %vm2395, %v2233, 0
        %v2715 = vsel %vm2395, %v2234, 0
        %v2718 = vsel %vm2395, %v2235, 0
        %v2721 = vsel %vm2395, %v2236, 0
        %v2724 = vsel %vm2395, %v2237, 0
        %v2727 = vsel %vm2395, %v2238, 0
        %v2730 = vsel %vm2395, %v2239, 0
        %v2733 = vsel %vm2395, %v2240, 0
        %v2736 = vsel %vm2395, %v2241, 0
        %v2739 = vsel %vm2395, %v2242, 0
        %v2742 = vsel %vm2395, %v2243, 0
        %v2745 = vsel %vm2395, %v2244, 0
        %v2748 = vsel %vm2395, %v2245, 0
        %v2751 = vsel %vm2395, %v2246, 0
        %v2754 = vsel %vm2395, %v2247, 0
        %v2757 = vsel %vm2395, %v2248, 0
        %v2760 = vsel %vm2395, %v2249, 0
        %v2763 = vsel %vm2395, %v2250, 0
        %v2766 = vsel %vm2395, %v2251, 0
        %v2769 = vsel %vm2395, %v2252, 0
        %v2772 = vsel %vm2395, %v2253, 0
        %v2775 = vsel %vm2395, %v2254, 0
        %v2778 = vsel %vm2395, %v2255, 0
        %v2781 = vsel %vm2395, %v2256, 0
        %v2784 = vsel %vm2395, %v2257, 0
        %v2787 = vsel %vm2395, %v2258, 0
        %v2790 = vsel %vm2395, %v2259, 0
        %v2793 = vsel %vm2395, %v2260, 0
        %v2796 = vsel %vm2395, %v2261, 0
        %v2799 = vsel %vm2395, %v2262, 0
        %v2802 = vsel %vm2395, %v2263, 0
        %v2805 = vsel %vm2395, %v2264, 0
        %v2808 = vsel %vm2395, %v2265, 0
        %v2811 = vsel %vm2395, %v2266, 0
        %v2814 = vsel %vm2395, %v2267, 0
        %v2817 = vsel %vm2395, %v2268, 0
        %v2820 = vsel %vm2395, %v2269, 0
        %v2823 = vsel %vm2395, %v2270, 0
        %v2826 = vsel %vm2395, %v2271, 0
        %v2829 = vsel %vm2395, %v2272, 0
        %v2832 = vsel %vm2395, %v2273, 0
        %v2835 = vsel %vm2395, %v2274, 0
        %v2838 = vsel %vm2395, %v2275, 0
        %v2841 = vsel %vm2395, %v2276, 0
        %v2844 = vsel %vm2395, %v2277, 0
        %v2847 = vsel %vm2395, %v2278, 0
        %v2850 = vsel %vm2395, %v2279, 0
        %v2853 = vsel %vm2395, %v2280, 0
        %v2856 = vsel %vm2395, %v2281, 0
        %v2859 = vsel %vm2395, %v2282, 0
        %v2862 = vsel %vm2395, %v2283, 0
        %v2865 = vsel %vm2395, %v2284, 0
        %v2868 = vsel %vm2395, %v2285, 0
        %v2871 = vsel %vm2395, %v2286, 0
        %v2874 = vsel %vm2395, %v2287, 0
        %v2877 = vsel %vm2395, %v2288, 0
        %v2880 = vsel %vm2395, %v2289, 0
        %v2883 = vsel %vm2395, %v2290, 0
        %v2886 = vsel %vm2395, %v2291, 0
        %v2889 = vsel %vm2395, %v2292, 0
        %v2892 = vsel %vm2395, %v2293, 0
        %v2895 = vsel %vm2395, %v2294, 0
        %v2898 = vsel %vm2395, %v2295, 0
        %v2901 = vsel %vm2395, %v2296, 0
        %v2904 = vsel %vm2395, %v2297, 0
        %v2907 = vsel %vm2395, %v2298, 0
        %v2910 = vsel %vm2395, %v2299, 0
        %v2913 = vsel %vm2395, %v2300, 0
        %v2916 = vsel %vm2395, %v2301, 0
        %v2919 = vsel %vm2395, %v2302, 0
        %v2922 = vsel %vm2395, %v2303, 0
        %v2925 = vsel %vm2395, %v2304, 0
        %v2928 = vsel %vm2395, %v2305, 0
        %v2931 = vsel %vm2395, %v2306, 0
        %v2934 = vsel %vm2395, %v2307, 0
        %v2937 = vsel %vm2395, %v2308, 0
        %v2940 = vsel %vm2395, %v2309, 0
        %v2943 = vsel %vm2395, %v2310, 0
        %v2946 = vsel %vm2395, %v2311, 0
        %v2949 = vsel %vm2395, %v2312, 0
        %v2952 = vsel %vm2395, %v2313, 0
        %v2955 = vsel %vm2395, %v2314, 0
        %v2958 = vsel %vm2395, %v2315, 0
        %v2961 = vsel %vm2395, %v2316, 0
        %v2964 = vsel %vm2395, %v2317, 0
        %v2967 = vsel %vm2395, %v2318, 0
        %v2970 = vsel %vm2395, %v2319, 0
        %v2973 = vsel %vm2395, %v2320, 0
        %v2976 = vsel %vm2395, %v2321, 0
        %v2979 = vsel %vm2395, %v2322, 0
        %v2982 = vsel %vm2395, %v2323, 0
        %v2985 = vsel %vm2395, %v2324, 0
        %v2988 = vsel %vm2395, %v2325, 0
        %v2991 = vsel %vm2395, %v2326, 0
        %v2994 = vsel %vm2395, %v2327, 0
        %v2997 = vsel %vm2395, %v2328, 0
        %v3000 = vsel %vm2395, %v2329, 0
        %v3003 = vsel %vm2395, %v2330, 0
        %v3006 = vsel %vm2395, %v2331, 0
        %v3009 = vsel %vm2395, %v2332, 0
        %v3012 = vsel %vm2395, %v2333, 0
        %v3015 = vsel %vm2395, %v2334, 0
        %v3018 = vsel %vm2395, %v2335, 0
        %v3021 = vsel %vm2395, %v2336, 0
        %v3024 = vsel %vm2395, %v2337, 0
        %v3027 = vsel %vm2395, %v2338, 0
        %v3030 = vsel %vm2395, %v2339, 0
        %v3033 = vsel %vm2395, %v2340, 0
        %v3036 = vsel %vm2395, %v2341, 0
        %v3039 = vsel %vm2395, %v2342, 0
        %v3042 = vsel %vm2395, %v2343, 0
        %v3045 = vsel %vm2395, %v2344, 0
        %v3048 = vsel %vm2395, %v2345, 0
        %v3051 = vsel %vm2395, %v2346, 0
        %v3054 = vsel %vm2395, %v2347, 0
        %v3057 = vsel %vm2395, %v2348, 0
        %v3060 = vsel %vm2395, %v2349, 0
        %v3063 = vsel %vm2395, %v2350, 0
        %v3066 = vsel %vm2395, %v2351, 0
        %v3069 = vsel %vm2395, %v2352, 0
        %v3072 = vsel %vm2395, %v2353, 0
        %v3075 = vsel %vm2395, %v2354, 0
        %v3078 = vsel %vm2395, %v2355, 0
        %v3081 = vsel %vm2395, %v2356, 0
        %v3084 = vsel %vm2395, %v2357, 0
        %v3087 = vsel %vm2395, %v2358, 0
        %v3090 = vsel %vm2395, %v2359, 0
        %v3093 = vsel %vm2395, %v2360, 0
        %v3096 = vsel %vm2395, %v2361, 0
        %v3099 = vsel %vm2395, %v2362, 0
        %v3102 = vsel %vm2395, %v2363, 0
        %v3105 = vsel %vm2395, %v2364, 0
        %v3108 = vsel %vm2395, %v2365, 0
        %v3111 = vsel %vm2395, %v2366, 0
        %v3114 = vsel %vm2395, %v2367, 0
        %v3117 = vsel %vm2395, %v2368, 0
        %v3120 = vsel %vm2395, %v2369, 0
        %v3123 = vsel %vm2395, %v2370, 0
        %v3126 = vsel %vm2395, %v2371, 0
        %v3129 = vsel %vm2395, %v2372, 0
        %v3132 = vsel %vm2395, %v2373, 0
        %v3135 = vsel %vm2395, %v2374, 0
        %v3138 = vsel %vm2395, %v2375, 0
        %v3141 = vsel %vm2395, %v2376, 0
        %v3144 = vsel %vm2395, %v2377, 0
        %v3147 = vsel %vm2395, %v2378, 0
        %v3150 = vsel %vm2395, %v2379, 0
        %v3153 = vsel %vm2395, %v2380, 0
        %v3156 = vsel %vm2395, %v2381, 0
        %v3159 = vsel %vm2395, %v2382, 0
        %v3162 = vsel %vm2395, %v2383, 0
        %vm3164 = vcmask 1043456
        %vm3165 = vcmask 1044480
        %v3166 = vsel %vm3164, 4294967295, 65535
        %v3167 = vsel %vm3165, %v3166, 0
        %v3169 = vand.u32 %v2393, %v3167
        %3171 = vmatprep.subr.bf16.mxu0 0
        %3172 = vmatpush1.bf16.msra.mxu0 %v2392
        %3173 = vmatprep.subr.bf16.mxu0 0
        %3174 = vmatpush1.bf16.msra.mxu0 %v3169
        %3175 = vmatprep.subr.bf16.mxu0 0
        %3176 = vmatpush1.bf16.msra.mxu0 0
        %3177 = vmatprep.subr.bf16.mxu0 0
        %3178 = vmatpush1.bf16.msra.mxu0 0
        %3179 = vmatprep.subr.bf16.mxu0 0
        %3180 = vmatpush1.bf16.msra.mxu0 0
        %3181 = vmatprep.subr.bf16.mxu0 0
        %3182 = vmatpush1.bf16.msra.mxu0 0
        %3183 = vmatprep.subr.bf16.mxu0 0
        %3184 = vmatpush1.bf16.msra.mxu0 0
        %3185 = vmatprep.subr.bf16.mxu0 0
        %3186 = vmatpush1.bf16.msra.mxu0 0
        %3187 = vmatprep.subr.bf16.mxu0 0
        %3188 = vmatpush1.bf16.msra.mxu0 0
        %3189 = vmatprep.subr.bf16.mxu0 0
        %3190 = vmatpush1.bf16.msra.mxu0 0
        %3191 = vmatprep.subr.bf16.mxu0 0
        %3192 = vmatpush1.bf16.msra.mxu0 0
        %3193 = vmatprep.subr.bf16.mxu0 0
        %3194 = vmatpush1.bf16.msra.mxu0 0
        %3195 = vmatprep.subr.bf16.mxu0 0
        %3196 = vmatpush1.bf16.msra.mxu0 0
        %3197 = vmatprep.subr.bf16.mxu0 0
        %3198 = vmatpush1.bf16.msra.mxu0 0
        %3199 = vmatprep.subr.bf16.mxu0 0
        %3200 = vmatpush1.bf16.msra.mxu0 0
        %3201 = vmatprep.subr.bf16.mxu0 0
        %3202 = vmatpush1.bf16.msra.mxu0 0
        %3203 = vmatprep.mubr.bf16.mxu0 0
        %3204 = vmatmul.mubr.bf16.gmra.mrb[0].mxu0 %v2397
        %v3205 = vpop.f32.mrb[0].mxu0
        %v3206 = vadd.f32 0.0, %v3205
        %v3207 = vpop.f32.mrb[0].mxu0
        %v3208 = vpop.f32.mrb[0].mxu0
        %v3209 = vadd.f32 0.0, %v3208
        %v3210 = vpop.f32.mrb[0].mxu0
        %3211 = vmatprep.mubr.bf16.mxu0 0
        %3212 = vmatmul.mubr.bf16.gmra.mrb[0].mxu0 %v2400
        %v3213 = vpop.f32.mrb[0].mxu0
        %v3214 = vadd.f32 0.0, %v3213
        %v3215 = vpop.f32.mrb[0].mxu0
        %v3216 = vpop.f32.mrb[0].mxu0
        %v3217 = vadd.f32 0.0, %v3216
        %v3218 = vpop.f32.mrb[0].mxu0
        %3219 = vmatprep.mubr.bf16.mxu0 0
        %3220 = vmatmul.mubr.bf16.gmra.mrb[0].mxu0 %v2403
        %v3221 = vpop.f32.mrb[0].mxu0
        %v3222 = vadd.f32 0.0, %v3221
        %v3223 = vpop.f32.mrb[0].mxu0
        %v3224 = vpop.f32.mrb[0].mxu0
        %v3225 = vadd.f32 0.0, %v3224
        %v3226 = vpop.f32.mrb[0].mxu0
        %3227 = vmatprep.mubr.bf16.mxu0 0
        %3228 = vmatmul.mubr.bf16.gmra.mrb[0].mxu0 %v2406
        %v3229 = vpop.f32.mrb[0].mxu0
        %v3230 = vadd.f32 0.0, %v3229
        %v3231 = vpop.f32.mrb[0].mxu0
        %v3232 = vpop.f32.mrb[0].mxu0
        %v3233 = vadd.f32 0.0, %v3232
        %v3234 = vpop.f32.mrb[0].mxu0
        %3235 = vmatprep.mubr.bf16.mxu0 0
        %3236 = vmatmul.mubr.bf16.gmra.mrb[0].mxu0 %v2409
        %v3237 = vpop.f32.mrb[0].mxu0
        %v3238 = vadd.f32 0.0, %v3237
        %v3239 = vpop.f32.mrb[0].mxu0
        %v3240 = vpop.f32.mrb[0].mxu0
        %v3241 = vadd.f32 0.0, %v3240
        %v3242 = vpop.f32.mrb[0].mxu0
        %3243 = vmatprep.mubr.bf16.mxu0 0
        %3244 = vmatmul.mubr.bf16.gmra.mrb[0].mxu0 %v2412
        %v3245 = vpop.f32.mrb[0].mxu0
        %v3246 = vadd.f32 0.0, %v3245
        %v3247 = vpop.f32.mrb[0].mxu0
        %v3248 = vpop.f32.mrb[0].mxu0
        %v3249 = vadd.f32 0.0, %v3248
        %v3250 = vpop.f32.mrb[0].mxu0
        %3251 = vmatprep.mubr.bf16.mxu0 0
        %3252 = vmatmul.mubr.bf16.gmra.mrb[0].mxu0 %v2415
        %v3253 = vpop.f32.mrb[0].mxu0
        %v3254 = vadd.f32 0.0, %v3253
        %v3255 = vpop.f32.mrb[0].mxu0
        %v3256 = vpop.f32.mrb[0].mxu0
        %v3257 = vadd.f32 0.0, %v3256
        %v3258 = vpop.f32.mrb[0].mxu0
        %3259 = vmatprep.mubr.bf16.mxu0 0
        %3260 = vmatmul.mubr.bf16.gmra.mrb[0].mxu0 %v2418
        %v3261 = vpop.f32.mrb[0].mxu0
        %v3262 = vadd.f32 0.0, %v3261
        %v3263 = vpop.f32.mrb[0].mxu0
        %v3264 = vpop.f32.mrb[0].mxu0
        %v3265 = vadd.f32 0.0, %v3264
        %v3266 = vpop.f32.mrb[0].mxu0
        %3267 = vmatprep.mubr.bf16.mxu0 0
        %3268 = vmatmul.mubr.bf16.gmra.mrb[0].mxu0 %v2421
        %v3269 = vpop.f32.mrb[0].mxu0
        %v3270 = vadd.f32 0.0, %v3269
        %v3271 = vpop.f32.mrb[0].mxu0
        %v3272 = vpop.f32.mrb[0].mxu0
        %v3273 = vadd.f32 0.0, %v3272
        %v3274 = vpop.f32.mrb[0].mxu0
        %3275 = vmatprep.mubr.bf16.mxu0 0
        %3276 = vmatmul.mubr.bf16.gmra.mrb[0].mxu0 %v2424
        %v3277 = vpop.f32.mrb[0].mxu0
        %v3278 = vadd.f32 0.0, %v3277
        %v3279 = vpop.f32.mrb[0].mxu0
        %v3280 = vpop.f32.mrb[0].mxu0
        %v3281 = vadd.f32 0.0, %v3280
        %v3282 = vpop.f32.mrb[0].mxu0
        %3283 = vmatprep.mubr.bf16.mxu0 0
        %3284 = vmatmul.mubr.bf16.gmra.mrb[0].mxu0 %v2427
        %v3285 = vpop.f32.mrb[0].mxu0
        %v3286 = vadd.f32 0.0, %v3285
        %v3287 = vpop.f32.mrb[0].mxu0
        %v3288 = vpop.f32.mrb[0].mxu0
        %v3289 = vadd.f32 0.0, %v3288
        %v3290 = vpop.f32.mrb[0].mxu0
        %3291 = vmatprep.mubr.bf16.mxu0 0
        %3292 = vmatmul.mubr.bf16.gmra.mrb[0].mxu0 %v2430
        %v3293 = vpop.f32.mrb[0].mxu0
        %v3294 = vadd.f32 0.0, %v3293
        %v3295 = vpop.f32.mrb[0].mxu0
        %v3296 = vpop.f32.mrb[0].mxu0
        %v3297 = vadd.f32 0.0, %v3296
        %v3298 = vpop.f32.mrb[0].mxu0
        %3299 = vmatprep.mubr.bf16.mxu0 0
        %3300 = vmatmul.mubr.bf16.gmra.mrb[0].mxu0 %v2433
        %v3301 = vpop.f32.mrb[0].mxu0
        %v3302 = vadd.f32 0.0, %v3301
        %v3303 = vpop.f32.mrb[0].mxu0
        %v3304 = vpop.f32.mrb[0].mxu0
        %v3305 = vadd.f32 0.0, %v3304
        %v3306 = vpop.f32.mrb[0].mxu0
        %3307 = vmatprep.mubr.bf16.mxu0 0
        %3308 = vmatmul.mubr.bf16.gmra.mrb[0].mxu0 %v2436
        %v3309 = vpop.f32.mrb[0].mxu0
        %v3310 = vadd.f32 0.0, %v3309
        %v3311 = vpop.f32.mrb[0].mxu0
        %v3312 = vpop.f32.mrb[0].mxu0
        %v3313 = vadd.f32 0.0, %v3312
        %v3314 = vpop.f32.mrb[0].mxu0
        %3315 = vmatprep.mubr.bf16.mxu0 0
        %3316 = vmatmul.mubr.bf16.gmra.mrb[0].mxu0 %v2439
        %v3317 = vpop.f32.mrb[0].mxu0
        %v3318 = vadd.f32 0.0, %v3317
        %v3319 = vpop.f32.mrb[0].mxu0
        %v3320 = vpop.f32.mrb[0].mxu0
        %v3321 = vadd.f32 0.0, %v3320
        %v3322 = vpop.f32.mrb[0].mxu0
        %3323 = vmatprep.mubr.bf16.mxu0 0
        %3324 = vmatmul.mubr.bf16.gmra.mrb[0].mxu0 %v2442
        %v3325 = vpop.f32.mrb[0].mxu0
        %v3326 = vadd.f32 0.0, %v3325
        %v3327 = vpop.f32.mrb[0].mxu0
        %v3328 = vpop.f32.mrb[0].mxu0
        %v3329 = vadd.f32 0.0, %v3328
        %v3330 = vpop.f32.mrb[0].mxu0
        %3331 = vmatprep.mubr.bf16.mxu0 0
        %3332 = vmatmul.mubr.bf16.gmra.mrb[0].mxu0 %v2445
        %v3333 = vpop.f32.mrb[0].mxu0
        %v3334 = vadd.f32 0.0, %v3333
        %v3335 = vpop.f32.mrb[0].mxu0
        %v3336 = vpop.f32.mrb[0].mxu0
        %v3337 = vadd.f32 0.0, %v3336
        %v3338 = vpop.f32.mrb[0].mxu0
        %3339 = vmatprep.mubr.bf16.mxu0 0
        %3340 = vmatmul.mubr.bf16.gmra.mrb[0].mxu0 %v2448
        %v3341 = vpop.f32.mrb[0].mxu0
        %v3342 = vadd.f32 0.0, %v3341
        %v3343 = vpop.f32.mrb[0].mxu0
        %v3344 = vpop.f32.mrb[0].mxu0
        %v3345 = vadd.f32 0.0, %v3344
        %v3346 = vpop.f32.mrb[0].mxu0
        %3347 = vmatprep.mubr.bf16.mxu0 0
        %3348 = vmatmul.mubr.bf16.gmra.mrb[0].mxu0 %v2451
        %v3349 = vpop.f32.mrb[0].mxu0
        %v3350 = vadd.f32 0.0, %v3349
        %v3351 = vpop.f32.mrb[0].mxu0
        %v3352 = vpop.f32.mrb[0].mxu0
        %v3353 = vadd.f32 0.0, %v3352
        %v3354 = vpop.f32.mrb[0].mxu0
        %3355 = vmatprep.mubr.bf16.mxu0 0
        %3356 = vmatmul.mubr.bf16.gmra.mrb[0].mxu0 %v2454
        %v3357 = vpop.f32.mrb[0].mxu0
        %v3358 = vadd.f32 0.0, %v3357
        %v3359 = vpop.f32.mrb[0].mxu0
        %v3360 = vpop.f32.mrb[0].mxu0
        %v3361 = vadd.f32 0.0, %v3360
        %v3362 = vpop.f32.mrb[0].mxu0
        %3363 = vmatprep.mubr.bf16.mxu0 0
        %3364 = vmatmul.mubr.bf16.gmra.mrb[0].mxu0 %v2457
        %v3365 = vpop.f32.mrb[0].mxu0
        %v3366 = vadd.f32 0.0, %v3365
        %v3367 = vpop.f32.mrb[0].mxu0
        %v3368 = vpop.f32.mrb[0].mxu0
        %v3369 = vadd.f32 0.0, %v3368
        %v3370 = vpop.f32.mrb[0].mxu0
        %3371 = vmatprep.mubr.bf16.mxu0 0
        %3372 = vmatmul.mubr.bf16.gmra.mrb[0].mxu0 %v2460
        %v3373 = vpop.f32.mrb[0].mxu0
        %v3374 = vadd.f32 0.0, %v3373
        %v3375 = vpop.f32.mrb[0].mxu0
        %v3376 = vpop.f32.mrb[0].mxu0
        %v3377 = vadd.f32 0.0, %v3376
        %v3378 = vpop.f32.mrb[0].mxu0
        %3379 = vmatprep.mubr.bf16.mxu0 0
        %3380 = vmatmul.mubr.bf16.gmra.mrb[0].mxu0 %v2463
        %v3381 = vpop.f32.mrb[0].mxu0
        %v3382 = vadd.f32 0.0, %v3381
        %v3383 = vpop.f32.mrb[0].mxu0
        %v3384 = vpop.f32.mrb[0].mxu0
        %v3385 = vadd.f32 0.0, %v3384
        %v3386 = vpop.f32.mrb[0].mxu0
        %3387 = vmatprep.mubr.bf16.mxu0 0
        %3388 = vmatmul.mubr.bf16.gmra.mrb[0].mxu0 %v2466
        %v3389 = vpop.f32.mrb[0].mxu0
        %v3390 = vadd.f32 0.0, %v3389
        %v3391 = vpop.f32.mrb[0].mxu0
        %v3392 = vpop.f32.mrb[0].mxu0
        %v3393 = vadd.f32 0.0, %v3392
        %v3394 = vpop.f32.mrb[0].mxu0
        %3395 = vmatprep.mubr.bf16.mxu0 0
        %3396 = vmatmul.mubr.bf16.gmra.mrb[0].mxu0 %v2469
        %v3397 = vpop.f32.mrb[0].mxu0
        %v3398 = vadd.f32 0.0, %v3397
        %v3399 = vpop.f32.mrb[0].mxu0
        %v3400 = vpop.f32.mrb[0].mxu0
        %v3401 = vadd.f32 0.0, %v3400
        %v3402 = vpop.f32.mrb[0].mxu0
        %3403 = vmatprep.mubr.bf16.mxu0 0
        %3404 = vmatmul.mubr.bf16.gmra.mrb[0].mxu0 %v2472
        %v3405 = vpop.f32.mrb[0].mxu0
        %v3406 = vadd.f32 0.0, %v3405
        %v3407 = vpop.f32.mrb[0].mxu0
        %v3408 = vpop.f32.mrb[0].mxu0
        %v3409 = vadd.f32 0.0, %v3408
        %v3410 = vpop.f32.mrb[0].mxu0
        %3411 = vmatprep.mubr.bf16.mxu0 0
        %3412 = vmatmul.mubr.bf16.gmra.mrb[0].mxu0 %v2475
        %v3413 = vpop.f32.mrb[0].mxu0
        %v3414 = vadd.f32 0.0, %v3413
        %v3415 = vpop.f32.mrb[0].mxu0
        %v3416 = vpop.f32.mrb[0].mxu0
        %v3417 = vadd.f32 0.0, %v3416
        %v3418 = vpop.f32.mrb[0].mxu0
        %3419 = vmatprep.mubr.bf16.mxu0 0
        %3420 = vmatmul.mubr.bf16.gmra.mrb[0].mxu0 %v2478
        %v3421 = vpop.f32.mrb[0].mxu0
        %v3422 = vadd.f32 0.0, %v3421
        %v3423 = vpop.f32.mrb[0].mxu0
        %v3424 = vpop.f32.mrb[0].mxu0
        %v3425 = vadd.f32 0.0, %v3424
        %v3426 = vpop.f32.mrb[0].mxu0
        %3427 = vmatprep.mubr.bf16.mxu0 0
        %3428 = vmatmul.mubr.bf16.gmra.mrb[0].mxu0 %v2481
        %v3429 = vpop.f32.mrb[0].mxu0
        %v3430 = vadd.f32 0.0, %v3429
        %v3431 = vpop.f32.mrb[0].mxu0
        %v3432 = vpop.f32.mrb[0].mxu0
        %v3433 = vadd.f32 0.0, %v3432
        %v3434 = vpop.f32.mrb[0].mxu0
        %3435 = vmatprep.mubr.bf16.mxu0 0
        %3436 = vmatmul.mubr.bf16.gmra.mrb[0].mxu0 %v2484
        %v3437 = vpop.f32.mrb[0].mxu0
        %v3438 = vadd.f32 0.0, %v3437
        %v3439 = vpop.f32.mrb[0].mxu0
        %v3440 = vpop.f32.mrb[0].mxu0
        %v3441 = vadd.f32 0.0, %v3440
        %v3442 = vpop.f32.mrb[0].mxu0
        %3443 = vmatprep.mubr.bf16.mxu0 0
        %3444 = vmatmul.mubr.bf16.gmra.mrb[0].mxu0 %v2487
        %v3445 = vpop.f32.mrb[0].mxu0
        %v3446 = vadd.f32 0.0, %v3445
        %v3447 = vpop.f32.mrb[0].mxu0
        %v3448 = vpop.f32.mrb[0].mxu0
        %v3449 = vadd.f32 0.0, %v3448
        %v3450 = vpop.f32.mrb[0].mxu0
        %3451 = vmatprep.mubr.bf16.mxu0 0
        %3452 = vmatmul.mubr.bf16.gmra.mrb[0].mxu0 %v2490
        %v3453 = vpop.f32.mrb[0].mxu0
        %v3454 = vadd.f32 0.0, %v3453
        %v3455 = vpop.f32.mrb[0].mxu0
        %v3456 = vpop.f32.mrb[0].mxu0
        %v3457 = vadd.f32 0.0, %v3456
        %v3458 = vpop.f32.mrb[0].mxu0
        %3459 = vmatprep.mubr.bf16.mxu0 0
        %3460 = vmatmul.mubr.bf16.gmra.mrb[0].mxu0 %v2493
        %v3461 = vpop.f32.mrb[0].mxu0
        %v3462 = vadd.f32 0.0, %v3461
        %v3463 = vpop.f32.mrb[0].mxu0
        %v3464 = vpop.f32.mrb[0].mxu0
        %v3465 = vadd.f32 0.0, %v3464
        %v3466 = vpop.f32.mrb[0].mxu0
        %3467 = vmatprep.mubr.bf16.mxu0 0
        %3468 = vmatmul.mubr.bf16.gmra.mrb[0].mxu0 %v2496
        %v3469 = vpop.f32.mrb[0].mxu0
        %v3470 = vadd.f32 0.0, %v3469
        %v3471 = vpop.f32.mrb[0].mxu0
        %v3472 = vpop.f32.mrb[0].mxu0
        %v3473 = vadd.f32 0.0, %v3472
        %v3474 = vpop.f32.mrb[0].mxu0
        %3475 = vmatprep.mubr.bf16.mxu0 0
        %3476 = vmatmul.mubr.bf16.gmra.mrb[0].mxu0 %v2499
        %v3477 = vpop.f32.mrb[0].mxu0
        %v3478 = vadd.f32 0.0, %v3477
        %v3479 = vpop.f32.mrb[0].mxu0
        %v3480 = vpop.f32.mrb[0].mxu0
        %v3481 = vadd.f32 0.0, %v3480
        %v3482 = vpop.f32.mrb[0].mxu0
        %3483 = vmatprep.mubr.bf16.mxu0 0
        %3484 = vmatmul.mubr.bf16.gmra.mrb[0].mxu0 %v2502
        %v3485 = vpop.f32.mrb[0].mxu0
        %v3486 = vadd.f32 0.0, %v3485
        %v3487 = vpop.f32.mrb[0].mxu0
        %v3488 = vpop.f32.mrb[0].mxu0
        %v3489 = vadd.f32 0.0, %v3488
        %v3490 = vpop.f32.mrb[0].mxu0
        %3491 = vmatprep.mubr.bf16.mxu0 0
        %3492 = vmatmul.mubr.bf16.gmra.mrb[0].mxu0 %v2505
        %v3493 = vpop.f32.mrb[0].mxu0
        %v3494 = vadd.f32 0.0, %v3493
        %v3495 = vpop.f32.mrb[0].mxu0
        %v3496 = vpop.f32.mrb[0].mxu0
        %v3497 = vadd.f32 0.0, %v3496
        %v3498 = vpop.f32.mrb[0].mxu0
        %3499 = vmatprep.mubr.bf16.mxu0 0
        %3500 = vmatmul.mubr.bf16.gmra.mrb[0].mxu0 %v2508
        %v3501 = vpop.f32.mrb[0].mxu0
        %v3502 = vadd.f32 0.0, %v3501
        %v3503 = vpop.f32.mrb[0].mxu0
        %v3504 = vpop.f32.mrb[0].mxu0
        %v3505 = vadd.f32 0.0, %v3504
        %v3506 = vpop.f32.mrb[0].mxu0
        %3507 = vmatprep.mubr.bf16.mxu0 0
        %3508 = vmatmul.mubr.bf16.gmra.mrb[0].mxu0 %v2511
        %v3509 = vpop.f32.mrb[0].mxu0
        %v3510 = vadd.f32 0.0, %v3509
        %v3511 = vpop.f32.mrb[0].mxu0
        %v3512 = vpop.f32.mrb[0].mxu0
        %v3513 = vadd.f32 0.0, %v3512
        %v3514 = vpop.f32.mrb[0].mxu0
        %3515 = vmatprep.mubr.bf16.mxu0 0
        %3516 = vmatmul.mubr.bf16.gmra.mrb[0].mxu0 %v2514
        %v3517 = vpop.f32.mrb[0].mxu0
        %v3518 = vadd.f32 0.0, %v3517
        %v3519 = vpop.f32.mrb[0].mxu0
        %v3520 = vpop.f32.mrb[0].mxu0
        %v3521 = vadd.f32 0.0, %v3520
        %v3522 = vpop.f32.mrb[0].mxu0
        %3523 = vmatprep.mubr.bf16.mxu0 0
        %3524 = vmatmul.mubr.bf16.gmra.mrb[0].mxu0 %v2517
        %v3525 = vpop.f32.mrb[0].mxu0
        %v3526 = vadd.f32 0.0, %v3525
        %v3527 = vpop.f32.mrb[0].mxu0
        %v3528 = vpop.f32.mrb[0].mxu0
        %v3529 = vadd.f32 0.0, %v3528
        %v3530 = vpop.f32.mrb[0].mxu0
        %3531 = vmatprep.mubr.bf16.mxu0 0
        %3532 = vmatmul.mubr.bf16.gmra.mrb[0].mxu0 %v2520
        %v3533 = vpop.f32.mrb[0].mxu0
        %v3534 = vadd.f32 0.0, %v3533
        %v3535 = vpop.f32.mrb[0].mxu0
        %v3536 = vpop.f32.mrb[0].mxu0
        %v3537 = vadd.f32 0.0, %v3536
        %v3538 = vpop.f32.mrb[0].mxu0
        %3539 = vmatprep.mubr.bf16.mxu0 0
        %3540 = vmatmul.mubr.bf16.gmra.mrb[0].mxu0 %v2523
        %v3541 = vpop.f32.mrb[0].mxu0
        %v3542 = vadd.f32 0.0, %v3541
        %v3543 = vpop.f32.mrb[0].mxu0
        %v3544 = vpop.f32.mrb[0].mxu0
        %v3545 = vadd.f32 0.0, %v3544
        %v3546 = vpop.f32.mrb[0].mxu0
        %3547 = vmatprep.mubr.bf16.mxu0 0
        %3548 = vmatmul.mubr.bf16.gmra.mrb[0].mxu0 %v2526
        %v3549 = vpop.f32.mrb[0].mxu0
        %v3550 = vadd.f32 0.0, %v3549
        %v3551 = vpop.f32.mrb[0].mxu0
        %v3552 = vpop.f32.mrb[0].mxu0
        %v3553 = vadd.f32 0.0, %v3552
        %v3554 = vpop.f32.mrb[0].mxu0
        %3555 = vmatprep.mubr.bf16.mxu0 0
        %3556 = vmatmul.mubr.bf16.gmra.mrb[0].mxu0 %v2529
        %v3557 = vpop.f32.mrb[0].mxu0
        %v3558 = vadd.f32 0.0, %v3557
        %v3559 = vpop.f32.mrb[0].mxu0
        %v3560 = vpop.f32.mrb[0].mxu0
        %v3561 = vadd.f32 0.0, %v3560
        %v3562 = vpop.f32.mrb[0].mxu0
        %3563 = vmatprep.mubr.bf16.mxu0 0
        %3564 = vmatmul.mubr.bf16.gmra.mrb[0].mxu0 %v2532
        %v3565 = vpop.f32.mrb[0].mxu0
        %v3566 = vadd.f32 0.0, %v3565
        %v3567 = vpop.f32.mrb[0].mxu0
        %v3568 = vpop.f32.mrb[0].mxu0
        %v3569 = vadd.f32 0.0, %v3568
        %v3570 = vpop.f32.mrb[0].mxu0
        %3571 = vmatprep.mubr.bf16.mxu0 0
        %3572 = vmatmul.mubr.bf16.gmra.mrb[0].mxu0 %v2535
        %v3573 = vpop.f32.mrb[0].mxu0
        %v3574 = vadd.f32 0.0, %v3573
        %v3575 = vpop.f32.mrb[0].mxu0
        %v3576 = vpop.f32.mrb[0].mxu0
        %v3577 = vadd.f32 0.0, %v3576
        %v3578 = vpop.f32.mrb[0].mxu0
        %3579 = vmatprep.mubr.bf16.mxu0 0
        %3580 = vmatmul.mubr.bf16.gmra.mrb[0].mxu0 %v2538
        %v3581 = vpop.f32.mrb[0].mxu0
        %v3582 = vadd.f32 0.0, %v3581
        %v3583 = vpop.f32.mrb[0].mxu0
        %v3584 = vpop.f32.mrb[0].mxu0
        %v3585 = vadd.f32 0.0, %v3584
        %v3586 = vpop.f32.mrb[0].mxu0
        %3587 = vmatprep.mubr.bf16.mxu0 0
        %3588 = vmatmul.mubr.bf16.gmra.mrb[0].mxu0 %v2541
        %v3589 = vpop.f32.mrb[0].mxu0
        %v3590 = vadd.f32 0.0, %v3589
        %v3591 = vpop.f32.mrb[0].mxu0
        %v3592 = vpop.f32.mrb[0].mxu0
        %v3593 = vadd.f32 0.0, %v3592
        %v3594 = vpop.f32.mrb[0].mxu0
        %3595 = vmatprep.mubr.bf16.mxu0 0
        %3596 = vmatmul.mubr.bf16.gmra.mrb[0].mxu0 %v2544
        %v3597 = vpop.f32.mrb[0].mxu0
        %v3598 = vadd.f32 0.0, %v3597
        %v3599 = vpop.f32.mrb[0].mxu0
        %v3600 = vpop.f32.mrb[0].mxu0
        %v3601 = vadd.f32 0.0, %v3600
        %v3602 = vpop.f32.mrb[0].mxu0
        %3603 = vmatprep.mubr.bf16.mxu0 0
        %3604 = vmatmul.mubr.bf16.gmra.mrb[0].mxu0 %v2547
        %v3605 = vpop.f32.mrb[0].mxu0
        %v3606 = vadd.f32 0.0, %v3605
        %v3607 = vpop.f32.mrb[0].mxu0
        %v3608 = vpop.f32.mrb[0].mxu0
        %v3609 = vadd.f32 0.0, %v3608
        %v3610 = vpop.f32.mrb[0].mxu0
        %3611 = vmatprep.mubr.bf16.mxu0 0
        %3612 = vmatmul.mubr.bf16.gmra.mrb[0].mxu0 %v2550
        %v3613 = vpop.f32.mrb[0].mxu0
        %v3614 = vadd.f32 0.0, %v3613
        %v3615 = vpop.f32.mrb[0].mxu0
        %v3616 = vpop.f32.mrb[0].mxu0
        %v3617 = vadd.f32 0.0, %v3616
        %v3618 = vpop.f32.mrb[0].mxu0
        %3619 = vmatprep.mubr.bf16.mxu0 0
        %3620 = vmatmul.mubr.bf16.gmra.mrb[0].mxu0 %v2553
        %v3621 = vpop.f32.mrb[0].mxu0
        %v3622 = vadd.f32 0.0, %v3621
        %v3623 = vpop.f32.mrb[0].mxu0
        %v3624 = vpop.f32.mrb[0].mxu0
        %v3625 = vadd.f32 0.0, %v3624
        %v3626 = vpop.f32.mrb[0].mxu0
        %3627 = vmatprep.mubr.bf16.mxu0 0
        %3628 = vmatmul.mubr.bf16.gmra.mrb[0].mxu0 %v2556
        %v3629 = vpop.f32.mrb[0].mxu0
        %v3630 = vadd.f32 0.0, %v3629
        %v3631 = vpop.f32.mrb[0].mxu0
        %v3632 = vpop.f32.mrb[0].mxu0
        %v3633 = vadd.f32 0.0, %v3632
        %v3634 = vpop.f32.mrb[0].mxu0
        %3635 = vmatprep.mubr.bf16.mxu0 0
        %3636 = vmatmul.mubr.bf16.gmra.mrb[0].mxu0 %v2559
        %v3637 = vpop.f32.mrb[0].mxu0
        %v3638 = vadd.f32 0.0, %v3637
        %v3639 = vpop.f32.mrb[0].mxu0
        %v3640 = vpop.f32.mrb[0].mxu0
        %v3641 = vadd.f32 0.0, %v3640
        %v3642 = vpop.f32.mrb[0].mxu0
        %3643 = vmatprep.mubr.bf16.mxu0 0
        %3644 = vmatmul.mubr.bf16.gmra.mrb[0].mxu0 %v2562
        %v3645 = vpop.f32.mrb[0].mxu0
        %v3646 = vadd.f32 0.0, %v3645
        %v3647 = vpop.f32.mrb[0].mxu0
        %v3648 = vpop.f32.mrb[0].mxu0
        %v3649 = vadd.f32 0.0, %v3648
        %v3650 = vpop.f32.mrb[0].mxu0
        %3651 = vmatprep.mubr.bf16.mxu0 0
        %3652 = vmatmul.mubr.bf16.gmra.mrb[0].mxu0 %v2565
        %v3653 = vpop.f32.mrb[0].mxu0
        %v3654 = vadd.f32 0.0, %v3653
        %v3655 = vpop.f32.mrb[0].mxu0
        %v3656 = vpop.f32.mrb[0].mxu0
        %v3657 = vadd.f32 0.0, %v3656
        %v3658 = vpop.f32.mrb[0].mxu0
        %3659 = vmatprep.mubr.bf16.mxu0 0
        %3660 = vmatmul.mubr.bf16.gmra.mrb[0].mxu0 %v2568
        %v3661 = vpop.f32.mrb[0].mxu0
        %v3662 = vadd.f32 0.0, %v3661
        %v3663 = vpop.f32.mrb[0].mxu0
        %v3664 = vpop.f32.mrb[0].mxu0
        %v3665 = vadd.f32 0.0, %v3664
        %v3666 = vpop.f32.mrb[0].mxu0
        %3667 = vmatprep.mubr.bf16.mxu0 0
        %3668 = vmatmul.mubr.bf16.gmra.mrb[0].mxu0 %v2571
        %v3669 = vpop.f32.mrb[0].mxu0
        %v3670 = vadd.f32 0.0, %v3669
        %v3671 = vpop.f32.mrb[0].mxu0
        %v3672 = vpop.f32.mrb[0].mxu0
        %v3673 = vadd.f32 0.0, %v3672
        %v3674 = vpop.f32.mrb[0].mxu0
        %3675 = vmatprep.mubr.bf16.mxu0 0
        %3676 = vmatmul.mubr.bf16.gmra.mrb[0].mxu0 %v2574
        %v3677 = vpop.f32.mrb[0].mxu0
        %v3678 = vadd.f32 0.0, %v3677
        %v3679 = vpop.f32.mrb[0].mxu0
        %v3680 = vpop.f32.mrb[0].mxu0
        %v3681 = vadd.f32 0.0, %v3680
        %v3682 = vpop.f32.mrb[0].mxu0
        %3683 = vmatprep.mubr.bf16.mxu0 0
        %3684 = vmatmul.mubr.bf16.gmra.mrb[0].mxu0 %v2577
        %v3685 = vpop.f32.mrb[0].mxu0
        %v3686 = vadd.f32 0.0, %v3685
        %v3687 = vpop.f32.mrb[0].mxu0
        %v3688 = vpop.f32.mrb[0].mxu0
        %v3689 = vadd.f32 0.0, %v3688
        %v3690 = vpop.f32.mrb[0].mxu0
        %3691 = vmatprep.mubr.bf16.mxu0 0
        %3692 = vmatmul.mubr.bf16.gmra.mrb[0].mxu0 %v2580
        %v3693 = vpop.f32.mrb[0].mxu0
        %v3694 = vadd.f32 0.0, %v3693
        %v3695 = vpop.f32.mrb[0].mxu0
        %v3696 = vpop.f32.mrb[0].mxu0
        %v3697 = vadd.f32 0.0, %v3696
        %v3698 = vpop.f32.mrb[0].mxu0
        %3699 = vmatprep.mubr.bf16.mxu0 0
        %3700 = vmatmul.mubr.bf16.gmra.mrb[0].mxu0 %v2583
        %v3701 = vpop.f32.mrb[0].mxu0
        %v3702 = vadd.f32 0.0, %v3701
        %v3703 = vpop.f32.mrb[0].mxu0
        %v3704 = vpop.f32.mrb[0].mxu0
        %v3705 = vadd.f32 0.0, %v3704
        %v3706 = vpop.f32.mrb[0].mxu0
        %3707 = vmatprep.mubr.bf16.mxu0 0
        %3708 = vmatmul.mubr.bf16.gmra.mrb[0].mxu0 %v2586
        %v3709 = vpop.f32.mrb[0].mxu0
        %v3710 = vadd.f32 0.0, %v3709
        %v3711 = vpop.f32.mrb[0].mxu0
        %v3712 = vpop.f32.mrb[0].mxu0
        %v3713 = vadd.f32 0.0, %v3712
        %v3714 = vpop.f32.mrb[0].mxu0
        %3715 = vmatprep.mubr.bf16.mxu0 0
        %3716 = vmatmul.mubr.bf16.gmra.mrb[0].mxu0 %v2589
        %v3717 = vpop.f32.mrb[0].mxu0
        %v3718 = vadd.f32 0.0, %v3717
        %v3719 = vpop.f32.mrb[0].mxu0
        %v3720 = vpop.f32.mrb[0].mxu0
        %v3721 = vadd.f32 0.0, %v3720
        %v3722 = vpop.f32.mrb[0].mxu0
        %3723 = vmatprep.mubr.bf16.mxu0 0
        %3724 = vmatmul.mubr.bf16.gmra.mrb[0].mxu0 %v2592
        %v3725 = vpop.f32.mrb[0].mxu0
        %v3726 = vadd.f32 0.0, %v3725
        %v3727 = vpop.f32.mrb[0].mxu0
        %v3728 = vpop.f32.mrb[0].mxu0
        %v3729 = vadd.f32 0.0, %v3728
        %v3730 = vpop.f32.mrb[0].mxu0
        %3731 = vmatprep.mubr.bf16.mxu0 0
        %3732 = vmatmul.mubr.bf16.gmra.mrb[0].mxu0 %v2595
        %v3733 = vpop.f32.mrb[0].mxu0
        %v3734 = vadd.f32 0.0, %v3733
        %v3735 = vpop.f32.mrb[0].mxu0
        %v3736 = vpop.f32.mrb[0].mxu0
        %v3737 = vadd.f32 0.0, %v3736
        %v3738 = vpop.f32.mrb[0].mxu0
        %3739 = vmatprep.mubr.bf16.mxu0 0
        %3740 = vmatmul.mubr.bf16.gmra.mrb[0].mxu0 %v2598
        %v3741 = vpop.f32.mrb[0].mxu0
        %v3742 = vadd.f32 0.0, %v3741
        %v3743 = vpop.f32.mrb[0].mxu0
        %v3744 = vpop.f32.mrb[0].mxu0
        %v3745 = vadd.f32 0.0, %v3744
        %v3746 = vpop.f32.mrb[0].mxu0
        %3747 = vmatprep.mubr.bf16.mxu0 0
        %3748 = vmatmul.mubr.bf16.gmra.mrb[0].mxu0 %v2601
        %v3749 = vpop.f32.mrb[0].mxu0
        %v3750 = vadd.f32 0.0, %v3749
        %v3751 = vpop.f32.mrb[0].mxu0
        %v3752 = vpop.f32.mrb[0].mxu0
        %v3753 = vadd.f32 0.0, %v3752
        %v3754 = vpop.f32.mrb[0].mxu0
        %3755 = vmatprep.mubr.bf16.mxu0 0
        %3756 = vmatmul.mubr.bf16.gmra.mrb[0].mxu0 %v2604
        %v3757 = vpop.f32.mrb[0].mxu0
        %v3758 = vadd.f32 0.0, %v3757
        %v3759 = vpop.f32.mrb[0].mxu0
        %v3760 = vpop.f32.mrb[0].mxu0
        %v3761 = vadd.f32 0.0, %v3760
        %v3762 = vpop.f32.mrb[0].mxu0
        %3763 = vmatprep.mubr.bf16.mxu0 0
        %3764 = vmatmul.mubr.bf16.gmra.mrb[0].mxu0 %v2607
        %v3765 = vpop.f32.mrb[0].mxu0
        %v3766 = vadd.f32 0.0, %v3765
        %v3767 = vpop.f32.mrb[0].mxu0
        %v3768 = vpop.f32.mrb[0].mxu0
        %v3769 = vadd.f32 0.0, %v3768
        %v3770 = vpop.f32.mrb[0].mxu0
        %3771 = vmatprep.mubr.bf16.mxu0 0
        %3772 = vmatmul.mubr.bf16.gmra.mrb[0].mxu0 %v2610
        %v3773 = vpop.f32.mrb[0].mxu0
        %v3774 = vadd.f32 0.0, %v3773
        %v3775 = vpop.f32.mrb[0].mxu0
        %v3776 = vpop.f32.mrb[0].mxu0
        %v3777 = vadd.f32 0.0, %v3776
        %v3778 = vpop.f32.mrb[0].mxu0
        %3779 = vmatprep.mubr.bf16.mxu0 0
        %3780 = vmatmul.mubr.bf16.gmra.mrb[0].mxu0 %v2613
        %v3781 = vpop.f32.mrb[0].mxu0
        %v3782 = vadd.f32 0.0, %v3781
        %v3783 = vpop.f32.mrb[0].mxu0
        %v3784 = vpop.f32.mrb[0].mxu0
        %v3785 = vadd.f32 0.0, %v3784
        %v3786 = vpop.f32.mrb[0].mxu0
        %3787 = vmatprep.mubr.bf16.mxu0 0
        %3788 = vmatmul.mubr.bf16.gmra.mrb[0].mxu0 %v2616
        %v3789 = vpop.f32.mrb[0].mxu0
        %v3790 = vadd.f32 0.0, %v3789
        %v3791 = vpop.f32.mrb[0].mxu0
        %v3792 = vpop.f32.mrb[0].mxu0
        %v3793 = vadd.f32 0.0, %v3792
        %v3794 = vpop.f32.mrb[0].mxu0
        %3795 = vmatprep.mubr.bf16.mxu0 0
        %3796 = vmatmul.mubr.bf16.gmra.mrb[0].mxu0 %v2619
        %v3797 = vpop.f32.mrb[0].mxu0
        %v3798 = vadd.f32 0.0, %v3797
        %v3799 = vpop.f32.mrb[0].mxu0
        %v3800 = vpop.f32.mrb[0].mxu0
        %v3801 = vadd.f32 0.0, %v3800
        %v3802 = vpop.f32.mrb[0].mxu0
        %3803 = vmatprep.mubr.bf16.mxu0 0
        %3804 = vmatmul.mubr.bf16.gmra.mrb[0].mxu0 %v2622
        %v3805 = vpop.f32.mrb[0].mxu0
        %v3806 = vadd.f32 0.0, %v3805
        %v3807 = vpop.f32.mrb[0].mxu0
        %v3808 = vpop.f32.mrb[0].mxu0
        %v3809 = vadd.f32 0.0, %v3808
        %v3810 = vpop.f32.mrb[0].mxu0
        %3811 = vmatprep.mubr.bf16.mxu0 0
        %3812 = vmatmul.mubr.bf16.gmra.mrb[0].mxu0 %v2625
        %v3813 = vpop.f32.mrb[0].mxu0
        %v3814 = vadd.f32 0.0, %v3813
        %v3815 = vpop.f32.mrb[0].mxu0
        %v3816 = vpop.f32.mrb[0].mxu0
        %v3817 = vadd.f32 0.0, %v3816
        %v3818 = vpop.f32.mrb[0].mxu0
        %3819 = vmatprep.mubr.bf16.mxu0 0
        %3820 = vmatmul.mubr.bf16.gmra.mrb[0].mxu0 %v2628
        %v3821 = vpop.f32.mrb[0].mxu0
        %v3822 = vadd.f32 0.0, %v3821
        %v3823 = vpop.f32.mrb[0].mxu0
        %v3824 = vpop.f32.mrb[0].mxu0
        %v3825 = vadd.f32 0.0, %v3824
        %v3826 = vpop.f32.mrb[0].mxu0
        %3827 = vmatprep.mubr.bf16.mxu0 0
        %3828 = vmatmul.mubr.bf16.gmra.mrb[0].mxu0 %v2631
        %v3829 = vpop.f32.mrb[0].mxu0
        %v3830 = vadd.f32 0.0, %v3829
        %v3831 = vpop.f32.mrb[0].mxu0
        %v3832 = vpop.f32.mrb[0].mxu0
        %v3833 = vadd.f32 0.0, %v3832
        %v3834 = vpop.f32.mrb[0].mxu0
        %3835 = vmatprep.mubr.bf16.mxu0 0
        %3836 = vmatmul.mubr.bf16.gmra.mrb[0].mxu0 %v2634
        %v3837 = vpop.f32.mrb[0].mxu0
        %v3838 = vadd.f32 0.0, %v3837
        %v3839 = vpop.f32.mrb[0].mxu0
        %v3840 = vpop.f32.mrb[0].mxu0
        %v3841 = vadd.f32 0.0, %v3840
        %v3842 = vpop.f32.mrb[0].mxu0
        %3843 = vmatprep.mubr.bf16.mxu0 0
        %3844 = vmatmul.mubr.bf16.gmra.mrb[0].mxu0 %v2637
        %v3845 = vpop.f32.mrb[0].mxu0
        %v3846 = vadd.f32 0.0, %v3845
        %v3847 = vpop.f32.mrb[0].mxu0
        %v3848 = vpop.f32.mrb[0].mxu0
        %v3849 = vadd.f32 0.0, %v3848
        %v3850 = vpop.f32.mrb[0].mxu0
        %3851 = vmatprep.mubr.bf16.mxu0 0
        %3852 = vmatmul.mubr.bf16.gmra.mrb[0].mxu0 %v2640
        %v3853 = vpop.f32.mrb[0].mxu0
        %v3854 = vadd.f32 0.0, %v3853
        %v3855 = vpop.f32.mrb[0].mxu0
        %v3856 = vpop.f32.mrb[0].mxu0
        %v3857 = vadd.f32 0.0, %v3856
        %v3858 = vpop.f32.mrb[0].mxu0
        %3859 = vmatprep.mubr.bf16.mxu0 0
        %3860 = vmatmul.mubr.bf16.gmra.mrb[0].mxu0 %v2643
        %v3861 = vpop.f32.mrb[0].mxu0
        %v3862 = vadd.f32 0.0, %v3861
        %v3863 = vpop.f32.mrb[0].mxu0
        %v3864 = vpop.f32.mrb[0].mxu0
        %v3865 = vadd.f32 0.0, %v3864
        %v3866 = vpop.f32.mrb[0].mxu0
        %3867 = vmatprep.mubr.bf16.mxu0 0
        %3868 = vmatmul.mubr.bf16.gmra.mrb[0].mxu0 %v2646
        %v3869 = vpop.f32.mrb[0].mxu0
        %v3870 = vadd.f32 0.0, %v3869
        %v3871 = vpop.f32.mrb[0].mxu0
        %v3872 = vpop.f32.mrb[0].mxu0
        %v3873 = vadd.f32 0.0, %v3872
        %v3874 = vpop.f32.mrb[0].mxu0
        %3875 = vmatprep.mubr.bf16.mxu0 0
        %3876 = vmatmul.mubr.bf16.gmra.mrb[0].mxu0 %v2649
        %v3877 = vpop.f32.mrb[0].mxu0
        %v3878 = vadd.f32 0.0, %v3877
        %v3879 = vpop.f32.mrb[0].mxu0
        %v3880 = vpop.f32.mrb[0].mxu0
        %v3881 = vadd.f32 0.0, %v3880
        %v3882 = vpop.f32.mrb[0].mxu0
        %3883 = vmatprep.mubr.bf16.mxu0 0
        %3884 = vmatmul.mubr.bf16.gmra.mrb[0].mxu0 %v2652
        %v3885 = vpop.f32.mrb[0].mxu0
        %v3886 = vadd.f32 0.0, %v3885
        %v3887 = vpop.f32.mrb[0].mxu0
        %v3888 = vpop.f32.mrb[0].mxu0
        %v3889 = vadd.f32 0.0, %v3888
        %v3890 = vpop.f32.mrb[0].mxu0
        %3891 = vmatprep.mubr.bf16.mxu0 0
        %3892 = vmatmul.mubr.bf16.gmra.mrb[0].mxu0 %v2655
        %v3893 = vpop.f32.mrb[0].mxu0
        %v3894 = vadd.f32 0.0, %v3893
        %v3895 = vpop.f32.mrb[0].mxu0
        %v3896 = vpop.f32.mrb[0].mxu0
        %v3897 = vadd.f32 0.0, %v3896
        %v3898 = vpop.f32.mrb[0].mxu0
        %3899 = vmatprep.mubr.bf16.mxu0 0
        %3900 = vmatmul.mubr.bf16.gmra.mrb[0].mxu0 %v2658
        %v3901 = vpop.f32.mrb[0].mxu0
        %v3902 = vadd.f32 0.0, %v3901
        %v3903 = vpop.f32.mrb[0].mxu0
        %v3904 = vpop.f32.mrb[0].mxu0
        %v3905 = vadd.f32 0.0, %v3904
        %v3906 = vpop.f32.mrb[0].mxu0
        %3907 = vmatprep.mubr.bf16.mxu0 0
        %3908 = vmatmul.mubr.bf16.gmra.mrb[0].mxu0 %v2661
        %v3909 = vpop.f32.mrb[0].mxu0
        %v3910 = vadd.f32 0.0, %v3909
        %v3911 = vpop.f32.mrb[0].mxu0
        %v3912 = vpop.f32.mrb[0].mxu0
        %v3913 = vadd.f32 0.0, %v3912
        %v3914 = vpop.f32.mrb[0].mxu0
        %3915 = vmatprep.mubr.bf16.mxu0 0
        %3916 = vmatmul.mubr.bf16.gmra.mrb[0].mxu0 %v2664
        %v3917 = vpop.f32.mrb[0].mxu0
        %v3918 = vadd.f32 0.0, %v3917
        %v3919 = vpop.f32.mrb[0].mxu0
        %v3920 = vpop.f32.mrb[0].mxu0
        %v3921 = vadd.f32 0.0, %v3920
        %v3922 = vpop.f32.mrb[0].mxu0
        %3923 = vmatprep.mubr.bf16.mxu0 0
        %3924 = vmatmul.mubr.bf16.gmra.mrb[0].mxu0 %v2667
        %v3925 = vpop.f32.mrb[0].mxu0
        %v3926 = vadd.f32 0.0, %v3925
        %v3927 = vpop.f32.mrb[0].mxu0
        %v3928 = vpop.f32.mrb[0].mxu0
        %v3929 = vadd.f32 0.0, %v3928
        %v3930 = vpop.f32.mrb[0].mxu0
        %3931 = vmatprep.mubr.bf16.mxu0 0
        %3932 = vmatmul.mubr.bf16.gmra.mrb[0].mxu0 %v2670
        %v3933 = vpop.f32.mrb[0].mxu0
        %v3934 = vadd.f32 0.0, %v3933
        %v3935 = vpop.f32.mrb[0].mxu0
        %v3936 = vpop.f32.mrb[0].mxu0
        %v3937 = vadd.f32 0.0, %v3936
        %v3938 = vpop.f32.mrb[0].mxu0
        %3939 = vmatprep.mubr.bf16.mxu0 0
        %3940 = vmatmul.mubr.bf16.gmra.mrb[0].mxu0 %v2673
        %v3941 = vpop.f32.mrb[0].mxu0
        %v3942 = vadd.f32 0.0, %v3941
        %v3943 = vpop.f32.mrb[0].mxu0
        %v3944 = vpop.f32.mrb[0].mxu0
        %v3945 = vadd.f32 0.0, %v3944
        %v3946 = vpop.f32.mrb[0].mxu0
        %3947 = vmatprep.mubr.bf16.mxu0 0
        %3948 = vmatmul.mubr.bf16.gmra.mrb[0].mxu0 %v2676
        %v3949 = vpop.f32.mrb[0].mxu0
        %v3950 = vadd.f32 0.0, %v3949
        %v3951 = vpop.f32.mrb[0].mxu0
        %v3952 = vpop.f32.mrb[0].mxu0
        %v3953 = vadd.f32 0.0, %v3952
        %v3954 = vpop.f32.mrb[0].mxu0
        %3955 = vmatprep.mubr.bf16.mxu0 0
        %3956 = vmatmul.mubr.bf16.gmra.mrb[0].mxu0 %v2679
        %v3957 = vpop.f32.mrb[0].mxu0
        %v3958 = vadd.f32 0.0, %v3957
        %v3959 = vpop.f32.mrb[0].mxu0
        %v3960 = vpop.f32.mrb[0].mxu0
        %v3961 = vadd.f32 0.0, %v3960
        %v3962 = vpop.f32.mrb[0].mxu0
        %3963 = vmatprep.mubr.bf16.mxu0 0
        %3964 = vmatmul.mubr.bf16.gmra.mrb[0].mxu0 %v2682
        %v3965 = vpop.f32.mrb[0].mxu0
        %v3966 = vadd.f32 0.0, %v3965
        %v3967 = vpop.f32.mrb[0].mxu0
        %v3968 = vpop.f32.mrb[0].mxu0
        %v3969 = vadd.f32 0.0, %v3968
        %v3970 = vpop.f32.mrb[0].mxu0
        %3971 = vmatprep.mubr.bf16.mxu0 0
        %3972 = vmatmul.mubr.bf16.gmra.mrb[0].mxu0 %v2685
        %v3973 = vpop.f32.mrb[0].mxu0
        %v3974 = vadd.f32 0.0, %v3973
        %v3975 = vpop.f32.mrb[0].mxu0
        %v3976 = vpop.f32.mrb[0].mxu0
        %v3977 = vadd.f32 0.0, %v3976
        %v3978 = vpop.f32.mrb[0].mxu0
        %3979 = vmatprep.mubr.bf16.mxu0 0
        %3980 = vmatmul.mubr.bf16.gmra.mrb[0].mxu0 %v2688
        %v3981 = vpop.f32.mrb[0].mxu0
        %v3982 = vadd.f32 0.0, %v3981
        %v3983 = vpop.f32.mrb[0].mxu0
        %v3984 = vpop.f32.mrb[0].mxu0
        %v3985 = vadd.f32 0.0, %v3984
        %v3986 = vpop.f32.mrb[0].mxu0
        %3987 = vmatprep.mubr.bf16.mxu0 0
        %3988 = vmatmul.mubr.bf16.gmra.mrb[0].mxu0 %v2691
        %v3989 = vpop.f32.mrb[0].mxu0
        %v3990 = vadd.f32 0.0, %v3989
        %v3991 = vpop.f32.mrb[0].mxu0
        %v3992 = vpop.f32.mrb[0].mxu0
        %v3993 = vadd.f32 0.0, %v3992
        %v3994 = vpop.f32.mrb[0].mxu0
        %3995 = vmatprep.mubr.bf16.mxu0 0
        %3996 = vmatmul.mubr.bf16.gmra.mrb[0].mxu0 %v2694
        %v3997 = vpop.f32.mrb[0].mxu0
        %v3998 = vadd.f32 0.0, %v3997
        %v3999 = vpop.f32.mrb[0].mxu0
        %v4000 = vpop.f32.mrb[0].mxu0
        %v4001 = vadd.f32 0.0, %v4000
        %v4002 = vpop.f32.mrb[0].mxu0
        %4003 = vmatprep.mubr.bf16.mxu0 0
        %4004 = vmatmul.mubr.bf16.gmra.mrb[0].mxu0 %v2697
        %v4005 = vpop.f32.mrb[0].mxu0
        %v4006 = vadd.f32 0.0, %v4005
        %v4007 = vpop.f32.mrb[0].mxu0
        %v4008 = vpop.f32.mrb[0].mxu0
        %v4009 = vadd.f32 0.0, %v4008
        %v4010 = vpop.f32.mrb[0].mxu0
        %4011 = vmatprep.mubr.bf16.mxu0 0
        %4012 = vmatmul.mubr.bf16.gmra.mrb[0].mxu0 %v2700
        %v4013 = vpop.f32.mrb[0].mxu0
        %v4014 = vadd.f32 0.0, %v4013
        %v4015 = vpop.f32.mrb[0].mxu0
        %v4016 = vpop.f32.mrb[0].mxu0
        %v4017 = vadd.f32 0.0, %v4016
        %v4018 = vpop.f32.mrb[0].mxu0
        %4019 = vmatprep.mubr.bf16.mxu0 0
        %4020 = vmatmul.mubr.bf16.gmra.mrb[0].mxu0 %v2703
        %v4021 = vpop.f32.mrb[0].mxu0
        %v4022 = vadd.f32 0.0, %v4021
        %v4023 = vpop.f32.mrb[0].mxu0
        %v4024 = vpop.f32.mrb[0].mxu0
        %v4025 = vadd.f32 0.0, %v4024
        %v4026 = vpop.f32.mrb[0].mxu0
        %4027 = vmatprep.mubr.bf16.mxu0 0
        %4028 = vmatmul.mubr.bf16.gmra.mrb[0].mxu0 %v2706
        %v4029 = vpop.f32.mrb[0].mxu0
        %v4030 = vadd.f32 0.0, %v4029
        %v4031 = vpop.f32.mrb[0].mxu0
        %v4032 = vpop.f32.mrb[0].mxu0
        %v4033 = vadd.f32 0.0, %v4032
        %v4034 = vpop.f32.mrb[0].mxu0
        %4035 = vmatprep.mubr.bf16.mxu0 0
        %4036 = vmatmul.mubr.bf16.gmra.mrb[0].mxu0 %v2709
        %v4037 = vpop.f32.mrb[0].mxu0
        %v4038 = vadd.f32 0.0, %v4037
        %v4039 = vpop.f32.mrb[0].mxu0
        %v4040 = vpop.f32.mrb[0].mxu0
        %v4041 = vadd.f32 0.0, %v4040
        %v4042 = vpop.f32.mrb[0].mxu0
        %4043 = vmatprep.mubr.bf16.mxu0 0
        %4044 = vmatmul.mubr.bf16.gmra.mrb[0].mxu0 %v2712
        %v4045 = vpop.f32.mrb[0].mxu0
        %v4046 = vadd.f32 0.0, %v4045
        %v4047 = vpop.f32.mrb[0].mxu0
        %v4048 = vpop.f32.mrb[0].mxu0
        %v4049 = vadd.f32 0.0, %v4048
        %v4050 = vpop.f32.mrb[0].mxu0
        %4051 = vmatprep.mubr.bf16.mxu0 0
        %4052 = vmatmul.mubr.bf16.gmra.mrb[0].mxu0 %v2715
        %v4053 = vpop.f32.mrb[0].mxu0
        %v4054 = vadd.f32 0.0, %v4053
        %v4055 = vpop.f32.mrb[0].mxu0
        %v4056 = vpop.f32.mrb[0].mxu0
        %v4057 = vadd.f32 0.0, %v4056
        %v4058 = vpop.f32.mrb[0].mxu0
        %4059 = vmatprep.mubr.bf16.mxu0 0
        %4060 = vmatmul.mubr.bf16.gmra.mrb[0].mxu0 %v2718
        %v4061 = vpop.f32.mrb[0].mxu0
        %v4062 = vadd.f32 0.0, %v4061
        %v4063 = vpop.f32.mrb[0].mxu0
        %v4064 = vpop.f32.mrb[0].mxu0
        %v4065 = vadd.f32 0.0, %v4064
        %v4066 = vpop.f32.mrb[0].mxu0
        %4067 = vmatprep.mubr.bf16.mxu0 0
        %4068 = vmatmul.mubr.bf16.gmra.mrb[0].mxu0 %v2721
        %v4069 = vpop.f32.mrb[0].mxu0
        %v4070 = vadd.f32 0.0, %v4069
        %v4071 = vpop.f32.mrb[0].mxu0
        %v4072 = vpop.f32.mrb[0].mxu0
        %v4073 = vadd.f32 0.0, %v4072
        %v4074 = vpop.f32.mrb[0].mxu0
        %4075 = vmatprep.mubr.bf16.mxu0 0
        %4076 = vmatmul.mubr.bf16.gmra.mrb[0].mxu0 %v2724
        %v4077 = vpop.f32.mrb[0].mxu0
        %v4078 = vadd.f32 0.0, %v4077
        %v4079 = vpop.f32.mrb[0].mxu0
        %v4080 = vpop.f32.mrb[0].mxu0
        %v4081 = vadd.f32 0.0, %v4080
        %v4082 = vpop.f32.mrb[0].mxu0
        %4083 = vmatprep.mubr.bf16.mxu0 0
        %4084 = vmatmul.mubr.bf16.gmra.mrb[0].mxu0 %v2727
        %v4085 = vpop.f32.mrb[0].mxu0
        %v4086 = vadd.f32 0.0, %v4085
        %v4087 = vpop.f32.mrb[0].mxu0
        %v4088 = vpop.f32.mrb[0].mxu0
        %v4089 = vadd.f32 0.0, %v4088
        %v4090 = vpop.f32.mrb[0].mxu0
        %4091 = vmatprep.mubr.bf16.mxu0 0
        %4092 = vmatmul.mubr.bf16.gmra.mrb[0].mxu0 %v2730
        %v4093 = vpop.f32.mrb[0].mxu0
        %v4094 = vadd.f32 0.0, %v4093
        %v4095 = vpop.f32.mrb[0].mxu0
        %v4096 = vpop.f32.mrb[0].mxu0
        %v4097 = vadd.f32 0.0, %v4096
        %v4098 = vpop.f32.mrb[0].mxu0
        %4099 = vmatprep.mubr.bf16.mxu0 0
        %4100 = vmatmul.mubr.bf16.gmra.mrb[0].mxu0 %v2733
        %v4101 = vpop.f32.mrb[0].mxu0
        %v4102 = vadd.f32 0.0, %v4101
        %v4103 = vpop.f32.mrb[0].mxu0
        %v4104 = vpop.f32.mrb[0].mxu0
        %v4105 = vadd.f32 0.0, %v4104
        %v4106 = vpop.f32.mrb[0].mxu0
        %4107 = vmatprep.mubr.bf16.mxu0 0
        %4108 = vmatmul.mubr.bf16.gmra.mrb[0].mxu0 %v2736
        %v4109 = vpop.f32.mrb[0].mxu0
        %v4110 = vadd.f32 0.0, %v4109
        %v4111 = vpop.f32.mrb[0].mxu0
        %v4112 = vpop.f32.mrb[0].mxu0
        %v4113 = vadd.f32 0.0, %v4112
        %v4114 = vpop.f32.mrb[0].mxu0
        %4115 = vmatprep.mubr.bf16.mxu0 0
        %4116 = vmatmul.mubr.bf16.gmra.mrb[0].mxu0 %v2739
        %v4117 = vpop.f32.mrb[0].mxu0
        %v4118 = vadd.f32 0.0, %v4117
        %v4119 = vpop.f32.mrb[0].mxu0
        %v4120 = vpop.f32.mrb[0].mxu0
        %v4121 = vadd.f32 0.0, %v4120
        %v4122 = vpop.f32.mrb[0].mxu0
        %4123 = vmatprep.mubr.bf16.mxu0 0
        %4124 = vmatmul.mubr.bf16.gmra.mrb[0].mxu0 %v2742
        %v4125 = vpop.f32.mrb[0].mxu0
        %v4126 = vadd.f32 0.0, %v4125
        %v4127 = vpop.f32.mrb[0].mxu0
        %v4128 = vpop.f32.mrb[0].mxu0
        %v4129 = vadd.f32 0.0, %v4128
        %v4130 = vpop.f32.mrb[0].mxu0
        %4131 = vmatprep.mubr.bf16.mxu0 0
        %4132 = vmatmul.mubr.bf16.gmra.mrb[0].mxu0 %v2745
        %v4133 = vpop.f32.mrb[0].mxu0
        %v4134 = vadd.f32 0.0, %v4133
        %v4135 = vpop.f32.mrb[0].mxu0
        %v4136 = vpop.f32.mrb[0].mxu0
        %v4137 = vadd.f32 0.0, %v4136
        %v4138 = vpop.f32.mrb[0].mxu0
        %4139 = vmatprep.mubr.bf16.mxu0 0
        %4140 = vmatmul.mubr.bf16.gmra.mrb[0].mxu0 %v2748
        %v4141 = vpop.f32.mrb[0].mxu0
        %v4142 = vadd.f32 0.0, %v4141
        %v4143 = vpop.f32.mrb[0].mxu0
        %v4144 = vpop.f32.mrb[0].mxu0
        %v4145 = vadd.f32 0.0, %v4144
        %v4146 = vpop.f32.mrb[0].mxu0
        %4147 = vmatprep.mubr.bf16.mxu0 0
        %4148 = vmatmul.mubr.bf16.gmra.mrb[0].mxu0 %v2751
        %v4149 = vpop.f32.mrb[0].mxu0
        %v4150 = vadd.f32 0.0, %v4149
        %v4151 = vpop.f32.mrb[0].mxu0
        %v4152 = vpop.f32.mrb[0].mxu0
        %v4153 = vadd.f32 0.0, %v4152
        %v4154 = vpop.f32.mrb[0].mxu0
        %4155 = vmatprep.mubr.bf16.mxu0 0
        %4156 = vmatmul.mubr.bf16.gmra.mrb[0].mxu0 %v2754
        %v4157 = vpop.f32.mrb[0].mxu0
        %v4158 = vadd.f32 0.0, %v4157
        %v4159 = vpop.f32.mrb[0].mxu0
        %v4160 = vpop.f32.mrb[0].mxu0
        %v4161 = vadd.f32 0.0, %v4160
        %v4162 = vpop.f32.mrb[0].mxu0
        %4163 = vmatprep.mubr.bf16.mxu0 0
        %4164 = vmatmul.mubr.bf16.gmra.mrb[0].mxu0 %v2757
        %v4165 = vpop.f32.mrb[0].mxu0
        %v4166 = vadd.f32 0.0, %v4165
        %v4167 = vpop.f32.mrb[0].mxu0
        %v4168 = vpop.f32.mrb[0].mxu0
        %v4169 = vadd.f32 0.0, %v4168
        %v4170 = vpop.f32.mrb[0].mxu0
        %4171 = vmatprep.mubr.bf16.mxu0 0
        %4172 = vmatmul.mubr.bf16.gmra.mrb[0].mxu0 %v2760
        %v4173 = vpop.f32.mrb[0].mxu0
        %v4174 = vadd.f32 0.0, %v4173
        %v4175 = vpop.f32.mrb[0].mxu0
        %v4176 = vpop.f32.mrb[0].mxu0
        %v4177 = vadd.f32 0.0, %v4176
        %v4178 = vpop.f32.mrb[0].mxu0
        %4179 = vmatprep.mubr.bf16.mxu0 0
        %4180 = vmatmul.mubr.bf16.gmra.mrb[0].mxu0 %v2763
        %v4181 = vpop.f32.mrb[0].mxu0
        %v4182 = vadd.f32 0.0, %v4181
        %v4183 = vpop.f32.mrb[0].mxu0
        %v4184 = vpop.f32.mrb[0].mxu0
        %v4185 = vadd.f32 0.0, %v4184
        %v4186 = vpop.f32.mrb[0].mxu0
        %4187 = vmatprep.mubr.bf16.mxu0 0
        %4188 = vmatmul.mubr.bf16.gmra.mrb[0].mxu0 %v2766
        %v4189 = vpop.f32.mrb[0].mxu0
        %v4190 = vadd.f32 0.0, %v4189
        %v4191 = vpop.f32.mrb[0].mxu0
        %v4192 = vpop.f32.mrb[0].mxu0
        %v4193 = vadd.f32 0.0, %v4192
        %v4194 = vpop.f32.mrb[0].mxu0
        %4195 = vmatprep.mubr.bf16.mxu0 0
        %4196 = vmatmul.mubr.bf16.gmra.mrb[0].mxu0 %v2769
        %v4197 = vpop.f32.mrb[0].mxu0
        %v4198 = vadd.f32 0.0, %v4197
        %v4199 = vpop.f32.mrb[0].mxu0
        %v4200 = vpop.f32.mrb[0].mxu0
        %v4201 = vadd.f32 0.0, %v4200
        %v4202 = vpop.f32.mrb[0].mxu0
        %4203 = vmatprep.mubr.bf16.mxu0 0
        %4204 = vmatmul.mubr.bf16.gmra.mrb[0].mxu0 %v2772
        %v4205 = vpop.f32.mrb[0].mxu0
        %v4206 = vadd.f32 0.0, %v4205
        %v4207 = vpop.f32.mrb[0].mxu0
        %v4208 = vpop.f32.mrb[0].mxu0
        %v4209 = vadd.f32 0.0, %v4208
        %v4210 = vpop.f32.mrb[0].mxu0
        %4211 = vmatprep.mubr.bf16.mxu0 0
        %4212 = vmatmul.mubr.bf16.gmra.mrb[0].mxu0 %v2775
        %v4213 = vpop.f32.mrb[0].mxu0
        %v4214 = vadd.f32 0.0, %v4213
        %v4215 = vpop.f32.mrb[0].mxu0
        %v4216 = vpop.f32.mrb[0].mxu0
        %v4217 = vadd.f32 0.0, %v4216
        %v4218 = vpop.f32.mrb[0].mxu0
        %4219 = vmatprep.mubr.bf16.mxu0 0
        %4220 = vmatmul.mubr.bf16.gmra.mrb[0].mxu0 %v2778
        %v4221 = vpop.f32.mrb[0].mxu0
        %v4222 = vadd.f32 0.0, %v4221
        %v4223 = vpop.f32.mrb[0].mxu0
        %v4224 = vpop.f32.mrb[0].mxu0
        %v4225 = vadd.f32 0.0, %v4224
        %v4226 = vpop.f32.mrb[0].mxu0
        %4227 = vmatprep.mubr.bf16.mxu0 0
        %4228 = vmatmul.mubr.bf16.gmra.mrb[0].mxu0 %v2781
        %v4229 = vpop.f32.mrb[0].mxu0
        %v4230 = vadd.f32 0.0, %v4229
        %v4231 = vpop.f32.mrb[0].mxu0
        %v4232 = vpop.f32.mrb[0].mxu0
        %v4233 = vadd.f32 0.0, %v4232
        %v4234 = vpop.f32.mrb[0].mxu0
        %4235 = vmatprep.mubr.bf16.mxu0 0
        %4236 = vmatmul.mubr.bf16.gmra.mrb[0].mxu0 %v2784
        %v4237 = vpop.f32.mrb[0].mxu0
        %v4238 = vadd.f32 0.0, %v4237
        %v4239 = vpop.f32.mrb[0].mxu0
        %v4240 = vpop.f32.mrb[0].mxu0
        %v4241 = vadd.f32 0.0, %v4240
        %v4242 = vpop.f32.mrb[0].mxu0
        %4243 = vmatprep.mubr.bf16.mxu0 0
        %4244 = vmatmul.mubr.bf16.gmra.mrb[0].mxu0 %v2787
        %v4245 = vpop.f32.mrb[0].mxu0
        %v4246 = vadd.f32 0.0, %v4245
        %v4247 = vpop.f32.mrb[0].mxu0
        %v4248 = vpop.f32.mrb[0].mxu0
        %v4249 = vadd.f32 0.0, %v4248
        %v4250 = vpop.f32.mrb[0].mxu0
        %4251 = vmatprep.mubr.bf16.mxu0 0
        %4252 = vmatmul.mubr.bf16.gmra.mrb[0].mxu0 %v2790
        %v4253 = vpop.f32.mrb[0].mxu0
        %v4254 = vadd.f32 0.0, %v4253
        %v4255 = vpop.f32.mrb[0].mxu0
        %v4256 = vpop.f32.mrb[0].mxu0
        %v4257 = vadd.f32 0.0, %v4256
        %v4258 = vpop.f32.mrb[0].mxu0
        %4259 = vmatprep.mubr.bf16.mxu0 0
        %4260 = vmatmul.mubr.bf16.gmra.mrb[0].mxu0 %v2793
        %v4261 = vpop.f32.mrb[0].mxu0
        %v4262 = vadd.f32 0.0, %v4261
        %v4263 = vpop.f32.mrb[0].mxu0
        %v4264 = vpop.f32.mrb[0].mxu0
        %v4265 = vadd.f32 0.0, %v4264
        %v4266 = vpop.f32.mrb[0].mxu0
        %4267 = vmatprep.mubr.bf16.mxu0 0
        %4268 = vmatmul.mubr.bf16.gmra.mrb[0].mxu0 %v2796
        %v4269 = vpop.f32.mrb[0].mxu0
        %v4270 = vadd.f32 0.0, %v4269
        %v4271 = vpop.f32.mrb[0].mxu0
        %v4272 = vpop.f32.mrb[0].mxu0
        %v4273 = vadd.f32 0.0, %v4272
        %v4274 = vpop.f32.mrb[0].mxu0
        %4275 = vmatprep.mubr.bf16.mxu0 0
        %4276 = vmatmul.mubr.bf16.gmra.mrb[0].mxu0 %v2799
        %v4277 = vpop.f32.mrb[0].mxu0
        %v4278 = vadd.f32 0.0, %v4277
        %v4279 = vpop.f32.mrb[0].mxu0
        %v4280 = vpop.f32.mrb[0].mxu0
        %v4281 = vadd.f32 0.0, %v4280
        %v4282 = vpop.f32.mrb[0].mxu0
        %4283 = vmatprep.mubr.bf16.mxu0 0
        %4284 = vmatmul.mubr.bf16.gmra.mrb[0].mxu0 %v2802
        %v4285 = vpop.f32.mrb[0].mxu0
        %v4286 = vadd.f32 0.0, %v4285
        %v4287 = vpop.f32.mrb[0].mxu0
        %v4288 = vpop.f32.mrb[0].mxu0
        %v4289 = vadd.f32 0.0, %v4288
        %v4290 = vpop.f32.mrb[0].mxu0
        %4291 = vmatprep.mubr.bf16.mxu0 0
        %4292 = vmatmul.mubr.bf16.gmra.mrb[0].mxu0 %v2805
        %v4293 = vpop.f32.mrb[0].mxu0
        %v4294 = vadd.f32 0.0, %v4293
        %v4295 = vpop.f32.mrb[0].mxu0
        %v4296 = vpop.f32.mrb[0].mxu0
        %v4297 = vadd.f32 0.0, %v4296
        %v4298 = vpop.f32.mrb[0].mxu0
        %4299 = vmatprep.mubr.bf16.mxu0 0
        %4300 = vmatmul.mubr.bf16.gmra.mrb[0].mxu0 %v2808
        %v4301 = vpop.f32.mrb[0].mxu0
        %v4302 = vadd.f32 0.0, %v4301
        %v4303 = vpop.f32.mrb[0].mxu0
        %v4304 = vpop.f32.mrb[0].mxu0
        %v4305 = vadd.f32 0.0, %v4304
        %v4306 = vpop.f32.mrb[0].mxu0
        %4307 = vmatprep.mubr.bf16.mxu0 0
        %4308 = vmatmul.mubr.bf16.gmra.mrb[0].mxu0 %v2811
        %v4309 = vpop.f32.mrb[0].mxu0
        %v4310 = vadd.f32 0.0, %v4309
        %v4311 = vpop.f32.mrb[0].mxu0
        %v4312 = vpop.f32.mrb[0].mxu0
        %v4313 = vadd.f32 0.0, %v4312
        %v4314 = vpop.f32.mrb[0].mxu0
        %4315 = vmatprep.mubr.bf16.mxu0 0
        %4316 = vmatmul.mubr.bf16.gmra.mrb[0].mxu0 %v2814
        %v4317 = vpop.f32.mrb[0].mxu0
        %v4318 = vadd.f32 0.0, %v4317
        %v4319 = vpop.f32.mrb[0].mxu0
        %v4320 = vpop.f32.mrb[0].mxu0
        %v4321 = vadd.f32 0.0, %v4320
        %v4322 = vpop.f32.mrb[0].mxu0
        %4323 = vmatprep.mubr.bf16.mxu0 0
        %4324 = vmatmul.mubr.bf16.gmra.mrb[0].mxu0 %v2817
        %v4325 = vpop.f32.mrb[0].mxu0
        %v4326 = vadd.f32 0.0, %v4325
        %v4327 = vpop.f32.mrb[0].mxu0
        %v4328 = vpop.f32.mrb[0].mxu0
        %v4329 = vadd.f32 0.0, %v4328
        %v4330 = vpop.f32.mrb[0].mxu0
        %4331 = vmatprep.mubr.bf16.mxu0 0
        %4332 = vmatmul.mubr.bf16.gmra.mrb[0].mxu0 %v2820
        %v4333 = vpop.f32.mrb[0].mxu0
        %v4334 = vadd.f32 0.0, %v4333
        %v4335 = vpop.f32.mrb[0].mxu0
        %v4336 = vpop.f32.mrb[0].mxu0
        %v4337 = vadd.f32 0.0, %v4336
        %v4338 = vpop.f32.mrb[0].mxu0
        %4339 = vmatprep.mubr.bf16.mxu0 0
        %4340 = vmatmul.mubr.bf16.gmra.mrb[0].mxu0 %v2823
        %v4341 = vpop.f32.mrb[0].mxu0
        %v4342 = vadd.f32 0.0, %v4341
        %v4343 = vpop.f32.mrb[0].mxu0
        %v4344 = vpop.f32.mrb[0].mxu0
        %v4345 = vadd.f32 0.0, %v4344
        %v4346 = vpop.f32.mrb[0].mxu0
        %4347 = vmatprep.mubr.bf16.mxu0 0
        %4348 = vmatmul.mubr.bf16.gmra.mrb[0].mxu0 %v2826
        %v4349 = vpop.f32.mrb[0].mxu0
        %v4350 = vadd.f32 0.0, %v4349
        %v4351 = vpop.f32.mrb[0].mxu0
        %v4352 = vpop.f32.mrb[0].mxu0
        %v4353 = vadd.f32 0.0, %v4352
        %v4354 = vpop.f32.mrb[0].mxu0
        %4355 = vmatprep.mubr.bf16.mxu0 0
        %4356 = vmatmul.mubr.bf16.gmra.mrb[0].mxu0 %v2829
        %v4357 = vpop.f32.mrb[0].mxu0
        %v4358 = vadd.f32 0.0, %v4357
        %v4359 = vpop.f32.mrb[0].mxu0
        %v4360 = vpop.f32.mrb[0].mxu0
        %v4361 = vadd.f32 0.0, %v4360
        %v4362 = vpop.f32.mrb[0].mxu0
        %4363 = vmatprep.mubr.bf16.mxu0 0
        %4364 = vmatmul.mubr.bf16.gmra.mrb[0].mxu0 %v2832
        %v4365 = vpop.f32.mrb[0].mxu0
        %v4366 = vadd.f32 0.0, %v4365
        %v4367 = vpop.f32.mrb[0].mxu0
        %v4368 = vpop.f32.mrb[0].mxu0
        %v4369 = vadd.f32 0.0, %v4368
        %v4370 = vpop.f32.mrb[0].mxu0
        %4371 = vmatprep.mubr.bf16.mxu0 0
        %4372 = vmatmul.mubr.bf16.gmra.mrb[0].mxu0 %v2835
        %v4373 = vpop.f32.mrb[0].mxu0
        %v4374 = vadd.f32 0.0, %v4373
        %v4375 = vpop.f32.mrb[0].mxu0
        %v4376 = vpop.f32.mrb[0].mxu0
        %v4377 = vadd.f32 0.0, %v4376
        %v4378 = vpop.f32.mrb[0].mxu0
        %4379 = vmatprep.mubr.bf16.mxu0 0
        %4380 = vmatmul.mubr.bf16.gmra.mrb[0].mxu0 %v2838
        %v4381 = vpop.f32.mrb[0].mxu0
        %v4382 = vadd.f32 0.0, %v4381
        %v4383 = vpop.f32.mrb[0].mxu0
        %v4384 = vpop.f32.mrb[0].mxu0
        %v4385 = vadd.f32 0.0, %v4384
        %v4386 = vpop.f32.mrb[0].mxu0
        %4387 = vmatprep.mubr.bf16.mxu0 0
        %4388 = vmatmul.mubr.bf16.gmra.mrb[0].mxu0 %v2841
        %v4389 = vpop.f32.mrb[0].mxu0
        %v4390 = vadd.f32 0.0, %v4389
        %v4391 = vpop.f32.mrb[0].mxu0
        %v4392 = vpop.f32.mrb[0].mxu0
        %v4393 = vadd.f32 0.0, %v4392
        %v4394 = vpop.f32.mrb[0].mxu0
        %4395 = vmatprep.mubr.bf16.mxu0 0
        %4396 = vmatmul.mubr.bf16.gmra.mrb[0].mxu0 %v2844
        %v4397 = vpop.f32.mrb[0].mxu0
        %v4398 = vadd.f32 0.0, %v4397
        %v4399 = vpop.f32.mrb[0].mxu0
        %v4400 = vpop.f32.mrb[0].mxu0
        %v4401 = vadd.f32 0.0, %v4400
        %v4402 = vpop.f32.mrb[0].mxu0
        %4403 = vmatprep.mubr.bf16.mxu0 0
        %4404 = vmatmul.mubr.bf16.gmra.mrb[0].mxu0 %v2847
        %v4405 = vpop.f32.mrb[0].mxu0
        %v4406 = vadd.f32 0.0, %v4405
        %v4407 = vpop.f32.mrb[0].mxu0
        %v4408 = vpop.f32.mrb[0].mxu0
        %v4409 = vadd.f32 0.0, %v4408
        %v4410 = vpop.f32.mrb[0].mxu0
        %4411 = vmatprep.mubr.bf16.mxu0 0
        %4412 = vmatmul.mubr.bf16.gmra.mrb[0].mxu0 %v2850
        %v4413 = vpop.f32.mrb[0].mxu0
        %v4414 = vadd.f32 0.0, %v4413
        %v4415 = vpop.f32.mrb[0].mxu0
        %v4416 = vpop.f32.mrb[0].mxu0
        %v4417 = vadd.f32 0.0, %v4416
        %v4418 = vpop.f32.mrb[0].mxu0
        %4419 = vmatprep.mubr.bf16.mxu0 0
        %4420 = vmatmul.mubr.bf16.gmra.mrb[0].mxu0 %v2853
        %v4421 = vpop.f32.mrb[0].mxu0
        %v4422 = vadd.f32 0.0, %v4421
        %v4423 = vpop.f32.mrb[0].mxu0
        %v4424 = vpop.f32.mrb[0].mxu0
        %v4425 = vadd.f32 0.0, %v4424
        %v4426 = vpop.f32.mrb[0].mxu0
        %4427 = vmatprep.mubr.bf16.mxu0 0
        %4428 = vmatmul.mubr.bf16.gmra.mrb[0].mxu0 %v2856
        %v4429 = vpop.f32.mrb[0].mxu0
        %v4430 = vadd.f32 0.0, %v4429
        %v4431 = vpop.f32.mrb[0].mxu0
        %v4432 = vpop.f32.mrb[0].mxu0
        %v4433 = vadd.f32 0.0, %v4432
        %v4434 = vpop.f32.mrb[0].mxu0
        %4435 = vmatprep.mubr.bf16.mxu0 0
        %4436 = vmatmul.mubr.bf16.gmra.mrb[0].mxu0 %v2859
        %v4437 = vpop.f32.mrb[0].mxu0
        %v4438 = vadd.f32 0.0, %v4437
        %v4439 = vpop.f32.mrb[0].mxu0
        %v4440 = vpop.f32.mrb[0].mxu0
        %v4441 = vadd.f32 0.0, %v4440
        %v4442 = vpop.f32.mrb[0].mxu0
        %4443 = vmatprep.mubr.bf16.mxu0 0
        %4444 = vmatmul.mubr.bf16.gmra.mrb[0].mxu0 %v2862
        %v4445 = vpop.f32.mrb[0].mxu0
        %v4446 = vadd.f32 0.0, %v4445
        %v4447 = vpop.f32.mrb[0].mxu0
        %v4448 = vpop.f32.mrb[0].mxu0
        %v4449 = vadd.f32 0.0, %v4448
        %v4450 = vpop.f32.mrb[0].mxu0
        %4451 = vmatprep.mubr.bf16.mxu0 0
        %4452 = vmatmul.mubr.bf16.gmra.mrb[0].mxu0 %v2865
        %v4453 = vpop.f32.mrb[0].mxu0
        %v4454 = vadd.f32 0.0, %v4453
        %v4455 = vpop.f32.mrb[0].mxu0
        %v4456 = vpop.f32.mrb[0].mxu0
        %v4457 = vadd.f32 0.0, %v4456
        %v4458 = vpop.f32.mrb[0].mxu0
        %4459 = vmatprep.mubr.bf16.mxu0 0
        %4460 = vmatmul.mubr.bf16.gmra.mrb[0].mxu0 %v2868
        %v4461 = vpop.f32.mrb[0].mxu0
        %v4462 = vadd.f32 0.0, %v4461
        %v4463 = vpop.f32.mrb[0].mxu0
        %v4464 = vpop.f32.mrb[0].mxu0
        %v4465 = vadd.f32 0.0, %v4464
        %v4466 = vpop.f32.mrb[0].mxu0
        %4467 = vmatprep.mubr.bf16.mxu0 0
        %4468 = vmatmul.mubr.bf16.gmra.mrb[0].mxu0 %v2871
        %v4469 = vpop.f32.mrb[0].mxu0
        %v4470 = vadd.f32 0.0, %v4469
        %v4471 = vpop.f32.mrb[0].mxu0
        %v4472 = vpop.f32.mrb[0].mxu0
        %v4473 = vadd.f32 0.0, %v4472
        %v4474 = vpop.f32.mrb[0].mxu0
        %4475 = vmatprep.mubr.bf16.mxu0 0
        %4476 = vmatmul.mubr.bf16.gmra.mrb[0].mxu0 %v2874
        %v4477 = vpop.f32.mrb[0].mxu0
        %v4478 = vadd.f32 0.0, %v4477
        %v4479 = vpop.f32.mrb[0].mxu0
        %v4480 = vpop.f32.mrb[0].mxu0
        %v4481 = vadd.f32 0.0, %v4480
        %v4482 = vpop.f32.mrb[0].mxu0
        %4483 = vmatprep.mubr.bf16.mxu0 0
        %4484 = vmatmul.mubr.bf16.gmra.mrb[0].mxu0 %v2877
        %v4485 = vpop.f32.mrb[0].mxu0
        %v4486 = vadd.f32 0.0, %v4485
        %v4487 = vpop.f32.mrb[0].mxu0
        %v4488 = vpop.f32.mrb[0].mxu0
        %v4489 = vadd.f32 0.0, %v4488
        %v4490 = vpop.f32.mrb[0].mxu0
        %4491 = vmatprep.mubr.bf16.mxu0 0
        %4492 = vmatmul.mubr.bf16.gmra.mrb[0].mxu0 %v2880
        %v4493 = vpop.f32.mrb[0].mxu0
        %v4494 = vadd.f32 0.0, %v4493
        %v4495 = vpop.f32.mrb[0].mxu0
        %v4496 = vpop.f32.mrb[0].mxu0
        %v4497 = vadd.f32 0.0, %v4496
        %v4498 = vpop.f32.mrb[0].mxu0
        %4499 = vmatprep.mubr.bf16.mxu0 0
        %4500 = vmatmul.mubr.bf16.gmra.mrb[0].mxu0 %v2883
        %v4501 = vpop.f32.mrb[0].mxu0
        %v4502 = vadd.f32 0.0, %v4501
        %v4503 = vpop.f32.mrb[0].mxu0
        %v4504 = vpop.f32.mrb[0].mxu0
        %v4505 = vadd.f32 0.0, %v4504
        %v4506 = vpop.f32.mrb[0].mxu0
        %4507 = vmatprep.mubr.bf16.mxu0 0
        %4508 = vmatmul.mubr.bf16.gmra.mrb[0].mxu0 %v2886
        %v4509 = vpop.f32.mrb[0].mxu0
        %v4510 = vadd.f32 0.0, %v4509
        %v4511 = vpop.f32.mrb[0].mxu0
        %v4512 = vpop.f32.mrb[0].mxu0
        %v4513 = vadd.f32 0.0, %v4512
        %v4514 = vpop.f32.mrb[0].mxu0
        %4515 = vmatprep.mubr.bf16.mxu0 0
        %4516 = vmatmul.mubr.bf16.gmra.mrb[0].mxu0 %v2889
        %v4517 = vpop.f32.mrb[0].mxu0
        %v4518 = vadd.f32 0.0, %v4517
        %v4519 = vpop.f32.mrb[0].mxu0
        %v4520 = vpop.f32.mrb[0].mxu0
        %v4521 = vadd.f32 0.0, %v4520
        %v4522 = vpop.f32.mrb[0].mxu0
        %4523 = vmatprep.mubr.bf16.mxu0 0
        %4524 = vmatmul.mubr.bf16.gmra.mrb[0].mxu0 %v2892
        %v4525 = vpop.f32.mrb[0].mxu0
        %v4526 = vadd.f32 0.0, %v4525
        %v4527 = vpop.f32.mrb[0].mxu0
        %v4528 = vpop.f32.mrb[0].mxu0
        %v4529 = vadd.f32 0.0, %v4528
        %v4530 = vpop.f32.mrb[0].mxu0
        %4531 = vmatprep.mubr.bf16.mxu0 0
        %4532 = vmatmul.mubr.bf16.gmra.mrb[0].mxu0 %v2895
        %v4533 = vpop.f32.mrb[0].mxu0
        %v4534 = vadd.f32 0.0, %v4533
        %v4535 = vpop.f32.mrb[0].mxu0
        %v4536 = vpop.f32.mrb[0].mxu0
        %v4537 = vadd.f32 0.0, %v4536
        %v4538 = vpop.f32.mrb[0].mxu0
        %4539 = vmatprep.mubr.bf16.mxu0 0
        %4540 = vmatmul.mubr.bf16.gmra.mrb[0].mxu0 %v2898
        %v4541 = vpop.f32.mrb[0].mxu0
        %v4542 = vadd.f32 0.0, %v4541
        %v4543 = vpop.f32.mrb[0].mxu0
        %v4544 = vpop.f32.mrb[0].mxu0
        %v4545 = vadd.f32 0.0, %v4544
        %v4546 = vpop.f32.mrb[0].mxu0
        %4547 = vmatprep.mubr.bf16.mxu0 0
        %4548 = vmatmul.mubr.bf16.gmra.mrb[0].mxu0 %v2901
        %v4549 = vpop.f32.mrb[0].mxu0
        %v4550 = vadd.f32 0.0, %v4549
        %v4551 = vpop.f32.mrb[0].mxu0
        %v4552 = vpop.f32.mrb[0].mxu0
        %v4553 = vadd.f32 0.0, %v4552
        %v4554 = vpop.f32.mrb[0].mxu0
        %4555 = vmatprep.mubr.bf16.mxu0 0
        %4556 = vmatmul.mubr.bf16.gmra.mrb[0].mxu0 %v2904
        %v4557 = vpop.f32.mrb[0].mxu0
        %v4558 = vadd.f32 0.0, %v4557
        %v4559 = vpop.f32.mrb[0].mxu0
        %v4560 = vpop.f32.mrb[0].mxu0
        %v4561 = vadd.f32 0.0, %v4560
        %v4562 = vpop.f32.mrb[0].mxu0
        %4563 = vmatprep.mubr.bf16.mxu0 0
        %4564 = vmatmul.mubr.bf16.gmra.mrb[0].mxu0 %v2907
        %v4565 = vpop.f32.mrb[0].mxu0
        %v4566 = vadd.f32 0.0, %v4565
        %v4567 = vpop.f32.mrb[0].mxu0
        %v4568 = vpop.f32.mrb[0].mxu0
        %v4569 = vadd.f32 0.0, %v4568
        %v4570 = vpop.f32.mrb[0].mxu0
        %4571 = vmatprep.mubr.bf16.mxu0 0
        %4572 = vmatmul.mubr.bf16.gmra.mrb[0].mxu0 %v2910
        %v4573 = vpop.f32.mrb[0].mxu0
        %v4574 = vadd.f32 0.0, %v4573
        %v4575 = vpop.f32.mrb[0].mxu0
        %v4576 = vpop.f32.mrb[0].mxu0
        %v4577 = vadd.f32 0.0, %v4576
        %v4578 = vpop.f32.mrb[0].mxu0
        %4579 = vmatprep.mubr.bf16.mxu0 0
        %4580 = vmatmul.mubr.bf16.gmra.mrb[0].mxu0 %v2913
        %v4581 = vpop.f32.mrb[0].mxu0
        %v4582 = vadd.f32 0.0, %v4581
        %v4583 = vpop.f32.mrb[0].mxu0
        %v4584 = vpop.f32.mrb[0].mxu0
        %v4585 = vadd.f32 0.0, %v4584
        %v4586 = vpop.f32.mrb[0].mxu0
        %4587 = vmatprep.mubr.bf16.mxu0 0
        %4588 = vmatmul.mubr.bf16.gmra.mrb[0].mxu0 %v2916
        %v4589 = vpop.f32.mrb[0].mxu0
        %v4590 = vadd.f32 0.0, %v4589
        %v4591 = vpop.f32.mrb[0].mxu0
        %v4592 = vpop.f32.mrb[0].mxu0
        %v4593 = vadd.f32 0.0, %v4592
        %v4594 = vpop.f32.mrb[0].mxu0
        %4595 = vmatprep.mubr.bf16.mxu0 0
        %4596 = vmatmul.mubr.bf16.gmra.mrb[0].mxu0 %v2919
        %v4597 = vpop.f32.mrb[0].mxu0
        %v4598 = vadd.f32 0.0, %v4597
        %v4599 = vpop.f32.mrb[0].mxu0
        %v4600 = vpop.f32.mrb[0].mxu0
        %v4601 = vadd.f32 0.0, %v4600
        %v4602 = vpop.f32.mrb[0].mxu0
        %4603 = vmatprep.mubr.bf16.mxu0 0
        %4604 = vmatmul.mubr.bf16.gmra.mrb[0].mxu0 %v2922
        %v4605 = vpop.f32.mrb[0].mxu0
        %v4606 = vadd.f32 0.0, %v4605
        %v4607 = vpop.f32.mrb[0].mxu0
        %v4608 = vpop.f32.mrb[0].mxu0
        %v4609 = vadd.f32 0.0, %v4608
        %v4610 = vpop.f32.mrb[0].mxu0
        %4611 = vmatprep.mubr.bf16.mxu0 0
        %4612 = vmatmul.mubr.bf16.gmra.mrb[0].mxu0 %v2925
        %v4613 = vpop.f32.mrb[0].mxu0
        %v4614 = vadd.f32 0.0, %v4613
        %v4615 = vpop.f32.mrb[0].mxu0
        %v4616 = vpop.f32.mrb[0].mxu0
        %v4617 = vadd.f32 0.0, %v4616
        %v4618 = vpop.f32.mrb[0].mxu0
        %4619 = vmatprep.mubr.bf16.mxu0 0
        %4620 = vmatmul.mubr.bf16.gmra.mrb[0].mxu0 %v2928
        %v4621 = vpop.f32.mrb[0].mxu0
        %v4622 = vadd.f32 0.0, %v4621
        %v4623 = vpop.f32.mrb[0].mxu0
        %v4624 = vpop.f32.mrb[0].mxu0
        %v4625 = vadd.f32 0.0, %v4624
        %v4626 = vpop.f32.mrb[0].mxu0
        %4627 = vmatprep.mubr.bf16.mxu0 0
        %4628 = vmatmul.mubr.bf16.gmra.mrb[0].mxu0 %v2931
        %v4629 = vpop.f32.mrb[0].mxu0
        %v4630 = vadd.f32 0.0, %v4629
        %v4631 = vpop.f32.mrb[0].mxu0
        %v4632 = vpop.f32.mrb[0].mxu0
        %v4633 = vadd.f32 0.0, %v4632
        %v4634 = vpop.f32.mrb[0].mxu0
        %4635 = vmatprep.mubr.bf16.mxu0 0
        %4636 = vmatmul.mubr.bf16.gmra.mrb[0].mxu0 %v2934
        %v4637 = vpop.f32.mrb[0].mxu0
        %v4638 = vadd.f32 0.0, %v4637
        %v4639 = vpop.f32.mrb[0].mxu0
        %v4640 = vpop.f32.mrb[0].mxu0
        %v4641 = vadd.f32 0.0, %v4640
        %v4642 = vpop.f32.mrb[0].mxu0
        %4643 = vmatprep.mubr.bf16.mxu0 0
        %4644 = vmatmul.mubr.bf16.gmra.mrb[0].mxu0 %v2937
        %v4645 = vpop.f32.mrb[0].mxu0
        %v4646 = vadd.f32 0.0, %v4645
        %v4647 = vpop.f32.mrb[0].mxu0
        %v4648 = vpop.f32.mrb[0].mxu0
        %v4649 = vadd.f32 0.0, %v4648
        %v4650 = vpop.f32.mrb[0].mxu0
        %4651 = vmatprep.mubr.bf16.mxu0 0
        %4652 = vmatmul.mubr.bf16.gmra.mrb[0].mxu0 %v2940
        %v4653 = vpop.f32.mrb[0].mxu0
        %v4654 = vadd.f32 0.0, %v4653
        %v4655 = vpop.f32.mrb[0].mxu0
        %v4656 = vpop.f32.mrb[0].mxu0
        %v4657 = vadd.f32 0.0, %v4656
        %v4658 = vpop.f32.mrb[0].mxu0
        %4659 = vmatprep.mubr.bf16.mxu0 0
        %4660 = vmatmul.mubr.bf16.gmra.mrb[0].mxu0 %v2943
        %v4661 = vpop.f32.mrb[0].mxu0
        %v4662 = vadd.f32 0.0, %v4661
        %v4663 = vpop.f32.mrb[0].mxu0
        %v4664 = vpop.f32.mrb[0].mxu0
        %v4665 = vadd.f32 0.0, %v4664
        %v4666 = vpop.f32.mrb[0].mxu0
        %4667 = vmatprep.mubr.bf16.mxu0 0
        %4668 = vmatmul.mubr.bf16.gmra.mrb[0].mxu0 %v2946
        %v4669 = vpop.f32.mrb[0].mxu0
        %v4670 = vadd.f32 0.0, %v4669
        %v4671 = vpop.f32.mrb[0].mxu0
        %v4672 = vpop.f32.mrb[0].mxu0
        %v4673 = vadd.f32 0.0, %v4672
        %v4674 = vpop.f32.mrb[0].mxu0
        %4675 = vmatprep.mubr.bf16.mxu0 0
        %4676 = vmatmul.mubr.bf16.gmra.mrb[0].mxu0 %v2949
        %v4677 = vpop.f32.mrb[0].mxu0
        %v4678 = vadd.f32 0.0, %v4677
        %v4679 = vpop.f32.mrb[0].mxu0
        %v4680 = vpop.f32.mrb[0].mxu0
        %v4681 = vadd.f32 0.0, %v4680
        %v4682 = vpop.f32.mrb[0].mxu0
        %4683 = vmatprep.mubr.bf16.mxu0 0
        %4684 = vmatmul.mubr.bf16.gmra.mrb[0].mxu0 %v2952
        %v4685 = vpop.f32.mrb[0].mxu0
        %v4686 = vadd.f32 0.0, %v4685
        %v4687 = vpop.f32.mrb[0].mxu0
        %v4688 = vpop.f32.mrb[0].mxu0
        %v4689 = vadd.f32 0.0, %v4688
        %v4690 = vpop.f32.mrb[0].mxu0
        %4691 = vmatprep.mubr.bf16.mxu0 0
        %4692 = vmatmul.mubr.bf16.gmra.mrb[0].mxu0 %v2955
        %v4693 = vpop.f32.mrb[0].mxu0
        %v4694 = vadd.f32 0.0, %v4693
        %v4695 = vpop.f32.mrb[0].mxu0
        %v4696 = vpop.f32.mrb[0].mxu0
        %v4697 = vadd.f32 0.0, %v4696
        %v4698 = vpop.f32.mrb[0].mxu0
        %4699 = vmatprep.mubr.bf16.mxu0 0
        %4700 = vmatmul.mubr.bf16.gmra.mrb[0].mxu0 %v2958
        %v4701 = vpop.f32.mrb[0].mxu0
        %v4702 = vadd.f32 0.0, %v4701
        %v4703 = vpop.f32.mrb[0].mxu0
        %v4704 = vpop.f32.mrb[0].mxu0
        %v4705 = vadd.f32 0.0, %v4704
        %v4706 = vpop.f32.mrb[0].mxu0
        %4707 = vmatprep.mubr.bf16.mxu0 0
        %4708 = vmatmul.mubr.bf16.gmra.mrb[0].mxu0 %v2961
        %v4709 = vpop.f32.mrb[0].mxu0
        %v4710 = vadd.f32 0.0, %v4709
        %v4711 = vpop.f32.mrb[0].mxu0
        %v4712 = vpop.f32.mrb[0].mxu0
        %v4713 = vadd.f32 0.0, %v4712
        %v4714 = vpop.f32.mrb[0].mxu0
        %4715 = vmatprep.mubr.bf16.mxu0 0
        %4716 = vmatmul.mubr.bf16.gmra.mrb[0].mxu0 %v2964
        %v4717 = vpop.f32.mrb[0].mxu0
        %v4718 = vadd.f32 0.0, %v4717
        %v4719 = vpop.f32.mrb[0].mxu0
        %v4720 = vpop.f32.mrb[0].mxu0
        %v4721 = vadd.f32 0.0, %v4720
        %v4722 = vpop.f32.mrb[0].mxu0
        %4723 = vmatprep.mubr.bf16.mxu0 0
        %4724 = vmatmul.mubr.bf16.gmra.mrb[0].mxu0 %v2967
        %v4725 = vpop.f32.mrb[0].mxu0
        %v4726 = vadd.f32 0.0, %v4725
        %v4727 = vpop.f32.mrb[0].mxu0
        %v4728 = vpop.f32.mrb[0].mxu0
        %v4729 = vadd.f32 0.0, %v4728
        %v4730 = vpop.f32.mrb[0].mxu0
        %4731 = vmatprep.mubr.bf16.mxu0 0
        %4732 = vmatmul.mubr.bf16.gmra.mrb[0].mxu0 %v2970
        %v4733 = vpop.f32.mrb[0].mxu0
        %v4734 = vadd.f32 0.0, %v4733
        %v4735 = vpop.f32.mrb[0].mxu0
        %v4736 = vpop.f32.mrb[0].mxu0
        %v4737 = vadd.f32 0.0, %v4736
        %v4738 = vpop.f32.mrb[0].mxu0
        %4739 = vmatprep.mubr.bf16.mxu0 0
        %4740 = vmatmul.mubr.bf16.gmra.mrb[0].mxu0 %v2973
        %v4741 = vpop.f32.mrb[0].mxu0
        %v4742 = vadd.f32 0.0, %v4741
        %v4743 = vpop.f32.mrb[0].mxu0
        %v4744 = vpop.f32.mrb[0].mxu0
        %v4745 = vadd.f32 0.0, %v4744
        %v4746 = vpop.f32.mrb[0].mxu0
        %4747 = vmatprep.mubr.bf16.mxu0 0
        %4748 = vmatmul.mubr.bf16.gmra.mrb[0].mxu0 %v2976
        %v4749 = vpop.f32.mrb[0].mxu0
        %v4750 = vadd.f32 0.0, %v4749
        %v4751 = vpop.f32.mrb[0].mxu0
        %v4752 = vpop.f32.mrb[0].mxu0
        %v4753 = vadd.f32 0.0, %v4752
        %v4754 = vpop.f32.mrb[0].mxu0
        %4755 = vmatprep.mubr.bf16.mxu0 0
        %4756 = vmatmul.mubr.bf16.gmra.mrb[0].mxu0 %v2979
        %v4757 = vpop.f32.mrb[0].mxu0
        %v4758 = vadd.f32 0.0, %v4757
        %v4759 = vpop.f32.mrb[0].mxu0
        %v4760 = vpop.f32.mrb[0].mxu0
        %v4761 = vadd.f32 0.0, %v4760
        %v4762 = vpop.f32.mrb[0].mxu0
        %4763 = vmatprep.mubr.bf16.mxu0 0
        %4764 = vmatmul.mubr.bf16.gmra.mrb[0].mxu0 %v2982
        %v4765 = vpop.f32.mrb[0].mxu0
        %v4766 = vadd.f32 0.0, %v4765
        %v4767 = vpop.f32.mrb[0].mxu0
        %v4768 = vpop.f32.mrb[0].mxu0
        %v4769 = vadd.f32 0.0, %v4768
        %v4770 = vpop.f32.mrb[0].mxu0
        %4771 = vmatprep.mubr.bf16.mxu0 0
        %4772 = vmatmul.mubr.bf16.gmra.mrb[0].mxu0 %v2985
        %v4773 = vpop.f32.mrb[0].mxu0
        %v4774 = vadd.f32 0.0, %v4773
        %v4775 = vpop.f32.mrb[0].mxu0
        %v4776 = vpop.f32.mrb[0].mxu0
        %v4777 = vadd.f32 0.0, %v4776
        %v4778 = vpop.f32.mrb[0].mxu0
        %4779 = vmatprep.mubr.bf16.mxu0 0
        %4780 = vmatmul.mubr.bf16.gmra.mrb[0].mxu0 %v2988
        %v4781 = vpop.f32.mrb[0].mxu0
        %v4782 = vadd.f32 0.0, %v4781
        %v4783 = vpop.f32.mrb[0].mxu0
        %v4784 = vpop.f32.mrb[0].mxu0
        %v4785 = vadd.f32 0.0, %v4784
        %v4786 = vpop.f32.mrb[0].mxu0
        %4787 = vmatprep.mubr.bf16.mxu0 0
        %4788 = vmatmul.mubr.bf16.gmra.mrb[0].mxu0 %v2991
        %v4789 = vpop.f32.mrb[0].mxu0
        %v4790 = vadd.f32 0.0, %v4789
        %v4791 = vpop.f32.mrb[0].mxu0
        %v4792 = vpop.f32.mrb[0].mxu0
        %v4793 = vadd.f32 0.0, %v4792
        %v4794 = vpop.f32.mrb[0].mxu0
        %4795 = vmatprep.mubr.bf16.mxu0 0
        %4796 = vmatmul.mubr.bf16.gmra.mrb[0].mxu0 %v2994
        %v4797 = vpop.f32.mrb[0].mxu0
        %v4798 = vadd.f32 0.0, %v4797
        %v4799 = vpop.f32.mrb[0].mxu0
        %v4800 = vpop.f32.mrb[0].mxu0
        %v4801 = vadd.f32 0.0, %v4800
        %v4802 = vpop.f32.mrb[0].mxu0
        %4803 = vmatprep.mubr.bf16.mxu0 0
        %4804 = vmatmul.mubr.bf16.gmra.mrb[0].mxu0 %v2997
        %v4805 = vpop.f32.mrb[0].mxu0
        %v4806 = vadd.f32 0.0, %v4805
        %v4807 = vpop.f32.mrb[0].mxu0
        %v4808 = vpop.f32.mrb[0].mxu0
        %v4809 = vadd.f32 0.0, %v4808
        %v4810 = vpop.f32.mrb[0].mxu0
        %4811 = vmatprep.mubr.bf16.mxu0 0
        %4812 = vmatmul.mubr.bf16.gmra.mrb[0].mxu0 %v3000
        %v4813 = vpop.f32.mrb[0].mxu0
        %v4814 = vadd.f32 0.0, %v4813
        %v4815 = vpop.f32.mrb[0].mxu0
        %v4816 = vpop.f32.mrb[0].mxu0
        %v4817 = vadd.f32 0.0, %v4816
        %v4818 = vpop.f32.mrb[0].mxu0
        %4819 = vmatprep.mubr.bf16.mxu0 0
        %4820 = vmatmul.mubr.bf16.gmra.mrb[0].mxu0 %v3003
        %v4821 = vpop.f32.mrb[0].mxu0
        %v4822 = vadd.f32 0.0, %v4821
        %v4823 = vpop.f32.mrb[0].mxu0
        %v4824 = vpop.f32.mrb[0].mxu0
        %v4825 = vadd.f32 0.0, %v4824
        %v4826 = vpop.f32.mrb[0].mxu0
        %4827 = vmatprep.mubr.bf16.mxu0 0
        %4828 = vmatmul.mubr.bf16.gmra.mrb[0].mxu0 %v3006
        %v4829 = vpop.f32.mrb[0].mxu0
        %v4830 = vadd.f32 0.0, %v4829
        %v4831 = vpop.f32.mrb[0].mxu0
        %v4832 = vpop.f32.mrb[0].mxu0
        %v4833 = vadd.f32 0.0, %v4832
        %v4834 = vpop.f32.mrb[0].mxu0
        %4835 = vmatprep.mubr.bf16.mxu0 0
        %4836 = vmatmul.mubr.bf16.gmra.mrb[0].mxu0 %v3009
        %v4837 = vpop.f32.mrb[0].mxu0
        %v4838 = vadd.f32 0.0, %v4837
        %v4839 = vpop.f32.mrb[0].mxu0
        %v4840 = vpop.f32.mrb[0].mxu0
        %v4841 = vadd.f32 0.0, %v4840
        %v4842 = vpop.f32.mrb[0].mxu0
        %4843 = vmatprep.mubr.bf16.mxu0 0
        %4844 = vmatmul.mubr.bf16.gmra.mrb[0].mxu0 %v3012
        %v4845 = vpop.f32.mrb[0].mxu0
        %v4846 = vadd.f32 0.0, %v4845
        %v4847 = vpop.f32.mrb[0].mxu0
        %v4848 = vpop.f32.mrb[0].mxu0
        %v4849 = vadd.f32 0.0, %v4848
        %v4850 = vpop.f32.mrb[0].mxu0
        %4851 = vmatprep.mubr.bf16.mxu0 0
        %4852 = vmatmul.mubr.bf16.gmra.mrb[0].mxu0 %v3015
        %v4853 = vpop.f32.mrb[0].mxu0
        %v4854 = vadd.f32 0.0, %v4853
        %v4855 = vpop.f32.mrb[0].mxu0
        %v4856 = vpop.f32.mrb[0].mxu0
        %v4857 = vadd.f32 0.0, %v4856
        %v4858 = vpop.f32.mrb[0].mxu0
        %4859 = vmatprep.mubr.bf16.mxu0 0
        %4860 = vmatmul.mubr.bf16.gmra.mrb[0].mxu0 %v3018
        %v4861 = vpop.f32.mrb[0].mxu0
        %v4862 = vadd.f32 0.0, %v4861
        %v4863 = vpop.f32.mrb[0].mxu0
        %v4864 = vpop.f32.mrb[0].mxu0
        %v4865 = vadd.f32 0.0, %v4864
        %v4866 = vpop.f32.mrb[0].mxu0
        %4867 = vmatprep.mubr.bf16.mxu0 0
        %4868 = vmatmul.mubr.bf16.gmra.mrb[0].mxu0 %v3021
        %v4869 = vpop.f32.mrb[0].mxu0
        %v4870 = vadd.f32 0.0, %v4869
        %v4871 = vpop.f32.mrb[0].mxu0
        %v4872 = vpop.f32.mrb[0].mxu0
        %v4873 = vadd.f32 0.0, %v4872
        %v4874 = vpop.f32.mrb[0].mxu0
        %4875 = vmatprep.mubr.bf16.mxu0 0
        %4876 = vmatmul.mubr.bf16.gmra.mrb[0].mxu0 %v3024
        %v4877 = vpop.f32.mrb[0].mxu0
        %v4878 = vadd.f32 0.0, %v4877
        %v4879 = vpop.f32.mrb[0].mxu0
        %v4880 = vpop.f32.mrb[0].mxu0
        %v4881 = vadd.f32 0.0, %v4880
        %v4882 = vpop.f32.mrb[0].mxu0
        %4883 = vmatprep.mubr.bf16.mxu0 0
        %4884 = vmatmul.mubr.bf16.gmra.mrb[0].mxu0 %v3027
        %v4885 = vpop.f32.mrb[0].mxu0
        %v4886 = vadd.f32 0.0, %v4885
        %v4887 = vpop.f32.mrb[0].mxu0
        %v4888 = vpop.f32.mrb[0].mxu0
        %v4889 = vadd.f32 0.0, %v4888
        %v4890 = vpop.f32.mrb[0].mxu0
        %4891 = vmatprep.mubr.bf16.mxu0 0
        %4892 = vmatmul.mubr.bf16.gmra.mrb[0].mxu0 %v3030
        %v4893 = vpop.f32.mrb[0].mxu0
        %v4894 = vadd.f32 0.0, %v4893
        %v4895 = vpop.f32.mrb[0].mxu0
        %v4896 = vpop.f32.mrb[0].mxu0
        %v4897 = vadd.f32 0.0, %v4896
        %v4898 = vpop.f32.mrb[0].mxu0
        %4899 = vmatprep.mubr.bf16.mxu0 0
        %4900 = vmatmul.mubr.bf16.gmra.mrb[0].mxu0 %v3033
        %v4901 = vpop.f32.mrb[0].mxu0
        %v4902 = vadd.f32 0.0, %v4901
        %v4903 = vpop.f32.mrb[0].mxu0
        %v4904 = vpop.f32.mrb[0].mxu0
        %v4905 = vadd.f32 0.0, %v4904
        %v4906 = vpop.f32.mrb[0].mxu0
        %4907 = vmatprep.mubr.bf16.mxu0 0
        %4908 = vmatmul.mubr.bf16.gmra.mrb[0].mxu0 %v3036
        %v4909 = vpop.f32.mrb[0].mxu0
        %v4910 = vadd.f32 0.0, %v4909
        %v4911 = vpop.f32.mrb[0].mxu0
        %v4912 = vpop.f32.mrb[0].mxu0
        %v4913 = vadd.f32 0.0, %v4912
        %v4914 = vpop.f32.mrb[0].mxu0
        %4915 = vmatprep.mubr.bf16.mxu0 0
        %4916 = vmatmul.mubr.bf16.gmra.mrb[0].mxu0 %v3039
        %v4917 = vpop.f32.mrb[0].mxu0
        %v4918 = vadd.f32 0.0, %v4917
        %v4919 = vpop.f32.mrb[0].mxu0
        %v4920 = vpop.f32.mrb[0].mxu0
        %v4921 = vadd.f32 0.0, %v4920
        %v4922 = vpop.f32.mrb[0].mxu0
        %4923 = vmatprep.mubr.bf16.mxu0 0
        %4924 = vmatmul.mubr.bf16.gmra.mrb[0].mxu0 %v3042
        %v4925 = vpop.f32.mrb[0].mxu0
        %v4926 = vadd.f32 0.0, %v4925
        %v4927 = vpop.f32.mrb[0].mxu0
        %v4928 = vpop.f32.mrb[0].mxu0
        %v4929 = vadd.f32 0.0, %v4928
        %v4930 = vpop.f32.mrb[0].mxu0
        %4931 = vmatprep.mubr.bf16.mxu0 0
        %4932 = vmatmul.mubr.bf16.gmra.mrb[0].mxu0 %v3045
        %v4933 = vpop.f32.mrb[0].mxu0
        %v4934 = vadd.f32 0.0, %v4933
        %v4935 = vpop.f32.mrb[0].mxu0
        %v4936 = vpop.f32.mrb[0].mxu0
        %v4937 = vadd.f32 0.0, %v4936
        %v4938 = vpop.f32.mrb[0].mxu0
        %4939 = vmatprep.mubr.bf16.mxu0 0
        %4940 = vmatmul.mubr.bf16.gmra.mrb[0].mxu0 %v3048
        %v4941 = vpop.f32.mrb[0].mxu0
        %v4942 = vadd.f32 0.0, %v4941
        %v4943 = vpop.f32.mrb[0].mxu0
        %v4944 = vpop.f32.mrb[0].mxu0
        %v4945 = vadd.f32 0.0, %v4944
        %v4946 = vpop.f32.mrb[0].mxu0
        %4947 = vmatprep.mubr.bf16.mxu0 0
        %4948 = vmatmul.mubr.bf16.gmra.mrb[0].mxu0 %v3051
        %v4949 = vpop.f32.mrb[0].mxu0
        %v4950 = vadd.f32 0.0, %v4949
        %v4951 = vpop.f32.mrb[0].mxu0
        %v4952 = vpop.f32.mrb[0].mxu0
        %v4953 = vadd.f32 0.0, %v4952
        %v4954 = vpop.f32.mrb[0].mxu0
        %4955 = vmatprep.mubr.bf16.mxu0 0
        %4956 = vmatmul.mubr.bf16.gmra.mrb[0].mxu0 %v3054
        %v4957 = vpop.f32.mrb[0].mxu0
        %v4958 = vadd.f32 0.0, %v4957
        %v4959 = vpop.f32.mrb[0].mxu0
        %v4960 = vpop.f32.mrb[0].mxu0
        %v4961 = vadd.f32 0.0, %v4960
        %v4962 = vpop.f32.mrb[0].mxu0
        %4963 = vmatprep.mubr.bf16.mxu0 0
        %4964 = vmatmul.mubr.bf16.gmra.mrb[0].mxu0 %v3057
        %v4965 = vpop.f32.mrb[0].mxu0
        %v4966 = vadd.f32 0.0, %v4965
        %v4967 = vpop.f32.mrb[0].mxu0
        %v4968 = vpop.f32.mrb[0].mxu0
        %v4969 = vadd.f32 0.0, %v4968
        %v4970 = vpop.f32.mrb[0].mxu0
        %4971 = vmatprep.mubr.bf16.mxu0 0
        %4972 = vmatmul.mubr.bf16.gmra.mrb[0].mxu0 %v3060
        %v4973 = vpop.f32.mrb[0].mxu0
        %v4974 = vadd.f32 0.0, %v4973
        %v4975 = vpop.f32.mrb[0].mxu0
        %v4976 = vpop.f32.mrb[0].mxu0
        %v4977 = vadd.f32 0.0, %v4976
        %v4978 = vpop.f32.mrb[0].mxu0
        %4979 = vmatprep.mubr.bf16.mxu0 0
        %4980 = vmatmul.mubr.bf16.gmra.mrb[0].mxu0 %v3063
        %v4981 = vpop.f32.mrb[0].mxu0
        %v4982 = vadd.f32 0.0, %v4981
        %v4983 = vpop.f32.mrb[0].mxu0
        %v4984 = vpop.f32.mrb[0].mxu0
        %v4985 = vadd.f32 0.0, %v4984
        %v4986 = vpop.f32.mrb[0].mxu0
        %4987 = vmatprep.mubr.bf16.mxu0 0
        %4988 = vmatmul.mubr.bf16.gmra.mrb[0].mxu0 %v3066
        %v4989 = vpop.f32.mrb[0].mxu0
        %v4990 = vadd.f32 0.0, %v4989
        %v4991 = vpop.f32.mrb[0].mxu0
        %v4992 = vpop.f32.mrb[0].mxu0
        %v4993 = vadd.f32 0.0, %v4992
        %v4994 = vpop.f32.mrb[0].mxu0
        %4995 = vmatprep.mubr.bf16.mxu0 0
        %4996 = vmatmul.mubr.bf16.gmra.mrb[0].mxu0 %v3069
        %v4997 = vpop.f32.mrb[0].mxu0
        %v4998 = vadd.f32 0.0, %v4997
        %v4999 = vpop.f32.mrb[0].mxu0
        %v5000 = vpop.f32.mrb[0].mxu0
        %v5001 = vadd.f32 0.0, %v5000
        %v5002 = vpop.f32.mrb[0].mxu0
        %5003 = vmatprep.mubr.bf16.mxu0 0
        %5004 = vmatmul.mubr.bf16.gmra.mrb[0].mxu0 %v3072
        %v5005 = vpop.f32.mrb[0].mxu0
        %v5006 = vadd.f32 0.0, %v5005
        %v5007 = vpop.f32.mrb[0].mxu0
        %v5008 = vpop.f32.mrb[0].mxu0
        %v5009 = vadd.f32 0.0, %v5008
        %v5010 = vpop.f32.mrb[0].mxu0
        %5011 = vmatprep.mubr.bf16.mxu0 0
        %5012 = vmatmul.mubr.bf16.gmra.mrb[0].mxu0 %v3075
        %v5013 = vpop.f32.mrb[0].mxu0
        %v5014 = vadd.f32 0.0, %v5013
        %v5015 = vpop.f32.mrb[0].mxu0
        %v5016 = vpop.f32.mrb[0].mxu0
        %v5017 = vadd.f32 0.0, %v5016
        %v5018 = vpop.f32.mrb[0].mxu0
        %5019 = vmatprep.mubr.bf16.mxu0 0
        %5020 = vmatmul.mubr.bf16.gmra.mrb[0].mxu0 %v3078
        %v5021 = vpop.f32.mrb[0].mxu0
        %v5022 = vadd.f32 0.0, %v5021
        %v5023 = vpop.f32.mrb[0].mxu0
        %v5024 = vpop.f32.mrb[0].mxu0
        %v5025 = vadd.f32 0.0, %v5024
        %v5026 = vpop.f32.mrb[0].mxu0
        %5027 = vmatprep.mubr.bf16.mxu0 0
        %5028 = vmatmul.mubr.bf16.gmra.mrb[0].mxu0 %v3081
        %v5029 = vpop.f32.mrb[0].mxu0
        %v5030 = vadd.f32 0.0, %v5029
        %v5031 = vpop.f32.mrb[0].mxu0
        %v5032 = vpop.f32.mrb[0].mxu0
        %v5033 = vadd.f32 0.0, %v5032
        %v5034 = vpop.f32.mrb[0].mxu0
        %5035 = vmatprep.mubr.bf16.mxu0 0
        %5036 = vmatmul.mubr.bf16.gmra.mrb[0].mxu0 %v3084
        %v5037 = vpop.f32.mrb[0].mxu0
        %v5038 = vadd.f32 0.0, %v5037
        %v5039 = vpop.f32.mrb[0].mxu0
        %v5040 = vpop.f32.mrb[0].mxu0
        %v5041 = vadd.f32 0.0, %v5040
        %v5042 = vpop.f32.mrb[0].mxu0
        %5043 = vmatprep.mubr.bf16.mxu0 0
        %5044 = vmatmul.mubr.bf16.gmra.mrb[0].mxu0 %v3087
        %v5045 = vpop.f32.mrb[0].mxu0
        %v5046 = vadd.f32 0.0, %v5045
        %v5047 = vpop.f32.mrb[0].mxu0
        %v5048 = vpop.f32.mrb[0].mxu0
        %v5049 = vadd.f32 0.0, %v5048
        %v5050 = vpop.f32.mrb[0].mxu0
        %5051 = vmatprep.mubr.bf16.mxu0 0
        %5052 = vmatmul.mubr.bf16.gmra.mrb[0].mxu0 %v3090
        %v5053 = vpop.f32.mrb[0].mxu0
        %v5054 = vadd.f32 0.0, %v5053
        %v5055 = vpop.f32.mrb[0].mxu0
        %v5056 = vpop.f32.mrb[0].mxu0
        %v5057 = vadd.f32 0.0, %v5056
        %v5058 = vpop.f32.mrb[0].mxu0
        %5059 = vmatprep.mubr.bf16.mxu0 0
        %5060 = vmatmul.mubr.bf16.gmra.mrb[0].mxu0 %v3093
        %v5061 = vpop.f32.mrb[0].mxu0
        %v5062 = vadd.f32 0.0, %v5061
        %v5063 = vpop.f32.mrb[0].mxu0
        %v5064 = vpop.f32.mrb[0].mxu0
        %v5065 = vadd.f32 0.0, %v5064
        %v5066 = vpop.f32.mrb[0].mxu0
        %5067 = vmatprep.mubr.bf16.mxu0 0
        %5068 = vmatmul.mubr.bf16.gmra.mrb[0].mxu0 %v3096
        %v5069 = vpop.f32.mrb[0].mxu0
        %v5070 = vadd.f32 0.0, %v5069
        %v5071 = vpop.f32.mrb[0].mxu0
        %v5072 = vpop.f32.mrb[0].mxu0
        %v5073 = vadd.f32 0.0, %v5072
        %v5074 = vpop.f32.mrb[0].mxu0
        %5075 = vmatprep.mubr.bf16.mxu0 0
        %5076 = vmatmul.mubr.bf16.gmra.mrb[0].mxu0 %v3099
        %v5077 = vpop.f32.mrb[0].mxu0
        %v5078 = vadd.f32 0.0, %v5077
        %v5079 = vpop.f32.mrb[0].mxu0
        %v5080 = vpop.f32.mrb[0].mxu0
        %v5081 = vadd.f32 0.0, %v5080
        %v5082 = vpop.f32.mrb[0].mxu0
        %5083 = vmatprep.mubr.bf16.mxu0 0
        %5084 = vmatmul.mubr.bf16.gmra.mrb[0].mxu0 %v3102
        %v5085 = vpop.f32.mrb[0].mxu0
        %v5086 = vadd.f32 0.0, %v5085
        %v5087 = vpop.f32.mrb[0].mxu0
        %v5088 = vpop.f32.mrb[0].mxu0
        %v5089 = vadd.f32 0.0, %v5088
        %v5090 = vpop.f32.mrb[0].mxu0
        %5091 = vmatprep.mubr.bf16.mxu0 0
        %5092 = vmatmul.mubr.bf16.gmra.mrb[0].mxu0 %v3105
        %v5093 = vpop.f32.mrb[0].mxu0
        %v5094 = vadd.f32 0.0, %v5093
        %v5095 = vpop.f32.mrb[0].mxu0
        %v5096 = vpop.f32.mrb[0].mxu0
        %v5097 = vadd.f32 0.0, %v5096
        %v5098 = vpop.f32.mrb[0].mxu0
        %5099 = vmatprep.mubr.bf16.mxu0 0
        %5100 = vmatmul.mubr.bf16.gmra.mrb[0].mxu0 %v3108
        %v5101 = vpop.f32.mrb[0].mxu0
        %v5102 = vadd.f32 0.0, %v5101
        %v5103 = vpop.f32.mrb[0].mxu0
        %v5104 = vpop.f32.mrb[0].mxu0
        %v5105 = vadd.f32 0.0, %v5104
        %v5106 = vpop.f32.mrb[0].mxu0
        %5107 = vmatprep.mubr.bf16.mxu0 0
        %5108 = vmatmul.mubr.bf16.gmra.mrb[0].mxu0 %v3111
        %v5109 = vpop.f32.mrb[0].mxu0
        %v5110 = vadd.f32 0.0, %v5109
        %v5111 = vpop.f32.mrb[0].mxu0
        %v5112 = vpop.f32.mrb[0].mxu0
        %v5113 = vadd.f32 0.0, %v5112
        %v5114 = vpop.f32.mrb[0].mxu0
        %5115 = vmatprep.mubr.bf16.mxu0 0
        %5116 = vmatmul.mubr.bf16.gmra.mrb[0].mxu0 %v3114
        %v5117 = vpop.f32.mrb[0].mxu0
        %v5118 = vadd.f32 0.0, %v5117
        %v5119 = vpop.f32.mrb[0].mxu0
        %v5120 = vpop.f32.mrb[0].mxu0
        %v5121 = vadd.f32 0.0, %v5120
        %v5122 = vpop.f32.mrb[0].mxu0
        %5123 = vmatprep.mubr.bf16.mxu0 0
        %5124 = vmatmul.mubr.bf16.gmra.mrb[0].mxu0 %v3117
        %v5125 = vpop.f32.mrb[0].mxu0
        %v5126 = vadd.f32 0.0, %v5125
        %v5127 = vpop.f32.mrb[0].mxu0
        %v5128 = vpop.f32.mrb[0].mxu0
        %v5129 = vadd.f32 0.0, %v5128
        %v5130 = vpop.f32.mrb[0].mxu0
        %5131 = vmatprep.mubr.bf16.mxu0 0
        %5132 = vmatmul.mubr.bf16.gmra.mrb[0].mxu0 %v3120
        %v5133 = vpop.f32.mrb[0].mxu0
        %v5134 = vadd.f32 0.0, %v5133
        %v5135 = vpop.f32.mrb[0].mxu0
        %v5136 = vpop.f32.mrb[0].mxu0
        %v5137 = vadd.f32 0.0, %v5136
        %v5138 = vpop.f32.mrb[0].mxu0
        %5139 = vmatprep.mubr.bf16.mxu0 0
        %5140 = vmatmul.mubr.bf16.gmra.mrb[0].mxu0 %v3123
        %v5141 = vpop.f32.mrb[0].mxu0
        %v5142 = vadd.f32 0.0, %v5141
        %v5143 = vpop.f32.mrb[0].mxu0
        %v5144 = vpop.f32.mrb[0].mxu0
        %v5145 = vadd.f32 0.0, %v5144
        %v5146 = vpop.f32.mrb[0].mxu0
        %5147 = vmatprep.mubr.bf16.mxu0 0
        %5148 = vmatmul.mubr.bf16.gmra.mrb[0].mxu0 %v3126
        %v5149 = vpop.f32.mrb[0].mxu0
        %v5150 = vadd.f32 0.0, %v5149
        %v5151 = vpop.f32.mrb[0].mxu0
        %v5152 = vpop.f32.mrb[0].mxu0
        %v5153 = vadd.f32 0.0, %v5152
        %v5154 = vpop.f32.mrb[0].mxu0
        %5155 = vmatprep.mubr.bf16.mxu0 0
        %5156 = vmatmul.mubr.bf16.gmra.mrb[0].mxu0 %v3129
        %v5157 = vpop.f32.mrb[0].mxu0
        %v5158 = vadd.f32 0.0, %v5157
        %v5159 = vpop.f32.mrb[0].mxu0
        %v5160 = vpop.f32.mrb[0].mxu0
        %v5161 = vadd.f32 0.0, %v5160
        %v5162 = vpop.f32.mrb[0].mxu0
        %5163 = vmatprep.mubr.bf16.mxu0 0
        %5164 = vmatmul.mubr.bf16.gmra.mrb[0].mxu0 %v3132
        %v5165 = vpop.f32.mrb[0].mxu0
        %v5166 = vadd.f32 0.0, %v5165
        %v5167 = vpop.f32.mrb[0].mxu0
        %v5168 = vpop.f32.mrb[0].mxu0
        %v5169 = vadd.f32 0.0, %v5168
        %v5170 = vpop.f32.mrb[0].mxu0
        %5171 = vmatprep.mubr.bf16.mxu0 0
        %5172 = vmatmul.mubr.bf16.gmra.mrb[0].mxu0 %v3135
        %v5173 = vpop.f32.mrb[0].mxu0
        %v5174 = vadd.f32 0.0, %v5173
        %v5175 = vpop.f32.mrb[0].mxu0
        %v5176 = vpop.f32.mrb[0].mxu0
        %v5177 = vadd.f32 0.0, %v5176
        %v5178 = vpop.f32.mrb[0].mxu0
        %5179 = vmatprep.mubr.bf16.mxu0 0
        %5180 = vmatmul.mubr.bf16.gmra.mrb[0].mxu0 %v3138
        %v5181 = vpop.f32.mrb[0].mxu0
        %v5182 = vadd.f32 0.0, %v5181
        %v5183 = vpop.f32.mrb[0].mxu0
        %v5184 = vpop.f32.mrb[0].mxu0
        %v5185 = vadd.f32 0.0, %v5184
        %v5186 = vpop.f32.mrb[0].mxu0
        %5187 = vmatprep.mubr.bf16.mxu0 0
        %5188 = vmatmul.mubr.bf16.gmra.mrb[0].mxu0 %v3141
        %v5189 = vpop.f32.mrb[0].mxu0
        %v5190 = vadd.f32 0.0, %v5189
        %v5191 = vpop.f32.mrb[0].mxu0
        %v5192 = vpop.f32.mrb[0].mxu0
        %v5193 = vadd.f32 0.0, %v5192
        %v5194 = vpop.f32.mrb[0].mxu0
        %5195 = vmatprep.mubr.bf16.mxu0 0
        %5196 = vmatmul.mubr.bf16.gmra.mrb[0].mxu0 %v3144
        %v5197 = vpop.f32.mrb[0].mxu0
        %v5198 = vadd.f32 0.0, %v5197
        %v5199 = vpop.f32.mrb[0].mxu0
        %v5200 = vpop.f32.mrb[0].mxu0
        %v5201 = vadd.f32 0.0, %v5200
        %v5202 = vpop.f32.mrb[0].mxu0
        %5203 = vmatprep.mubr.bf16.mxu0 0
        %5204 = vmatmul.mubr.bf16.gmra.mrb[0].mxu0 %v3147
        %v5205 = vpop.f32.mrb[0].mxu0
        %v5206 = vadd.f32 0.0, %v5205
        %v5207 = vpop.f32.mrb[0].mxu0
        %v5208 = vpop.f32.mrb[0].mxu0
        %v5209 = vadd.f32 0.0, %v5208
        %v5210 = vpop.f32.mrb[0].mxu0
        %5211 = vmatprep.mubr.bf16.mxu0 0
        %5212 = vmatmul.mubr.bf16.gmra.mrb[0].mxu0 %v3150
        %v5213 = vpop.f32.mrb[0].mxu0
        %v5214 = vadd.f32 0.0, %v5213
        %v5215 = vpop.f32.mrb[0].mxu0
        %v5216 = vpop.f32.mrb[0].mxu0
        %v5217 = vadd.f32 0.0, %v5216
        %v5218 = vpop.f32.mrb[0].mxu0
        %5219 = vmatprep.mubr.bf16.mxu0 0
        %5220 = vmatmul.mubr.bf16.gmra.mrb[0].mxu0 %v3153
        %v5221 = vpop.f32.mrb[0].mxu0
        %v5222 = vadd.f32 0.0, %v5221
        %v5223 = vpop.f32.mrb[0].mxu0
        %v5224 = vpop.f32.mrb[0].mxu0
        %v5225 = vadd.f32 0.0, %v5224
        %v5226 = vpop.f32.mrb[0].mxu0
        %5227 = vmatprep.mubr.bf16.mxu0 0
        %5228 = vmatmul.mubr.bf16.gmra.mrb[0].mxu0 %v3156
        %v5229 = vpop.f32.mrb[0].mxu0
        %v5230 = vadd.f32 0.0, %v5229
        %v5231 = vpop.f32.mrb[0].mxu0
        %v5232 = vpop.f32.mrb[0].mxu0
        %v5233 = vadd.f32 0.0, %v5232
        %v5234 = vpop.f32.mrb[0].mxu0
        %5235 = vmatprep.mubr.bf16.mxu0 0
        %5236 = vmatmul.mubr.bf16.gmra.mrb[0].mxu0 %v3159
        %v5237 = vpop.f32.mrb[0].mxu0
        %v5238 = vadd.f32 0.0, %v5237
        %v5239 = vpop.f32.mrb[0].mxu0
        %v5240 = vpop.f32.mrb[0].mxu0
        %v5241 = vadd.f32 0.0, %v5240
        %v5242 = vpop.f32.mrb[0].mxu0
        %5243 = vmatprep.mubr.bf16.mxu0 0
        %5244 = vmatmul.mubr.bf16.gmra.mrb[0].mxu0 %v3162
        %v5245 = vpop.f32.mrb[0].mxu0
        %v5246 = vadd.f32 0.0, %v5245
        %v5247 = vpop.f32.mrb[0].mxu0
        %v5248 = vpop.f32.mrb[0].mxu0
        %v5249 = vadd.f32 0.0, %v5248
        %v5250 = vpop.f32.mrb[0].mxu0
        %5251 = vdwg.mxu0
        %vm5252 = vcmask 80896
        %v5253 = vsel %vm5252, %v3206, -inf
        %v5254 = vsel %vm5252, %v3718, -inf
        %v5255 = vmax.f32 %v5253, %v5254
        %v5256 = vsel %vm5252, %v4230, -inf
        %v5257 = vmax.f32 %v5255, %v5256
        %v5258 = vsel %vm5252, %v4742, -inf
        %v5259 = vmax.f32 %v5257, %v5258
        %v5260 = vsel %vm5252, %v3209, -inf
        %v5261 = vsel %vm5252, %v3721, -inf
        %v5262 = vmax.f32 %v5260, %v5261
        %v5263 = vsel %vm5252, %v4233, -inf
        %v5264 = vmax.f32 %v5262, %v5263
        %v5265 = vsel %vm5252, %v4745, -inf
        %v5266 = vmax.f32 %v5264, %v5265
        %v5267 = vsel %vm5252, %v3214, -inf
        %v5268 = vsel %vm5252, %v3726, -inf
        %v5269 = vmax.f32 %v5267, %v5268
        %v5270 = vsel %vm5252, %v4238, -inf
        %v5271 = vmax.f32 %v5269, %v5270
        %v5272 = vsel %vm5252, %v4750, -inf
        %v5273 = vmax.f32 %v5271, %v5272
        %v5274 = vsel %vm5252, %v3217, -inf
        %v5275 = vsel %vm5252, %v3729, -inf
        %v5276 = vmax.f32 %v5274, %v5275
        %v5277 = vsel %vm5252, %v4241, -inf
        %v5278 = vmax.f32 %v5276, %v5277
        %v5279 = vsel %vm5252, %v4753, -inf
        %v5280 = vmax.f32 %v5278, %v5279
        %v5281 = vsel %vm5252, %v3222, -inf
        %v5282 = vsel %vm5252, %v3734, -inf
        %v5283 = vmax.f32 %v5281, %v5282
        %v5284 = vsel %vm5252, %v4246, -inf
        %v5285 = vmax.f32 %v5283, %v5284
        %v5286 = vsel %vm5252, %v4758, -inf
        %v5287 = vmax.f32 %v5285, %v5286
        %v5288 = vsel %vm5252, %v3225, -inf
        %v5289 = vsel %vm5252, %v3737, -inf
        %v5290 = vmax.f32 %v5288, %v5289
        %v5291 = vsel %vm5252, %v4249, -inf
        %v5292 = vmax.f32 %v5290, %v5291
        %v5293 = vsel %vm5252, %v4761, -inf
        %v5294 = vmax.f32 %v5292, %v5293
        %v5295 = vsel %vm5252, %v3230, -inf
        %v5296 = vsel %vm5252, %v3742, -inf
        %v5297 = vmax.f32 %v5295, %v5296
        %v5298 = vsel %vm5252, %v4254, -inf
        %v5299 = vmax.f32 %v5297, %v5298
        %v5300 = vsel %vm5252, %v4766, -inf
        %v5301 = vmax.f32 %v5299, %v5300
        %v5302 = vsel %vm5252, %v3233, -inf
        %v5303 = vsel %vm5252, %v3745, -inf
        %v5304 = vmax.f32 %v5302, %v5303
        %v5305 = vsel %vm5252, %v4257, -inf
        %v5306 = vmax.f32 %v5304, %v5305
        %v5307 = vsel %vm5252, %v4769, -inf
        %v5308 = vmax.f32 %v5306, %v5307
        %v5309 = vsel %vm5252, %v3238, -inf
        %v5310 = vsel %vm5252, %v3750, -inf
        %v5311 = vmax.f32 %v5309, %v5310
        %v5312 = vsel %vm5252, %v4262, -inf
        %v5313 = vmax.f32 %v5311, %v5312
        %v5314 = vsel %vm5252, %v4774, -inf
        %v5315 = vmax.f32 %v5313, %v5314
        %v5316 = vsel %vm5252, %v3241, -inf
        %v5317 = vsel %vm5252, %v3753, -inf
        %v5318 = vmax.f32 %v5316, %v5317
        %v5319 = vsel %vm5252, %v4265, -inf
        %v5320 = vmax.f32 %v5318, %v5319
        %v5321 = vsel %vm5252, %v4777, -inf
        %v5322 = vmax.f32 %v5320, %v5321
        %v5323 = vsel %vm5252, %v3246, -inf
        %v5324 = vsel %vm5252, %v3758, -inf
        %v5325 = vmax.f32 %v5323, %v5324
        %v5326 = vsel %vm5252, %v4270, -inf
        %v5327 = vmax.f32 %v5325, %v5326
        %v5328 = vsel %vm5252, %v4782, -inf
        %v5329 = vmax.f32 %v5327, %v5328
        %v5330 = vsel %vm5252, %v3249, -inf
        %v5331 = vsel %vm5252, %v3761, -inf
        %v5332 = vmax.f32 %v5330, %v5331
        %v5333 = vsel %vm5252, %v4273, -inf
        %v5334 = vmax.f32 %v5332, %v5333
        %v5335 = vsel %vm5252, %v4785, -inf
        %v5336 = vmax.f32 %v5334, %v5335
        %v5337 = vsel %vm5252, %v3254, -inf
        %v5338 = vsel %vm5252, %v3766, -inf
        %v5339 = vmax.f32 %v5337, %v5338
        %v5340 = vsel %vm5252, %v4278, -inf
        %v5341 = vmax.f32 %v5339, %v5340
        %v5342 = vsel %vm5252, %v4790, -inf
        %v5343 = vmax.f32 %v5341, %v5342
        %v5344 = vsel %vm5252, %v3257, -inf
        %v5345 = vsel %vm5252, %v3769, -inf
        %v5346 = vmax.f32 %v5344, %v5345
        %v5347 = vsel %vm5252, %v4281, -inf
        %v5348 = vmax.f32 %v5346, %v5347
        %v5349 = vsel %vm5252, %v4793, -inf
        %v5350 = vmax.f32 %v5348, %v5349
        %v5351 = vsel %vm5252, %v3262, -inf
        %v5352 = vsel %vm5252, %v3774, -inf
        %v5353 = vmax.f32 %v5351, %v5352
        %v5354 = vsel %vm5252, %v4286, -inf
        %v5355 = vmax.f32 %v5353, %v5354
        %v5356 = vsel %vm5252, %v4798, -inf
        %v5357 = vmax.f32 %v5355, %v5356
        %v5358 = vsel %vm5252, %v3265, -inf
        %v5359 = vsel %vm5252, %v3777, -inf
        %v5360 = vmax.f32 %v5358, %v5359
        %v5361 = vsel %vm5252, %v4289, -inf
        %v5362 = vmax.f32 %v5360, %v5361
        %v5363 = vsel %vm5252, %v4801, -inf
        %v5364 = vmax.f32 %v5362, %v5363
        %v5365 = vsel %vm5252, %v3270, -inf
        %v5366 = vsel %vm5252, %v3782, -inf
        %v5367 = vmax.f32 %v5365, %v5366
        %v5368 = vsel %vm5252, %v4294, -inf
        %v5369 = vmax.f32 %v5367, %v5368
        %v5370 = vsel %vm5252, %v4806, -inf
        %v5371 = vmax.f32 %v5369, %v5370
        %v5372 = vsel %vm5252, %v3273, -inf
        %v5373 = vsel %vm5252, %v3785, -inf
        %v5374 = vmax.f32 %v5372, %v5373
        %v5375 = vsel %vm5252, %v4297, -inf
        %v5376 = vmax.f32 %v5374, %v5375
        %v5377 = vsel %vm5252, %v4809, -inf
        %v5378 = vmax.f32 %v5376, %v5377
        %v5379 = vsel %vm5252, %v3278, -inf
        %v5380 = vsel %vm5252, %v3790, -inf
        %v5381 = vmax.f32 %v5379, %v5380
        %v5382 = vsel %vm5252, %v4302, -inf
        %v5383 = vmax.f32 %v5381, %v5382
        %v5384 = vsel %vm5252, %v4814, -inf
        %v5385 = vmax.f32 %v5383, %v5384
        %v5386 = vsel %vm5252, %v3281, -inf
        %v5387 = vsel %vm5252, %v3793, -inf
        %v5388 = vmax.f32 %v5386, %v5387
        %v5389 = vsel %vm5252, %v4305, -inf
        %v5390 = vmax.f32 %v5388, %v5389
        %v5391 = vsel %vm5252, %v4817, -inf
        %v5392 = vmax.f32 %v5390, %v5391
        %v5393 = vsel %vm5252, %v3286, -inf
        %v5394 = vsel %vm5252, %v3798, -inf
        %v5395 = vmax.f32 %v5393, %v5394
        %v5396 = vsel %vm5252, %v4310, -inf
        %v5397 = vmax.f32 %v5395, %v5396
        %v5398 = vsel %vm5252, %v4822, -inf
        %v5399 = vmax.f32 %v5397, %v5398
        %v5400 = vsel %vm5252, %v3289, -inf
        %v5401 = vsel %vm5252, %v3801, -inf
        %v5402 = vmax.f32 %v5400, %v5401
        %v5403 = vsel %vm5252, %v4313, -inf
        %v5404 = vmax.f32 %v5402, %v5403
        %v5405 = vsel %vm5252, %v4825, -inf
        %v5406 = vmax.f32 %v5404, %v5405
        %v5407 = vsel %vm5252, %v3294, -inf
        %v5408 = vsel %vm5252, %v3806, -inf
        %v5409 = vmax.f32 %v5407, %v5408
        %v5410 = vsel %vm5252, %v4318, -inf
        %v5411 = vmax.f32 %v5409, %v5410
        %v5412 = vsel %vm5252, %v4830, -inf
        %v5413 = vmax.f32 %v5411, %v5412
        %v5414 = vsel %vm5252, %v3297, -inf
        %v5415 = vsel %vm5252, %v3809, -inf
        %v5416 = vmax.f32 %v5414, %v5415
        %v5417 = vsel %vm5252, %v4321, -inf
        %v5418 = vmax.f32 %v5416, %v5417
        %v5419 = vsel %vm5252, %v4833, -inf
        %v5420 = vmax.f32 %v5418, %v5419
        %v5421 = vsel %vm5252, %v3302, -inf
        %v5422 = vsel %vm5252, %v3814, -inf
        %v5423 = vmax.f32 %v5421, %v5422
        %v5424 = vsel %vm5252, %v4326, -inf
        %v5425 = vmax.f32 %v5423, %v5424
        %v5426 = vsel %vm5252, %v4838, -inf
        %v5427 = vmax.f32 %v5425, %v5426
        %v5428 = vsel %vm5252, %v3305, -inf
        %v5429 = vsel %vm5252, %v3817, -inf
        %v5430 = vmax.f32 %v5428, %v5429
        %v5431 = vsel %vm5252, %v4329, -inf
        %v5432 = vmax.f32 %v5430, %v5431
        %v5433 = vsel %vm5252, %v4841, -inf
        %v5434 = vmax.f32 %v5432, %v5433
        %v5435 = vsel %vm5252, %v3310, -inf
        %v5436 = vsel %vm5252, %v3822, -inf
        %v5437 = vmax.f32 %v5435, %v5436
        %v5438 = vsel %vm5252, %v4334, -inf
        %v5439 = vmax.f32 %v5437, %v5438
        %v5440 = vsel %vm5252, %v4846, -inf
        %v5441 = vmax.f32 %v5439, %v5440
        %v5442 = vsel %vm5252, %v3313, -inf
        %v5443 = vsel %vm5252, %v3825, -inf
        %v5444 = vmax.f32 %v5442, %v5443
        %v5445 = vsel %vm5252, %v4337, -inf
        %v5446 = vmax.f32 %v5444, %v5445
        %v5447 = vsel %vm5252, %v4849, -inf
        %v5448 = vmax.f32 %v5446, %v5447
        %v5449 = vsel %vm5252, %v3318, -inf
        %v5450 = vsel %vm5252, %v3830, -inf
        %v5451 = vmax.f32 %v5449, %v5450
        %v5452 = vsel %vm5252, %v4342, -inf
        %v5453 = vmax.f32 %v5451, %v5452
        %v5454 = vsel %vm5252, %v4854, -inf
        %v5455 = vmax.f32 %v5453, %v5454
        %v5456 = vsel %vm5252, %v3321, -inf
        %v5457 = vsel %vm5252, %v3833, -inf
        %v5458 = vmax.f32 %v5456, %v5457
        %v5459 = vsel %vm5252, %v4345, -inf
        %v5460 = vmax.f32 %v5458, %v5459
        %v5461 = vsel %vm5252, %v4857, -inf
        %v5462 = vmax.f32 %v5460, %v5461
        %v5463 = vsel %vm5252, %v3326, -inf
        %v5464 = vsel %vm5252, %v3838, -inf
        %v5465 = vmax.f32 %v5463, %v5464
        %v5466 = vsel %vm5252, %v4350, -inf
        %v5467 = vmax.f32 %v5465, %v5466
        %v5468 = vsel %vm5252, %v4862, -inf
        %v5469 = vmax.f32 %v5467, %v5468
        %v5470 = vsel %vm5252, %v3329, -inf
        %v5471 = vsel %vm5252, %v3841, -inf
        %v5472 = vmax.f32 %v5470, %v5471
        %v5473 = vsel %vm5252, %v4353, -inf
        %v5474 = vmax.f32 %v5472, %v5473
        %v5475 = vsel %vm5252, %v4865, -inf
        %v5476 = vmax.f32 %v5474, %v5475
        %v5477 = vsel %vm5252, %v3334, -inf
        %v5478 = vsel %vm5252, %v3846, -inf
        %v5479 = vmax.f32 %v5477, %v5478
        %v5480 = vsel %vm5252, %v4358, -inf
        %v5481 = vmax.f32 %v5479, %v5480
        %v5482 = vsel %vm5252, %v4870, -inf
        %v5483 = vmax.f32 %v5481, %v5482
        %v5484 = vsel %vm5252, %v3337, -inf
        %v5485 = vsel %vm5252, %v3849, -inf
        %v5486 = vmax.f32 %v5484, %v5485
        %v5487 = vsel %vm5252, %v4361, -inf
        %v5488 = vmax.f32 %v5486, %v5487
        %v5489 = vsel %vm5252, %v4873, -inf
        %v5490 = vmax.f32 %v5488, %v5489
        %v5491 = vsel %vm5252, %v3342, -inf
        %v5492 = vsel %vm5252, %v3854, -inf
        %v5493 = vmax.f32 %v5491, %v5492
        %v5494 = vsel %vm5252, %v4366, -inf
        %v5495 = vmax.f32 %v5493, %v5494
        %v5496 = vsel %vm5252, %v4878, -inf
        %v5497 = vmax.f32 %v5495, %v5496
        %v5498 = vsel %vm5252, %v3345, -inf
        %v5499 = vsel %vm5252, %v3857, -inf
        %v5500 = vmax.f32 %v5498, %v5499
        %v5501 = vsel %vm5252, %v4369, -inf
        %v5502 = vmax.f32 %v5500, %v5501
        %v5503 = vsel %vm5252, %v4881, -inf
        %v5504 = vmax.f32 %v5502, %v5503
        %v5505 = vsel %vm5252, %v3350, -inf
        %v5506 = vsel %vm5252, %v3862, -inf
        %v5507 = vmax.f32 %v5505, %v5506
        %v5508 = vsel %vm5252, %v4374, -inf
        %v5509 = vmax.f32 %v5507, %v5508
        %v5510 = vsel %vm5252, %v4886, -inf
        %v5511 = vmax.f32 %v5509, %v5510
        %v5512 = vsel %vm5252, %v3353, -inf
        %v5513 = vsel %vm5252, %v3865, -inf
        %v5514 = vmax.f32 %v5512, %v5513
        %v5515 = vsel %vm5252, %v4377, -inf
        %v5516 = vmax.f32 %v5514, %v5515
        %v5517 = vsel %vm5252, %v4889, -inf
        %v5518 = vmax.f32 %v5516, %v5517
        %v5519 = vsel %vm5252, %v3358, -inf
        %v5520 = vsel %vm5252, %v3870, -inf
        %v5521 = vmax.f32 %v5519, %v5520
        %v5522 = vsel %vm5252, %v4382, -inf
        %v5523 = vmax.f32 %v5521, %v5522
        %v5524 = vsel %vm5252, %v4894, -inf
        %v5525 = vmax.f32 %v5523, %v5524
        %v5526 = vsel %vm5252, %v3361, -inf
        %v5527 = vsel %vm5252, %v3873, -inf
        %v5528 = vmax.f32 %v5526, %v5527
        %v5529 = vsel %vm5252, %v4385, -inf
        %v5530 = vmax.f32 %v5528, %v5529
        %v5531 = vsel %vm5252, %v4897, -inf
        %v5532 = vmax.f32 %v5530, %v5531
        %v5533 = vsel %vm5252, %v3366, -inf
        %v5534 = vsel %vm5252, %v3878, -inf
        %v5535 = vmax.f32 %v5533, %v5534
        %v5536 = vsel %vm5252, %v4390, -inf
        %v5537 = vmax.f32 %v5535, %v5536
        %v5538 = vsel %vm5252, %v4902, -inf
        %v5539 = vmax.f32 %v5537, %v5538
        %v5540 = vsel %vm5252, %v3369, -inf
        %v5541 = vsel %vm5252, %v3881, -inf
        %v5542 = vmax.f32 %v5540, %v5541
        %v5543 = vsel %vm5252, %v4393, -inf
        %v5544 = vmax.f32 %v5542, %v5543
        %v5545 = vsel %vm5252, %v4905, -inf
        %v5546 = vmax.f32 %v5544, %v5545
        %v5547 = vsel %vm5252, %v3374, -inf
        %v5548 = vsel %vm5252, %v3886, -inf
        %v5549 = vmax.f32 %v5547, %v5548
        %v5550 = vsel %vm5252, %v4398, -inf
        %v5551 = vmax.f32 %v5549, %v5550
        %v5552 = vsel %vm5252, %v4910, -inf
        %v5553 = vmax.f32 %v5551, %v5552
        %v5554 = vsel %vm5252, %v3377, -inf
        %v5555 = vsel %vm5252, %v3889, -inf
        %v5556 = vmax.f32 %v5554, %v5555
        %v5557 = vsel %vm5252, %v4401, -inf
        %v5558 = vmax.f32 %v5556, %v5557
        %v5559 = vsel %vm5252, %v4913, -inf
        %v5560 = vmax.f32 %v5558, %v5559
        %v5561 = vsel %vm5252, %v3382, -inf
        %v5562 = vsel %vm5252, %v3894, -inf
        %v5563 = vmax.f32 %v5561, %v5562
        %v5564 = vsel %vm5252, %v4406, -inf
        %v5565 = vmax.f32 %v5563, %v5564
        %v5566 = vsel %vm5252, %v4918, -inf
        %v5567 = vmax.f32 %v5565, %v5566
        %v5568 = vsel %vm5252, %v3385, -inf
        %v5569 = vsel %vm5252, %v3897, -inf
        %v5570 = vmax.f32 %v5568, %v5569
        %v5571 = vsel %vm5252, %v4409, -inf
        %v5572 = vmax.f32 %v5570, %v5571
        %v5573 = vsel %vm5252, %v4921, -inf
        %v5574 = vmax.f32 %v5572, %v5573
        %v5575 = vsel %vm5252, %v3390, -inf
        %v5576 = vsel %vm5252, %v3902, -inf
        %v5577 = vmax.f32 %v5575, %v5576
        %v5578 = vsel %vm5252, %v4414, -inf
        %v5579 = vmax.f32 %v5577, %v5578
        %v5580 = vsel %vm5252, %v4926, -inf
        %v5581 = vmax.f32 %v5579, %v5580
        %v5582 = vsel %vm5252, %v3393, -inf
        %v5583 = vsel %vm5252, %v3905, -inf
        %v5584 = vmax.f32 %v5582, %v5583
        %v5585 = vsel %vm5252, %v4417, -inf
        %v5586 = vmax.f32 %v5584, %v5585
        %v5587 = vsel %vm5252, %v4929, -inf
        %v5588 = vmax.f32 %v5586, %v5587
        %v5589 = vsel %vm5252, %v3398, -inf
        %v5590 = vsel %vm5252, %v3910, -inf
        %v5591 = vmax.f32 %v5589, %v5590
        %v5592 = vsel %vm5252, %v4422, -inf
        %v5593 = vmax.f32 %v5591, %v5592
        %v5594 = vsel %vm5252, %v4934, -inf
        %v5595 = vmax.f32 %v5593, %v5594
        %v5596 = vsel %vm5252, %v3401, -inf
        %v5597 = vsel %vm5252, %v3913, -inf
        %v5598 = vmax.f32 %v5596, %v5597
        %v5599 = vsel %vm5252, %v4425, -inf
        %v5600 = vmax.f32 %v5598, %v5599
        %v5601 = vsel %vm5252, %v4937, -inf
        %v5602 = vmax.f32 %v5600, %v5601
        %v5603 = vsel %vm5252, %v3406, -inf
        %v5604 = vsel %vm5252, %v3918, -inf
        %v5605 = vmax.f32 %v5603, %v5604
        %v5606 = vsel %vm5252, %v4430, -inf
        %v5607 = vmax.f32 %v5605, %v5606
        %v5608 = vsel %vm5252, %v4942, -inf
        %v5609 = vmax.f32 %v5607, %v5608
        %v5610 = vsel %vm5252, %v3409, -inf
        %v5611 = vsel %vm5252, %v3921, -inf
        %v5612 = vmax.f32 %v5610, %v5611
        %v5613 = vsel %vm5252, %v4433, -inf
        %v5614 = vmax.f32 %v5612, %v5613
        %v5615 = vsel %vm5252, %v4945, -inf
        %v5616 = vmax.f32 %v5614, %v5615
        %v5617 = vsel %vm5252, %v3414, -inf
        %v5618 = vsel %vm5252, %v3926, -inf
        %v5619 = vmax.f32 %v5617, %v5618
        %v5620 = vsel %vm5252, %v4438, -inf
        %v5621 = vmax.f32 %v5619, %v5620
        %v5622 = vsel %vm5252, %v4950, -inf
        %v5623 = vmax.f32 %v5621, %v5622
        %v5624 = vsel %vm5252, %v3417, -inf
        %v5625 = vsel %vm5252, %v3929, -inf
        %v5626 = vmax.f32 %v5624, %v5625
        %v5627 = vsel %vm5252, %v4441, -inf
        %v5628 = vmax.f32 %v5626, %v5627
        %v5629 = vsel %vm5252, %v4953, -inf
        %v5630 = vmax.f32 %v5628, %v5629
        %v5631 = vsel %vm5252, %v3422, -inf
        %v5632 = vsel %vm5252, %v3934, -inf
        %v5633 = vmax.f32 %v5631, %v5632
        %v5634 = vsel %vm5252, %v4446, -inf
        %v5635 = vmax.f32 %v5633, %v5634
        %v5636 = vsel %vm5252, %v4958, -inf
        %v5637 = vmax.f32 %v5635, %v5636
        %v5638 = vsel %vm5252, %v3425, -inf
        %v5639 = vsel %vm5252, %v3937, -inf
        %v5640 = vmax.f32 %v5638, %v5639
        %v5641 = vsel %vm5252, %v4449, -inf
        %v5642 = vmax.f32 %v5640, %v5641
        %v5643 = vsel %vm5252, %v4961, -inf
        %v5644 = vmax.f32 %v5642, %v5643
        %v5645 = vsel %vm5252, %v3430, -inf
        %v5646 = vsel %vm5252, %v3942, -inf
        %v5647 = vmax.f32 %v5645, %v5646
        %v5648 = vsel %vm5252, %v4454, -inf
        %v5649 = vmax.f32 %v5647, %v5648
        %v5650 = vsel %vm5252, %v4966, -inf
        %v5651 = vmax.f32 %v5649, %v5650
        %v5652 = vsel %vm5252, %v3433, -inf
        %v5653 = vsel %vm5252, %v3945, -inf
        %v5654 = vmax.f32 %v5652, %v5653
        %v5655 = vsel %vm5252, %v4457, -inf
        %v5656 = vmax.f32 %v5654, %v5655
        %v5657 = vsel %vm5252, %v4969, -inf
        %v5658 = vmax.f32 %v5656, %v5657
        %v5659 = vsel %vm5252, %v3438, -inf
        %v5660 = vsel %vm5252, %v3950, -inf
        %v5661 = vmax.f32 %v5659, %v5660
        %v5662 = vsel %vm5252, %v4462, -inf
        %v5663 = vmax.f32 %v5661, %v5662
        %v5664 = vsel %vm5252, %v4974, -inf
        %v5665 = vmax.f32 %v5663, %v5664
        %v5666 = vsel %vm5252, %v3441, -inf
        %v5667 = vsel %vm5252, %v3953, -inf
        %v5668 = vmax.f32 %v5666, %v5667
        %v5669 = vsel %vm5252, %v4465, -inf
        %v5670 = vmax.f32 %v5668, %v5669
        %v5671 = vsel %vm5252, %v4977, -inf
        %v5672 = vmax.f32 %v5670, %v5671
        %v5673 = vsel %vm5252, %v3446, -inf
        %v5674 = vsel %vm5252, %v3958, -inf
        %v5675 = vmax.f32 %v5673, %v5674
        %v5676 = vsel %vm5252, %v4470, -inf
        %v5677 = vmax.f32 %v5675, %v5676
        %v5678 = vsel %vm5252, %v4982, -inf
        %v5679 = vmax.f32 %v5677, %v5678
        %v5680 = vsel %vm5252, %v3449, -inf
        %v5681 = vsel %vm5252, %v3961, -inf
        %v5682 = vmax.f32 %v5680, %v5681
        %v5683 = vsel %vm5252, %v4473, -inf
        %v5684 = vmax.f32 %v5682, %v5683
        %v5685 = vsel %vm5252, %v4985, -inf
        %v5686 = vmax.f32 %v5684, %v5685
        %v5687 = vsel %vm5252, %v3454, -inf
        %v5688 = vsel %vm5252, %v3966, -inf
        %v5689 = vmax.f32 %v5687, %v5688
        %v5690 = vsel %vm5252, %v4478, -inf
        %v5691 = vmax.f32 %v5689, %v5690
        %v5692 = vsel %vm5252, %v4990, -inf
        %v5693 = vmax.f32 %v5691, %v5692
        %v5694 = vsel %vm5252, %v3457, -inf
        %v5695 = vsel %vm5252, %v3969, -inf
        %v5696 = vmax.f32 %v5694, %v5695
        %v5697 = vsel %vm5252, %v4481, -inf
        %v5698 = vmax.f32 %v5696, %v5697
        %v5699 = vsel %vm5252, %v4993, -inf
        %v5700 = vmax.f32 %v5698, %v5699
        %v5701 = vsel %vm5252, %v3462, -inf
        %v5702 = vsel %vm5252, %v3974, -inf
        %v5703 = vmax.f32 %v5701, %v5702
        %v5704 = vsel %vm5252, %v4486, -inf
        %v5705 = vmax.f32 %v5703, %v5704
        %v5706 = vsel %vm5252, %v4998, -inf
        %v5707 = vmax.f32 %v5705, %v5706
        %v5708 = vsel %vm5252, %v3465, -inf
        %v5709 = vsel %vm5252, %v3977, -inf
        %v5710 = vmax.f32 %v5708, %v5709
        %v5711 = vsel %vm5252, %v4489, -inf
        %v5712 = vmax.f32 %v5710, %v5711
        %v5713 = vsel %vm5252, %v5001, -inf
        %v5714 = vmax.f32 %v5712, %v5713
        %v5715 = vsel %vm5252, %v3470, -inf
        %v5716 = vsel %vm5252, %v3982, -inf
        %v5717 = vmax.f32 %v5715, %v5716
        %v5718 = vsel %vm5252, %v4494, -inf
        %v5719 = vmax.f32 %v5717, %v5718
        %v5720 = vsel %vm5252, %v5006, -inf
        %v5721 = vmax.f32 %v5719, %v5720
        %v5722 = vsel %vm5252, %v3473, -inf
        %v5723 = vsel %vm5252, %v3985, -inf
        %v5724 = vmax.f32 %v5722, %v5723
        %v5725 = vsel %vm5252, %v4497, -inf
        %v5726 = vmax.f32 %v5724, %v5725
        %v5727 = vsel %vm5252, %v5009, -inf
        %v5728 = vmax.f32 %v5726, %v5727
        %v5729 = vsel %vm5252, %v3478, -inf
        %v5730 = vsel %vm5252, %v3990, -inf
        %v5731 = vmax.f32 %v5729, %v5730
        %v5732 = vsel %vm5252, %v4502, -inf
        %v5733 = vmax.f32 %v5731, %v5732
        %v5734 = vsel %vm5252, %v5014, -inf
        %v5735 = vmax.f32 %v5733, %v5734
        %v5736 = vsel %vm5252, %v3481, -inf
        %v5737 = vsel %vm5252, %v3993, -inf
        %v5738 = vmax.f32 %v5736, %v5737
        %v5739 = vsel %vm5252, %v4505, -inf
        %v5740 = vmax.f32 %v5738, %v5739
        %v5741 = vsel %vm5252, %v5017, -inf
        %v5742 = vmax.f32 %v5740, %v5741
        %v5743 = vsel %vm5252, %v3486, -inf
        %v5744 = vsel %vm5252, %v3998, -inf
        %v5745 = vmax.f32 %v5743, %v5744
        %v5746 = vsel %vm5252, %v4510, -inf
        %v5747 = vmax.f32 %v5745, %v5746
        %v5748 = vsel %vm5252, %v5022, -inf
        %v5749 = vmax.f32 %v5747, %v5748
        %v5750 = vsel %vm5252, %v3489, -inf
        %v5751 = vsel %vm5252, %v4001, -inf
        %v5752 = vmax.f32 %v5750, %v5751
        %v5753 = vsel %vm5252, %v4513, -inf
        %v5754 = vmax.f32 %v5752, %v5753
        %v5755 = vsel %vm5252, %v5025, -inf
        %v5756 = vmax.f32 %v5754, %v5755
        %v5757 = vsel %vm5252, %v3494, -inf
        %v5758 = vsel %vm5252, %v4006, -inf
        %v5759 = vmax.f32 %v5757, %v5758
        %v5760 = vsel %vm5252, %v4518, -inf
        %v5761 = vmax.f32 %v5759, %v5760
        %v5762 = vsel %vm5252, %v5030, -inf
        %v5763 = vmax.f32 %v5761, %v5762
        %v5764 = vsel %vm5252, %v3497, -inf
        %v5765 = vsel %vm5252, %v4009, -inf
        %v5766 = vmax.f32 %v5764, %v5765
        %v5767 = vsel %vm5252, %v4521, -inf
        %v5768 = vmax.f32 %v5766, %v5767
        %v5769 = vsel %vm5252, %v5033, -inf
        %v5770 = vmax.f32 %v5768, %v5769
        %v5771 = vsel %vm5252, %v3502, -inf
        %v5772 = vsel %vm5252, %v4014, -inf
        %v5773 = vmax.f32 %v5771, %v5772
        %v5774 = vsel %vm5252, %v4526, -inf
        %v5775 = vmax.f32 %v5773, %v5774
        %v5776 = vsel %vm5252, %v5038, -inf
        %v5777 = vmax.f32 %v5775, %v5776
        %v5778 = vsel %vm5252, %v3505, -inf
        %v5779 = vsel %vm5252, %v4017, -inf
        %v5780 = vmax.f32 %v5778, %v5779
        %v5781 = vsel %vm5252, %v4529, -inf
        %v5782 = vmax.f32 %v5780, %v5781
        %v5783 = vsel %vm5252, %v5041, -inf
        %v5784 = vmax.f32 %v5782, %v5783
        %v5785 = vsel %vm5252, %v3510, -inf
        %v5786 = vsel %vm5252, %v4022, -inf
        %v5787 = vmax.f32 %v5785, %v5786
        %v5788 = vsel %vm5252, %v4534, -inf
        %v5789 = vmax.f32 %v5787, %v5788
        %v5790 = vsel %vm5252, %v5046, -inf
        %v5791 = vmax.f32 %v5789, %v5790
        %v5792 = vsel %vm5252, %v3513, -inf
        %v5793 = vsel %vm5252, %v4025, -inf
        %v5794 = vmax.f32 %v5792, %v5793
        %v5795 = vsel %vm5252, %v4537, -inf
        %v5796 = vmax.f32 %v5794, %v5795
        %v5797 = vsel %vm5252, %v5049, -inf
        %v5798 = vmax.f32 %v5796, %v5797
        %v5799 = vsel %vm5252, %v3518, -inf
        %v5800 = vsel %vm5252, %v4030, -inf
        %v5801 = vmax.f32 %v5799, %v5800
        %v5802 = vsel %vm5252, %v4542, -inf
        %v5803 = vmax.f32 %v5801, %v5802
        %v5804 = vsel %vm5252, %v5054, -inf
        %v5805 = vmax.f32 %v5803, %v5804
        %v5806 = vsel %vm5252, %v3521, -inf
        %v5807 = vsel %vm5252, %v4033, -inf
        %v5808 = vmax.f32 %v5806, %v5807
        %v5809 = vsel %vm5252, %v4545, -inf
        %v5810 = vmax.f32 %v5808, %v5809
        %v5811 = vsel %vm5252, %v5057, -inf
        %v5812 = vmax.f32 %v5810, %v5811
        %v5813 = vsel %vm5252, %v3526, -inf
        %v5814 = vsel %vm5252, %v4038, -inf
        %v5815 = vmax.f32 %v5813, %v5814
        %v5816 = vsel %vm5252, %v4550, -inf
        %v5817 = vmax.f32 %v5815, %v5816
        %v5818 = vsel %vm5252, %v5062, -inf
        %v5819 = vmax.f32 %v5817, %v5818
        %v5820 = vsel %vm5252, %v3529, -inf
        %v5821 = vsel %vm5252, %v4041, -inf
        %v5822 = vmax.f32 %v5820, %v5821
        %v5823 = vsel %vm5252, %v4553, -inf
        %v5824 = vmax.f32 %v5822, %v5823
        %v5825 = vsel %vm5252, %v5065, -inf
        %v5826 = vmax.f32 %v5824, %v5825
        %v5827 = vsel %vm5252, %v3534, -inf
        %v5828 = vsel %vm5252, %v4046, -inf
        %v5829 = vmax.f32 %v5827, %v5828
        %v5830 = vsel %vm5252, %v4558, -inf
        %v5831 = vmax.f32 %v5829, %v5830
        %v5832 = vsel %vm5252, %v5070, -inf
        %v5833 = vmax.f32 %v5831, %v5832
        %v5834 = vsel %vm5252, %v3537, -inf
        %v5835 = vsel %vm5252, %v4049, -inf
        %v5836 = vmax.f32 %v5834, %v5835
        %v5837 = vsel %vm5252, %v4561, -inf
        %v5838 = vmax.f32 %v5836, %v5837
        %v5839 = vsel %vm5252, %v5073, -inf
        %v5840 = vmax.f32 %v5838, %v5839
        %v5841 = vsel %vm5252, %v3542, -inf
        %v5842 = vsel %vm5252, %v4054, -inf
        %v5843 = vmax.f32 %v5841, %v5842
        %v5844 = vsel %vm5252, %v4566, -inf
        %v5845 = vmax.f32 %v5843, %v5844
        %v5846 = vsel %vm5252, %v5078, -inf
        %v5847 = vmax.f32 %v5845, %v5846
        %v5848 = vsel %vm5252, %v3545, -inf
        %v5849 = vsel %vm5252, %v4057, -inf
        %v5850 = vmax.f32 %v5848, %v5849
        %v5851 = vsel %vm5252, %v4569, -inf
        %v5852 = vmax.f32 %v5850, %v5851
        %v5853 = vsel %vm5252, %v5081, -inf
        %v5854 = vmax.f32 %v5852, %v5853
        %v5855 = vsel %vm5252, %v3550, -inf
        %v5856 = vsel %vm5252, %v4062, -inf
        %v5857 = vmax.f32 %v5855, %v5856
        %v5858 = vsel %vm5252, %v4574, -inf
        %v5859 = vmax.f32 %v5857, %v5858
        %v5860 = vsel %vm5252, %v5086, -inf
        %v5861 = vmax.f32 %v5859, %v5860
        %v5862 = vsel %vm5252, %v3553, -inf
        %v5863 = vsel %vm5252, %v4065, -inf
        %v5864 = vmax.f32 %v5862, %v5863
        %v5865 = vsel %vm5252, %v4577, -inf
        %v5866 = vmax.f32 %v5864, %v5865
        %v5867 = vsel %vm5252, %v5089, -inf
        %v5868 = vmax.f32 %v5866, %v5867
        %v5869 = vsel %vm5252, %v3558, -inf
        %v5870 = vsel %vm5252, %v4070, -inf
        %v5871 = vmax.f32 %v5869, %v5870
        %v5872 = vsel %vm5252, %v4582, -inf
        %v5873 = vmax.f32 %v5871, %v5872
        %v5874 = vsel %vm5252, %v5094, -inf
        %v5875 = vmax.f32 %v5873, %v5874
        %v5876 = vsel %vm5252, %v3561, -inf
        %v5877 = vsel %vm5252, %v4073, -inf
        %v5878 = vmax.f32 %v5876, %v5877
        %v5879 = vsel %vm5252, %v4585, -inf
        %v5880 = vmax.f32 %v5878, %v5879
        %v5881 = vsel %vm5252, %v5097, -inf
        %v5882 = vmax.f32 %v5880, %v5881
        %v5883 = vsel %vm5252, %v3566, -inf
        %v5884 = vsel %vm5252, %v4078, -inf
        %v5885 = vmax.f32 %v5883, %v5884
        %v5886 = vsel %vm5252, %v4590, -inf
        %v5887 = vmax.f32 %v5885, %v5886
        %v5888 = vsel %vm5252, %v5102, -inf
        %v5889 = vmax.f32 %v5887, %v5888
        %v5890 = vsel %vm5252, %v3569, -inf
        %v5891 = vsel %vm5252, %v4081, -inf
        %v5892 = vmax.f32 %v5890, %v5891
        %v5893 = vsel %vm5252, %v4593, -inf
        %v5894 = vmax.f32 %v5892, %v5893
        %v5895 = vsel %vm5252, %v5105, -inf
        %v5896 = vmax.f32 %v5894, %v5895
        %v5897 = vsel %vm5252, %v3574, -inf
        %v5898 = vsel %vm5252, %v4086, -inf
        %v5899 = vmax.f32 %v5897, %v5898
        %v5900 = vsel %vm5252, %v4598, -inf
        %v5901 = vmax.f32 %v5899, %v5900
        %v5902 = vsel %vm5252, %v5110, -inf
        %v5903 = vmax.f32 %v5901, %v5902
        %v5904 = vsel %vm5252, %v3577, -inf
        %v5905 = vsel %vm5252, %v4089, -inf
        %v5906 = vmax.f32 %v5904, %v5905
        %v5907 = vsel %vm5252, %v4601, -inf
        %v5908 = vmax.f32 %v5906, %v5907
        %v5909 = vsel %vm5252, %v5113, -inf
        %v5910 = vmax.f32 %v5908, %v5909
        %v5911 = vsel %vm5252, %v3582, -inf
        %v5912 = vsel %vm5252, %v4094, -inf
        %v5913 = vmax.f32 %v5911, %v5912
        %v5914 = vsel %vm5252, %v4606, -inf
        %v5915 = vmax.f32 %v5913, %v5914
        %v5916 = vsel %vm5252, %v5118, -inf
        %v5917 = vmax.f32 %v5915, %v5916
        %v5918 = vsel %vm5252, %v3585, -inf
        %v5919 = vsel %vm5252, %v4097, -inf
        %v5920 = vmax.f32 %v5918, %v5919
        %v5921 = vsel %vm5252, %v4609, -inf
        %v5922 = vmax.f32 %v5920, %v5921
        %v5923 = vsel %vm5252, %v5121, -inf
        %v5924 = vmax.f32 %v5922, %v5923
        %v5925 = vsel %vm5252, %v3590, -inf
        %v5926 = vsel %vm5252, %v4102, -inf
        %v5927 = vmax.f32 %v5925, %v5926
        %v5928 = vsel %vm5252, %v4614, -inf
        %v5929 = vmax.f32 %v5927, %v5928
        %v5930 = vsel %vm5252, %v5126, -inf
        %v5931 = vmax.f32 %v5929, %v5930
        %v5932 = vsel %vm5252, %v3593, -inf
        %v5933 = vsel %vm5252, %v4105, -inf
        %v5934 = vmax.f32 %v5932, %v5933
        %v5935 = vsel %vm5252, %v4617, -inf
        %v5936 = vmax.f32 %v5934, %v5935
        %v5937 = vsel %vm5252, %v5129, -inf
        %v5938 = vmax.f32 %v5936, %v5937
        %v5939 = vsel %vm5252, %v3598, -inf
        %v5940 = vsel %vm5252, %v4110, -inf
        %v5941 = vmax.f32 %v5939, %v5940
        %v5942 = vsel %vm5252, %v4622, -inf
        %v5943 = vmax.f32 %v5941, %v5942
        %v5944 = vsel %vm5252, %v5134, -inf
        %v5945 = vmax.f32 %v5943, %v5944
        %v5946 = vsel %vm5252, %v3601, -inf
        %v5947 = vsel %vm5252, %v4113, -inf
        %v5948 = vmax.f32 %v5946, %v5947
        %v5949 = vsel %vm5252, %v4625, -inf
        %v5950 = vmax.f32 %v5948, %v5949
        %v5951 = vsel %vm5252, %v5137, -inf
        %v5952 = vmax.f32 %v5950, %v5951
        %v5953 = vsel %vm5252, %v3606, -inf
        %v5954 = vsel %vm5252, %v4118, -inf
        %v5955 = vmax.f32 %v5953, %v5954
        %v5956 = vsel %vm5252, %v4630, -inf
        %v5957 = vmax.f32 %v5955, %v5956
        %v5958 = vsel %vm5252, %v5142, -inf
        %v5959 = vmax.f32 %v5957, %v5958
        %v5960 = vsel %vm5252, %v3609, -inf
        %v5961 = vsel %vm5252, %v4121, -inf
        %v5962 = vmax.f32 %v5960, %v5961
        %v5963 = vsel %vm5252, %v4633, -inf
        %v5964 = vmax.f32 %v5962, %v5963
        %v5965 = vsel %vm5252, %v5145, -inf
        %v5966 = vmax.f32 %v5964, %v5965
        %v5967 = vsel %vm5252, %v3614, -inf
        %v5968 = vsel %vm5252, %v4126, -inf
        %v5969 = vmax.f32 %v5967, %v5968
        %v5970 = vsel %vm5252, %v4638, -inf
        %v5971 = vmax.f32 %v5969, %v5970
        %v5972 = vsel %vm5252, %v5150, -inf
        %v5973 = vmax.f32 %v5971, %v5972
        %v5974 = vsel %vm5252, %v3617, -inf
        %v5975 = vsel %vm5252, %v4129, -inf
        %v5976 = vmax.f32 %v5974, %v5975
        %v5977 = vsel %vm5252, %v4641, -inf
        %v5978 = vmax.f32 %v5976, %v5977
        %v5979 = vsel %vm5252, %v5153, -inf
        %v5980 = vmax.f32 %v5978, %v5979
        %v5981 = vsel %vm5252, %v3622, -inf
        %v5982 = vsel %vm5252, %v4134, -inf
        %v5983 = vmax.f32 %v5981, %v5982
        %v5984 = vsel %vm5252, %v4646, -inf
        %v5985 = vmax.f32 %v5983, %v5984
        %v5986 = vsel %vm5252, %v5158, -inf
        %v5987 = vmax.f32 %v5985, %v5986
        %v5988 = vsel %vm5252, %v3625, -inf
        %v5989 = vsel %vm5252, %v4137, -inf
        %v5990 = vmax.f32 %v5988, %v5989
        %v5991 = vsel %vm5252, %v4649, -inf
        %v5992 = vmax.f32 %v5990, %v5991
        %v5993 = vsel %vm5252, %v5161, -inf
        %v5994 = vmax.f32 %v5992, %v5993
        %v5995 = vsel %vm5252, %v3630, -inf
        %v5996 = vsel %vm5252, %v4142, -inf
        %v5997 = vmax.f32 %v5995, %v5996
        %v5998 = vsel %vm5252, %v4654, -inf
        %v5999 = vmax.f32 %v5997, %v5998
        %v6000 = vsel %vm5252, %v5166, -inf
        %v6001 = vmax.f32 %v5999, %v6000
        %v6002 = vsel %vm5252, %v3633, -inf
        %v6003 = vsel %vm5252, %v4145, -inf
        %v6004 = vmax.f32 %v6002, %v6003
        %v6005 = vsel %vm5252, %v4657, -inf
        %v6006 = vmax.f32 %v6004, %v6005
        %v6007 = vsel %vm5252, %v5169, -inf
        %v6008 = vmax.f32 %v6006, %v6007
        %v6009 = vsel %vm5252, %v3638, -inf
        %v6010 = vsel %vm5252, %v4150, -inf
        %v6011 = vmax.f32 %v6009, %v6010
        %v6012 = vsel %vm5252, %v4662, -inf
        %v6013 = vmax.f32 %v6011, %v6012
        %v6014 = vsel %vm5252, %v5174, -inf
        %v6015 = vmax.f32 %v6013, %v6014
        %v6016 = vsel %vm5252, %v3641, -inf
        %v6017 = vsel %vm5252, %v4153, -inf
        %v6018 = vmax.f32 %v6016, %v6017
        %v6019 = vsel %vm5252, %v4665, -inf
        %v6020 = vmax.f32 %v6018, %v6019
        %v6021 = vsel %vm5252, %v5177, -inf
        %v6022 = vmax.f32 %v6020, %v6021
        %v6023 = vsel %vm5252, %v3646, -inf
        %v6024 = vsel %vm5252, %v4158, -inf
        %v6025 = vmax.f32 %v6023, %v6024
        %v6026 = vsel %vm5252, %v4670, -inf
        %v6027 = vmax.f32 %v6025, %v6026
        %v6028 = vsel %vm5252, %v5182, -inf
        %v6029 = vmax.f32 %v6027, %v6028
        %v6030 = vsel %vm5252, %v3649, -inf
        %v6031 = vsel %vm5252, %v4161, -inf
        %v6032 = vmax.f32 %v6030, %v6031
        %v6033 = vsel %vm5252, %v4673, -inf
        %v6034 = vmax.f32 %v6032, %v6033
        %v6035 = vsel %vm5252, %v5185, -inf
        %v6036 = vmax.f32 %v6034, %v6035
        %v6037 = vsel %vm5252, %v3654, -inf
        %v6038 = vsel %vm5252, %v4166, -inf
        %v6039 = vmax.f32 %v6037, %v6038
        %v6040 = vsel %vm5252, %v4678, -inf
        %v6041 = vmax.f32 %v6039, %v6040
        %v6042 = vsel %vm5252, %v5190, -inf
        %v6043 = vmax.f32 %v6041, %v6042
        %v6044 = vsel %vm5252, %v3657, -inf
        %v6045 = vsel %vm5252, %v4169, -inf
        %v6046 = vmax.f32 %v6044, %v6045
        %v6047 = vsel %vm5252, %v4681, -inf
        %v6048 = vmax.f32 %v6046, %v6047
        %v6049 = vsel %vm5252, %v5193, -inf
        %v6050 = vmax.f32 %v6048, %v6049
        %v6051 = vsel %vm5252, %v3662, -inf
        %v6052 = vsel %vm5252, %v4174, -inf
        %v6053 = vmax.f32 %v6051, %v6052
        %v6054 = vsel %vm5252, %v4686, -inf
        %v6055 = vmax.f32 %v6053, %v6054
        %v6056 = vsel %vm5252, %v5198, -inf
        %v6057 = vmax.f32 %v6055, %v6056
        %v6058 = vsel %vm5252, %v3665, -inf
        %v6059 = vsel %vm5252, %v4177, -inf
        %v6060 = vmax.f32 %v6058, %v6059
        %v6061 = vsel %vm5252, %v4689, -inf
        %v6062 = vmax.f32 %v6060, %v6061
        %v6063 = vsel %vm5252, %v5201, -inf
        %v6064 = vmax.f32 %v6062, %v6063
        %v6065 = vsel %vm5252, %v3670, -inf
        %v6066 = vsel %vm5252, %v4182, -inf
        %v6067 = vmax.f32 %v6065, %v6066
        %v6068 = vsel %vm5252, %v4694, -inf
        %v6069 = vmax.f32 %v6067, %v6068
        %v6070 = vsel %vm5252, %v5206, -inf
        %v6071 = vmax.f32 %v6069, %v6070
        %v6072 = vsel %vm5252, %v3673, -inf
        %v6073 = vsel %vm5252, %v4185, -inf
        %v6074 = vmax.f32 %v6072, %v6073
        %v6075 = vsel %vm5252, %v4697, -inf
        %v6076 = vmax.f32 %v6074, %v6075
        %v6077 = vsel %vm5252, %v5209, -inf
        %v6078 = vmax.f32 %v6076, %v6077
        %v6079 = vsel %vm5252, %v3678, -inf
        %v6080 = vsel %vm5252, %v4190, -inf
        %v6081 = vmax.f32 %v6079, %v6080
        %v6082 = vsel %vm5252, %v4702, -inf
        %v6083 = vmax.f32 %v6081, %v6082
        %v6084 = vsel %vm5252, %v5214, -inf
        %v6085 = vmax.f32 %v6083, %v6084
        %v6086 = vsel %vm5252, %v3681, -inf
        %v6087 = vsel %vm5252, %v4193, -inf
        %v6088 = vmax.f32 %v6086, %v6087
        %v6089 = vsel %vm5252, %v4705, -inf
        %v6090 = vmax.f32 %v6088, %v6089
        %v6091 = vsel %vm5252, %v5217, -inf
        %v6092 = vmax.f32 %v6090, %v6091
        %v6093 = vsel %vm5252, %v3686, -inf
        %v6094 = vsel %vm5252, %v4198, -inf
        %v6095 = vmax.f32 %v6093, %v6094
        %v6096 = vsel %vm5252, %v4710, -inf
        %v6097 = vmax.f32 %v6095, %v6096
        %v6098 = vsel %vm5252, %v5222, -inf
        %v6099 = vmax.f32 %v6097, %v6098
        %v6100 = vsel %vm5252, %v3689, -inf
        %v6101 = vsel %vm5252, %v4201, -inf
        %v6102 = vmax.f32 %v6100, %v6101
        %v6103 = vsel %vm5252, %v4713, -inf
        %v6104 = vmax.f32 %v6102, %v6103
        %v6105 = vsel %vm5252, %v5225, -inf
        %v6106 = vmax.f32 %v6104, %v6105
        %v6107 = vsel %vm5252, %v3694, -inf
        %v6108 = vsel %vm5252, %v4206, -inf
        %v6109 = vmax.f32 %v6107, %v6108
        %v6110 = vsel %vm5252, %v4718, -inf
        %v6111 = vmax.f32 %v6109, %v6110
        %v6112 = vsel %vm5252, %v5230, -inf
        %v6113 = vmax.f32 %v6111, %v6112
        %v6114 = vsel %vm5252, %v3697, -inf
        %v6115 = vsel %vm5252, %v4209, -inf
        %v6116 = vmax.f32 %v6114, %v6115
        %v6117 = vsel %vm5252, %v4721, -inf
        %v6118 = vmax.f32 %v6116, %v6117
        %v6119 = vsel %vm5252, %v5233, -inf
        %v6120 = vmax.f32 %v6118, %v6119
        %v6121 = vsel %vm5252, %v3702, -inf
        %v6122 = vsel %vm5252, %v4214, -inf
        %v6123 = vmax.f32 %v6121, %v6122
        %v6124 = vsel %vm5252, %v4726, -inf
        %v6125 = vmax.f32 %v6123, %v6124
        %v6126 = vsel %vm5252, %v5238, -inf
        %v6127 = vmax.f32 %v6125, %v6126
        %v6128 = vsel %vm5252, %v3705, -inf
        %v6129 = vsel %vm5252, %v4217, -inf
        %v6130 = vmax.f32 %v6128, %v6129
        %v6131 = vsel %vm5252, %v4729, -inf
        %v6132 = vmax.f32 %v6130, %v6131
        %v6133 = vsel %vm5252, %v5241, -inf
        %v6134 = vmax.f32 %v6132, %v6133
        %v6135 = vsel %vm5252, %v3710, -inf
        %v6136 = vsel %vm5252, %v4222, -inf
        %v6137 = vmax.f32 %v6135, %v6136
        %v6138 = vsel %vm5252, %v4734, -inf
        %v6139 = vmax.f32 %v6137, %v6138
        %v6140 = vsel %vm5252, %v5246, -inf
        %v6141 = vmax.f32 %v6139, %v6140
        %v6142 = vsel %vm5252, %v3713, -inf
        %v6143 = vsel %vm5252, %v4225, -inf
        %v6144 = vmax.f32 %v6142, %v6143
        %v6145 = vsel %vm5252, %v4737, -inf
        %v6146 = vmax.f32 %v6144, %v6145
        %v6147 = vsel %vm5252, %v5249, -inf
        %v6148 = vmax.f32 %v6146, %v6147
        %v6149 = vld [vmem:[%s2] sm:$0x1]
        %v6151 = vlaneseq
        %v6152 = vshrl.u32 %v6151, 7
        %v6153 = vsub.s32 0, %v6152
        %v6154 = vrot.slane %v6149, %v6153
        %v6156 = vadd.f32 %v5259, %v6154
        %v6157 = vadd.f32 %v5266, %v6154
        %v6158 = vadd.f32 %v5273, %v6154
        %v6159 = vadd.f32 %v5280, %v6154
        %v6160 = vadd.f32 %v5287, %v6154
        %v6161 = vadd.f32 %v5294, %v6154
        %v6162 = vadd.f32 %v5301, %v6154
        %v6163 = vadd.f32 %v5308, %v6154
        %v6164 = vadd.f32 %v5315, %v6154
        %v6165 = vadd.f32 %v5322, %v6154
        %v6166 = vadd.f32 %v5329, %v6154
        %v6167 = vadd.f32 %v5336, %v6154
        %v6168 = vadd.f32 %v5343, %v6154
        %v6169 = vadd.f32 %v5350, %v6154
        %v6170 = vadd.f32 %v5357, %v6154
        %v6171 = vadd.f32 %v5364, %v6154
        %v6172 = vadd.f32 %v5371, %v6154
        %v6173 = vadd.f32 %v5378, %v6154
        %v6174 = vadd.f32 %v5385, %v6154
        %v6175 = vadd.f32 %v5392, %v6154
        %v6176 = vadd.f32 %v5399, %v6154
        %v6177 = vadd.f32 %v5406, %v6154
        %v6178 = vadd.f32 %v5413, %v6154
        %v6179 = vadd.f32 %v5420, %v6154
        %v6180 = vadd.f32 %v5427, %v6154
        %v6181 = vadd.f32 %v5434, %v6154
        %v6182 = vadd.f32 %v5441, %v6154
        %v6183 = vadd.f32 %v5448, %v6154
        %v6184 = vadd.f32 %v5455, %v6154
        %v6185 = vadd.f32 %v5462, %v6154
        %v6186 = vadd.f32 %v5469, %v6154
        %v6187 = vadd.f32 %v5476, %v6154
        %v6188 = vadd.f32 %v5483, %v6154
        %v6189 = vadd.f32 %v5490, %v6154
        %v6190 = vadd.f32 %v5497, %v6154
        %v6191 = vadd.f32 %v5504, %v6154
        %v6192 = vadd.f32 %v5511, %v6154
        %v6193 = vadd.f32 %v5518, %v6154
        %v6194 = vadd.f32 %v5525, %v6154
        %v6195 = vadd.f32 %v5532, %v6154
        %v6196 = vadd.f32 %v5539, %v6154
        %v6197 = vadd.f32 %v5546, %v6154
        %v6198 = vadd.f32 %v5553, %v6154
        %v6199 = vadd.f32 %v5560, %v6154
        %v6200 = vadd.f32 %v5567, %v6154
        %v6201 = vadd.f32 %v5574, %v6154
        %v6202 = vadd.f32 %v5581, %v6154
        %v6203 = vadd.f32 %v5588, %v6154
        %v6204 = vadd.f32 %v5595, %v6154
        %v6205 = vadd.f32 %v5602, %v6154
        %v6206 = vadd.f32 %v5609, %v6154
        %v6207 = vadd.f32 %v5616, %v6154
        %v6208 = vadd.f32 %v5623, %v6154
        %v6209 = vadd.f32 %v5630, %v6154
        %v6210 = vadd.f32 %v5637, %v6154
        %v6211 = vadd.f32 %v5644, %v6154
        %v6212 = vadd.f32 %v5651, %v6154
        %v6213 = vadd.f32 %v5658, %v6154
        %v6214 = vadd.f32 %v5665, %v6154
        %v6215 = vadd.f32 %v5672, %v6154
        %v6216 = vadd.f32 %v5679, %v6154
        %v6217 = vadd.f32 %v5686, %v6154
        %v6218 = vadd.f32 %v5693, %v6154
        %v6219 = vadd.f32 %v5700, %v6154
        %v6220 = vadd.f32 %v5707, %v6154
        %v6221 = vadd.f32 %v5714, %v6154
        %v6222 = vadd.f32 %v5721, %v6154
        %v6223 = vadd.f32 %v5728, %v6154
        %v6224 = vadd.f32 %v5735, %v6154
        %v6225 = vadd.f32 %v5742, %v6154
        %v6226 = vadd.f32 %v5749, %v6154
        %v6227 = vadd.f32 %v5756, %v6154
        %v6228 = vadd.f32 %v5763, %v6154
        %v6229 = vadd.f32 %v5770, %v6154
        %v6230 = vadd.f32 %v5777, %v6154
        %v6231 = vadd.f32 %v5784, %v6154
        %v6232 = vadd.f32 %v5791, %v6154
        %v6233 = vadd.f32 %v5798, %v6154
        %v6234 = vadd.f32 %v5805, %v6154
        %v6235 = vadd.f32 %v5812, %v6154
        %v6236 = vadd.f32 %v5819, %v6154
        %v6237 = vadd.f32 %v5826, %v6154
        %v6238 = vadd.f32 %v5833, %v6154
        %v6239 = vadd.f32 %v5840, %v6154
        %v6240 = vadd.f32 %v5847, %v6154
        %v6241 = vadd.f32 %v5854, %v6154
        %v6242 = vadd.f32 %v5861, %v6154
        %v6243 = vadd.f32 %v5868, %v6154
        %v6244 = vadd.f32 %v5875, %v6154
        %v6245 = vadd.f32 %v5882, %v6154
        %v6246 = vadd.f32 %v5889, %v6154
        %v6247 = vadd.f32 %v5896, %v6154
        %v6248 = vadd.f32 %v5903, %v6154
        %v6249 = vadd.f32 %v5910, %v6154
        %v6250 = vadd.f32 %v5917, %v6154
        %v6251 = vadd.f32 %v5924, %v6154
        %v6252 = vadd.f32 %v5931, %v6154
        %v6253 = vadd.f32 %v5938, %v6154
        %v6254 = vadd.f32 %v5945, %v6154
        %v6255 = vadd.f32 %v5952, %v6154
        %v6256 = vadd.f32 %v5959, %v6154
        %v6257 = vadd.f32 %v5966, %v6154
        %v6258 = vadd.f32 %v5973, %v6154
        %v6259 = vadd.f32 %v5980, %v6154
        %v6260 = vadd.f32 %v5987, %v6154
        %v6261 = vadd.f32 %v5994, %v6154
        %v6262 = vadd.f32 %v6001, %v6154
        %v6263 = vadd.f32 %v6008, %v6154
        %v6264 = vadd.f32 %v6015, %v6154
        %v6265 = vadd.f32 %v6022, %v6154
        %v6266 = vadd.f32 %v6029, %v6154
        %v6267 = vadd.f32 %v6036, %v6154
        %v6268 = vadd.f32 %v6043, %v6154
        %v6269 = vadd.f32 %v6050, %v6154
        %v6270 = vadd.f32 %v6057, %v6154
        %v6271 = vadd.f32 %v6064, %v6154
        %v6272 = vadd.f32 %v6071, %v6154
        %v6273 = vadd.f32 %v6078, %v6154
        %v6274 = vadd.f32 %v6085, %v6154
        %v6275 = vadd.f32 %v6092, %v6154
        %v6276 = vadd.f32 %v6099, %v6154
        %v6277 = vadd.f32 %v6106, %v6154
        %v6278 = vadd.f32 %v6113, %v6154
        %v6279 = vadd.f32 %v6120, %v6154
        %v6280 = vadd.f32 %v6127, %v6154
        %v6281 = vadd.f32 %v6134, %v6154
        %v6282 = vadd.f32 %v6141, %v6154
        %v6283 = vadd.f32 %v6148, %v6154
        %v6284 = vmax.f32 %v6156, 0.0
        %v6285 = vmax.f32 %v6157, 0.0
        %v6286 = vmax.f32 %v6158, 0.0
        %v6287 = vmax.f32 %v6159, 0.0
        %v6288 = vmax.f32 %v6160, 0.0
        %v6289 = vmax.f32 %v6161, 0.0
        %v6290 = vmax.f32 %v6162, 0.0
        %v6291 = vmax.f32 %v6163, 0.0
        %v6292 = vmax.f32 %v6164, 0.0
        %v6293 = vmax.f32 %v6165, 0.0
        %v6294 = vmax.f32 %v6166, 0.0
        %v6295 = vmax.f32 %v6167, 0.0
        %v6296 = vmax.f32 %v6168, 0.0
        %v6297 = vmax.f32 %v6169, 0.0
        %v6298 = vmax.f32 %v6170, 0.0
        %v6299 = vmax.f32 %v6171, 0.0
        %v6300 = vmax.f32 %v6172, 0.0
        %v6301 = vmax.f32 %v6173, 0.0
        %v6302 = vmax.f32 %v6174, 0.0
        %v6303 = vmax.f32 %v6175, 0.0
        %v6304 = vmax.f32 %v6176, 0.0
        %v6305 = vmax.f32 %v6177, 0.0
        %v6306 = vmax.f32 %v6178, 0.0
        %v6307 = vmax.f32 %v6179, 0.0
        %v6308 = vmax.f32 %v6180, 0.0
        %v6309 = vmax.f32 %v6181, 0.0
        %v6310 = vmax.f32 %v6182, 0.0
        %v6311 = vmax.f32 %v6183, 0.0
        %v6312 = vmax.f32 %v6184, 0.0
        %v6313 = vmax.f32 %v6185, 0.0
        %v6314 = vmax.f32 %v6186, 0.0
        %v6315 = vmax.f32 %v6187, 0.0
        %v6316 = vmax.f32 %v6188, 0.0
        %v6317 = vmax.f32 %v6189, 0.0
        %v6318 = vmax.f32 %v6190, 0.0
        %v6319 = vmax.f32 %v6191, 0.0
        %v6320 = vmax.f32 %v6192, 0.0
        %v6321 = vmax.f32 %v6193, 0.0
        %v6322 = vmax.f32 %v6194, 0.0
        %v6323 = vmax.f32 %v6195, 0.0
        %v6324 = vmax.f32 %v6196, 0.0
        %v6325 = vmax.f32 %v6197, 0.0
        %v6326 = vmax.f32 %v6198, 0.0
        %v6327 = vmax.f32 %v6199, 0.0
        %v6328 = vmax.f32 %v6200, 0.0
        %v6329 = vmax.f32 %v6201, 0.0
        %v6330 = vmax.f32 %v6202, 0.0
        %v6331 = vmax.f32 %v6203, 0.0
        %v6332 = vmax.f32 %v6204, 0.0
        %v6333 = vmax.f32 %v6205, 0.0
        %v6334 = vmax.f32 %v6206, 0.0
        %v6335 = vmax.f32 %v6207, 0.0
        %v6336 = vmax.f32 %v6208, 0.0
        %v6337 = vmax.f32 %v6209, 0.0
        %v6338 = vmax.f32 %v6210, 0.0
        %v6339 = vmax.f32 %v6211, 0.0
        %v6340 = vmax.f32 %v6212, 0.0
        %v6341 = vmax.f32 %v6213, 0.0
        %v6342 = vmax.f32 %v6214, 0.0
        %v6343 = vmax.f32 %v6215, 0.0
        %v6344 = vmax.f32 %v6216, 0.0
        %v6345 = vmax.f32 %v6217, 0.0
        %v6346 = vmax.f32 %v6218, 0.0
        %v6347 = vmax.f32 %v6219, 0.0
        %v6348 = vmax.f32 %v6220, 0.0
        %v6349 = vmax.f32 %v6221, 0.0
        %v6350 = vmax.f32 %v6222, 0.0
        %v6351 = vmax.f32 %v6223, 0.0
        %v6352 = vmax.f32 %v6224, 0.0
        %v6353 = vmax.f32 %v6225, 0.0
        %v6354 = vmax.f32 %v6226, 0.0
        %v6355 = vmax.f32 %v6227, 0.0
        %v6356 = vmax.f32 %v6228, 0.0
        %v6357 = vmax.f32 %v6229, 0.0
        %v6358 = vmax.f32 %v6230, 0.0
        %v6359 = vmax.f32 %v6231, 0.0
        %v6360 = vmax.f32 %v6232, 0.0
        %v6361 = vmax.f32 %v6233, 0.0
        %v6362 = vmax.f32 %v6234, 0.0
        %v6363 = vmax.f32 %v6235, 0.0
        %v6364 = vmax.f32 %v6236, 0.0
        %v6365 = vmax.f32 %v6237, 0.0
        %v6366 = vmax.f32 %v6238, 0.0
        %v6367 = vmax.f32 %v6239, 0.0
        %v6368 = vmax.f32 %v6240, 0.0
        %v6369 = vmax.f32 %v6241, 0.0
        %v6370 = vmax.f32 %v6242, 0.0
        %v6371 = vmax.f32 %v6243, 0.0
        %v6372 = vmax.f32 %v6244, 0.0
        %v6373 = vmax.f32 %v6245, 0.0
        %v6374 = vmax.f32 %v6246, 0.0
        %v6375 = vmax.f32 %v6247, 0.0
        %v6376 = vmax.f32 %v6248, 0.0
        %v6377 = vmax.f32 %v6249, 0.0
        %v6378 = vmax.f32 %v6250, 0.0
        %v6379 = vmax.f32 %v6251, 0.0
        %v6380 = vmax.f32 %v6252, 0.0
        %v6381 = vmax.f32 %v6253, 0.0
        %v6382 = vmax.f32 %v6254, 0.0
        %v6383 = vmax.f32 %v6255, 0.0
        %v6384 = vmax.f32 %v6256, 0.0
        %v6385 = vmax.f32 %v6257, 0.0
        %v6386 = vmax.f32 %v6258, 0.0
        %v6387 = vmax.f32 %v6259, 0.0
        %v6388 = vmax.f32 %v6260, 0.0
        %v6389 = vmax.f32 %v6261, 0.0
        %v6390 = vmax.f32 %v6262, 0.0
        %v6391 = vmax.f32 %v6263, 0.0
        %v6392 = vmax.f32 %v6264, 0.0
        %v6393 = vmax.f32 %v6265, 0.0
        %v6394 = vmax.f32 %v6266, 0.0
        %v6395 = vmax.f32 %v6267, 0.0
        %v6396 = vmax.f32 %v6268, 0.0
        %v6397 = vmax.f32 %v6269, 0.0
        %v6398 = vmax.f32 %v6270, 0.0
        %v6399 = vmax.f32 %v6271, 0.0
        %v6400 = vmax.f32 %v6272, 0.0
        %v6401 = vmax.f32 %v6273, 0.0
        %v6402 = vmax.f32 %v6274, 0.0
        %v6403 = vmax.f32 %v6275, 0.0
        %v6404 = vmax.f32 %v6276, 0.0
        %v6405 = vmax.f32 %v6277, 0.0
        %v6406 = vmax.f32 %v6278, 0.0
        %v6407 = vmax.f32 %v6279, 0.0
        %v6408 = vmax.f32 %v6280, 0.0
        %v6409 = vmax.f32 %v6281, 0.0
        %v6410 = vmax.f32 %v6282, 0.0
        %v6411 = vmax.f32 %v6283, 0.0
        %v6412 = vpack.c.bf16 %v6285, %v6284
        %v6413 = vpack.c.bf16 %v6287, %v6286
        %v6414 = vpack.c.bf16 %v6289, %v6288
        %v6415 = vpack.c.bf16 %v6291, %v6290
        %v6416 = vpack.c.bf16 %v6293, %v6292
        %v6417 = vpack.c.bf16 %v6295, %v6294
        %v6418 = vpack.c.bf16 %v6297, %v6296
        %v6419 = vpack.c.bf16 %v6299, %v6298
        %v6420 = vpack.c.bf16 %v6301, %v6300
        %v6421 = vpack.c.bf16 %v6303, %v6302
        %v6422 = vpack.c.bf16 %v6305, %v6304
        %v6423 = vpack.c.bf16 %v6307, %v6306
        %v6424 = vpack.c.bf16 %v6309, %v6308
        %v6425 = vpack.c.bf16 %v6311, %v6310
        %v6426 = vpack.c.bf16 %v6313, %v6312
        %v6427 = vpack.c.bf16 %v6315, %v6314
        %v6428 = vpack.c.bf16 %v6317, %v6316
        %v6429 = vpack.c.bf16 %v6319, %v6318
        %v6430 = vpack.c.bf16 %v6321, %v6320
        %v6431 = vpack.c.bf16 %v6323, %v6322
        %v6432 = vpack.c.bf16 %v6325, %v6324
        %v6433 = vpack.c.bf16 %v6327, %v6326
        %v6434 = vpack.c.bf16 %v6329, %v6328
        %v6435 = vpack.c.bf16 %v6331, %v6330
        %v6436 = vpack.c.bf16 %v6333, %v6332
        %v6437 = vpack.c.bf16 %v6335, %v6334
        %v6438 = vpack.c.bf16 %v6337, %v6336
        %v6439 = vpack.c.bf16 %v6339, %v6338
        %v6440 = vpack.c.bf16 %v6341, %v6340
        %v6441 = vpack.c.bf16 %v6343, %v6342
        %v6442 = vpack.c.bf16 %v6345, %v6344
        %v6443 = vpack.c.bf16 %v6347, %v6346
        %v6444 = vpack.c.bf16 %v6349, %v6348
        %v6445 = vpack.c.bf16 %v6351, %v6350
        %v6446 = vpack.c.bf16 %v6353, %v6352
        %v6447 = vpack.c.bf16 %v6355, %v6354
        %v6448 = vpack.c.bf16 %v6357, %v6356
        %v6449 = vpack.c.bf16 %v6359, %v6358
        %v6450 = vpack.c.bf16 %v6361, %v6360
        %v6451 = vpack.c.bf16 %v6363, %v6362
        %v6452 = vpack.c.bf16 %v6365, %v6364
        %v6453 = vpack.c.bf16 %v6367, %v6366
        %v6454 = vpack.c.bf16 %v6369, %v6368
        %v6455 = vpack.c.bf16 %v6371, %v6370
        %v6456 = vpack.c.bf16 %v6373, %v6372
        %v6457 = vpack.c.bf16 %v6375, %v6374
        %v6458 = vpack.c.bf16 %v6377, %v6376
        %v6459 = vpack.c.bf16 %v6379, %v6378
        %v6460 = vpack.c.bf16 %v6381, %v6380
        %v6461 = vpack.c.bf16 %v6383, %v6382
        %v6462 = vpack.c.bf16 %v6385, %v6384
        %v6463 = vpack.c.bf16 %v6387, %v6386
        %v6464 = vpack.c.bf16 %v6389, %v6388
        %v6465 = vpack.c.bf16 %v6391, %v6390
        %v6466 = vpack.c.bf16 %v6393, %v6392
        %v6467 = vpack.c.bf16 %v6395, %v6394
        %v6468 = vpack.c.bf16 %v6397, %v6396
        %v6469 = vpack.c.bf16 %v6399, %v6398
        %v6470 = vpack.c.bf16 %v6401, %v6400
        %v6471 = vpack.c.bf16 %v6403, %v6402
        %v6472 = vpack.c.bf16 %v6405, %v6404
        %v6473 = vpack.c.bf16 %v6407, %v6406
        %v6474 = vpack.c.bf16 %v6409, %v6408
        %v6475 = vpack.c.bf16 %v6411, %v6410
        %v6540 = vunpack.c.l.b16 %v6412
        %v6541 = vunpack.c.h.b16 %v6412
        %v6542 = vunpack.c.l.b16 %v6413
        %v6543 = vunpack.c.h.b16 %v6413
        %v6544 = vunpack.c.l.b16 %v6414
        %v6545 = vunpack.c.h.b16 %v6414
        %v6546 = vunpack.c.l.b16 %v6415
        %v6547 = vunpack.c.h.b16 %v6415
        %v6548 = vunpack.c.l.b16 %v6416
        %v6549 = vunpack.c.h.b16 %v6416
        %v6550 = vunpack.c.l.b16 %v6417
        %v6551 = vunpack.c.h.b16 %v6417
        %v6552 = vunpack.c.l.b16 %v6418
        %v6553 = vunpack.c.h.b16 %v6418
        %v6554 = vunpack.c.l.b16 %v6419
        %v6555 = vunpack.c.h.b16 %v6419
        %v6556 = vunpack.c.l.b16 %v6420
        %v6557 = vunpack.c.h.b16 %v6420
        %v6558 = vunpack.c.l.b16 %v6421
        %v6559 = vunpack.c.h.b16 %v6421
        %v6560 = vunpack.c.l.b16 %v6422
        %v6561 = vunpack.c.h.b16 %v6422
        %v6562 = vunpack.c.l.b16 %v6423
        %v6563 = vunpack.c.h.b16 %v6423
        %v6564 = vunpack.c.l.b16 %v6424
        %v6565 = vunpack.c.h.b16 %v6424
        %v6566 = vunpack.c.l.b16 %v6425
        %v6567 = vunpack.c.h.b16 %v6425
        %v6568 = vunpack.c.l.b16 %v6426
        %v6569 = vunpack.c.h.b16 %v6426
        %v6570 = vunpack.c.l.b16 %v6427
        %v6571 = vunpack.c.h.b16 %v6427
        %v6572 = vunpack.c.l.b16 %v6428
        %v6573 = vunpack.c.h.b16 %v6428
        %v6574 = vunpack.c.l.b16 %v6429
        %v6575 = vunpack.c.h.b16 %v6429
        %v6576 = vunpack.c.l.b16 %v6430
        %v6577 = vunpack.c.h.b16 %v6430
        %v6578 = vunpack.c.l.b16 %v6431
        %v6579 = vunpack.c.h.b16 %v6431
        %v6580 = vunpack.c.l.b16 %v6432
        %v6581 = vunpack.c.h.b16 %v6432
        %v6582 = vunpack.c.l.b16 %v6433
        %v6583 = vunpack.c.h.b16 %v6433
        %v6584 = vunpack.c.l.b16 %v6434
        %v6585 = vunpack.c.h.b16 %v6434
        %v6586 = vunpack.c.l.b16 %v6435
        %v6587 = vunpack.c.h.b16 %v6435
        %v6588 = vunpack.c.l.b16 %v6436
        %v6589 = vunpack.c.h.b16 %v6436
        %v6590 = vunpack.c.l.b16 %v6437
        %v6591 = vunpack.c.h.b16 %v6437
        %v6592 = vunpack.c.l.b16 %v6438
        %v6593 = vunpack.c.h.b16 %v6438
        %v6594 = vunpack.c.l.b16 %v6439
        %v6595 = vunpack.c.h.b16 %v6439
        %v6596 = vunpack.c.l.b16 %v6440
        %v6597 = vunpack.c.h.b16 %v6440
        %v6598 = vunpack.c.l.b16 %v6441
        %v6599 = vunpack.c.h.b16 %v6441
        %v6600 = vunpack.c.l.b16 %v6442
        %v6601 = vunpack.c.h.b16 %v6442
        %v6602 = vunpack.c.l.b16 %v6443
        %v6603 = vunpack.c.h.b16 %v6443
        %v6604 = vunpack.c.l.b16 %v6444
        %v6605 = vunpack.c.h.b16 %v6444
        %v6606 = vunpack.c.l.b16 %v6445
        %v6607 = vunpack.c.h.b16 %v6445
        %v6608 = vunpack.c.l.b16 %v6446
        %v6609 = vunpack.c.h.b16 %v6446
        %v6610 = vunpack.c.l.b16 %v6447
        %v6611 = vunpack.c.h.b16 %v6447
        %v6612 = vunpack.c.l.b16 %v6448
        %v6613 = vunpack.c.h.b16 %v6448
        %v6614 = vunpack.c.l.b16 %v6449
        %v6615 = vunpack.c.h.b16 %v6449
        %v6616 = vunpack.c.l.b16 %v6450
        %v6617 = vunpack.c.h.b16 %v6450
        %v6618 = vunpack.c.l.b16 %v6451
        %v6619 = vunpack.c.h.b16 %v6451
        %v6620 = vunpack.c.l.b16 %v6452
        %v6621 = vunpack.c.h.b16 %v6452
        %v6622 = vunpack.c.l.b16 %v6453
        %v6623 = vunpack.c.h.b16 %v6453
        %v6624 = vunpack.c.l.b16 %v6454
        %v6625 = vunpack.c.h.b16 %v6454
        %v6626 = vunpack.c.l.b16 %v6455
        %v6627 = vunpack.c.h.b16 %v6455
        %v6628 = vunpack.c.l.b16 %v6456
        %v6629 = vunpack.c.h.b16 %v6456
        %v6630 = vunpack.c.l.b16 %v6457
        %v6631 = vunpack.c.h.b16 %v6457
        %v6632 = vunpack.c.l.b16 %v6458
        %v6633 = vunpack.c.h.b16 %v6458
        %v6634 = vunpack.c.l.b16 %v6459
        %v6635 = vunpack.c.h.b16 %v6459
        %v6636 = vunpack.c.l.b16 %v6460
        %v6637 = vunpack.c.h.b16 %v6460
        %v6638 = vunpack.c.l.b16 %v6461
        %v6639 = vunpack.c.h.b16 %v6461
        %v6640 = vunpack.c.l.b16 %v6462
        %v6641 = vunpack.c.h.b16 %v6462
        %v6642 = vunpack.c.l.b16 %v6463
        %v6643 = vunpack.c.h.b16 %v6463
        %v6644 = vunpack.c.l.b16 %v6464
        %v6645 = vunpack.c.h.b16 %v6464
        %v6646 = vunpack.c.l.b16 %v6465
        %v6647 = vunpack.c.h.b16 %v6465
        %v6648 = vunpack.c.l.b16 %v6466
        %v6649 = vunpack.c.h.b16 %v6466
        %v6650 = vunpack.c.l.b16 %v6467
        %v6651 = vunpack.c.h.b16 %v6467
        %v6652 = vunpack.c.l.b16 %v6468
        %v6653 = vunpack.c.h.b16 %v6468
        %v6654 = vunpack.c.l.b16 %v6469
        %v6655 = vunpack.c.h.b16 %v6469
        %v6656 = vunpack.c.l.b16 %v6470
        %v6657 = vunpack.c.h.b16 %v6470
        %v6658 = vunpack.c.l.b16 %v6471
        %v6659 = vunpack.c.h.b16 %v6471
        %v6660 = vunpack.c.l.b16 %v6472
        %v6661 = vunpack.c.h.b16 %v6472
        %v6662 = vunpack.c.l.b16 %v6473
        %v6663 = vunpack.c.h.b16 %v6473
        %v6664 = vunpack.c.l.b16 %v6474
        %v6665 = vunpack.c.h.b16 %v6474
        %v6666 = vunpack.c.l.b16 %v6475
        %v6667 = vunpack.c.h.b16 %v6475
        %v6668 = vpack.c.b16 %v6540, %v6540
        %v6669 = vpack.c.b16 %v6541, %v6541
        %v6670 = vpack.c.b16 %v6542, %v6542
        %v6671 = vpack.c.b16 %v6543, %v6543
        %v6672 = vpack.c.b16 %v6544, %v6544
        %v6673 = vpack.c.b16 %v6545, %v6545
        %v6674 = vpack.c.b16 %v6546, %v6546
        %v6675 = vpack.c.b16 %v6547, %v6547
        %v6676 = vpack.c.b16 %v6548, %v6548
        %v6677 = vpack.c.b16 %v6549, %v6549
        %v6678 = vpack.c.b16 %v6550, %v6550
        %v6679 = vpack.c.b16 %v6551, %v6551
        %v6680 = vpack.c.b16 %v6552, %v6552
        %v6681 = vpack.c.b16 %v6553, %v6553
        %v6682 = vpack.c.b16 %v6554, %v6554
        %v6683 = vpack.c.b16 %v6555, %v6555
        %v6684 = vpack.c.b16 %v6556, %v6556
        %v6685 = vpack.c.b16 %v6557, %v6557
        %v6686 = vpack.c.b16 %v6558, %v6558
        %v6687 = vpack.c.b16 %v6559, %v6559
        %v6688 = vpack.c.b16 %v6560, %v6560
        %v6689 = vpack.c.b16 %v6561, %v6561
        %v6690 = vpack.c.b16 %v6562, %v6562
        %v6691 = vpack.c.b16 %v6563, %v6563
        %v6692 = vpack.c.b16 %v6564, %v6564
        %v6693 = vpack.c.b16 %v6565, %v6565
        %v6694 = vpack.c.b16 %v6566, %v6566
        %v6695 = vpack.c.b16 %v6567, %v6567
        %v6696 = vpack.c.b16 %v6568, %v6568
        %v6697 = vpack.c.b16 %v6569, %v6569
        %v6698 = vpack.c.b16 %v6570, %v6570
        %v6699 = vpack.c.b16 %v6571, %v6571
        %v6700 = vpack.c.b16 %v6572, %v6572
        %v6701 = vpack.c.b16 %v6573, %v6573
        %v6702 = vpack.c.b16 %v6574, %v6574
        %v6703 = vpack.c.b16 %v6575, %v6575
        %v6704 = vpack.c.b16 %v6576, %v6576
        %v6705 = vpack.c.b16 %v6577, %v6577
        %v6706 = vpack.c.b16 %v6578, %v6578
        %v6707 = vpack.c.b16 %v6579, %v6579
        %v6708 = vpack.c.b16 %v6580, %v6580
        %v6709 = vpack.c.b16 %v6581, %v6581
        %v6710 = vpack.c.b16 %v6582, %v6582
        %v6711 = vpack.c.b16 %v6583, %v6583
        %v6712 = vpack.c.b16 %v6584, %v6584
        %v6713 = vpack.c.b16 %v6585, %v6585
        %v6714 = vpack.c.b16 %v6586, %v6586
        %v6715 = vpack.c.b16 %v6587, %v6587
        %v6716 = vpack.c.b16 %v6588, %v6588
        %v6717 = vpack.c.b16 %v6589, %v6589
        %v6718 = vpack.c.b16 %v6590, %v6590
        %v6719 = vpack.c.b16 %v6591, %v6591
        %v6720 = vpack.c.b16 %v6592, %v6592
        %v6721 = vpack.c.b16 %v6593, %v6593
        %v6722 = vpack.c.b16 %v6594, %v6594
        %v6723 = vpack.c.b16 %v6595, %v6595
        %v6724 = vpack.c.b16 %v6596, %v6596
        %v6725 = vpack.c.b16 %v6597, %v6597
        %v6726 = vpack.c.b16 %v6598, %v6598
        %v6727 = vpack.c.b16 %v6599, %v6599
        %v6728 = vpack.c.b16 %v6600, %v6600
        %v6729 = vpack.c.b16 %v6601, %v6601
        %v6730 = vpack.c.b16 %v6602, %v6602
        %v6731 = vpack.c.b16 %v6603, %v6603
        %v6732 = vpack.c.b16 %v6604, %v6604
        %v6733 = vpack.c.b16 %v6605, %v6605
        %v6734 = vpack.c.b16 %v6606, %v6606
        %v6735 = vpack.c.b16 %v6607, %v6607
        %v6736 = vpack.c.b16 %v6608, %v6608
        %v6737 = vpack.c.b16 %v6609, %v6609
        %v6738 = vpack.c.b16 %v6610, %v6610
        %v6739 = vpack.c.b16 %v6611, %v6611
        %v6740 = vpack.c.b16 %v6612, %v6612
        %v6741 = vpack.c.b16 %v6613, %v6613
        %v6742 = vpack.c.b16 %v6614, %v6614
        %v6743 = vpack.c.b16 %v6615, %v6615
        %v6744 = vpack.c.b16 %v6616, %v6616
        %v6745 = vpack.c.b16 %v6617, %v6617
        %v6746 = vpack.c.b16 %v6618, %v6618
        %v6747 = vpack.c.b16 %v6619, %v6619
        %v6748 = vpack.c.b16 %v6620, %v6620
        %v6749 = vpack.c.b16 %v6621, %v6621
        %v6750 = vpack.c.b16 %v6622, %v6622
        %v6751 = vpack.c.b16 %v6623, %v6623
        %v6752 = vpack.c.b16 %v6624, %v6624
        %v6753 = vpack.c.b16 %v6625, %v6625
        %v6754 = vpack.c.b16 %v6626, %v6626
        %v6755 = vpack.c.b16 %v6627, %v6627
        %v6756 = vpack.c.b16 %v6628, %v6628
        %v6757 = vpack.c.b16 %v6629, %v6629
        %v6758 = vpack.c.b16 %v6630, %v6630
        %v6759 = vpack.c.b16 %v6631, %v6631
        %v6760 = vpack.c.b16 %v6632, %v6632
        %v6761 = vpack.c.b16 %v6633, %v6633
        %v6762 = vpack.c.b16 %v6634, %v6634
        %v6763 = vpack.c.b16 %v6635, %v6635
        %v6764 = vpack.c.b16 %v6636, %v6636
        %v6765 = vpack.c.b16 %v6637, %v6637
        %v6766 = vpack.c.b16 %v6638, %v6638
        %v6767 = vpack.c.b16 %v6639, %v6639
        %v6768 = vpack.c.b16 %v6640, %v6640
        %v6769 = vpack.c.b16 %v6641, %v6641
        %v6770 = vpack.c.b16 %v6642, %v6642
        %v6771 = vpack.c.b16 %v6643, %v6643
        %v6772 = vpack.c.b16 %v6644, %v6644
        %v6773 = vpack.c.b16 %v6645, %v6645
        %v6774 = vpack.c.b16 %v6646, %v6646
        %v6775 = vpack.c.b16 %v6647, %v6647
        %v6776 = vpack.c.b16 %v6648, %v6648
        %v6777 = vpack.c.b16 %v6649, %v6649
        %v6778 = vpack.c.b16 %v6650, %v6650
        %v6779 = vpack.c.b16 %v6651, %v6651
        %v6780 = vpack.c.b16 %v6652, %v6652
        %v6781 = vpack.c.b16 %v6653, %v6653
        %v6782 = vpack.c.b16 %v6654, %v6654
        %v6783 = vpack.c.b16 %v6655, %v6655
        %v6784 = vpack.c.b16 %v6656, %v6656
        %v6785 = vpack.c.b16 %v6657, %v6657
        %v6786 = vpack.c.b16 %v6658, %v6658
        %v6787 = vpack.c.b16 %v6659, %v6659
        %v6788 = vpack.c.b16 %v6660, %v6660
        %v6789 = vpack.c.b16 %v6661, %v6661
        %v6790 = vpack.c.b16 %v6662, %v6662
        %v6791 = vpack.c.b16 %v6663, %v6663
        %v6792 = vpack.c.b16 %v6664, %v6664
        %v6793 = vpack.c.b16 %v6665, %v6665
        %v6794 = vpack.c.b16 %v6666, %v6666
        %v6795 = vpack.c.b16 %v6667, %v6667
        %vm6924 = vcmask 76800
        %6925 = vst.msk [vmem:[%s576] sm:$0xf] %vm6924, %v6668
        %6926 = vst.msk [vmem:[%s576 + $0x4] sm:$0xf] %vm6924, %v6669
        %6927 = vst.msk [vmem:[%s576 + $0x8] sm:$0xf] %vm6924, %v6670
        %6928 = vst.msk [vmem:[%s576 + $0xc] sm:$0xf] %vm6924, %v6671
        %6929 = vst.msk [vmem:[%s576 + $0x10] sm:$0xf] %vm6924, %v6672
        %6930 = vst.msk [vmem:[%s576 + $0x14] sm:$0xf] %vm6924, %v6673
        %6931 = vst.msk [vmem:[%s576 + $0x18] sm:$0xf] %vm6924, %v6674
        %6932 = vst.msk [vmem:[%s576 + $0x1c] sm:$0xf] %vm6924, %v6675
        %6933 = vst.msk [vmem:[%s576 + $0x20] sm:$0xf] %vm6924, %v6676
        %6934 = vst.msk [vmem:[%s576 + $0x24] sm:$0xf] %vm6924, %v6677
        %6935 = vst.msk [vmem:[%s576 + $0x28] sm:$0xf] %vm6924, %v6678
        %6936 = vst.msk [vmem:[%s576 + $0x2c] sm:$0xf] %vm6924, %v6679
        %6937 = vst.msk [vmem:[%s576 + $0x30] sm:$0xf] %vm6924, %v6680
        %6938 = vst.msk [vmem:[%s576 + $0x34] sm:$0xf] %vm6924, %v6681
        %6939 = vst.msk [vmem:[%s576 + $0x38] sm:$0xf] %vm6924, %v6682
        %6940 = vst.msk [vmem:[%s576 + $0x3c] sm:$0xf] %vm6924, %v6683
        %6941 = vst.msk [vmem:[%s576 + $0x40] sm:$0xf] %vm6924, %v6684
        %6942 = vst.msk [vmem:[%s576 + $0x44] sm:$0xf] %vm6924, %v6685
        %6943 = vst.msk [vmem:[%s576 + $0x48] sm:$0xf] %vm6924, %v6686
        %6944 = vst.msk [vmem:[%s576 + $0x4c] sm:$0xf] %vm6924, %v6687
        %6945 = vst.msk [vmem:[%s576 + $0x50] sm:$0xf] %vm6924, %v6688
        %6946 = vst.msk [vmem:[%s576 + $0x54] sm:$0xf] %vm6924, %v6689
        %6947 = vst.msk [vmem:[%s576 + $0x58] sm:$0xf] %vm6924, %v6690
        %6948 = vst.msk [vmem:[%s576 + $0x5c] sm:$0xf] %vm6924, %v6691
        %6949 = vst.msk [vmem:[%s576 + $0x60] sm:$0xf] %vm6924, %v6692
        %6950 = vst.msk [vmem:[%s576 + $0x64] sm:$0xf] %vm6924, %v6693
        %6951 = vst.msk [vmem:[%s576 + $0x68] sm:$0xf] %vm6924, %v6694
        %6952 = vst.msk [vmem:[%s576 + $0x6c] sm:$0xf] %vm6924, %v6695
        %6953 = vst.msk [vmem:[%s576 + $0x70] sm:$0xf] %vm6924, %v6696
        %6954 = vst.msk [vmem:[%s576 + $0x74] sm:$0xf] %vm6924, %v6697
        %6955 = vst.msk [vmem:[%s576 + $0x78] sm:$0xf] %vm6924, %v6698
        %6956 = vst.msk [vmem:[%s576 + $0x7c] sm:$0xf] %vm6924, %v6699
        %6957 = vst.msk [vmem:[%s576 + $0x80] sm:$0xf] %vm6924, %v6700
        %6958 = vst.msk [vmem:[%s576 + $0x84] sm:$0xf] %vm6924, %v6701
        %6959 = vst.msk [vmem:[%s576 + $0x88] sm:$0xf] %vm6924, %v6702
        %6960 = vst.msk [vmem:[%s576 + $0x8c] sm:$0xf] %vm6924, %v6703
        %6961 = vst.msk [vmem:[%s576 + $0x90] sm:$0xf] %vm6924, %v6704
        %6962 = vst.msk [vmem:[%s576 + $0x94] sm:$0xf] %vm6924, %v6705
        %6963 = vst.msk [vmem:[%s576 + $0x98] sm:$0xf] %vm6924, %v6706
        %6964 = vst.msk [vmem:[%s576 + $0x9c] sm:$0xf] %vm6924, %v6707
        %6965 = vst.msk [vmem:[%s576 + $0xa0] sm:$0xf] %vm6924, %v6708
        %6966 = vst.msk [vmem:[%s576 + $0xa4] sm:$0xf] %vm6924, %v6709
        %6967 = vst.msk [vmem:[%s576 + $0xa8] sm:$0xf] %vm6924, %v6710
        %6968 = vst.msk [vmem:[%s576 + $0xac] sm:$0xf] %vm6924, %v6711
        %6969 = vst.msk [vmem:[%s576 + $0xb0] sm:$0xf] %vm6924, %v6712
        %6970 = vst.msk [vmem:[%s576 + $0xb4] sm:$0xf] %vm6924, %v6713
        %6971 = vst.msk [vmem:[%s576 + $0xb8] sm:$0xf] %vm6924, %v6714
        %6972 = vst.msk [vmem:[%s576 + $0xbc] sm:$0xf] %vm6924, %v6715
        %6973 = vst.msk [vmem:[%s576 + $0xc0] sm:$0xf] %vm6924, %v6716
        %6974 = vst.msk [vmem:[%s576 + $0xc4] sm:$0xf] %vm6924, %v6717
        %6975 = vst.msk [vmem:[%s576 + $0xc8] sm:$0xf] %vm6924, %v6718
        %6976 = vst.msk [vmem:[%s576 + $0xcc] sm:$0xf] %vm6924, %v6719
        %6977 = vst.msk [vmem:[%s576 + $0xd0] sm:$0xf] %vm6924, %v6720
        %6978 = vst.msk [vmem:[%s576 + $0xd4] sm:$0xf] %vm6924, %v6721
        %6979 = vst.msk [vmem:[%s576 + $0xd8] sm:$0xf] %vm6924, %v6722
        %6980 = vst.msk [vmem:[%s576 + $0xdc] sm:$0xf] %vm6924, %v6723
        %6981 = vst.msk [vmem:[%s576 + $0xe0] sm:$0xf] %vm6924, %v6724
        %6982 = vst.msk [vmem:[%s576 + $0xe4] sm:$0xf] %vm6924, %v6725
        %6983 = vst.msk [vmem:[%s576 + $0xe8] sm:$0xf] %vm6924, %v6726
        %6984 = vst.msk [vmem:[%s576 + $0xec] sm:$0xf] %vm6924, %v6727
        %6985 = vst.msk [vmem:[%s576 + $0xf0] sm:$0xf] %vm6924, %v6728
        %6986 = vst.msk [vmem:[%s576 + $0xf4] sm:$0xf] %vm6924, %v6729
        %6987 = vst.msk [vmem:[%s576 + $0xf8] sm:$0xf] %vm6924, %v6730
        %6988 = vst.msk [vmem:[%s576 + $0xfc] sm:$0xf] %vm6924, %v6731
        %6989 = vst.msk [vmem:[%s576 + $0x100] sm:$0xf] %vm6924, %v6732
        %6990 = vst.msk [vmem:[%s576 + $0x104] sm:$0xf] %vm6924, %v6733
        %6991 = vst.msk [vmem:[%s576 + $0x108] sm:$0xf] %vm6924, %v6734
        %6992 = vst.msk [vmem:[%s576 + $0x10c] sm:$0xf] %vm6924, %v6735
        %6993 = vst.msk [vmem:[%s576 + $0x110] sm:$0xf] %vm6924, %v6736
        %6994 = vst.msk [vmem:[%s576 + $0x114] sm:$0xf] %vm6924, %v6737
        %6995 = vst.msk [vmem:[%s576 + $0x118] sm:$0xf] %vm6924, %v6738
        %6996 = vst.msk [vmem:[%s576 + $0x11c] sm:$0xf] %vm6924, %v6739
        %6997 = vst.msk [vmem:[%s576 + $0x120] sm:$0xf] %vm6924, %v6740
        %6998 = vst.msk [vmem:[%s576 + $0x124] sm:$0xf] %vm6924, %v6741
        %6999 = vst.msk [vmem:[%s576 + $0x128] sm:$0xf] %vm6924, %v6742
        %7000 = vst.msk [vmem:[%s576 + $0x12c] sm:$0xf] %vm6924, %v6743
        %7001 = vst.msk [vmem:[%s576 + $0x130] sm:$0xf] %vm6924, %v6744
        %7002 = vst.msk [vmem:[%s576 + $0x134] sm:$0xf] %vm6924, %v6745
        %7003 = vst.msk [vmem:[%s576 + $0x138] sm:$0xf] %vm6924, %v6746
        %7004 = vst.msk [vmem:[%s576 + $0x13c] sm:$0xf] %vm6924, %v6747
        %7005 = vst.msk [vmem:[%s576 + $0x140] sm:$0xf] %vm6924, %v6748
        %7006 = vst.msk [vmem:[%s576 + $0x144] sm:$0xf] %vm6924, %v6749
        %7007 = vst.msk [vmem:[%s576 + $0x148] sm:$0xf] %vm6924, %v6750
        %7008 = vst.msk [vmem:[%s576 + $0x14c] sm:$0xf] %vm6924, %v6751
        %7009 = vst.msk [vmem:[%s576 + $0x150] sm:$0xf] %vm6924, %v6752
        %7010 = vst.msk [vmem:[%s576 + $0x154] sm:$0xf] %vm6924, %v6753
        %7011 = vst.msk [vmem:[%s576 + $0x158] sm:$0xf] %vm6924, %v6754
        %7012 = vst.msk [vmem:[%s576 + $0x15c] sm:$0xf] %vm6924, %v6755
        %7013 = vst.msk [vmem:[%s576 + $0x160] sm:$0xf] %vm6924, %v6756
        %7014 = vst.msk [vmem:[%s576 + $0x164] sm:$0xf] %vm6924, %v6757
        %7015 = vst.msk [vmem:[%s576 + $0x168] sm:$0xf] %vm6924, %v6758
        %7016 = vst.msk [vmem:[%s576 + $0x16c] sm:$0xf] %vm6924, %v6759
        %7017 = vst.msk [vmem:[%s576 + $0x170] sm:$0xf] %vm6924, %v6760
        %7018 = vst.msk [vmem:[%s576 + $0x174] sm:$0xf] %vm6924, %v6761
        %7019 = vst.msk [vmem:[%s576 + $0x178] sm:$0xf] %vm6924, %v6762
        %7020 = vst.msk [vmem:[%s576 + $0x17c] sm:$0xf] %vm6924, %v6763
        %7021 = vst.msk [vmem:[%s576 + $0x180] sm:$0xf] %vm6924, %v6764
        %7022 = vst.msk [vmem:[%s576 + $0x184] sm:$0xf] %vm6924, %v6765
        %7023 = vst.msk [vmem:[%s576 + $0x188] sm:$0xf] %vm6924, %v6766
        %7024 = vst.msk [vmem:[%s576 + $0x18c] sm:$0xf] %vm6924, %v6767
        %7025 = vst.msk [vmem:[%s576 + $0x190] sm:$0xf] %vm6924, %v6768
        %7026 = vst.msk [vmem:[%s576 + $0x194] sm:$0xf] %vm6924, %v6769
        %7027 = vst.msk [vmem:[%s576 + $0x198] sm:$0xf] %vm6924, %v6770
        %7028 = vst.msk [vmem:[%s576 + $0x19c] sm:$0xf] %vm6924, %v6771
        %7029 = vst.msk [vmem:[%s576 + $0x1a0] sm:$0xf] %vm6924, %v6772
        %7030 = vst.msk [vmem:[%s576 + $0x1a4] sm:$0xf] %vm6924, %v6773
        %7031 = vst.msk [vmem:[%s576 + $0x1a8] sm:$0xf] %vm6924, %v6774
        %7032 = vst.msk [vmem:[%s576 + $0x1ac] sm:$0xf] %vm6924, %v6775
        %7033 = vst.msk [vmem:[%s576 + $0x1b0] sm:$0xf] %vm6924, %v6776
        %7034 = vst.msk [vmem:[%s576 + $0x1b4] sm:$0xf] %vm6924, %v6777
        %7035 = vst.msk [vmem:[%s576 + $0x1b8] sm:$0xf] %vm6924, %v6778
        %7036 = vst.msk [vmem:[%s576 + $0x1bc] sm:$0xf] %vm6924, %v6779
        %7037 = vst.msk [vmem:[%s576 + $0x1c0] sm:$0xf] %vm6924, %v6780
        %7038 = vst.msk [vmem:[%s576 + $0x1c4] sm:$0xf] %vm6924, %v6781
        %7039 = vst.msk [vmem:[%s576 + $0x1c8] sm:$0xf] %vm6924, %v6782
        %7040 = vst.msk [vmem:[%s576 + $0x1cc] sm:$0xf] %vm6924, %v6783
        %7041 = vst.msk [vmem:[%s576 + $0x1d0] sm:$0xf] %vm6924, %v6784
        %7042 = vst.msk [vmem:[%s576 + $0x1d4] sm:$0xf] %vm6924, %v6785
        %7043 = vst.msk [vmem:[%s576 + $0x1d8] sm:$0xf] %vm6924, %v6786
        %7044 = vst.msk [vmem:[%s576 + $0x1dc] sm:$0xf] %vm6924, %v6787
        %7045 = vst.msk [vmem:[%s576 + $0x1e0] sm:$0xf] %vm6924, %v6788
        %7046 = vst.msk [vmem:[%s576 + $0x1e4] sm:$0xf] %vm6924, %v6789
        %7047 = vst.msk [vmem:[%s576 + $0x1e8] sm:$0xf] %vm6924, %v6790
        %7048 = vst.msk [vmem:[%s576 + $0x1ec] sm:$0xf] %vm6924, %v6791
        %7049 = vst.msk [vmem:[%s576 + $0x1f0] sm:$0xf] %vm6924, %v6792
        %7050 = vst.msk [vmem:[%s576 + $0x1f4] sm:$0xf] %vm6924, %v6793
        %7051 = vst.msk [vmem:[%s576 + $0x1f8] sm:$0xf] %vm6924, %v6794
        %7052 = vst.msk [vmem:[%s576 + $0x1fc] sm:$0xf] %vm6924, %v6795
        %s7053 = sand.u32 %s90, 1
        %s7054 = sand.u32 %s90, 1
        %s7055 = smul.addr %s7054, 512
        %s7056 = scalar_lea.vmem [#allocation3], %s7055
        // Predicated region
        $region95: #{net_forward.3} parent=89 // pred_check
          %p7057 = pneg %p100
        $region96: #{net_forward.3} parent=89 // pred_check_branch
          %7059 = sbr.rel (%p7057) target = $region98
        $region97: #{net_forward.3} parent=89 // pred_region
          %s7060 = smul.u32 128, %s14
          %s7061 = ssub.s32 144, %s7060
          %p7062 = scmp.lt.s32.totalorder %s7061, 128
          %s7063 = scalar_select %p7062, %s7061, 128
          %s7064 = smul.u32 64, %s7063
          %p7065 = scmp.ne.s32.totalorder 0, %s7064
          %s7066 = smul.addr %s7060, 4
          %s7067 = scalar_lea.vmem %s3, %s7066
          // Predicated region
          $region99: #{net_forward.3} parent=97 // pred_check
            %p7068 = pneg %p7065
          $region100: #{net_forward.3} parent=97 // pred_check_branch
            %7070 = sbr.rel (%p7068) target = $region102
          $region101: #{net_forward.3} parent=97 // pred_region
            // Predicated region
            $region103: #{net_forward.3} parent=101 // pred_check
              _
            $region104: #{net_forward.3} parent=101 // pred_check_branch
              %7072 = sbr.rel target = $region106
            $region105: #{net_forward.3} parent=101 // pred_region
              // Predicated region
              $region125: #{net_forward.3} parent=105 // pred_check
                _
              $region126: #{net_forward.3} parent=105 // pred_check_branch
                %7247 = sbr.rel (0) target = $region128
              $region127: #{net_forward.3} parent=105 // pred_region
                %s7249 = sshrl.u32 %s7063, 6
                // While loop
                $region129: #{net_forward.3} parent=127 // loop_pre_header
                  _
                $region130: #{net_forward.3} parent=127 // loop_header
                  %s7251 = sphi 0, %s7253
                  %p7252 = scmp.ge.s32.totalorder %s7251, %s7249
                  %s7256 = sphi 0, %s7389
                  %s7257 = sphi %s7056, %s7392
                  %s7258 = sphi %s7067, %s7393
                $region131: #{net_forward.3} parent=127 // loop_header_branch
                  %7255 = sbr.rel (%p7252) target = $region135
                $region132: #{net_forward.3} parent=127 // loop_body
                  %v7259 = vld [vmem:[%s7257] sm:$0xf]
                  %7260 = vst [vmem:[%s7258] sm:$0xf] %v7259
                  %v7261 = vld [vmem:[%s7257 + $0x4] sm:$0xf]
                  %7262 = vst [vmem:[%s7258 + $0x4] sm:$0xf] %v7261
                  %v7263 = vld [vmem:[%s7257 + $0x8] sm:$0xf]
                  %7264 = vst [vmem:[%s7258 + $0x8] sm:$0xf] %v7263
                  %v7265 = vld [vmem:[%s7257 + $0xc] sm:$0xf]
                  %7266 = vst [vmem:[%s7258 + $0xc] sm:$0xf] %v7265
                  %v7267 = vld [vmem:[%s7257 + $0x10] sm:$0xf]
                  %7268 = vst [vmem:[%s7258 + $0x10] sm:$0xf] %v7267
                  %v7269 = vld [vmem:[%s7257 + $0x14] sm:$0xf]
                  %7270 = vst [vmem:[%s7258 + $0x14] sm:$0xf] %v7269
                  %v7271 = vld [vmem:[%s7257 + $0x18] sm:$0xf]
                  %7272 = vst [vmem:[%s7258 + $0x18] sm:$0xf] %v7271
                  %v7273 = vld [vmem:[%s7257 + $0x1c] sm:$0xf]
                  %7274 = vst [vmem:[%s7258 + $0x1c] sm:$0xf] %v7273
                  %v7275 = vld [vmem:[%s7257 + $0x20] sm:$0xf]
                  %7276 = vst [vmem:[%s7258 + $0x20] sm:$0xf] %v7275
                  %v7277 = vld [vmem:[%s7257 + $0x24] sm:$0xf]
                  %7278 = vst [vmem:[%s7258 + $0x24] sm:$0xf] %v7277
                  %v7279 = vld [vmem:[%s7257 + $0x28] sm:$0xf]
                  %7280 = vst [vmem:[%s7258 + $0x28] sm:$0xf] %v7279
                  %v7281 = vld [vmem:[%s7257 + $0x2c] sm:$0xf]
                  %7282 = vst [vmem:[%s7258 + $0x2c] sm:$0xf] %v7281
                  %v7283 = vld [vmem:[%s7257 + $0x30] sm:$0xf]
                  %7284 = vst [vmem:[%s7258 + $0x30] sm:$0xf] %v7283
                  %v7285 = vld [vmem:[%s7257 + $0x34] sm:$0xf]
                  %7286 = vst [vmem:[%s7258 + $0x34] sm:$0xf] %v7285
                  %v7287 = vld [vmem:[%s7257 + $0x38] sm:$0xf]
                  %7288 = vst [vmem:[%s7258 + $0x38] sm:$0xf] %v7287
                  %v7289 = vld [vmem:[%s7257 + $0x3c] sm:$0xf]
                  %7290 = vst [vmem:[%s7258 + $0x3c] sm:$0xf] %v7289
                  %v7291 = vld [vmem:[%s7257 + $0x40] sm:$0xf]
                  %7292 = vst [vmem:[%s7258 + $0x40] sm:$0xf] %v7291
                  %v7293 = vld [vmem:[%s7257 + $0x44] sm:$0xf]
                  %7294 = vst [vmem:[%s7258 + $0x44] sm:$0xf] %v7293
                  %v7295 = vld [vmem:[%s7257 + $0x48] sm:$0xf]
                  %7296 = vst [vmem:[%s7258 + $0x48] sm:$0xf] %v7295
                  %v7297 = vld [vmem:[%s7257 + $0x4c] sm:$0xf]
                  %7298 = vst [vmem:[%s7258 + $0x4c] sm:$0xf] %v7297
                  %v7299 = vld [vmem:[%s7257 + $0x50] sm:$0xf]
                  %7300 = vst [vmem:[%s7258 + $0x50] sm:$0xf] %v7299
                  %v7301 = vld [vmem:[%s7257 + $0x54] sm:$0xf]
                  %7302 = vst [vmem:[%s7258 + $0x54] sm:$0xf] %v7301
                  %v7303 = vld [vmem:[%s7257 + $0x58] sm:$0xf]
                  %7304 = vst [vmem:[%s7258 + $0x58] sm:$0xf] %v7303
                  %v7305 = vld [vmem:[%s7257 + $0x5c] sm:$0xf]
                  %7306 = vst [vmem:[%s7258 + $0x5c] sm:$0xf] %v7305
                  %v7307 = vld [vmem:[%s7257 + $0x60] sm:$0xf]
                  %7308 = vst [vmem:[%s7258 + $0x60] sm:$0xf] %v7307
                  %v7309 = vld [vmem:[%s7257 + $0x64] sm:$0xf]
                  %7310 = vst [vmem:[%s7258 + $0x64] sm:$0xf] %v7309
                  %v7311 = vld [vmem:[%s7257 + $0x68] sm:$0xf]
                  %7312 = vst [vmem:[%s7258 + $0x68] sm:$0xf] %v7311
                  %v7313 = vld [vmem:[%s7257 + $0x6c] sm:$0xf]
                  %7314 = vst [vmem:[%s7258 + $0x6c] sm:$0xf] %v7313
                  %v7315 = vld [vmem:[%s7257 + $0x70] sm:$0xf]
                  %7316 = vst [vmem:[%s7258 + $0x70] sm:$0xf] %v7315
                  %v7317 = vld [vmem:[%s7257 + $0x74] sm:$0xf]
                  %7318 = vst [vmem:[%s7258 + $0x74] sm:$0xf] %v7317
                  %v7319 = vld [vmem:[%s7257 + $0x78] sm:$0xf]
                  %7320 = vst [vmem:[%s7258 + $0x78] sm:$0xf] %v7319
                  %v7321 = vld [vmem:[%s7257 + $0x7c] sm:$0xf]
                  %7322 = vst [vmem:[%s7258 + $0x7c] sm:$0xf] %v7321
                  %v7323 = vld [vmem:[%s7257 + $0x80] sm:$0xf]
                  %7324 = vst [vmem:[%s7258 + $0x80] sm:$0xf] %v7323
                  %v7325 = vld [vmem:[%s7257 + $0x84] sm:$0xf]
                  %7326 = vst [vmem:[%s7258 + $0x84] sm:$0xf] %v7325
                  %v7327 = vld [vmem:[%s7257 + $0x88] sm:$0xf]
                  %7328 = vst [vmem:[%s7258 + $0x88] sm:$0xf] %v7327
                  %v7329 = vld [vmem:[%s7257 + $0x8c] sm:$0xf]
                  %7330 = vst [vmem:[%s7258 + $0x8c] sm:$0xf] %v7329
                  %v7331 = vld [vmem:[%s7257 + $0x90] sm:$0xf]
                  %7332 = vst [vmem:[%s7258 + $0x90] sm:$0xf] %v7331
                  %v7333 = vld [vmem:[%s7257 + $0x94] sm:$0xf]
                  %7334 = vst [vmem:[%s7258 + $0x94] sm:$0xf] %v7333
                  %v7335 = vld [vmem:[%s7257 + $0x98] sm:$0xf]
                  %7336 = vst [vmem:[%s7258 + $0x98] sm:$0xf] %v7335
                  %v7337 = vld [vmem:[%s7257 + $0x9c] sm:$0xf]
                  %7338 = vst [vmem:[%s7258 + $0x9c] sm:$0xf] %v7337
                  %v7339 = vld [vmem:[%s7257 + $0xa0] sm:$0xf]
                  %7340 = vst [vmem:[%s7258 + $0xa0] sm:$0xf] %v7339
                  %v7341 = vld [vmem:[%s7257 + $0xa4] sm:$0xf]
                  %7342 = vst [vmem:[%s7258 + $0xa4] sm:$0xf] %v7341
                  %v7343 = vld [vmem:[%s7257 + $0xa8] sm:$0xf]
                  %7344 = vst [vmem:[%s7258 + $0xa8] sm:$0xf] %v7343
                  %v7345 = vld [vmem:[%s7257 + $0xac] sm:$0xf]
                  %7346 = vst [vmem:[%s7258 + $0xac] sm:$0xf] %v7345
                  %v7347 = vld [vmem:[%s7257 + $0xb0] sm:$0xf]
                  %7348 = vst [vmem:[%s7258 + $0xb0] sm:$0xf] %v7347
                  %v7349 = vld [vmem:[%s7257 + $0xb4] sm:$0xf]
                  %7350 = vst [vmem:[%s7258 + $0xb4] sm:$0xf] %v7349
                  %v7351 = vld [vmem:[%s7257 + $0xb8] sm:$0xf]
                  %7352 = vst [vmem:[%s7258 + $0xb8] sm:$0xf] %v7351
                  %v7353 = vld [vmem:[%s7257 + $0xbc] sm:$0xf]
                  %7354 = vst [vmem:[%s7258 + $0xbc] sm:$0xf] %v7353
                  %v7355 = vld [vmem:[%s7257 + $0xc0] sm:$0xf]
                  %7356 = vst [vmem:[%s7258 + $0xc0] sm:$0xf] %v7355
                  %v7357 = vld [vmem:[%s7257 + $0xc4] sm:$0xf]
                  %7358 = vst [vmem:[%s7258 + $0xc4] sm:$0xf] %v7357
                  %v7359 = vld [vmem:[%s7257 + $0xc8] sm:$0xf]
                  %7360 = vst [vmem:[%s7258 + $0xc8] sm:$0xf] %v7359
                  %v7361 = vld [vmem:[%s7257 + $0xcc] sm:$0xf]
                  %7362 = vst [vmem:[%s7258 + $0xcc] sm:$0xf] %v7361
                  %v7363 = vld [vmem:[%s7257 + $0xd0] sm:$0xf]
                  %7364 = vst [vmem:[%s7258 + $0xd0] sm:$0xf] %v7363
                  %v7365 = vld [vmem:[%s7257 + $0xd4] sm:$0xf]
                  %7366 = vst [vmem:[%s7258 + $0xd4] sm:$0xf] %v7365
                  %v7367 = vld [vmem:[%s7257 + $0xd8] sm:$0xf]
                  %7368 = vst [vmem:[%s7258 + $0xd8] sm:$0xf] %v7367
                  %v7369 = vld [vmem:[%s7257 + $0xdc] sm:$0xf]
                  %7370 = vst [vmem:[%s7258 + $0xdc] sm:$0xf] %v7369
                  %v7371 = vld [vmem:[%s7257 + $0xe0] sm:$0xf]
                  %7372 = vst [vmem:[%s7258 + $0xe0] sm:$0xf] %v7371
                  %v7373 = vld [vmem:[%s7257 + $0xe4] sm:$0xf]
                  %7374 = vst [vmem:[%s7258 + $0xe4] sm:$0xf] %v7373
                  %v7375 = vld [vmem:[%s7257 + $0xe8] sm:$0xf]
                  %7376 = vst [vmem:[%s7258 + $0xe8] sm:$0xf] %v7375
                  %v7377 = vld [vmem:[%s7257 + $0xec] sm:$0xf]
                  %7378 = vst [vmem:[%s7258 + $0xec] sm:$0xf] %v7377
                  %v7379 = vld [vmem:[%s7257 + $0xf0] sm:$0xf]
                  %7380 = vst [vmem:[%s7258 + $0xf0] sm:$0xf] %v7379
                  %v7381 = vld [vmem:[%s7257 + $0xf4] sm:$0xf]
                  %7382 = vst [vmem:[%s7258 + $0xf4] sm:$0xf] %v7381
                  %v7383 = vld [vmem:[%s7257 + $0xf8] sm:$0xf]
                  %7384 = vst [vmem:[%s7258 + $0xf8] sm:$0xf] %v7383
                  %v7385 = vld [vmem:[%s7257 + $0xfc] sm:$0xf]
                  %7386 = vst [vmem:[%s7258 + $0xfc] sm:$0xf] %v7385
                  %s7387 = sadd.s32 1, %s7256
                  %p7388 = scmp.ge.s32.totalorder %s7387, %s7249
                  %s7389 = scalar_select %p7388, 0, %s7387
                  %s7390 = smul.u32 %s7389, 256
                  %s7391 = smul.u32 %s7389, 256
                  %s7392 = scalar_lea.vmem %s7056, %s7390 [#allocation3]
                  %s7393 = scalar_lea.vmem %s7067, %s7391
                $region133: #{net_forward.3} parent=127 // loop_footer
                  %s7253 = sadd.s32 %s7251, 1
                $region134: #{net_forward.3} parent=127 // loop_footer_branch
                  %7250 = sbr.rel target = $region130
                $region135: #{net_forward.3} parent=127 // loop_exit
                  _
                %s7394 = sshrl.u32 %s7063, 6
                %s7395 = sand.u32 %s7063, 63
                %s7396 = smul.u32 %s7394, 64
                %s7397 = smul.u32 4, %s7396
                %s7398 = scalar_lea.vmem %s7056, %s7397 [#allocation3]
                %s7399 = smul.u32 4, %s7396
                %s7400 = scalar_lea.vmem %s7067, %s7399
                // While loop
                $region136: #{net_forward.3} parent=127 // loop_pre_header
                  _
                $region137: #{net_forward.3} parent=127 // loop_header
                  %s7402 = sphi 0, %s7404
                  %p7403 = scmp.ge.s32.totalorder %s7402, %s7395
                  %s7407 = sphi 0, %s7414
                  %s7408 = sphi %s7398, %s7417
                  %s7409 = sphi %s7400, %s7418
                $region138: #{net_forward.3} parent=127 // loop_header_branch
                  %7406 = sbr.rel (%p7403) target = $region142
                $region139: #{net_forward.3} parent=127 // loop_body
                  %v7410 = vld [vmem:[%s7408] sm:$0xf]
                  %7411 = vst [vmem:[%s7409] sm:$0xf] %v7410
                  %s7412 = sadd.s32 1, %s7407
                  %p7413 = scmp.ge.s32.totalorder %s7412, %s7395
                  %s7414 = scalar_select %p7413, 0, %s7412
                  %s7415 = smul.u32 %s7414, 4
                  %s7416 = smul.u32 %s7414, 4
                  %s7417 = scalar_lea.vmem %s7398, %s7415 [#allocation3]
                  %s7418 = scalar_lea.vmem %s7400, %s7416
                $region140: #{net_forward.3} parent=127 // loop_footer
                  %s7404 = sadd.s32 %s7402, 1
                $region141: #{net_forward.3} parent=127 // loop_footer_branch
                  %7401 = sbr.rel target = $region137
                $region142: #{net_forward.3} parent=127 // loop_exit
                  _
              $region128: #{net_forward.3} parent=105 // pred_fallthru
                _
            $region106: #{net_forward.3} parent=101 // pred_fallthru
              _
            // Predicated region
            $region107: #{net_forward.3} parent=101 // pred_check
              _
            $region108: #{net_forward.3} parent=101 // pred_check_branch
              %7074 = sbr.rel (0) target = $region110
            $region109: #{net_forward.3} parent=101 // pred_region
              %s7076 = sshrl.u32 %s7063, 6
              // While loop
              $region111: #{net_forward.3} parent=109 // loop_pre_header
                _
              $region112: #{net_forward.3} parent=109 // loop_header
                %s7078 = sphi 0, %s7080
                %p7079 = scmp.ge.s32.totalorder %s7078, %s7076
                %s7083 = sphi 0, %s7216
                %s7084 = sphi %s7056, %s7219
                %s7085 = sphi %s7067, %s7220
              $region113: #{net_forward.3} parent=109 // loop_header_branch
                %7082 = sbr.rel (%p7079) target = $region117
              $region114: #{net_forward.3} parent=109 // loop_body
                %v7086 = vld [vmem:[%s7084] sm:$0xf]
                %7087 = vst [vmem:[%s7085] sm:$0xf] %v7086
                %v7088 = vld [vmem:[%s7084 + $0x4] sm:$0xf]
                %7089 = vst [vmem:[%s7085 + $0x4] sm:$0xf] %v7088
                %v7090 = vld [vmem:[%s7084 + $0x8] sm:$0xf]
                %7091 = vst [vmem:[%s7085 + $0x8] sm:$0xf] %v7090
                %v7092 = vld [vmem:[%s7084 + $0xc] sm:$0xf]
                %7093 = vst [vmem:[%s7085 + $0xc] sm:$0xf] %v7092
                %v7094 = vld [vmem:[%s7084 + $0x10] sm:$0xf]
                %7095 = vst [vmem:[%s7085 + $0x10] sm:$0xf] %v7094
                %v7096 = vld [vmem:[%s7084 + $0x14] sm:$0xf]
                %7097 = vst [vmem:[%s7085 + $0x14] sm:$0xf] %v7096
                %v7098 = vld [vmem:[%s7084 + $0x18] sm:$0xf]
                %7099 = vst [vmem:[%s7085 + $0x18] sm:$0xf] %v7098
                %v7100 = vld [vmem:[%s7084 + $0x1c] sm:$0xf]
                %7101 = vst [vmem:[%s7085 + $0x1c] sm:$0xf] %v7100
                %v7102 = vld [vmem:[%s7084 + $0x20] sm:$0xf]
                %7103 = vst [vmem:[%s7085 + $0x20] sm:$0xf] %v7102
                %v7104 = vld [vmem:[%s7084 + $0x24] sm:$0xf]
                %7105 = vst [vmem:[%s7085 + $0x24] sm:$0xf] %v7104
                %v7106 = vld [vmem:[%s7084 + $0x28] sm:$0xf]
                %7107 = vst [vmem:[%s7085 + $0x28] sm:$0xf] %v7106
                %v7108 = vld [vmem:[%s7084 + $0x2c] sm:$0xf]
                %7109 = vst [vmem:[%s7085 + $0x2c] sm:$0xf] %v7108
                %v7110 = vld [vmem:[%s7084 + $0x30] sm:$0xf]
                %7111 = vst [vmem:[%s7085 + $0x30] sm:$0xf] %v7110
                %v7112 = vld [vmem:[%s7084 + $0x34] sm:$0xf]
                %7113 = vst [vmem:[%s7085 + $0x34] sm:$0xf] %v7112
                %v7114 = vld [vmem:[%s7084 + $0x38] sm:$0xf]
                %7115 = vst [vmem:[%s7085 + $0x38] sm:$0xf] %v7114
                %v7116 = vld [vmem:[%s7084 + $0x3c] sm:$0xf]
                %7117 = vst [vmem:[%s7085 + $0x3c] sm:$0xf] %v7116
                %v7118 = vld [vmem:[%s7084 + $0x40] sm:$0xf]
                %7119 = vst [vmem:[%s7085 + $0x40] sm:$0xf] %v7118
                %v7120 = vld [vmem:[%s7084 + $0x44] sm:$0xf]
                %7121 = vst [vmem:[%s7085 + $0x44] sm:$0xf] %v7120
                %v7122 = vld [vmem:[%s7084 + $0x48] sm:$0xf]
                %7123 = vst [vmem:[%s7085 + $0x48] sm:$0xf] %v7122
                %v7124 = vld [vmem:[%s7084 + $0x4c] sm:$0xf]
                %7125 = vst [vmem:[%s7085 + $0x4c] sm:$0xf] %v7124
                %v7126 = vld [vmem:[%s7084 + $0x50] sm:$0xf]
                %7127 = vst [vmem:[%s7085 + $0x50] sm:$0xf] %v7126
                %v7128 = vld [vmem:[%s7084 + $0x54] sm:$0xf]
                %7129 = vst [vmem:[%s7085 + $0x54] sm:$0xf] %v7128
                %v7130 = vld [vmem:[%s7084 + $0x58] sm:$0xf]
                %7131 = vst [vmem:[%s7085 + $0x58] sm:$0xf] %v7130
                %v7132 = vld [vmem:[%s7084 + $0x5c] sm:$0xf]
                %7133 = vst [vmem:[%s7085 + $0x5c] sm:$0xf] %v7132
                %v7134 = vld [vmem:[%s7084 + $0x60] sm:$0xf]
                %7135 = vst [vmem:[%s7085 + $0x60] sm:$0xf] %v7134
                %v7136 = vld [vmem:[%s7084 + $0x64] sm:$0xf]
                %7137 = vst [vmem:[%s7085 + $0x64] sm:$0xf] %v7136
                %v7138 = vld [vmem:[%s7084 + $0x68] sm:$0xf]
                %7139 = vst [vmem:[%s7085 + $0x68] sm:$0xf] %v7138
                %v7140 = vld [vmem:[%s7084 + $0x6c] sm:$0xf]
                %7141 = vst [vmem:[%s7085 + $0x6c] sm:$0xf] %v7140
                %v7142 = vld [vmem:[%s7084 + $0x70] sm:$0xf]
                %7143 = vst [vmem:[%s7085 + $0x70] sm:$0xf] %v7142
                %v7144 = vld [vmem:[%s7084 + $0x74] sm:$0xf]
                %7145 = vst [vmem:[%s7085 + $0x74] sm:$0xf] %v7144
                %v7146 = vld [vmem:[%s7084 + $0x78] sm:$0xf]
                %7147 = vst [vmem:[%s7085 + $0x78] sm:$0xf] %v7146
                %v7148 = vld [vmem:[%s7084 + $0x7c] sm:$0xf]
                %7149 = vst [vmem:[%s7085 + $0x7c] sm:$0xf] %v7148
                %v7150 = vld [vmem:[%s7084 + $0x80] sm:$0xf]
                %7151 = vst [vmem:[%s7085 + $0x80] sm:$0xf] %v7150
                %v7152 = vld [vmem:[%s7084 + $0x84] sm:$0xf]
                %7153 = vst [vmem:[%s7085 + $0x84] sm:$0xf] %v7152
                %v7154 = vld [vmem:[%s7084 + $0x88] sm:$0xf]
                %7155 = vst [vmem:[%s7085 + $0x88] sm:$0xf] %v7154
                %v7156 = vld [vmem:[%s7084 + $0x8c] sm:$0xf]
                %7157 = vst [vmem:[%s7085 + $0x8c] sm:$0xf] %v7156
                %v7158 = vld [vmem:[%s7084 + $0x90] sm:$0xf]
                %7159 = vst [vmem:[%s7085 + $0x90] sm:$0xf] %v7158
                %v7160 = vld [vmem:[%s7084 + $0x94] sm:$0xf]
                %7161 = vst [vmem:[%s7085 + $0x94] sm:$0xf] %v7160
                %v7162 = vld [vmem:[%s7084 + $0x98] sm:$0xf]
                %7163 = vst [vmem:[%s7085 + $0x98] sm:$0xf] %v7162
                %v7164 = vld [vmem:[%s7084 + $0x9c] sm:$0xf]
                %7165 = vst [vmem:[%s7085 + $0x9c] sm:$0xf] %v7164
                %v7166 = vld [vmem:[%s7084 + $0xa0] sm:$0xf]
                %7167 = vst [vmem:[%s7085 + $0xa0] sm:$0xf] %v7166
                %v7168 = vld [vmem:[%s7084 + $0xa4] sm:$0xf]
                %7169 = vst [vmem:[%s7085 + $0xa4] sm:$0xf] %v7168
                %v7170 = vld [vmem:[%s7084 + $0xa8] sm:$0xf]
                %7171 = vst [vmem:[%s7085 + $0xa8] sm:$0xf] %v7170
                %v7172 = vld [vmem:[%s7084 + $0xac] sm:$0xf]
                %7173 = vst [vmem:[%s7085 + $0xac] sm:$0xf] %v7172
                %v7174 = vld [vmem:[%s7084 + $0xb0] sm:$0xf]
                %7175 = vst [vmem:[%s7085 + $0xb0] sm:$0xf] %v7174
                %v7176 = vld [vmem:[%s7084 + $0xb4] sm:$0xf]
                %7177 = vst [vmem:[%s7085 + $0xb4] sm:$0xf] %v7176
                %v7178 = vld [vmem:[%s7084 + $0xb8] sm:$0xf]
                %7179 = vst [vmem:[%s7085 + $0xb8] sm:$0xf] %v7178
                %v7180 = vld [vmem:[%s7084 + $0xbc] sm:$0xf]
                %7181 = vst [vmem:[%s7085 + $0xbc] sm:$0xf] %v7180
                %v7182 = vld [vmem:[%s7084 + $0xc0] sm:$0xf]
                %7183 = vst [vmem:[%s7085 + $0xc0] sm:$0xf] %v7182
                %v7184 = vld [vmem:[%s7084 + $0xc4] sm:$0xf]
                %7185 = vst [vmem:[%s7085 + $0xc4] sm:$0xf] %v7184
                %v7186 = vld [vmem:[%s7084 + $0xc8] sm:$0xf]
                %7187 = vst [vmem:[%s7085 + $0xc8] sm:$0xf] %v7186
                %v7188 = vld [vmem:[%s7084 + $0xcc] sm:$0xf]
                %7189 = vst [vmem:[%s7085 + $0xcc] sm:$0xf] %v7188
                %v7190 = vld [vmem:[%s7084 + $0xd0] sm:$0xf]
                %7191 = vst [vmem:[%s7085 + $0xd0] sm:$0xf] %v7190
                %v7192 = vld [vmem:[%s7084 + $0xd4] sm:$0xf]
                %7193 = vst [vmem:[%s7085 + $0xd4] sm:$0xf] %v7192
                %v7194 = vld [vmem:[%s7084 + $0xd8] sm:$0xf]
                %7195 = vst [vmem:[%s7085 + $0xd8] sm:$0xf] %v7194
                %v7196 = vld [vmem:[%s7084 + $0xdc] sm:$0xf]
                %7197 = vst [vmem:[%s7085 + $0xdc] sm:$0xf] %v7196
                %v7198 = vld [vmem:[%s7084 + $0xe0] sm:$0xf]
                %7199 = vst [vmem:[%s7085 + $0xe0] sm:$0xf] %v7198
                %v7200 = vld [vmem:[%s7084 + $0xe4] sm:$0xf]
                %7201 = vst [vmem:[%s7085 + $0xe4] sm:$0xf] %v7200
                %v7202 = vld [vmem:[%s7084 + $0xe8] sm:$0xf]
                %7203 = vst [vmem:[%s7085 + $0xe8] sm:$0xf] %v7202
                %v7204 = vld [vmem:[%s7084 + $0xec] sm:$0xf]
                %7205 = vst [vmem:[%s7085 + $0xec] sm:$0xf] %v7204
                %v7206 = vld [vmem:[%s7084 + $0xf0] sm:$0xf]
                %7207 = vst [vmem:[%s7085 + $0xf0] sm:$0xf] %v7206
                %v7208 = vld [vmem:[%s7084 + $0xf4] sm:$0xf]
                %7209 = vst [vmem:[%s7085 + $0xf4] sm:$0xf] %v7208
                %v7210 = vld [vmem:[%s7084 + $0xf8] sm:$0xf]
                %7211 = vst [vmem:[%s7085 + $0xf8] sm:$0xf] %v7210
                %v7212 = vld [vmem:[%s7084 + $0xfc] sm:$0xf]
                %7213 = vst [vmem:[%s7085 + $0xfc] sm:$0xf] %v7212
                %s7214 = sadd.s32 1, %s7083
                %p7215 = scmp.ge.s32.totalorder %s7214, %s7076
                %s7216 = scalar_select %p7215, 0, %s7214
                %s7217 = smul.u32 %s7216, 256
                %s7218 = smul.u32 %s7216, 256
                %s7219 = scalar_lea.vmem %s7056, %s7217 [#allocation3]
                %s7220 = scalar_lea.vmem %s7067, %s7218
              $region115: #{net_forward.3} parent=109 // loop_footer
                %s7080 = sadd.s32 %s7078, 1
              $region116: #{net_forward.3} parent=109 // loop_footer_branch
                %7077 = sbr.rel target = $region112
              $region117: #{net_forward.3} parent=109 // loop_exit
                _
              %s7221 = sshrl.u32 %s7063, 6
              %s7222 = sand.u32 %s7063, 63
              %s7223 = smul.u32 %s7221, 64
              %s7224 = smul.u32 4, %s7223
              %s7225 = scalar_lea.vmem %s7056, %s7224 [#allocation3]
              %s7226 = smul.u32 4, %s7223
              %s7227 = scalar_lea.vmem %s7067, %s7226
              // While loop
              $region118: #{net_forward.3} parent=109 // loop_pre_header
                _
              $region119: #{net_forward.3} parent=109 // loop_header
                %s7229 = sphi 0, %s7231
                %p7230 = scmp.ge.s32.totalorder %s7229, %s7222
                %s7234 = sphi 0, %s7241
                %s7235 = sphi %s7225, %s7244
                %s7236 = sphi %s7227, %s7245
              $region120: #{net_forward.3} parent=109 // loop_header_branch
                %7233 = sbr.rel (%p7230) target = $region124
              $region121: #{net_forward.3} parent=109 // loop_body
                %v7237 = vld [vmem:[%s7235] sm:$0xf]
                %7238 = vst [vmem:[%s7236] sm:$0xf] %v7237
                %s7239 = sadd.s32 1, %s7234
                %p7240 = scmp.ge.s32.totalorder %s7239, %s7222
                %s7241 = scalar_select %p7240, 0, %s7239
                %s7242 = smul.u32 %s7241, 4
                %s7243 = smul.u32 %s7241, 4
                %s7244 = scalar_lea.vmem %s7225, %s7242 [#allocation3]
                %s7245 = scalar_lea.vmem %s7227, %s7243
              $region122: #{net_forward.3} parent=109 // loop_footer
                %s7231 = sadd.s32 %s7229, 1
              $region123: #{net_forward.3} parent=109 // loop_footer_branch
                %7228 = sbr.rel target = $region119
              $region124: #{net_forward.3} parent=109 // loop_exit
                _
            $region110: #{net_forward.3} parent=101 // pred_fallthru
              _
          $region102: #{net_forward.3} parent=97 // pred_fallthru
            _
          %7419 = vnop
        $region98: #{net_forward.3} parent=89 // pred_fallthru
          _
      $region90: #{net_forward.3} parent=5 // pred_fallthru
        _
      %p7420 = scmp.le.s32.totalorder 2, %s9
      // Predicated region
      $region143: #{net_forward.3} parent=5 // pred_check
        %p7421 = pneg %p7420
      $region144: #{net_forward.3} parent=5 // pred_check_branch
        %7423 = sbr.rel (%p7421) target = $region146
      $region145: #{net_forward.3} parent=5 // pred_region
        %s7424 = ssub.s32 %s9, 2
        // Predicated region
        $region147: #{net_forward.3} parent=145 // pred_check
          %p7425 = pneg %p106
        $region148: #{net_forward.3} parent=145 // pred_check_branch
          %7427 = sbr.rel (%p7425) target = $region150
        $region149: #{net_forward.3} parent=145 // pred_region
          %s7428 = sand.u32 %s91, 1
          %s7429 = sand.u32 %s91, 1
          %s7430 = smul.addr %s7429, 512
          %s7431 = scalar_lea.vmem [#allocation3], %s7430
        $region150: #{net_forward.3} parent=145 // pred_fallthru
          _
      $region146: #{net_forward.3} parent=5 // pred_fallthru
        _
    $region6: #{net_forward.3} parent=1 // loop_footer
      %s13 = sadd.s32 1, %s9
    $region7: #{net_forward.3} parent=1 // loop_footer_branch
      %8 = sbr.rel target = $region3
    $region8: #{net_forward.3} parent=1 // loop_exit
      _

// kernel: net_forward.4
$region0: #{net_forward.4}
  #allocation0 [shape = 'u32[]', space=smem, size = 0x4, offset = 0x4, fixed_abs, tag = 'smem constant byte address 0x4 - core index']
  #allocation1 [shape = 'u32[144,128]{1,0:T(1,128)}', space=vmem, size = 0x12000, scoped, tag = 'internal scratch']
  %s0 = inlined_call_operand.vmem [shape: bf16[4,128,250], index: 0, kind: input, shape index: {}]
  %s1 = inlined_call_operand.vmem [shape: bf16[250,20], index: 1, kind: input, shape index: {}]
  %s2 = inlined_call_operand.vmem [shape: f32[1,20], index: 2, kind: input, shape index: {}]
  %s3 = inlined_call_operand.vmem [shape: bf16[128,20], index: 3, kind: output, shape index: {}]
  %s4 = sld [smem:[#allocation0]]
  $region22: #{net_forward.4} parent=0
    _
  %s6 = ssub.s32 1, %s4
  %s7 = scalar_select 0, %s6, %s4
  // Predicated region
  $region2: #{net_forward.4} parent=0 // pred_check
    _
  $region3: #{net_forward.4} parent=0 // pred_check_branch
    %9 = sbr.rel (0) target = $region5
  $region4: #{net_forward.4} parent=0 // pred_region
    _
  $region5: #{net_forward.4} parent=0 // pred_fallthru
    _
  // Predicated region
  $region6: #{net_forward.4} parent=0 // pred_check
    _
  $region7: #{net_forward.4} parent=0 // pred_check_branch
    %11 = sbr.rel (0) target = $region9
  $region8: #{net_forward.4} parent=0 // pred_region
    _
  $region9: #{net_forward.4} parent=0 // pred_fallthru
    _
  // Predicated region
  $region10: #{net_forward.4} parent=0 // pred_check
    _
  $region11: #{net_forward.4} parent=0 // pred_check_branch
    %13 = sbr.rel (0) target = $region13
  $region12: #{net_forward.4} parent=0 // pred_region
    _
  $region13: #{net_forward.4} parent=0 // pred_fallthru
    _
  %v15 = vld [vmem:[%s0] sm:$0xff]
  %v16 = vld [vmem:[%s0 + $0x8] sm:$0xff]
  %v17 = vld [vmem:[%s0 + $0x10] sm:$0xff]
  %v18 = vld [vmem:[%s0 + $0x18] sm:$0xff]
  %v19 = vld [vmem:[%s0 + $0x20] sm:$0xff]
  %v20 = vld [vmem:[%s0 + $0x28] sm:$0xff]
  %v21 = vld [vmem:[%s0 + $0x30] sm:$0xff]
  %v22 = vld [vmem:[%s0 + $0x38] sm:$0xff]
  %v23 = vld [vmem:[%s0 + $0x40] sm:$0xff]
  %v24 = vld [vmem:[%s0 + $0x48] sm:$0xff]
  %v25 = vld [vmem:[%s0 + $0x50] sm:$0xff]
  %v26 = vld [vmem:[%s0 + $0x58] sm:$0xff]
  %v27 = vld [vmem:[%s0 + $0x60] sm:$0xff]
  %v28 = vld [vmem:[%s0 + $0x68] sm:$0xff]
  %v29 = vld [vmem:[%s0 + $0x70] sm:$0xff]
  %v30 = vld [vmem:[%s0 + $0x78] sm:$0xff]
  %v31 = vld [vmem:[%s0 + $0x80] sm:$0xff]
  %v32 = vld [vmem:[%s0 + $0x88] sm:$0xff]
  %v33 = vld [vmem:[%s0 + $0x90] sm:$0xff]
  %v34 = vld [vmem:[%s0 + $0x98] sm:$0xff]
  %v35 = vld [vmem:[%s0 + $0xa0] sm:$0xff]
  %v36 = vld [vmem:[%s0 + $0xa8] sm:$0xff]
  %v37 = vld [vmem:[%s0 + $0xb0] sm:$0xff]
  %v38 = vld [vmem:[%s0 + $0xb8] sm:$0xff]
  %v39 = vld [vmem:[%s0 + $0xc0] sm:$0xff]
  %v40 = vld [vmem:[%s0 + $0xc8] sm:$0xff]
  %v41 = vld [vmem:[%s0 + $0xd0] sm:$0xff]
  %v42 = vld [vmem:[%s0 + $0xd8] sm:$0xff]
  %v43 = vld [vmem:[%s0 + $0xe0] sm:$0xff]
  %v44 = vld [vmem:[%s0 + $0xe8] sm:$0xff]
  %v45 = vld [vmem:[%s0 + $0xf0] sm:$0xff]
  %v46 = vld [vmem:[%s0 + $0xf8] sm:$0xff]
  %v47 = vld [vmem:[%s0 + $0x100] sm:$0xff]
  %v48 = vld [vmem:[%s0 + $0x108] sm:$0xff]
  %v49 = vld [vmem:[%s0 + $0x110] sm:$0xff]
  %v50 = vld [vmem:[%s0 + $0x118] sm:$0xff]
  %v51 = vld [vmem:[%s0 + $0x120] sm:$0xff]
  %v52 = vld [vmem:[%s0 + $0x128] sm:$0xff]
  %v53 = vld [vmem:[%s0 + $0x130] sm:$0xff]
  %v54 = vld [vmem:[%s0 + $0x138] sm:$0xff]
  %v55 = vld [vmem:[%s0 + $0x140] sm:$0xff]
  %v56 = vld [vmem:[%s0 + $0x148] sm:$0xff]
  %v57 = vld [vmem:[%s0 + $0x150] sm:$0xff]
  %v58 = vld [vmem:[%s0 + $0x158] sm:$0xff]
  %v59 = vld [vmem:[%s0 + $0x160] sm:$0xff]
  %v60 = vld [vmem:[%s0 + $0x168] sm:$0xff]
  %v61 = vld [vmem:[%s0 + $0x170] sm:$0xff]
  %v62 = vld [vmem:[%s0 + $0x178] sm:$0xff]
  %v63 = vld [vmem:[%s0 + $0x180] sm:$0xff]
  %v64 = vld [vmem:[%s0 + $0x188] sm:$0xff]
  %v65 = vld [vmem:[%s0 + $0x190] sm:$0xff]
  %v66 = vld [vmem:[%s0 + $0x198] sm:$0xff]
  %v67 = vld [vmem:[%s0 + $0x1a0] sm:$0xff]
  %v68 = vld [vmem:[%s0 + $0x1a8] sm:$0xff]
  %v69 = vld [vmem:[%s0 + $0x1b0] sm:$0xff]
  %v70 = vld [vmem:[%s0 + $0x1b8] sm:$0xff]
  %v71 = vld [vmem:[%s0 + $0x1c0] sm:$0xff]
  %v72 = vld [vmem:[%s0 + $0x1c8] sm:$0xff]
  %v73 = vld [vmem:[%s0 + $0x1d0] sm:$0xff]
  %v74 = vld [vmem:[%s0 + $0x1d8] sm:$0xff]
  %v75 = vld [vmem:[%s0 + $0x1e0] sm:$0xff]
  %v76 = vld [vmem:[%s0 + $0x1e8] sm:$0xff]
  %v77 = vld [vmem:[%s0 + $0x1f0] sm:$0xff]
  %v78 = vld [vmem:[%s0 + $0x1f8] sm:$0xff]
  %v79 = vld [vmem:[%s1] sm:$0xf]
  %v80 = vld [vmem:[%s1 + $0x4] sm:$0xf]
  %v81 = vld [vmem:[%s1 + $0x8] sm:$0xf]
  %v82 = vld [vmem:[%s1 + $0xc] sm:$0xf]
  %v83 = vld [vmem:[%s1 + $0x10] sm:$0xf]
  %v84 = vld [vmem:[%s1 + $0x14] sm:$0xf]
  %v85 = vld [vmem:[%s1 + $0x18] sm:$0xf]
  %v86 = vld [vmem:[%s1 + $0x1c] sm:$0xf]
  %v87 = vld [vmem:[%s1 + $0x20] sm:$0xf]
  %v88 = vld [vmem:[%s1 + $0x24] sm:$0xf]
  %v89 = vld [vmem:[%s1 + $0x28] sm:$0xf]
  %v90 = vld [vmem:[%s1 + $0x2c] sm:$0xf]
  %v91 = vld [vmem:[%s1 + $0x30] sm:$0xf]
  %v92 = vld [vmem:[%s1 + $0x34] sm:$0xf]
  %v93 = vld [vmem:[%s1 + $0x38] sm:$0xf]
  %v94 = vld [vmem:[%s1 + $0x3c] sm:$0xf]
  %v95 = vld [vmem:[%s1 + $0x40] sm:$0xf]
  %v96 = vld [vmem:[%s1 + $0x44] sm:$0xf]
  %v97 = vld [vmem:[%s1 + $0x48] sm:$0xf]
  %v98 = vld [vmem:[%s1 + $0x4c] sm:$0xf]
  %v99 = vld [vmem:[%s1 + $0x50] sm:$0xf]
  %v100 = vld [vmem:[%s1 + $0x54] sm:$0xf]
  %v101 = vld [vmem:[%s1 + $0x58] sm:$0xf]
  %v102 = vld [vmem:[%s1 + $0x5c] sm:$0xf]
  %v103 = vld [vmem:[%s1 + $0x60] sm:$0xf]
  %v104 = vld [vmem:[%s1 + $0x64] sm:$0xf]
  %v105 = vld [vmem:[%s1 + $0x68] sm:$0xf]
  %v106 = vld [vmem:[%s1 + $0x6c] sm:$0xf]
  %v107 = vld [vmem:[%s1 + $0x70] sm:$0xf]
  %v108 = vld [vmem:[%s1 + $0x74] sm:$0xf]
  %v109 = vld [vmem:[%s1 + $0x78] sm:$0xf]
  %v110 = vld [vmem:[%s1 + $0x7c] sm:$0x1]
  %v175 = vunpack.c.l.b16 %v15
  %v176 = vunpack.c.h.b16 %v15
  %v177 = vunpack.c.l.b16 %v16
  %v178 = vunpack.c.h.b16 %v16
  %v179 = vunpack.c.l.b16 %v17
  %v180 = vunpack.c.h.b16 %v17
  %v181 = vunpack.c.l.b16 %v18
  %v182 = vunpack.c.h.b16 %v18
  %v183 = vunpack.c.l.b16 %v19
  %v184 = vunpack.c.h.b16 %v19
  %v185 = vunpack.c.l.b16 %v20
  %v186 = vunpack.c.h.b16 %v20
  %v187 = vunpack.c.l.b16 %v21
  %v188 = vunpack.c.h.b16 %v21
  %v189 = vunpack.c.l.b16 %v22
  %v190 = vunpack.c.h.b16 %v22
  %v191 = vunpack.c.l.b16 %v23
  %v192 = vunpack.c.h.b16 %v23
  %v193 = vunpack.c.l.b16 %v24
  %v194 = vunpack.c.h.b16 %v24
  %v195 = vunpack.c.l.b16 %v25
  %v196 = vunpack.c.h.b16 %v25
  %v197 = vunpack.c.l.b16 %v26
  %v198 = vunpack.c.h.b16 %v26
  %v199 = vunpack.c.l.b16 %v27
  %v200 = vunpack.c.h.b16 %v27
  %v201 = vunpack.c.l.b16 %v28
  %v202 = vunpack.c.h.b16 %v28
  %v203 = vunpack.c.l.b16 %v29
  %v204 = vunpack.c.h.b16 %v29
  %v205 = vunpack.c.l.b16 %v30
  %v206 = vunpack.c.h.b16 %v30
  %v207 = vunpack.c.l.b16 %v31
  %v208 = vunpack.c.h.b16 %v31
  %v209 = vunpack.c.l.b16 %v32
  %v210 = vunpack.c.h.b16 %v32
  %v211 = vunpack.c.l.b16 %v33
  %v212 = vunpack.c.h.b16 %v33
  %v213 = vunpack.c.l.b16 %v34
  %v214 = vunpack.c.h.b16 %v34
  %v215 = vunpack.c.l.b16 %v35
  %v216 = vunpack.c.h.b16 %v35
  %v217 = vunpack.c.l.b16 %v36
  %v218 = vunpack.c.h.b16 %v36
  %v219 = vunpack.c.l.b16 %v37
  %v220 = vunpack.c.h.b16 %v37
  %v221 = vunpack.c.l.b16 %v38
  %v222 = vunpack.c.h.b16 %v38
  %v223 = vunpack.c.l.b16 %v39
  %v224 = vunpack.c.h.b16 %v39
  %v225 = vunpack.c.l.b16 %v40
  %v226 = vunpack.c.h.b16 %v40
  %v227 = vunpack.c.l.b16 %v41
  %v228 = vunpack.c.h.b16 %v41
  %v229 = vunpack.c.l.b16 %v42
  %v230 = vunpack.c.h.b16 %v42
  %v231 = vunpack.c.l.b16 %v43
  %v232 = vunpack.c.h.b16 %v43
  %v233 = vunpack.c.l.b16 %v44
  %v234 = vunpack.c.h.b16 %v44
  %v235 = vunpack.c.l.b16 %v45
  %v236 = vunpack.c.h.b16 %v45
  %v237 = vunpack.c.l.b16 %v46
  %v238 = vunpack.c.h.b16 %v46
  %v239 = vunpack.c.l.b16 %v47
  %v240 = vunpack.c.h.b16 %v47
  %v241 = vunpack.c.l.b16 %v48
  %v242 = vunpack.c.h.b16 %v48
  %v243 = vunpack.c.l.b16 %v49
  %v244 = vunpack.c.h.b16 %v49
  %v245 = vunpack.c.l.b16 %v50
  %v246 = vunpack.c.h.b16 %v50
  %v247 = vunpack.c.l.b16 %v51
  %v248 = vunpack.c.h.b16 %v51
  %v249 = vunpack.c.l.b16 %v52
  %v250 = vunpack.c.h.b16 %v52
  %v251 = vunpack.c.l.b16 %v53
  %v252 = vunpack.c.h.b16 %v53
  %v253 = vunpack.c.l.b16 %v54
  %v254 = vunpack.c.h.b16 %v54
  %v255 = vunpack.c.l.b16 %v55
  %v256 = vunpack.c.h.b16 %v55
  %v257 = vunpack.c.l.b16 %v56
  %v258 = vunpack.c.h.b16 %v56
  %v259 = vunpack.c.l.b16 %v57
  %v260 = vunpack.c.h.b16 %v57
  %v261 = vunpack.c.l.b16 %v58
  %v262 = vunpack.c.h.b16 %v58
  %v263 = vunpack.c.l.b16 %v59
  %v264 = vunpack.c.h.b16 %v59
  %v265 = vunpack.c.l.b16 %v60
  %v266 = vunpack.c.h.b16 %v60
  %v267 = vunpack.c.l.b16 %v61
  %v268 = vunpack.c.h.b16 %v61
  %v269 = vunpack.c.l.b16 %v62
  %v270 = vunpack.c.h.b16 %v62
  %v271 = vunpack.c.l.b16 %v63
  %v272 = vunpack.c.h.b16 %v63
  %v273 = vunpack.c.l.b16 %v64
  %v274 = vunpack.c.h.b16 %v64
  %v275 = vunpack.c.l.b16 %v65
  %v276 = vunpack.c.h.b16 %v65
  %v277 = vunpack.c.l.b16 %v66
  %v278 = vunpack.c.h.b16 %v66
  %v279 = vunpack.c.l.b16 %v67
  %v280 = vunpack.c.h.b16 %v67
  %v281 = vunpack.c.l.b16 %v68
  %v282 = vunpack.c.h.b16 %v68
  %v283 = vunpack.c.l.b16 %v69
  %v284 = vunpack.c.h.b16 %v69
  %v285 = vunpack.c.l.b16 %v70
  %v286 = vunpack.c.h.b16 %v70
  %v287 = vunpack.c.l.b16 %v71
  %v288 = vunpack.c.h.b16 %v71
  %v289 = vunpack.c.l.b16 %v72
  %v290 = vunpack.c.h.b16 %v72
  %v291 = vunpack.c.l.b16 %v73
  %v292 = vunpack.c.h.b16 %v73
  %v293 = vunpack.c.l.b16 %v74
  %v294 = vunpack.c.h.b16 %v74
  %v295 = vunpack.c.l.b16 %v75
  %v296 = vunpack.c.h.b16 %v75
  %v297 = vunpack.c.l.b16 %v76
  %v298 = vunpack.c.h.b16 %v76
  %v299 = vunpack.c.l.b16 %v77
  %v300 = vunpack.c.h.b16 %v77
  %v301 = vunpack.c.l.b16 %v78
  %v302 = vunpack.c.h.b16 %v78
  %v303 = vpack.c.b16 %v177, %v175
  %v304 = vpack.c.b16 %v178, %v176
  %v305 = vpack.c.b16 %v181, %v179
  %v306 = vpack.c.b16 %v182, %v180
  %v307 = vpack.c.b16 %v185, %v183
  %v308 = vpack.c.b16 %v186, %v184
  %v309 = vpack.c.b16 %v189, %v187
  %v310 = vpack.c.b16 %v190, %v188
  %v311 = vpack.c.b16 %v193, %v191
  %v312 = vpack.c.b16 %v194, %v192
  %v313 = vpack.c.b16 %v197, %v195
  %v314 = vpack.c.b16 %v198, %v196
  %v315 = vpack.c.b16 %v201, %v199
  %v316 = vpack.c.b16 %v202, %v200
  %v317 = vpack.c.b16 %v205, %v203
  %v318 = vpack.c.b16 %v206, %v204
  %v319 = vpack.c.b16 %v209, %v207
  %v320 = vpack.c.b16 %v210, %v208
  %v321 = vpack.c.b16 %v213, %v211
  %v322 = vpack.c.b16 %v214, %v212
  %v323 = vpack.c.b16 %v217, %v215
  %v324 = vpack.c.b16 %v218, %v216
  %v325 = vpack.c.b16 %v221, %v219
  %v326 = vpack.c.b16 %v222, %v220
  %v327 = vpack.c.b16 %v225, %v223
  %v328 = vpack.c.b16 %v226, %v224
  %v329 = vpack.c.b16 %v229, %v227
  %v330 = vpack.c.b16 %v230, %v228
  %v331 = vpack.c.b16 %v233, %v231
  %v332 = vpack.c.b16 %v234, %v232
  %v333 = vpack.c.b16 %v237, %v235
  %v334 = vpack.c.b16 %v238, %v236
  %v335 = vpack.c.b16 %v241, %v239
  %v336 = vpack.c.b16 %v242, %v240
  %v337 = vpack.c.b16 %v245, %v243
  %v338 = vpack.c.b16 %v246, %v244
  %v339 = vpack.c.b16 %v249, %v247
  %v340 = vpack.c.b16 %v250, %v248
  %v341 = vpack.c.b16 %v253, %v251
  %v342 = vpack.c.b16 %v254, %v252
  %v343 = vpack.c.b16 %v257, %v255
  %v344 = vpack.c.b16 %v258, %v256
  %v345 = vpack.c.b16 %v261, %v259
  %v346 = vpack.c.b16 %v262, %v260
  %v347 = vpack.c.b16 %v265, %v263
  %v348 = vpack.c.b16 %v266, %v264
  %v349 = vpack.c.b16 %v269, %v267
  %v350 = vpack.c.b16 %v270, %v268
  %v351 = vpack.c.b16 %v273, %v271
  %v352 = vpack.c.b16 %v274, %v272
  %v353 = vpack.c.b16 %v277, %v275
  %v354 = vpack.c.b16 %v278, %v276
  %v355 = vpack.c.b16 %v281, %v279
  %v356 = vpack.c.b16 %v282, %v280
  %v357 = vpack.c.b16 %v285, %v283
  %v358 = vpack.c.b16 %v286, %v284
  %v359 = vpack.c.b16 %v289, %v287
  %v360 = vpack.c.b16 %v290, %v288
  %v361 = vpack.c.b16 %v293, %v291
  %v362 = vpack.c.b16 %v294, %v292
  %v363 = vpack.c.b16 %v297, %v295
  %v364 = vpack.c.b16 %v298, %v296
  %v365 = vpack.c.b16 %v301, %v299
  %v366 = vpack.c.b16 %v302, %v300
  %v431 = vunpack.c.l.b16 %v79
  %v432 = vunpack.c.l.b16 %v80
  %v433 = vunpack.c.l.b16 %v81
  %v434 = vunpack.c.l.b16 %v82
  %v435 = vunpack.c.l.b16 %v83
  %v436 = vunpack.c.l.b16 %v84
  %v437 = vunpack.c.l.b16 %v85
  %v438 = vunpack.c.l.b16 %v86
  %v439 = vunpack.c.l.b16 %v87
  %v440 = vunpack.c.l.b16 %v88
  %v441 = vunpack.c.l.b16 %v89
  %v442 = vunpack.c.l.b16 %v90
  %v443 = vunpack.c.l.b16 %v91
  %v444 = vunpack.c.l.b16 %v92
  %v445 = vunpack.c.l.b16 %v93
  %v446 = vunpack.c.l.b16 %v94
  %v447 = vunpack.c.l.b16 %v95
  %v448 = vunpack.c.l.b16 %v96
  %v449 = vunpack.c.l.b16 %v97
  %v450 = vunpack.c.l.b16 %v98
  %v451 = vunpack.c.l.b16 %v99
  %v452 = vunpack.c.l.b16 %v100
  %v453 = vunpack.c.l.b16 %v101
  %v454 = vunpack.c.l.b16 %v102
  %v455 = vunpack.c.l.b16 %v103
  %v456 = vunpack.c.l.b16 %v104
  %v457 = vunpack.c.l.b16 %v105
  %v458 = vunpack.c.l.b16 %v106
  %v459 = vunpack.c.l.b16 %v107
  %v460 = vunpack.c.l.b16 %v108
  %v461 = vunpack.c.l.b16 %v109
  %v462 = vunpack.c.l.b16 %v110
  %v463 = vpack.c.b16 %v432, %v431
  %v464 = vpack.c.b16 %v434, %v433
  %v465 = vpack.c.b16 %v436, %v435
  %v466 = vpack.c.b16 %v438, %v437
  %v467 = vpack.c.b16 %v440, %v439
  %v468 = vpack.c.b16 %v442, %v441
  %v469 = vpack.c.b16 %v444, %v443
  %v470 = vpack.c.b16 %v446, %v445
  %v471 = vpack.c.b16 %v448, %v447
  %v472 = vpack.c.b16 %v450, %v449
  %v473 = vpack.c.b16 %v452, %v451
  %v474 = vpack.c.b16 %v454, %v453
  %v475 = vpack.c.b16 %v456, %v455
  %v476 = vpack.c.b16 %v458, %v457
  %v477 = vpack.c.b16 %v460, %v459
  %v478 = vpack.c.b16 %v462, %v461
  %vm494 = vcmask 998400
  %v496 = vsel %vm494, %v304, 0
  %v499 = vsel %vm494, %v306, 0
  %v502 = vsel %vm494, %v308, 0
  %v505 = vsel %vm494, %v310, 0
  %v508 = vsel %vm494, %v312, 0
  %v511 = vsel %vm494, %v314, 0
  %v514 = vsel %vm494, %v316, 0
  %v517 = vsel %vm494, %v318, 0
  %v520 = vsel %vm494, %v320, 0
  %v523 = vsel %vm494, %v322, 0
  %v526 = vsel %vm494, %v324, 0
  %v529 = vsel %vm494, %v326, 0
  %v532 = vsel %vm494, %v328, 0
  %v535 = vsel %vm494, %v330, 0
  %v538 = vsel %vm494, %v332, 0
  %v541 = vsel %vm494, %v334, 0
  %v544 = vsel %vm494, %v336, 0
  %v547 = vsel %vm494, %v338, 0
  %v550 = vsel %vm494, %v340, 0
  %v553 = vsel %vm494, %v342, 0
  %v556 = vsel %vm494, %v344, 0
  %v559 = vsel %vm494, %v346, 0
  %v562 = vsel %vm494, %v348, 0
  %v565 = vsel %vm494, %v350, 0
  %v568 = vsel %vm494, %v352, 0
  %v571 = vsel %vm494, %v354, 0
  %v574 = vsel %vm494, %v356, 0
  %v577 = vsel %vm494, %v358, 0
  %v580 = vsel %vm494, %v360, 0
  %v583 = vsel %vm494, %v362, 0
  %v586 = vsel %vm494, %v364, 0
  %v589 = vsel %vm494, %v366, 0
  %vm591 = vcmask 1044480
  %v593 = vsel %vm591, %v478, 0
  %595 = vmatprep.subr.bf16.mxu0 0
  %596 = vmatpush1.bf16.msra.mxu0 %v463
  %597 = vmatprep.subr.bf16.mxu0 0
  %598 = vmatpush1.bf16.msra.mxu0 %v464
  %599 = vmatprep.subr.bf16.mxu0 0
  %600 = vmatpush1.bf16.msra.mxu0 %v465
  %601 = vmatprep.subr.bf16.mxu0 0
  %602 = vmatpush1.bf16.msra.mxu0 %v466
  %603 = vmatprep.subr.bf16.mxu0 0
  %604 = vmatpush1.bf16.msra.mxu0 %v467
  %605 = vmatprep.subr.bf16.mxu0 0
  %606 = vmatpush1.bf16.msra.mxu0 %v468
  %607 = vmatprep.subr.bf16.mxu0 0
  %608 = vmatpush1.bf16.msra.mxu0 %v469
  %609 = vmatprep.subr.bf16.mxu0 0
  %610 = vmatpush1.bf16.msra.mxu0 %v470
  %611 = vmatprep.subr.bf16.mxu0 0
  %612 = vmatpush1.bf16.msra.mxu0 %v471
  %613 = vmatprep.subr.bf16.mxu0 0
  %614 = vmatpush1.bf16.msra.mxu0 %v472
  %615 = vmatprep.subr.bf16.mxu0 0
  %616 = vmatpush1.bf16.msra.mxu0 %v473
  %617 = vmatprep.subr.bf16.mxu0 0
  %618 = vmatpush1.bf16.msra.mxu0 %v474
  %619 = vmatprep.subr.bf16.mxu0 0
  %620 = vmatpush1.bf16.msra.mxu0 %v475
  %621 = vmatprep.subr.bf16.mxu0 0
  %622 = vmatpush1.bf16.msra.mxu0 %v476
  %623 = vmatprep.subr.bf16.mxu0 0
  %624 = vmatpush1.bf16.msra.mxu0 %v477
  %625 = vmatprep.subr.bf16.mxu0 0
  %626 = vmatpush1.bf16.msra.mxu0 %v593
  %627 = vmatprep.mubr.bf16.mxu0 %v496
  %628 = vmatmul.mubr.bf16.gmra.mrb[0].mxu0 %v303
  %v629 = vpop.f32.mrb[0].mxu0
  %v630 = vadd.f32 0.0, %v629
  %v631 = vpop.f32.mrb[0].mxu0
  %v632 = vpop.f32.mrb[0].mxu0
  %v633 = vadd.f32 0.0, %v632
  %v634 = vpop.f32.mrb[0].mxu0
  %635 = vmatprep.mubr.bf16.mxu0 %v499
  %636 = vmatmul.mubr.bf16.gmra.mrb[0].mxu0 %v305
  %v637 = vpop.f32.mrb[0].mxu0
  %v638 = vadd.f32 0.0, %v637
  %v639 = vpop.f32.mrb[0].mxu0
  %v640 = vpop.f32.mrb[0].mxu0
  %v641 = vadd.f32 0.0, %v640
  %v642 = vpop.f32.mrb[0].mxu0
  %643 = vmatprep.mubr.bf16.mxu0 %v502
  %644 = vmatmul.mubr.bf16.gmra.mrb[0].mxu0 %v307
  %v645 = vpop.f32.mrb[0].mxu0
  %v646 = vadd.f32 0.0, %v645
  %v647 = vpop.f32.mrb[0].mxu0
  %v648 = vpop.f32.mrb[0].mxu0
  %v649 = vadd.f32 0.0, %v648
  %v650 = vpop.f32.mrb[0].mxu0
  %651 = vmatprep.mubr.bf16.mxu0 %v505
  %652 = vmatmul.mubr.bf16.gmra.mrb[0].mxu0 %v309
  %v653 = vpop.f32.mrb[0].mxu0
  %v654 = vadd.f32 0.0, %v653
  %v655 = vpop.f32.mrb[0].mxu0
  %v656 = vpop.f32.mrb[0].mxu0
  %v657 = vadd.f32 0.0, %v656
  %v658 = vpop.f32.mrb[0].mxu0
  %659 = vmatprep.mubr.bf16.mxu0 %v508
  %660 = vmatmul.mubr.bf16.gmra.mrb[0].mxu0 %v311
  %v661 = vpop.f32.mrb[0].mxu0
  %v662 = vadd.f32 0.0, %v661
  %v663 = vpop.f32.mrb[0].mxu0
  %v664 = vpop.f32.mrb[0].mxu0
  %v665 = vadd.f32 0.0, %v664
  %v666 = vpop.f32.mrb[0].mxu0
  %667 = vmatprep.mubr.bf16.mxu0 %v511
  %668 = vmatmul.mubr.bf16.gmra.mrb[0].mxu0 %v313
  %v669 = vpop.f32.mrb[0].mxu0
  %v670 = vadd.f32 0.0, %v669
  %v671 = vpop.f32.mrb[0].mxu0
  %v672 = vpop.f32.mrb[0].mxu0
  %v673 = vadd.f32 0.0, %v672
  %v674 = vpop.f32.mrb[0].mxu0
  %675 = vmatprep.mubr.bf16.mxu0 %v514
  %676 = vmatmul.mubr.bf16.gmra.mrb[0].mxu0 %v315
  %v677 = vpop.f32.mrb[0].mxu0
  %v678 = vadd.f32 0.0, %v677
  %v679 = vpop.f32.mrb[0].mxu0
  %v680 = vpop.f32.mrb[0].mxu0
  %v681 = vadd.f32 0.0, %v680
  %v682 = vpop.f32.mrb[0].mxu0
  %683 = vmatprep.mubr.bf16.mxu0 %v517
  %684 = vmatmul.mubr.bf16.gmra.mrb[0].mxu0 %v317
  %v685 = vpop.f32.mrb[0].mxu0
  %v686 = vadd.f32 0.0, %v685
  %v687 = vpop.f32.mrb[0].mxu0
  %v688 = vpop.f32.mrb[0].mxu0
  %v689 = vadd.f32 0.0, %v688
  %v690 = vpop.f32.mrb[0].mxu0
  %691 = vmatprep.mubr.bf16.mxu0 %v520
  %692 = vmatmul.mubr.bf16.gmra.mrb[0].mxu0 %v319
  %v693 = vpop.f32.mrb[0].mxu0
  %v694 = vadd.f32 0.0, %v693
  %v695 = vpop.f32.mrb[0].mxu0
  %v696 = vpop.f32.mrb[0].mxu0
  %v697 = vadd.f32 0.0, %v696
  %v698 = vpop.f32.mrb[0].mxu0
  %699 = vmatprep.mubr.bf16.mxu0 %v523
  %700 = vmatmul.mubr.bf16.gmra.mrb[0].mxu0 %v321
  %v701 = vpop.f32.mrb[0].mxu0
  %v702 = vadd.f32 0.0, %v701
  %v703 = vpop.f32.mrb[0].mxu0
  %v704 = vpop.f32.mrb[0].mxu0
  %v705 = vadd.f32 0.0, %v704
  %v706 = vpop.f32.mrb[0].mxu0
  %707 = vmatprep.mubr.bf16.mxu0 %v526
  %708 = vmatmul.mubr.bf16.gmra.mrb[0].mxu0 %v323
  %v709 = vpop.f32.mrb[0].mxu0
  %v710 = vadd.f32 0.0, %v709
  %v711 = vpop.f32.mrb[0].mxu0
  %v712 = vpop.f32.mrb[0].mxu0
  %v713 = vadd.f32 0.0, %v712
  %v714 = vpop.f32.mrb[0].mxu0
  %715 = vmatprep.mubr.bf16.mxu0 %v529
  %716 = vmatmul.mubr.bf16.gmra.mrb[0].mxu0 %v325
  %v717 = vpop.f32.mrb[0].mxu0
  %v718 = vadd.f32 0.0, %v717
  %v719 = vpop.f32.mrb[0].mxu0
  %v720 = vpop.f32.mrb[0].mxu0
  %v721 = vadd.f32 0.0, %v720
  %v722 = vpop.f32.mrb[0].mxu0
  %723 = vmatprep.mubr.bf16.mxu0 %v532
  %724 = vmatmul.mubr.bf16.gmra.mrb[0].mxu0 %v327
  %v725 = vpop.f32.mrb[0].mxu0
  %v726 = vadd.f32 0.0, %v725
  %v727 = vpop.f32.mrb[0].mxu0
  %v728 = vpop.f32.mrb[0].mxu0
  %v729 = vadd.f32 0.0, %v728
  %v730 = vpop.f32.mrb[0].mxu0
  %731 = vmatprep.mubr.bf16.mxu0 %v535
  %732 = vmatmul.mubr.bf16.gmra.mrb[0].mxu0 %v329
  %v733 = vpop.f32.mrb[0].mxu0
  %v734 = vadd.f32 0.0, %v733
  %v735 = vpop.f32.mrb[0].mxu0
  %v736 = vpop.f32.mrb[0].mxu0
  %v737 = vadd.f32 0.0, %v736
  %v738 = vpop.f32.mrb[0].mxu0
  %739 = vmatprep.mubr.bf16.mxu0 %v538
  %740 = vmatmul.mubr.bf16.gmra.mrb[0].mxu0 %v331
  %v741 = vpop.f32.mrb[0].mxu0
  %v742 = vadd.f32 0.0, %v741
  %v743 = vpop.f32.mrb[0].mxu0
  %v744 = vpop.f32.mrb[0].mxu0
  %v745 = vadd.f32 0.0, %v744
  %v746 = vpop.f32.mrb[0].mxu0
  %747 = vmatprep.mubr.bf16.mxu0 %v541
  %748 = vmatmul.mubr.bf16.gmra.mrb[0].mxu0 %v333
  %v749 = vpop.f32.mrb[0].mxu0
  %v750 = vadd.f32 0.0, %v749
  %v751 = vpop.f32.mrb[0].mxu0
  %v752 = vpop.f32.mrb[0].mxu0
  %v753 = vadd.f32 0.0, %v752
  %v754 = vpop.f32.mrb[0].mxu0
  %755 = vmatprep.mubr.bf16.mxu0 %v544
  %756 = vmatmul.mubr.bf16.gmra.mrb[0].mxu0 %v335
  %v757 = vpop.f32.mrb[0].mxu0
  %v758 = vadd.f32 0.0, %v757
  %v759 = vpop.f32.mrb[0].mxu0
  %v760 = vpop.f32.mrb[0].mxu0
  %v761 = vadd.f32 0.0, %v760
  %v762 = vpop.f32.mrb[0].mxu0
  %763 = vmatprep.mubr.bf16.mxu0 %v547
  %764 = vmatmul.mubr.bf16.gmra.mrb[0].mxu0 %v337
  %v765 = vpop.f32.mrb[0].mxu0
  %v766 = vadd.f32 0.0, %v765
  %v767 = vpop.f32.mrb[0].mxu0
  %v768 = vpop.f32.mrb[0].mxu0
  %v769 = vadd.f32 0.0, %v768
  %v770 = vpop.f32.mrb[0].mxu0
  %771 = vmatprep.mubr.bf16.mxu0 %v550
  %772 = vmatmul.mubr.bf16.gmra.mrb[0].mxu0 %v339
  %v773 = vpop.f32.mrb[0].mxu0
  %v774 = vadd.f32 0.0, %v773
  %v775 = vpop.f32.mrb[0].mxu0
  %v776 = vpop.f32.mrb[0].mxu0
  %v777 = vadd.f32 0.0, %v776
  %v778 = vpop.f32.mrb[0].mxu0
  %779 = vmatprep.mubr.bf16.mxu0 %v553
  %780 = vmatmul.mubr.bf16.gmra.mrb[0].mxu0 %v341
  %v781 = vpop.f32.mrb[0].mxu0
  %v782 = vadd.f32 0.0, %v781
  %v783 = vpop.f32.mrb[0].mxu0
  %v784 = vpop.f32.mrb[0].mxu0
  %v785 = vadd.f32 0.0, %v784
  %v786 = vpop.f32.mrb[0].mxu0
  %787 = vmatprep.mubr.bf16.mxu0 %v556
  %788 = vmatmul.mubr.bf16.gmra.mrb[0].mxu0 %v343
  %v789 = vpop.f32.mrb[0].mxu0
  %v790 = vadd.f32 0.0, %v789
  %v791 = vpop.f32.mrb[0].mxu0
  %v792 = vpop.f32.mrb[0].mxu0
  %v793 = vadd.f32 0.0, %v792
  %v794 = vpop.f32.mrb[0].mxu0
  %795 = vmatprep.mubr.bf16.mxu0 %v559
  %796 = vmatmul.mubr.bf16.gmra.mrb[0].mxu0 %v345
  %v797 = vpop.f32.mrb[0].mxu0
  %v798 = vadd.f32 0.0, %v797
  %v799 = vpop.f32.mrb[0].mxu0
  %v800 = vpop.f32.mrb[0].mxu0
  %v801 = vadd.f32 0.0, %v800
  %v802 = vpop.f32.mrb[0].mxu0
  %803 = vmatprep.mubr.bf16.mxu0 %v562
  %804 = vmatmul.mubr.bf16.gmra.mrb[0].mxu0 %v347
  %v805 = vpop.f32.mrb[0].mxu0
  %v806 = vadd.f32 0.0, %v805
  %v807 = vpop.f32.mrb[0].mxu0
  %v808 = vpop.f32.mrb[0].mxu0
  %v809 = vadd.f32 0.0, %v808
  %v810 = vpop.f32.mrb[0].mxu0
  %811 = vmatprep.mubr.bf16.mxu0 %v565
  %812 = vmatmul.mubr.bf16.gmra.mrb[0].mxu0 %v349
  %v813 = vpop.f32.mrb[0].mxu0
  %v814 = vadd.f32 0.0, %v813
  %v815 = vpop.f32.mrb[0].mxu0
  %v816 = vpop.f32.mrb[0].mxu0
  %v817 = vadd.f32 0.0, %v816
  %v818 = vpop.f32.mrb[0].mxu0
  %819 = vmatprep.mubr.bf16.mxu0 %v568
  %820 = vmatmul.mubr.bf16.gmra.mrb[0].mxu0 %v351
  %v821 = vpop.f32.mrb[0].mxu0
  %v822 = vadd.f32 0.0, %v821
  %v823 = vpop.f32.mrb[0].mxu0
  %v824 = vpop.f32.mrb[0].mxu0
  %v825 = vadd.f32 0.0, %v824
  %v826 = vpop.f32.mrb[0].mxu0
  %827 = vmatprep.mubr.bf16.mxu0 %v571
  %828 = vmatmul.mubr.bf16.gmra.mrb[0].mxu0 %v353
  %v829 = vpop.f32.mrb[0].mxu0
  %v830 = vadd.f32 0.0, %v829
  %v831 = vpop.f32.mrb[0].mxu0
  %v832 = vpop.f32.mrb[0].mxu0
  %v833 = vadd.f32 0.0, %v832
  %v834 = vpop.f32.mrb[0].mxu0
  %835 = vmatprep.mubr.bf16.mxu0 %v574
  %836 = vmatmul.mubr.bf16.gmra.mrb[0].mxu0 %v355
  %v837 = vpop.f32.mrb[0].mxu0
  %v838 = vadd.f32 0.0, %v837
  %v839 = vpop.f32.mrb[0].mxu0
  %v840 = vpop.f32.mrb[0].mxu0
  %v841 = vadd.f32 0.0, %v840
  %v842 = vpop.f32.mrb[0].mxu0
  %843 = vmatprep.mubr.bf16.mxu0 %v577
  %844 = vmatmul.mubr.bf16.gmra.mrb[0].mxu0 %v357
  %v845 = vpop.f32.mrb[0].mxu0
  %v846 = vadd.f32 0.0, %v845
  %v847 = vpop.f32.mrb[0].mxu0
  %v848 = vpop.f32.mrb[0].mxu0
  %v849 = vadd.f32 0.0, %v848
  %v850 = vpop.f32.mrb[0].mxu0
  %851 = vmatprep.mubr.bf16.mxu0 %v580
  %852 = vmatmul.mubr.bf16.gmra.mrb[0].mxu0 %v359
  %v853 = vpop.f32.mrb[0].mxu0
  %v854 = vadd.f32 0.0, %v853
  %v855 = vpop.f32.mrb[0].mxu0
  %v856 = vpop.f32.mrb[0].mxu0
  %v857 = vadd.f32 0.0, %v856
  %v858 = vpop.f32.mrb[0].mxu0
  %859 = vmatprep.mubr.bf16.mxu0 %v583
  %860 = vmatmul.mubr.bf16.gmra.mrb[0].mxu0 %v361
  %v861 = vpop.f32.mrb[0].mxu0
  %v862 = vadd.f32 0.0, %v861
  %v863 = vpop.f32.mrb[0].mxu0
  %v864 = vpop.f32.mrb[0].mxu0
  %v865 = vadd.f32 0.0, %v864
  %v866 = vpop.f32.mrb[0].mxu0
  %867 = vmatprep.mubr.bf16.mxu0 %v586
  %868 = vmatmul.mubr.bf16.gmra.mrb[0].mxu0 %v363
  %v869 = vpop.f32.mrb[0].mxu0
  %v870 = vadd.f32 0.0, %v869
  %v871 = vpop.f32.mrb[0].mxu0
  %v872 = vpop.f32.mrb[0].mxu0
  %v873 = vadd.f32 0.0, %v872
  %v874 = vpop.f32.mrb[0].mxu0
  %875 = vmatprep.mubr.bf16.mxu0 %v589
  %876 = vmatmul.mubr.bf16.gmra.mrb[0].mxu0 %v365
  %v877 = vpop.f32.mrb[0].mxu0
  %v878 = vadd.f32 0.0, %v877
  %v879 = vpop.f32.mrb[0].mxu0
  %v880 = vpop.f32.mrb[0].mxu0
  %v881 = vadd.f32 0.0, %v880
  %v882 = vpop.f32.mrb[0].mxu0
  %883 = vdwg.mxu0
  %vm884 = vcmask 162816
  %v885 = vsel %vm884, %v630, -inf
  %v886 = vsel %vm884, %v694, -inf
  %v887 = vmax.f32 %v885, %v886
  %v888 = vsel %vm884, %v758, -inf
  %v889 = vmax.f32 %v887, %v888
  %v890 = vsel %vm884, %v822, -inf
  %v891 = vmax.f32 %v889, %v890
  %v892 = vsel %vm884, %v633, -inf
  %v893 = vsel %vm884, %v697, -inf
  %v894 = vmax.f32 %v892, %v893
  %v895 = vsel %vm884, %v761, -inf
  %v896 = vmax.f32 %v894, %v895
  %v897 = vsel %vm884, %v825, -inf
  %v898 = vmax.f32 %v896, %v897
  %v899 = vsel %vm884, %v638, -inf
  %v900 = vsel %vm884, %v702, -inf
  %v901 = vmax.f32 %v899, %v900
  %v902 = vsel %vm884, %v766, -inf
  %v903 = vmax.f32 %v901, %v902
  %v904 = vsel %vm884, %v830, -inf
  %v905 = vmax.f32 %v903, %v904
  %v906 = vsel %vm884, %v641, -inf
  %v907 = vsel %vm884, %v705, -inf
  %v908 = vmax.f32 %v906, %v907
  %v909 = vsel %vm884, %v769, -inf
  %v910 = vmax.f32 %v908, %v909
  %v911 = vsel %vm884, %v833, -inf
  %v912 = vmax.f32 %v910, %v911
  %v913 = vsel %vm884, %v646, -inf
  %v914 = vsel %vm884, %v710, -inf
  %v915 = vmax.f32 %v913, %v914
  %v916 = vsel %vm884, %v774, -inf
  %v917 = vmax.f32 %v915, %v916
  %v918 = vsel %vm884, %v838, -inf
  %v919 = vmax.f32 %v917, %v918
  %v920 = vsel %vm884, %v649, -inf
  %v921 = vsel %vm884, %v713, -inf
  %v922 = vmax.f32 %v920, %v921
  %v923 = vsel %vm884, %v777, -inf
  %v924 = vmax.f32 %v922, %v923
  %v925 = vsel %vm884, %v841, -inf
  %v926 = vmax.f32 %v924, %v925
  %v927 = vsel %vm884, %v654, -inf
  %v928 = vsel %vm884, %v718, -inf
  %v929 = vmax.f32 %v927, %v928
  %v930 = vsel %vm884, %v782, -inf
  %v931 = vmax.f32 %v929, %v930
  %v932 = vsel %vm884, %v846, -inf
  %v933 = vmax.f32 %v931, %v932
  %v934 = vsel %vm884, %v657, -inf
  %v935 = vsel %vm884, %v721, -inf
  %v936 = vmax.f32 %v934, %v935
  %v937 = vsel %vm884, %v785, -inf
  %v938 = vmax.f32 %v936, %v937
  %v939 = vsel %vm884, %v849, -inf
  %v940 = vmax.f32 %v938, %v939
  %v941 = vsel %vm884, %v662, -inf
  %v942 = vsel %vm884, %v726, -inf
  %v943 = vmax.f32 %v941, %v942
  %v944 = vsel %vm884, %v790, -inf
  %v945 = vmax.f32 %v943, %v944
  %v946 = vsel %vm884, %v854, -inf
  %v947 = vmax.f32 %v945, %v946
  %v948 = vsel %vm884, %v665, -inf
  %v949 = vsel %vm884, %v729, -inf
  %v950 = vmax.f32 %v948, %v949
  %v951 = vsel %vm884, %v793, -inf
  %v952 = vmax.f32 %v950, %v951
  %v953 = vsel %vm884, %v857, -inf
  %v954 = vmax.f32 %v952, %v953
  %v955 = vsel %vm884, %v670, -inf
  %v956 = vsel %vm884, %v734, -inf
  %v957 = vmax.f32 %v955, %v956
  %v958 = vsel %vm884, %v798, -inf
  %v959 = vmax.f32 %v957, %v958
  %v960 = vsel %vm884, %v862, -inf
  %v961 = vmax.f32 %v959, %v960
  %v962 = vsel %vm884, %v673, -inf
  %v963 = vsel %vm884, %v737, -inf
  %v964 = vmax.f32 %v962, %v963
  %v965 = vsel %vm884, %v801, -inf
  %v966 = vmax.f32 %v964, %v965
  %v967 = vsel %vm884, %v865, -inf
  %v968 = vmax.f32 %v966, %v967
  %v969 = vsel %vm884, %v678, -inf
  %v970 = vsel %vm884, %v742, -inf
  %v971 = vmax.f32 %v969, %v970
  %v972 = vsel %vm884, %v806, -inf
  %v973 = vmax.f32 %v971, %v972
  %v974 = vsel %vm884, %v870, -inf
  %v975 = vmax.f32 %v973, %v974
  %v976 = vsel %vm884, %v681, -inf
  %v977 = vsel %vm884, %v745, -inf
  %v978 = vmax.f32 %v976, %v977
  %v979 = vsel %vm884, %v809, -inf
  %v980 = vmax.f32 %v978, %v979
  %v981 = vsel %vm884, %v873, -inf
  %v982 = vmax.f32 %v980, %v981
  %v983 = vsel %vm884, %v686, -inf
  %v984 = vsel %vm884, %v750, -inf
  %v985 = vmax.f32 %v983, %v984
  %v986 = vsel %vm884, %v814, -inf
  %v987 = vmax.f32 %v985, %v986
  %v988 = vsel %vm884, %v878, -inf
  %v989 = vmax.f32 %v987, %v988
  %v990 = vsel %vm884, %v689, -inf
  %v991 = vsel %vm884, %v753, -inf
  %v992 = vmax.f32 %v990, %v991
  %v993 = vsel %vm884, %v817, -inf
  %v994 = vmax.f32 %v992, %v993
  %v995 = vsel %vm884, %v881, -inf
  %v996 = vmax.f32 %v994, %v995
  %v997 = vld [vmem:[%s2] sm:$0x1]
  %v999 = vlaneseq
  %v1000 = vshrl.u32 %v999, 7
  %v1001 = vsub.s32 0, %v1000
  %v1002 = vrot.slane %v997, %v1001
  %v1004 = vadd.f32 %v891, %v1002
  %v1005 = vadd.f32 %v898, %v1002
  %v1006 = vadd.f32 %v905, %v1002
  %v1007 = vadd.f32 %v912, %v1002
  %v1008 = vadd.f32 %v919, %v1002
  %v1009 = vadd.f32 %v926, %v1002
  %v1010 = vadd.f32 %v933, %v1002
  %v1011 = vadd.f32 %v940, %v1002
  %v1012 = vadd.f32 %v947, %v1002
  %v1013 = vadd.f32 %v954, %v1002
  %v1014 = vadd.f32 %v961, %v1002
  %v1015 = vadd.f32 %v968, %v1002
  %v1016 = vadd.f32 %v975, %v1002
  %v1017 = vadd.f32 %v982, %v1002
  %v1018 = vadd.f32 %v989, %v1002
  %v1019 = vadd.f32 %v996, %v1002
  %v1020 = vmax.f32 %v1004, 0.0
  %v1021 = vmax.f32 %v1005, 0.0
  %v1022 = vmax.f32 %v1006, 0.0
  %v1023 = vmax.f32 %v1007, 0.0
  %v1024 = vmax.f32 %v1008, 0.0
  %v1025 = vmax.f32 %v1009, 0.0
  %v1026 = vmax.f32 %v1010, 0.0
  %v1027 = vmax.f32 %v1011, 0.0
  %v1028 = vmax.f32 %v1012, 0.0
  %v1029 = vmax.f32 %v1013, 0.0
  %v1030 = vmax.f32 %v1014, 0.0
  %v1031 = vmax.f32 %v1015, 0.0
  %v1032 = vmax.f32 %v1016, 0.0
  %v1033 = vmax.f32 %v1017, 0.0
  %v1034 = vmax.f32 %v1018, 0.0
  %v1035 = vmax.f32 %v1019, 0.0
  %v1036 = vpack.c.bf16 %v1021, %v1020
  %v1037 = vpack.c.bf16 %v1023, %v1022
  %v1038 = vpack.c.bf16 %v1025, %v1024
  %v1039 = vpack.c.bf16 %v1027, %v1026
  %v1040 = vpack.c.bf16 %v1029, %v1028
  %v1041 = vpack.c.bf16 %v1031, %v1030
  %v1042 = vpack.c.bf16 %v1033, %v1032
  %v1043 = vpack.c.bf16 %v1035, %v1034
  %v1052 = vunpack.c.l.b16 %v1036
  %v1053 = vunpack.c.h.b16 %v1036
  %v1054 = vunpack.c.l.b16 %v1037
  %v1055 = vunpack.c.h.b16 %v1037
  %v1056 = vunpack.c.l.b16 %v1038
  %v1057 = vunpack.c.h.b16 %v1038
  %v1058 = vunpack.c.l.b16 %v1039
  %v1059 = vunpack.c.h.b16 %v1039
  %v1060 = vunpack.c.l.b16 %v1040
  %v1061 = vunpack.c.h.b16 %v1040
  %v1062 = vunpack.c.l.b16 %v1041
  %v1063 = vunpack.c.h.b16 %v1041
  %v1064 = vunpack.c.l.b16 %v1042
  %v1065 = vunpack.c.h.b16 %v1042
  %v1066 = vunpack.c.l.b16 %v1043
  %v1067 = vunpack.c.h.b16 %v1043
  %v1068 = vpack.c.b16 %v1052, %v1052
  %v1069 = vpack.c.b16 %v1053, %v1053
  %v1070 = vpack.c.b16 %v1054, %v1054
  %v1071 = vpack.c.b16 %v1055, %v1055
  %v1072 = vpack.c.b16 %v1056, %v1056
  %v1073 = vpack.c.b16 %v1057, %v1057
  %v1074 = vpack.c.b16 %v1058, %v1058
  %v1075 = vpack.c.b16 %v1059, %v1059
  %v1076 = vpack.c.b16 %v1060, %v1060
  %v1077 = vpack.c.b16 %v1061, %v1061
  %v1078 = vpack.c.b16 %v1062, %v1062
  %v1079 = vpack.c.b16 %v1063, %v1063
  %v1080 = vpack.c.b16 %v1064, %v1064
  %v1081 = vpack.c.b16 %v1065, %v1065
  %v1082 = vpack.c.b16 %v1066, %v1066
  %v1083 = vpack.c.b16 %v1067, %v1067
  %vm1100 = vcmask 158720
  %1101 = vst.msk [vmem:[%s3] sm:$0xf] %vm1100, %v1068
  %1102 = vst.msk [vmem:[%s3 + $0x4] sm:$0xf] %vm1100, %v1069
  %1103 = vst.msk [vmem:[%s3 + $0x8] sm:$0xf] %vm1100, %v1070
  %1104 = vst.msk [vmem:[%s3 + $0xc] sm:$0xf] %vm1100, %v1071
  %1105 = vst.msk [vmem:[%s3 + $0x10] sm:$0xf] %vm1100, %v1072
  %1106 = vst.msk [vmem:[%s3 + $0x14] sm:$0xf] %vm1100, %v1073
  %1107 = vst.msk [vmem:[%s3 + $0x18] sm:$0xf] %vm1100, %v1074
  %1108 = vst.msk [vmem:[%s3 + $0x1c] sm:$0xf] %vm1100, %v1075
  %1109 = vst.msk [vmem:[%s3 + $0x20] sm:$0xf] %vm1100, %v1076
  %1110 = vst.msk [vmem:[%s3 + $0x24] sm:$0xf] %vm1100, %v1077
  %1111 = vst.msk [vmem:[%s3 + $0x28] sm:$0xf] %vm1100, %v1078
  %1112 = vst.msk [vmem:[%s3 + $0x2c] sm:$0xf] %vm1100, %v1079
  %1113 = vst.msk [vmem:[%s3 + $0x30] sm:$0xf] %vm1100, %v1080
  %1114 = vst.msk [vmem:[%s3 + $0x34] sm:$0xf] %vm1100, %v1081
  %1115 = vst.msk [vmem:[%s3 + $0x38] sm:$0xf] %vm1100, %v1082
  %1116 = vst.msk [vmem:[%s3 + $0x3c] sm:$0xf] %vm1100, %v1083
  // Predicated region
  $region14: #{net_forward.4} parent=0 // pred_check
    _
  $region15: #{net_forward.4} parent=0 // pred_check_branch
    %1118 = sbr.rel (0) target = $region17
  $region16: #{net_forward.4} parent=0 // pred_region
    _
  $region17: #{net_forward.4} parent=0 // pred_fallthru
    _
  // Predicated region
  $region18: #{net_forward.4} parent=0 // pred_check
    _
  $region19: #{net_forward.4} parent=0 // pred_check_branch
    %1120 = sbr.rel (0) target = $region21
  $region20: #{net_forward.4} parent=0 // pred_region
    _
  $region21: #{net_forward.4} parent=0 // pred_fallthru
    _

// kernel: net_forward.5
$region0: #{net_forward.5}
  #allocation0 [shape = 'u32[]', space=smem, size = 0x4, offset = 0x4, fixed_abs, tag = 'smem constant byte address 0x4 - core index']
  #allocation1 [shape = 'u32[144,128]{1,0:T(1,128)}', space=vmem, size = 0x12000, scoped, tag = 'internal scratch']
  %s0 = inlined_call_operand.vmem [shape: bf16[8,320], index: 0, kind: input, shape index: {}]
  %s1 = inlined_call_operand.vmem [shape: bf16[320,128], index: 1, kind: input, shape index: {}]
  %s2 = inlined_call_operand.vmem [shape: f32[1,128], index: 2, kind: input, shape index: {}]
  %s3 = inlined_call_operand.vmem [shape: bf16[128,128], index: 3, kind: input, shape index: {}]
  %s4 = inlined_call_operand.vmem [shape: f32[1,128], index: 4, kind: input, shape index: {}]
  %s5 = inlined_call_operand.hbm [shape: f32[8,128], index: 5, kind: output, shape index: {}]
  %s6 = sld [smem:[#allocation0]]
  $region30: #{net_forward.5} parent=0
    _
  %s8 = ssub.s32 1, %s6
  %s9 = scalar_select 0, %s8, %s6
  $region1: #{net_forward.5} parent=0
    #allocation2 [shape = 'u8[4096]{0}', space=vmem, size = 0x1000, scoped, tag = 'output window, operand 0, single buffered']
    #allocation3 [shape = 's32[1]{0}', space=sflag, size = 0x4, scoped, tag = 'scoped memory for net_forward.5']
    %10 = vsyncpa [#allocation3], 0
    // Predicated region
    $region2: #{net_forward.5} parent=1 // pred_check
      _
    $region3: #{net_forward.5} parent=1 // pred_check_branch
      %12 = sbr.rel (0) target = $region5
    $region4: #{net_forward.5} parent=1 // pred_region
      _
    $region5: #{net_forward.5} parent=1 // pred_fallthru
      _
    // Predicated region
    $region6: #{net_forward.5} parent=1 // pred_check
      _
    $region7: #{net_forward.5} parent=1 // pred_check_branch
      %14 = sbr.rel (0) target = $region9
    $region8: #{net_forward.5} parent=1 // pred_region
      _
    $region9: #{net_forward.5} parent=1 // pred_fallthru
      _
    // Predicated region
    $region10: #{net_forward.5} parent=1 // pred_check
      _
    $region11: #{net_forward.5} parent=1 // pred_check_branch
      %16 = sbr.rel (0) target = $region13
    $region12: #{net_forward.5} parent=1 // pred_region
      _
    $region13: #{net_forward.5} parent=1 // pred_fallthru
      _
    // Predicated region
    $region14: #{net_forward.5} parent=1 // pred_check
      _
    $region15: #{net_forward.5} parent=1 // pred_check_branch
      %18 = sbr.rel (0) target = $region17
    $region16: #{net_forward.5} parent=1 // pred_region
      _
    $region17: #{net_forward.5} parent=1 // pred_fallthru
      _
    // Predicated region
    $region18: #{net_forward.5} parent=1 // pred_check
      _
    $region19: #{net_forward.5} parent=1 // pred_check_branch
      %20 = sbr.rel (0) target = $region21
    $region20: #{net_forward.5} parent=1 // pred_region
      _
    $region21: #{net_forward.5} parent=1 // pred_fallthru
      _
    %v22 = vld [vmem:[%s0] sm:$0xff]
    %v23 = vld [vmem:[%s0 + $0x8] sm:$0xf]
    %v24 = vld [vmem:[%s1] sm:$0xf]
    %v25 = vld [vmem:[%s1 + $0x4] sm:$0xf]
    %v26 = vld [vmem:[%s1 + $0x8] sm:$0xf]
    %v27 = vld [vmem:[%s1 + $0xc] sm:$0xf]
    %v28 = vld [vmem:[%s1 + $0x10] sm:$0xf]
    %v29 = vld [vmem:[%s1 + $0x14] sm:$0xf]
    %v30 = vld [vmem:[%s1 + $0x18] sm:$0xf]
    %v31 = vld [vmem:[%s1 + $0x1c] sm:$0xf]
    %v32 = vld [vmem:[%s1 + $0x20] sm:$0xf]
    %v33 = vld [vmem:[%s1 + $0x24] sm:$0xf]
    %v34 = vld [vmem:[%s1 + $0x28] sm:$0xf]
    %v35 = vld [vmem:[%s1 + $0x2c] sm:$0xf]
    %v36 = vld [vmem:[%s1 + $0x30] sm:$0xf]
    %v37 = vld [vmem:[%s1 + $0x34] sm:$0xf]
    %v38 = vld [vmem:[%s1 + $0x38] sm:$0xf]
    %v39 = vld [vmem:[%s1 + $0x3c] sm:$0xf]
    %v40 = vld [vmem:[%s1 + $0x40] sm:$0xf]
    %v41 = vld [vmem:[%s1 + $0x44] sm:$0xf]
    %v42 = vld [vmem:[%s1 + $0x48] sm:$0xf]
    %v43 = vld [vmem:[%s1 + $0x4c] sm:$0xf]
    %v44 = vld [vmem:[%s1 + $0x50] sm:$0xf]
    %v45 = vld [vmem:[%s1 + $0x54] sm:$0xf]
    %v46 = vld [vmem:[%s1 + $0x58] sm:$0xf]
    %v47 = vld [vmem:[%s1 + $0x5c] sm:$0xf]
    %v48 = vld [vmem:[%s1 + $0x60] sm:$0xf]
    %v49 = vld [vmem:[%s1 + $0x64] sm:$0xf]
    %v50 = vld [vmem:[%s1 + $0x68] sm:$0xf]
    %v51 = vld [vmem:[%s1 + $0x6c] sm:$0xf]
    %v52 = vld [vmem:[%s1 + $0x70] sm:$0xf]
    %v53 = vld [vmem:[%s1 + $0x74] sm:$0xf]
    %v54 = vld [vmem:[%s1 + $0x78] sm:$0xf]
    %v55 = vld [vmem:[%s1 + $0x7c] sm:$0xf]
    %v56 = vld [vmem:[%s1 + $0x80] sm:$0xf]
    %v57 = vld [vmem:[%s1 + $0x84] sm:$0xf]
    %v58 = vld [vmem:[%s1 + $0x88] sm:$0xf]
    %v59 = vld [vmem:[%s1 + $0x8c] sm:$0xf]
    %v60 = vld [vmem:[%s1 + $0x90] sm:$0xf]
    %v61 = vld [vmem:[%s1 + $0x94] sm:$0xf]
    %v62 = vld [vmem:[%s1 + $0x98] sm:$0xf]
    %v63 = vld [vmem:[%s1 + $0x9c] sm:$0xf]
    %v64 = vld [vmem:[%s2] sm:$0x1]
    %v66 = vlaneseq
    %v67 = vshrl.u32 %v66, 7
    %v68 = vsub.s32 0, %v67
    %v69 = vrot.slane %v64, %v68
    %v73 = vunpack.c.l.b16 %v22
    %v74 = vunpack.c.h.b16 %v22
    %v75 = vunpack.c.l.b16 %v23
    %v76 = vpack.c.b16 %v73, %v73
    %v77 = vpack.c.b16 %v74, %v74
    %v78 = vpack.c.b16 %v75, %v75
    %v121 = vunpack.c.l.b16 %v24
    %v122 = vunpack.c.l.b16 %v25
    %v123 = vunpack.c.l.b16 %v26
    %v124 = vunpack.c.l.b16 %v27
    %v125 = vunpack.c.l.b16 %v28
    %v126 = vunpack.c.l.b16 %v29
    %v127 = vunpack.c.l.b16 %v30
    %v128 = vunpack.c.l.b16 %v31
    %v129 = vunpack.c.l.b16 %v32
    %v130 = vunpack.c.l.b16 %v33
    %v131 = vunpack.c.l.b16 %v34
    %v132 = vunpack.c.l.b16 %v35
    %v133 = vunpack.c.l.b16 %v36
    %v134 = vunpack.c.l.b16 %v37
    %v135 = vunpack.c.l.b16 %v38
    %v136 = vunpack.c.l.b16 %v39
    %v137 = vunpack.c.l.b16 %v40
    %v138 = vunpack.c.l.b16 %v41
    %v139 = vunpack.c.l.b16 %v42
    %v140 = vunpack.c.l.b16 %v43
    %v141 = vunpack.c.l.b16 %v44
    %v142 = vunpack.c.l.b16 %v45
    %v143 = vunpack.c.l.b16 %v46
    %v144 = vunpack.c.l.b16 %v47
    %v145 = vunpack.c.l.b16 %v48
    %v146 = vunpack.c.l.b16 %v49
    %v147 = vunpack.c.l.b16 %v50
    %v148 = vunpack.c.l.b16 %v51
    %v149 = vunpack.c.l.b16 %v52
    %v150 = vunpack.c.l.b16 %v53
    %v151 = vunpack.c.l.b16 %v54
    %v152 = vunpack.c.l.b16 %v55
    %v153 = vunpack.c.l.b16 %v56
    %v154 = vunpack.c.l.b16 %v57
    %v155 = vunpack.c.l.b16 %v58
    %v156 = vunpack.c.l.b16 %v59
    %v157 = vunpack.c.l.b16 %v60
    %v158 = vunpack.c.l.b16 %v61
    %v159 = vunpack.c.l.b16 %v62
    %v160 = vunpack.c.l.b16 %v63
    %v161 = vpack.c.b16 %v122, %v121
    %v162 = vpack.c.b16 %v124, %v123
    %v163 = vpack.c.b16 %v126, %v125
    %v164 = vpack.c.b16 %v128, %v127
    %v165 = vpack.c.b16 %v130, %v129
    %v166 = vpack.c.b16 %v132, %v131
    %v167 = vpack.c.b16 %v134, %v133
    %v168 = vpack.c.b16 %v136, %v135
    %v169 = vpack.c.b16 %v138, %v137
    %v170 = vpack.c.b16 %v140, %v139
    %v171 = vpack.c.b16 %v142, %v141
    %v172 = vpack.c.b16 %v144, %v143
    %v173 = vpack.c.b16 %v146, %v145
    %v174 = vpack.c.b16 %v148, %v147
    %v175 = vpack.c.b16 %v150, %v149
    %v176 = vpack.c.b16 %v152, %v151
    %v177 = vpack.c.b16 %v154, %v153
    %v178 = vpack.c.b16 %v156, %v155
    %v179 = vpack.c.b16 %v158, %v157
    %v180 = vpack.c.b16 %v160, %v159
    %vm201 = vcmask 523264
    %v203 = vsel %vm201, %v78, 0
    %205 = vmatprep.subr.bf16.mxu0 0
    %206 = vmatpush1.bf16.msra.mxu0 %v161
    %207 = vmatprep.subr.bf16.mxu0 0
    %208 = vmatpush1.bf16.msra.mxu0 %v162
    %209 = vmatprep.subr.bf16.mxu0 0
    %210 = vmatpush1.bf16.msra.mxu0 %v163
    %211 = vmatprep.subr.bf16.mxu0 0
    %212 = vmatpush1.bf16.msra.mxu0 %v164
    %213 = vmatprep.subr.bf16.mxu0 0
    %214 = vmatpush1.bf16.msra.mxu0 %v165
    %215 = vmatprep.subr.bf16.mxu0 0
    %216 = vmatpush1.bf16.msra.mxu0 %v166
    %217 = vmatprep.subr.bf16.mxu0 0
    %218 = vmatpush1.bf16.msra.mxu0 %v167
    %219 = vmatprep.subr.bf16.mxu0 0
    %220 = vmatpush1.bf16.msra.mxu0 %v168
    %221 = vmatprep.subr.bf16.mxu0 0
    %222 = vmatpush1.bf16.msra.mxu0 %v169
    %223 = vmatprep.subr.bf16.mxu0 0
    %224 = vmatpush1.bf16.msra.mxu0 %v170
    %225 = vmatprep.subr.bf16.mxu0 0
    %226 = vmatpush1.bf16.msra.mxu0 %v171
    %227 = vmatprep.subr.bf16.mxu0 0
    %228 = vmatpush1.bf16.msra.mxu0 %v172
    %229 = vmatprep.subr.bf16.mxu0 0
    %230 = vmatpush1.bf16.msra.mxu0 %v173
    %231 = vmatprep.subr.bf16.mxu0 0
    %232 = vmatpush1.bf16.msra.mxu0 %v174
    %233 = vmatprep.subr.bf16.mxu0 0
    %234 = vmatpush1.bf16.msra.mxu0 %v175
    %235 = vmatprep.subr.bf16.mxu0 0
    %236 = vmatpush1.bf16.msra.mxu0 %v176
    %237 = vmatprep.mubr.bf16.mxu0 %v77
    %238 = vmatmul.mubr.bf16.gmra.mrb[0].mxu0 %v76
    %v239 = vpop.f32.mrb[0].mxu0
    %v240 = vadd.f32 %v69, %v239
    %v241 = vpop.f32.mrb[0].mxu0
    %v242 = vpop.f32.mrb[0].mxu0
    %v243 = vpop.f32.mrb[0].mxu0
    %244 = vdwg.mxu0
    %245 = vmatprep.subr.bf16.mxu0 0
    %246 = vmatpush1.bf16.msra.mxu0 %v177
    %247 = vmatprep.subr.bf16.mxu0 0
    %248 = vmatpush1.bf16.msra.mxu0 %v178
    %249 = vmatprep.subr.bf16.mxu0 0
    %250 = vmatpush1.bf16.msra.mxu0 %v179
    %251 = vmatprep.subr.bf16.mxu0 0
    %252 = vmatpush1.bf16.msra.mxu0 %v180
    %253 = vmatprep.subr.bf16.mxu0 0
    %254 = vmatpush1.bf16.msra.mxu0 0
    %255 = vmatprep.subr.bf16.mxu0 0
    %256 = vmatpush1.bf16.msra.mxu0 0
    %257 = vmatprep.subr.bf16.mxu0 0
    %258 = vmatpush1.bf16.msra.mxu0 0
    %259 = vmatprep.subr.bf16.mxu0 0
    %260 = vmatpush1.bf16.msra.mxu0 0
    %261 = vmatprep.subr.bf16.mxu0 0
    %262 = vmatpush1.bf16.msra.mxu0 0
    %263 = vmatprep.subr.bf16.mxu0 0
    %264 = vmatpush1.bf16.msra.mxu0 0
    %265 = vmatprep.subr.bf16.mxu0 0
    %266 = vmatpush1.bf16.msra.mxu0 0
    %267 = vmatprep.subr.bf16.mxu0 0
    %268 = vmatpush1.bf16.msra.mxu0 0
    %269 = vmatprep.subr.bf16.mxu0 0
    %270 = vmatpush1.bf16.msra.mxu0 0
    %271 = vmatprep.subr.bf16.mxu0 0
    %272 = vmatpush1.bf16.msra.mxu0 0
    %273 = vmatprep.subr.bf16.mxu0 0
    %274 = vmatpush1.bf16.msra.mxu0 0
    %275 = vmatprep.subr.bf16.mxu0 0
    %276 = vmatpush1.bf16.msra.mxu0 0
    %277 = vmatprep.mubr.bf16.mxu0 0
    %278 = vmatmul.mubr.bf16.gmra.mrb[0].mxu0 %v203
    %v279 = vpop.f32.mrb[0].mxu0
    %v280 = vadd.f32 %v240, %v279
    %v281 = vpop.f32.mrb[0].mxu0
    %v282 = vpop.f32.mrb[0].mxu0
    %v283 = vpop.f32.mrb[0].mxu0
    %284 = vdwg.mxu0
    %v285 = vmax.f32 %v280, 0.0
    %v286 = vpack.c.bf16 %v285, %v285
    %v287 = vld [vmem:[%s3] sm:$0xf]
    %v288 = vld [vmem:[%s3 + $0x4] sm:$0xf]
    %v289 = vld [vmem:[%s3 + $0x8] sm:$0xf]
    %v290 = vld [vmem:[%s3 + $0xc] sm:$0xf]
    %v291 = vld [vmem:[%s3 + $0x10] sm:$0xf]
    %v292 = vld [vmem:[%s3 + $0x14] sm:$0xf]
    %v293 = vld [vmem:[%s3 + $0x18] sm:$0xf]
    %v294 = vld [vmem:[%s3 + $0x1c] sm:$0xf]
    %v295 = vld [vmem:[%s3 + $0x20] sm:$0xf]
    %v296 = vld [vmem:[%s3 + $0x24] sm:$0xf]
    %v297 = vld [vmem:[%s3 + $0x28] sm:$0xf]
    %v298 = vld [vmem:[%s3 + $0x2c] sm:$0xf]
    %v299 = vld [vmem:[%s3 + $0x30] sm:$0xf]
    %v300 = vld [vmem:[%s3 + $0x34] sm:$0xf]
    %v301 = vld [vmem:[%s3 + $0x38] sm:$0xf]
    %v302 = vld [vmem:[%s3 + $0x3c] sm:$0xf]
    %v303 = vld [vmem:[%s4] sm:$0x1]
    %v305 = vlaneseq
    %v306 = vshrl.u32 %v305, 7
    %v307 = vsub.s32 0, %v306
    %v308 = vrot.slane %v303, %v307
    %v326 = vunpack.c.l.b16 %v287
    %v327 = vunpack.c.l.b16 %v288
    %v328 = vunpack.c.l.b16 %v289
    %v329 = vunpack.c.l.b16 %v290
    %v330 = vunpack.c.l.b16 %v291
    %v331 = vunpack.c.l.b16 %v292
    %v332 = vunpack.c.l.b16 %v293
    %v333 = vunpack.c.l.b16 %v294
    %v334 = vunpack.c.l.b16 %v295
    %v335 = vunpack.c.l.b16 %v296
    %v336 = vunpack.c.l.b16 %v297
    %v337 = vunpack.c.l.b16 %v298
    %v338 = vunpack.c.l.b16 %v299
    %v339 = vunpack.c.l.b16 %v300
    %v340 = vunpack.c.l.b16 %v301
    %v341 = vunpack.c.l.b16 %v302
    %v342 = vpack.c.b16 %v327, %v326
    %v343 = vpack.c.b16 %v329, %v328
    %v344 = vpack.c.b16 %v331, %v330
    %v345 = vpack.c.b16 %v333, %v332
    %v346 = vpack.c.b16 %v335, %v334
    %v347 = vpack.c.b16 %v337, %v336
    %v348 = vpack.c.b16 %v339, %v338
    %v349 = vpack.c.b16 %v341, %v340
    %358 = vmatprep.subr.bf16.mxu0 0
    %359 = vmatpush1.bf16.msra.mxu0 %v342
    %360 = vmatprep.subr.bf16.mxu0 0
    %361 = vmatpush1.bf16.msra.mxu0 %v343
    %362 = vmatprep.subr.bf16.mxu0 0
    %363 = vmatpush1.bf16.msra.mxu0 %v344
    %364 = vmatprep.subr.bf16.mxu0 0
    %365 = vmatpush1.bf16.msra.mxu0 %v345
    %366 = vmatprep.subr.bf16.mxu0 0
    %367 = vmatpush1.bf16.msra.mxu0 %v346
    %368 = vmatprep.subr.bf16.mxu0 0
    %369 = vmatpush1.bf16.msra.mxu0 %v347
    %370 = vmatprep.subr.bf16.mxu0 0
    %371 = vmatpush1.bf16.msra.mxu0 %v348
    %372 = vmatprep.subr.bf16.mxu0 0
    %373 = vmatpush1.bf16.msra.mxu0 %v349
    %374 = vmatprep.subr.bf16.mxu0 0
    %375 = vmatpush1.bf16.msra.mxu0 0
    %376 = vmatprep.subr.bf16.mxu0 0
    %377 = vmatpush1.bf16.msra.mxu0 0
    %378 = vmatprep.subr.bf16.mxu0 0
    %379 = vmatpush1.bf16.msra.mxu0 0
    %380 = vmatprep.subr.bf16.mxu0 0
    %381 = vmatpush1.bf16.msra.mxu0 0
    %382 = vmatprep.subr.bf16.mxu0 0
    %383 = vmatpush1.bf16.msra.mxu0 0
    %384 = vmatprep.subr.bf16.mxu0 0
    %385 = vmatpush1.bf16.msra.mxu0 0
    %386 = vmatprep.subr.bf16.mxu0 0
    %387 = vmatpush1.bf16.msra.mxu0 0
    %388 = vmatprep.subr.bf16.mxu0 0
    %389 = vmatpush1.bf16.msra.mxu0 0
    %390 = vmatprep.mubr.bf16.mxu0 0
    %391 = vmatmul.mubr.bf16.gmra.mrb[0].mxu0 %v286
    %v392 = vpop.f32.mrb[0].mxu0
    %v393 = vadd.f32 %v308, %v392
    %v394 = vpop.f32.mrb[0].mxu0
    %v395 = vpop.f32.mrb[0].mxu0
    %v396 = vpop.f32.mrb[0].mxu0
    %397 = vdwg.mxu0
    %v398 = vlaneseq
    %v399 = vand.u32 %v398, 127
    %vm400 = vcmp.lt.s32.totalorder %v399, 10
    %v401 = vsel %vm400, %v393, -1e+30
    %402 = vmax.xlane.f32.xlu0 %v401
    %v403 = vpop.xlane.xlu0 %402
    %v404 = vsub.f32 %v401, %v403
    %v405 = vmul.f32 %v404, 1.442695
    %v406 = vpow.pop %v405
    %407 = vadd.xlane.f32.xlu0 %v406
    %v408 = vpop.xlane.xlu0 %407
    %v409 = vlog2.pop %v408
    %v410 = vmul.f32 %v409, 0.6931472
    %v411 = vsub.f32 %v404, %v410
    %412 = vst [vmem:[#allocation2] sm:$0xff] %v411
    // Predicated region
    $region22: #{net_forward.5} parent=1 // pred_check
      _
    $region23: #{net_forward.5} parent=1 // pred_check_branch
      %414 = sbr.rel (0) target = $region25
    $region24: #{net_forward.5} parent=1 // pred_region
      %s416 = ssub.s32 128, 128
      %417 = vsyncadd [#allocation3], %s416
      %s419 = sshll.u32 [#allocation2], 4
      %s420 = int_to_ptr.vmem [resolvable:$true] %s419
      %422 = dma.vmem_to_hbm [thread:$0]  %s420, 128, %s5, [#allocation3]
    $region25: #{net_forward.5} parent=1 // pred_fallthru
      _
    // Predicated region
    $region26: #{net_forward.5} parent=1 // pred_check
      _
    $region27: #{net_forward.5} parent=1 // pred_check_branch
      %424 = sbr.rel (0) target = $region29
    $region28: #{net_forward.5} parent=1 // pred_region
      %425 = dma.done [#allocation3], 128
    $region29: #{net_forward.5} parent=1 // pred_fallthru
      _
    %426 = vsyncpa [#allocation3], 1

</llo_original>
